<compile_context>
chip_gen: v7x
topology: tpu7x:2x2x1
jax: 0.10.0
libtpu: 0.0.40
codegen_flags: <defaults>
</compile_context>

<pallas_src>
import functools

import jax
import jax.numpy as jnp
from jax.experimental import pallas as pl
from jax.experimental.pallas import tpu as pltpu

# Full-precision f32 matmuls for the host-side parameter folding, the pure-JAX reference and the
# in-kernel dots, so the correctness comparison is meaningful.
jax.config.update("jax_default_matmul_precision", "highest")


# ---------------------------------------------------------------------------------------------
# Kernel
# ---------------------------------------------------------------------------------------------
def make_kernel(*, num_nodes, num_edges, edge_dim, heads, out_dim):
    N, E = num_nodes, num_edges
    E_aug = E + N                      # real edges + one self loop per node (GATConv add_self_loops)
    H, C = heads, out_dim
    HC = H * C
    qh = edge_dim // 2
    K1 = edge_dim + 4                  # operand width of the fused stage-1 edge matmul
    f32 = jnp.float32

    def kernel(x_ref, ep_ref, gsc_ref, gsct_ref, wx_ref, ws_ref, wf_ref, b_ref, out_ref):
        # ---- unpack the few packed inputs (static slices are free) ----
        x = x_ref[0]                           # [N, in_dim]
        ep = ep_ref[0]                         # [E_aug, edge_dim+4+1] = [edge_attr | quality_raw | mask]
        gsc = gsc_ref[0]                       # [E_aug, 2N]           = [P_src | P_dst] one-hots
        gt = gsct_ref[0]                       # [N, E_aug+1]          = [P_dst^T | 1/in_degree]
        bias = b_ref[...]                      # [1, qh+H+C]           = [bq1 | bq2e | b_final]
        bq1 = bias[:, :qh]
        bq2e = bias[:, qh:qh + H]
        b_fin = bias[:, qh + H:]

        p_src = gsc[:, :N]
        p_dst = gsc[:, N:]
        p_dst_t = gt[:, :E_aug]
        inv_deg = gt[:, E_aug:]                # [N, 1]

        # ---- node projection, one fused MXU pass: [x@W | <xW,att_src>_h | <xW,att_dst>_h] ----
        xw = jnp.dot(x, wx_ref[...], preferred_element_type=f32)            # [N, HC+2H]
        a_dst_n = xw[:, HC + H:]                                             # [N, H]

        # ---- path_quality_encoder folded into the edge-attention (H) space ----
        # stage1 = [edge_attr | q_raw] @ [[W_edge@M_att_edge, 0], [0, Wq1]]   (one matmul, shared operand)
        stage1 = jnp.dot(ep[:, :K1], ws_ref[:K1, :H + qh], preferred_element_type=f32)
        ae_direct = stage1[:, :H]                                            # edge_attr attention term
        h_q = jnp.maximum(stage1[:, H:] + bq1, 0.0)                          # ReLU(q @ Wq1 + bq1)
        q_att = jnp.dot(h_q, ws_ref[K1:, H + qh:], preferred_element_type=f32) + bq2e
        q_mask = ep[:, K1:K1 + 1]                                            # 0: no path info / self-loop row
        ae_real = ae_direct + q_mask * q_att                                 # [E_aug, H]; self-loop rows = 0

        # ---- add_self_loops(fill_value='mean'): mean of incoming enhanced attrs, which (by linearity)
        #      equals the mean of the per-edge attention terms of the incoming real edges ----
        row = jax.lax.broadcasted_iota(jnp.int32, (E_aug, 1), 0)
        is_real = (row < E).astype(f32)                                      # [E_aug, 1]
        is_real_row = (jax.lax.broadcasted_iota(jnp.int32, (1, E_aug), 1) < E).astype(f32)
        mean_ae_n = jnp.dot(p_dst_t * is_real_row, ae_real,
                            preferred_element_type=f32) * inv_deg            # [N, H]

        # ---- gather node-side terms to edges (shared-operand fused gather) ----
        gathered = jnp.dot(p_src, xw[:, :HC + H], preferred_element_type=f32)  # [E_aug, HC+H]
        xs_e = gathered[:, :HC]                                              # x_j (source features)
        a_src_e = gathered[:, HC:]                                           # alpha_src[j]
        a_dst_e = jnp.dot(p_dst, a_dst_n, preferred_element_type=f32)        # alpha_dst[i]
        ae_loop_e = jnp.dot(p_dst, mean_ae_n, preferred_element_type=f32)
        ae = ae_real + (1.0 - is_real) * ae_loop_e                           # fill self-loop rows

        # ---- attention logits -> LeakyReLU(0.2) -> per-destination softmax ----
        alpha = a_src_e + a_dst_e + ae
        alpha = jnp.where(alpha > 0, alpha, 0.2 * alpha)
        # a per-head global max is a valid (group-constant) shift for the segment softmax
        alpha = alpha - jnp.max(alpha, axis=0, keepdims=True)
        ex = jnp.exp(alpha)
        den_n = jnp.dot(p_dst_t, ex, preferred_element_type=f32)             # segment-sum over dst
        den_e = jnp.dot(p_dst, den_n, preferred_element_type=f32)            # gather back to edges
        attn = ex * pl.reciprocal(den_e)        # attention Dropout(0.1): identity in eval mode

        # ---- weighted message aggregation ----
        # expand per-head attn over that head's C channels (iota-built selector, no extra DMA)
        r_row = jax.lax.broadcasted_iota(jnp.int32, (H, HC), 0)
        r_col = jax.lax.broadcasted_iota(jnp.int32, (H, HC), 1)
        rexp = ((r_col >= r_row * C) & (r_col < (r_row + 1) * C)).astype(f32)   # [H, HC]
        msg = xs_e * jnp.dot(attn, rexp, preferred_element_type=f32)         # [E_aug, HC]
        out_n = jnp.dot(p_dst_t, msg, preferred_element_type=f32)            # [N, HC]

        # ---- head-mean + GAT bias + constraint_awareness, all folded into one matmul + bias ----
        # relu(out_n @ (M_avg @ W_ca1) + (b_gat @ W_ca1 + net_state @ W_ca2 + b_ca)); Dropout = identity
        y = jnp.dot(out_n, wf_ref[...], preferred_element_type=f32) + b_fin
        out_ref[0] = jnp.maximum(y, 0.0)

    return kernel


# ---------------------------------------------------------------------------------------------
# Host-side plumbing: parameter folding (done once) and dense graph-structure packing
# ---------------------------------------------------------------------------------------------
def pack_params(params, network_state, *, heads):
    p = params
    H = heads
    C = p["b_gat"].shape[0]
    edge_dim = p["w_edge"].shape[0]
    HC = H * C
    qh = edge_dim // 2
    K1 = edge_dim + 4
    eye_h = jnp.eye(H, dtype=jnp.float32)

    def att_mat(att):            # [H, C] -> [HC, H]: per-head dot with att, as a matmul
        return (att[:, :, None] * eye_h[:, None, :]).reshape(HC, H)

    m_src, m_dst, m_edge = att_mat(p["att_src"]), att_mat(p["att_dst"]), att_mat(p["att_edge"])

    # fused node weight: ONE matmul gives x@W, alpha_src, alpha_dst
    wx_big = jnp.concatenate([p["w_gat"], p["w_gat"] @ m_src, p["w_gat"] @ m_dst], axis=1)

    # edge path folded into attention (H) space
    w_edge_att = p["w_edge"] @ m_edge                  # [edge_dim, H]
    wq2e = p["wq2"] @ w_edge_att                       # [qh, H]
    bq2e = p["bq2"] @ w_edge_att                       # [H]

    # one small packed weight, sliced with static windows in the kernel:
    #   rows 0:edge_dim   cols 0:H      -> W_edge @ M_att_edge
    #   rows edge_dim:K1  cols H:H+qh   -> Wq1 (path_quality_encoder layer 0)
    #   rows K1:K1+qh     cols H+qh:    -> Wq2 @ (W_edge @ M_att_edge)
    w_small = jnp.zeros((K1 + qh, 2 * H + qh), jnp.float32)
    w_small = w_small.at[:edge_dim, :H].set(w_edge_att)
    w_small = w_small.at[edge_dim:K1, H:H + qh].set(p["wq1"])
    w_small = w_small.at[K1:, H + qh:].set(wq2e)

    # head-mean + GAT bias + constraint_awareness folded into one matmul + one bias row
    m_avg = jnp.tile(jnp.eye(C, dtype=jnp.float32), (H, 1)) / H        # [HC, C]
    w_ca1, w_ca2 = p["w_ca"][:C], p["w_ca"][C:]
    w_final = m_avg @ w_ca1                                            # [HC, C]
    b_final = p["b_gat"] @ w_ca1 + network_state @ w_ca2 + p["b_ca"]   # [C]

    bias_pack = jnp.concatenate([p["bq1"], bq2e, b_final])[None, :]    # [1, qh+H+C]
    return wx_big, w_small, w_final, bias_pack


def _pack_graph(edge_index, edge_attr, quality_raw, quality_mask, *, num_nodes):
    """Dense per-graph packing: edge slab + one-hot gather/scatter matrices (incl. self loops)."""
    N = num_nodes
    src, dst = edge_index[0], edge_index[1]
    E = src.shape[0]
    loops = jnp.arange(N, dtype=src.dtype)
    src_a = jnp.concatenate([src, loops])
    dst_a = jnp.concatenate([dst, loops])
    p_src = jax.nn.one_hot(src_a, N, dtype=jnp.float32)                # [E+N, N]
    p_dst = jax.nn.one_hot(dst_a, N, dtype=jnp.float32)
    gsc = jnp.concatenate([p_src, p_dst], axis=1)                      # gather orientation
    deg = jax.ops.segment_sum(jnp.ones((E,), jnp.float32), dst, num_segments=N)
    inv_deg = 1.0 / jnp.maximum(deg, 1.0)
    gsct = jnp.concatenate([p_dst.T, inv_deg[:, None]], axis=1)        # scatter orientation + 1/deg
    ep = jnp.concatenate([edge_attr, quality_raw, quality_mask[:, None]], axis=1)
    ep = jnp.concatenate([ep, jnp.zeros((N, ep.shape[1]), jnp.float32)], axis=0)  # self-loop rows
    return ep, gsc, gsct


def path_quality_aware_conv(x, edge_index, edge_attr, quality_raw, quality_mask,
                            network_state, params, *, heads):
    """Batched PathQualityAwareConv forward (eval mode, path_quality_info provided)."""
    B, N, in_dim = x.shape
    E = edge_index.shape[-1]
    edge_dim = params["w_edge"].shape[0]
    if edge_attr.shape[-1] != edge_dim:          # the module's explicit dim check
        raise ValueError(f"edge feature dim mismatch: expected {edge_dim}, got {edge_attr.shape[-1]}")
    if network_state.shape[-1] != edge_dim:
        # TODO(synk): torch adaptive-avg-pools network_state to edge_dim in this case; sizes match here.
        raise NotImplementedError("network_state length must equal edge_dim")
    out_dim = params["b_gat"].shape[0]
    H, C = heads, out_dim
    HC = H * C
    qh = edge_dim // 2
    E_aug = E + N

    # host-side plumbing: fold parameters once, pack graph structure densely
    wx_big, w_small, w_final, bias_pack = pack_params(params, network_state, heads=H)
    epack, gsc, gsct = jax.vmap(functools.partial(_pack_graph, num_nodes=N))(
        edge_index, edge_attr.astype(jnp.float32),
        quality_raw.astype(jnp.float32), quality_mask.astype(jnp.float32))

    kernel = make_kernel(num_nodes=N, num_edges=E, edge_dim=edge_dim, heads=H, out_dim=C)

    return pl.pallas_call(
        kernel,
        out_shape=jax.ShapeDtypeStruct((B, N, C), jnp.float32),
        grid=(B,),
        in_specs=[
            pl.BlockSpec((1, N, in_dim), lambda b: (b, 0, 0)),
            pl.BlockSpec((1, E_aug, edge_dim + 5), lambda b: (b, 0, 0)),
            pl.BlockSpec((1, E_aug, 2 * N), lambda b: (b, 0, 0)),
            pl.BlockSpec((1, N, E_aug + 1), lambda b: (b, 0, 0)),
            pl.BlockSpec((in_dim, HC + 2 * H), lambda b: (0, 0)),
            pl.BlockSpec((edge_dim + 4 + qh, 2 * H + qh), lambda b: (0, 0)),
            pl.BlockSpec((HC, C), lambda b: (0, 0)),
            pl.BlockSpec((1, qh + H + C), lambda b: (0, 0)),
        ],
        out_specs=pl.BlockSpec((1, N, C), lambda b: (b, 0, 0)),
        compiler_params=pltpu.CompilerParams(
            dimension_semantics=("parallel",),   # independent graphs -> megacore-shardable on v7x
        ),
    )(x.astype(jnp.float32), epack, gsc, gsct, wx_big, w_small, w_final, bias_pack)


# ---------------------------------------------------------------------------------------------
# Parameters and pure-JAX reference (unfused, faithful to the torch module in eval mode)
# ---------------------------------------------------------------------------------------------
def _uniform(key, shape, bound):
    return jax.random.uniform(key, shape, jnp.float32, -bound, bound)


def init_params(key, in_dim, out_dim, edge_dim, heads):
    H, C = heads, out_dim
    qh = edge_dim // 2
    ks = jax.random.split(key, 12)
    return dict(
        w_gat=_uniform(ks[0], (in_dim, H * C), 1.0 / in_dim ** 0.5),
        att_src=_uniform(ks[1], (H, C), 1.0 / C ** 0.5),
        att_dst=_uniform(ks[2], (H, C), 1.0 / C ** 0.5),
        w_edge=_uniform(ks[3], (edge_dim, H * C), 1.0 / edge_dim ** 0.5),
        att_edge=_uniform(ks[4], (H, C), 1.0 / C ** 0.5),
        b_gat=_uniform(ks[5], (C,), 1.0 / C ** 0.5),
        wq1=_uniform(ks[6], (4, qh), 0.5),
        bq1=_uniform(ks[7], (qh,), 0.5),
        wq2=_uniform(ks[8], (qh, edge_dim), 1.0 / qh ** 0.5),
        bq2=_uniform(ks[9], (edge_dim,), 1.0 / qh ** 0.5),
        w_ca=_uniform(ks[10], (C + edge_dim, C), 1.0 / (C + edge_dim) ** 0.5),
        b_ca=_uniform(ks[11], (C,), 1.0 / (C + edge_dim) ** 0.5),
    )


def reference_single(x, src, dst, edge_attr, q_raw, q_mask, *, net_state, params, heads):
    p = params
    N = x.shape[0]
    E = src.shape[0]
    H = heads
    C = p["b_gat"].shape[0]
    # path_quality_encoder, applied only to edges present in path_quality_matrix
    q_enc = jnp.maximum(q_raw @ p["wq1"] + p["bq1"], 0.0) @ p["wq2"] + p["bq2"]
    enhanced = edge_attr + q_mask[:, None] * q_enc
    # GATConv (add_self_loops=True, fill_value='mean', concat=False, negative_slope=0.2)
    deg = jax.ops.segment_sum(jnp.ones((E,), jnp.float32), dst, num_segments=N)
    loop_attr = jax.ops.segment_sum(enhanced, dst, num_segments=N) / jnp.maximum(deg, 1.0)[:, None]
    loops = jnp.arange(N)
    src_a = jnp.concatenate([src, loops])
    dst_a = jnp.concatenate([dst, loops])
    eattr = jnp.concatenate([enhanced, loop_attr], axis=0)
    x_lin = (x @ p["w_gat"]).reshape(N, H, C)
    a_src = (x_lin * p["att_src"][None]).sum(-1)
    a_dst = (x_lin * p["att_dst"][None]).sum(-1)
    e_lin = (eattr @ p["w_edge"]).reshape(-1, H, C)
    a_edge = (e_lin * p["att_edge"][None]).sum(-1)
    alpha = a_src[src_a] + a_dst[dst_a] + a_edge
    alpha = jnp.where(alpha > 0, alpha, 0.2 * alpha)
    amax = jax.ops.segment_max(alpha, dst_a, num_segments=N)
    ex = jnp.exp(alpha - amax[dst_a])
    den = jax.ops.segment_sum(ex, dst_a, num_segments=N)
    attn = ex / den[dst_a]
    msg = x_lin[src_a] * attn[:, :, None]
    agg = jax.ops.segment_sum(msg, dst_a, num_segments=N)
    gat_out = agg.mean(axis=1) + p["b_gat"]
    const = jnp.broadcast_to(net_state[None, :], (N, net_state.shape[0]))
    x_out = jnp.maximum(jnp.concatenate([gat_out, const], axis=-1) @ p["w_ca"] + p["b_ca"], 0.0)
    return x_out


# ---------------------------------------------------------------------------------------------
if __name__ == "__main__":
    B, N, E = 2, 12, 24
    IN_DIM, OUT_DIM, EDGE_DIM, HEADS = 16, 32, 8, 4

    root = jax.random.PRNGKey(0)
    kp, kx, ke, ka, kq, km, kn = jax.random.split(root, 7)
    params = init_params(kp, IN_DIM, OUT_DIM, EDGE_DIM, HEADS)

    x = jax.random.normal(kx, (B, N, IN_DIM), jnp.float32)
    k_src, k_off = jax.random.split(ke)
    src = jax.random.randint(k_src, (B, E), 0, N, dtype=jnp.int32)
    off = jax.random.randint(k_off, (B, E), 1, N, dtype=jnp.int32)
    dst = (src + off) % N                       # no explicit self loops (PyG remove_self_loops is a no-op)
    edge_index = jnp.stack([src, dst], axis=1)  # [B, 2, E]
    edge_attr = jax.random.normal(ka, (B, E, EDGE_DIM), jnp.float32)
    # TODO(synk): the torch dict lookups in _extract_path_quality_features happen on the host; here
    # we supply the already-normalised per-edge quality vectors and a 0/1 presence mask directly.
    quality_raw = jax.random.uniform(kq, (B, E, 4), jnp.float32)
    quality_mask = (jax.random.uniform(km, (B, E)) < 0.7).astype(jnp.float32)
    network_state = jax.random.normal(kn, (EDGE_DIM,), jnp.float32)

    fwd = jax.jit(functools.partial(path_quality_aware_conv, heads=HEADS))
    out = fwd(x, edge_index, edge_attr, quality_raw, quality_mask, network_state, params)
    out = jax.block_until_ready(out)

    ref_fn = functools.partial(reference_single, net_state=network_state, params=params, heads=HEADS)
    ref = jax.vmap(ref_fn)(x, edge_index[:, 0], edge_index[:, 1], edge_attr, quality_raw, quality_mask)

    assert out.shape == (B, N, OUT_DIM)
    max_err = float(jnp.max(jnp.abs(out - ref)))
    assert jnp.allclose(out, ref, atol=2e-4, rtol=2e-4), max_err
    print("KERNEL_OK")
</pallas_src>

<mosaic_0001>
module attributes {stable_mosaic.version = 11 : i64} {
  func.func private @main(%arg0: i32) attributes {dimension_semantics = [#tpu.dimension_semantics<core_parallel>], iteration_bounds = array<i64: 2>, tpu.core_type = #tpu.core_type<sc_scalar_subcore>, window_params = []} {
    return
  }
}

module attributes {stable_mosaic.version = 11 : i64} {
  func.func private @main(%arg0: i32) attributes {dimension_semantics = [#tpu.dimension_semantics<core_parallel>], iteration_bounds = array<i64: 2>, tpu.core_type = #tpu.core_type<sc_scalar_subcore>, window_params = []} {
    return
  }
}

module attributes {stable_mosaic.version = 11 : i64} {
  func.func @kernel(%arg0: i32, %arg1: memref<1x12x16xf32, #tpu.memory_space<vmem>>, %arg2: memref<1x36x13xf32, #tpu.memory_space<vmem>>, %arg3: memref<1x36x24xf32, #tpu.memory_space<vmem>>, %arg4: memref<1x12x37xf32, #tpu.memory_space<vmem>>, %arg5: memref<16x136xf32, #tpu.memory_space<vmem>>, %arg6: memref<16x12xf32, #tpu.memory_space<vmem>>, %arg7: memref<128x32xf32, #tpu.memory_space<vmem>>, %arg8: memref<1x40xf32, #tpu.memory_space<vmem>>, %arg9: memref<1x12x32xf32, #tpu.memory_space<vmem>>) attributes {dimension_semantics = [#tpu.dimension_semantics<parallel>], iteration_bounds = array<i64: 2>, scalar_prefetch = 0 : i64, scratch_operands = 0 : i64, tpu.core_type = #tpu.core_type<tc>, window_params = [{transform_indices = @transform_0, window_bounds = array<i64: 1, 12, 16>}, {transform_indices = @transform_1, window_bounds = array<i64: 1, 36, 13>}, {transform_indices = @transform_2, window_bounds = array<i64: 1, 36, 24>}, {transform_indices = @transform_3, window_bounds = array<i64: 1, 12, 37>}, {pipeline_mode = #tpu.pipeline_mode<synchronous>, transform_indices = @transform_4, window_bounds = array<i64: 16, 136>}, {pipeline_mode = #tpu.pipeline_mode<synchronous>, transform_indices = @transform_5, window_bounds = array<i64: 16, 12>}, {pipeline_mode = #tpu.pipeline_mode<synchronous>, transform_indices = @transform_6, window_bounds = array<i64: 128, 32>}, {pipeline_mode = #tpu.pipeline_mode<synchronous>, transform_indices = @transform_7, window_bounds = array<i64: 1, 40>}, {transform_indices = @transform_8, window_bounds = array<i64: 1, 12, 32>}]} {
    %c0 = arith.constant 0 : index
    %c0_0 = arith.constant 0 : index
    %c0_1 = arith.constant 0 : index
    %0 = vector.load %arg1[%c0, %c0_0, %c0_1] : memref<1x12x16xf32, #tpu.memory_space<vmem>>, vector<1x12x16xf32>
    %1 = vector.shape_cast %0 : vector<1x12x16xf32> to vector<12x16xf32>
    %c0_2 = arith.constant 0 : index
    %c0_3 = arith.constant 0 : index
    %c0_4 = arith.constant 0 : index
    %2 = vector.load %arg2[%c0_2, %c0_3, %c0_4] : memref<1x36x13xf32, #tpu.memory_space<vmem>>, vector<1x36x13xf32>
    %3 = vector.shape_cast %2 : vector<1x36x13xf32> to vector<36x13xf32>
    %c0_5 = arith.constant 0 : index
    %c0_6 = arith.constant 0 : index
    %c0_7 = arith.constant 0 : index
    %4 = vector.load %arg3[%c0_5, %c0_6, %c0_7] : memref<1x36x24xf32, #tpu.memory_space<vmem>>, vector<1x36x24xf32>
    %5 = vector.shape_cast %4 : vector<1x36x24xf32> to vector<36x24xf32>
    %c0_8 = arith.constant 0 : index
    %c0_9 = arith.constant 0 : index
    %c0_10 = arith.constant 0 : index
    %6 = vector.load %arg4[%c0_8, %c0_9, %c0_10] : memref<1x12x37xf32, #tpu.memory_space<vmem>>, vector<1x12x37xf32>
    %7 = vector.shape_cast %6 : vector<1x12x37xf32> to vector<12x37xf32>
    %c0_11 = arith.constant 0 : index
    %c0_12 = arith.constant 0 : index
    %8 = vector.load %arg8[%c0_11, %c0_12] : memref<1x40xf32, #tpu.memory_space<vmem>>, vector<1x40xf32>
    %9 = vector.extract_strided_slice %8 {offsets = [0, 0], sizes = [1, 4], strides = [1, 1]} : vector<1x40xf32> to vector<1x4xf32>
    %10 = vector.extract_strided_slice %8 {offsets = [0, 4], sizes = [1, 4], strides = [1, 1]} : vector<1x40xf32> to vector<1x4xf32>
    %11 = vector.extract_strided_slice %8 {offsets = [0, 8], sizes = [1, 32], strides = [1, 1]} : vector<1x40xf32> to vector<1x32xf32>
    %12 = vector.extract_strided_slice %5 {offsets = [0, 0], sizes = [36, 12], strides = [1, 1]} : vector<36x24xf32> to vector<36x12xf32>
    %13 = vector.extract_strided_slice %5 {offsets = [0, 12], sizes = [36, 12], strides = [1, 1]} : vector<36x24xf32> to vector<36x12xf32>
    %14 = vector.extract_strided_slice %7 {offsets = [0, 0], sizes = [12, 36], strides = [1, 1]} : vector<12x37xf32> to vector<12x36xf32>
    %15 = vector.extract_strided_slice %7 {offsets = [0, 36], sizes = [12, 1], strides = [1, 1]} : vector<12x37xf32> to vector<12x1xf32>
    %c0_13 = arith.constant 0 : index
    %c0_14 = arith.constant 0 : index
    %16 = vector.load %arg5[%c0_13, %c0_14] : memref<16x136xf32, #tpu.memory_space<vmem>>, vector<16x136xf32>
    %cst = arith.constant dense<0.000000e+00> : vector<12x136xf32>
    %17 = tpu.matmul %1, %16, %cst {dimension_numbers = #tpu.dot_dimension_numbers<[1], [0], [0], [1], [0, 0, 1, 1], [], []>, precision = #tpu.contract_precision<fp32>} : vector<12x16xf32>, vector<16x136xf32>, vector<12x136xf32> -> vector<12x136xf32>
    %18 = vector.extract_strided_slice %17 {offsets = [0, 132], sizes = [12, 4], strides = [1, 1]} : vector<12x136xf32> to vector<12x4xf32>
    %19 = vector.extract_strided_slice %3 {offsets = [0, 0], sizes = [36, 12], strides = [1, 1]} : vector<36x13xf32> to vector<36x12xf32>
    %c0_15 = arith.constant 0 : index
    %c0_16 = arith.constant 0 : index
    %20 = vector.load %arg6[%c0_15, %c0_16] : memref<16x12xf32, #tpu.memory_space<vmem>>, vector<12x8xf32>
    %cst_17 = arith.constant dense<0.000000e+00> : vector<36x8xf32>
    %21 = tpu.matmul %19, %20, %cst_17 {dimension_numbers = #tpu.dot_dimension_numbers<[1], [0], [0], [1], [0, 0, 1, 1], [], []>, precision = #tpu.contract_precision<fp32>} : vector<36x12xf32>, vector<12x8xf32>, vector<36x8xf32> -> vector<36x8xf32>
    %22 = vector.extract_strided_slice %21 {offsets = [0, 0], sizes = [36, 4], strides = [1, 1]} : vector<36x8xf32> to vector<36x4xf32>
    %23 = vector.extract_strided_slice %21 {offsets = [0, 4], sizes = [36, 4], strides = [1, 1]} : vector<36x8xf32> to vector<36x4xf32>
    %24 = vector.broadcast %9 : vector<1x4xf32> to vector<36x4xf32>
    %25 = arith.addf %23, %24 : vector<36x4xf32>
    %cst_18 = arith.constant 0.000000e+00 : f32
    %26 = vector.broadcast %cst_18 : f32 to vector<36x4xf32>
    %27 = arith.maximumf %25, %26 : vector<36x4xf32>
    %c12 = arith.constant 12 : index
    %c8 = arith.constant 8 : index
    %28 = vector.load %arg6[%c12, %c8] : memref<16x12xf32, #tpu.memory_space<vmem>>, vector<4x4xf32>
    %cst_19 = arith.constant dense<0.000000e+00> : vector<36x4xf32>
    %29 = tpu.matmul %27, %28, %cst_19 {dimension_numbers = #tpu.dot_dimension_numbers<[1], [0], [0], [1], [0, 0, 1, 1], [], []>, precision = #tpu.contract_precision<fp32>} : vector<36x4xf32>, vector<4x4xf32>, vector<36x4xf32> -> vector<36x4xf32>
    %30 = vector.broadcast %10 : vector<1x4xf32> to vector<36x4xf32>
    %31 = arith.addf %29, %30 : vector<36x4xf32>
    %32 = vector.extract_strided_slice %3 {offsets = [0, 12], sizes = [36, 1], strides = [1, 1]} : vector<36x13xf32> to vector<36x1xf32>
    %33 = vector.broadcast %32 : vector<36x1xf32> to vector<36x4xf32>
    %34 = arith.mulf %33, %31 : vector<36x4xf32>
    %35 = arith.addf %22, %34 : vector<36x4xf32>
    %36 = tpu.iota {dimensions = array<i32: 0>} : vector<36x1xi32>
    %c24_i32 = arith.constant 24 : i32
    %37 = vector.broadcast %c24_i32 : i32 to vector<36x1xi32>
    %38 = arith.cmpi slt, %36, %37 : vector<36x1xi32>
    %39 = arith.extui %38 : vector<36x1xi1> to vector<36x1xi32>
    %40 = arith.sitofp %39 : vector<36x1xi32> to vector<36x1xf32>
    %41 = tpu.iota {dimensions = array<i32: 1>} : vector<1x36xi32>
    %c24_i32_20 = arith.constant 24 : i32
    %42 = vector.broadcast %c24_i32_20 : i32 to vector<1x36xi32>
    %43 = arith.cmpi slt, %41, %42 : vector<1x36xi32>
    %44 = arith.extui %43 : vector<1x36xi1> to vector<1x36xi32>
    %45 = arith.sitofp %44 : vector<1x36xi32> to vector<1x36xf32>
    %46 = vector.broadcast %45 : vector<1x36xf32> to vector<12x36xf32>
    %47 = arith.mulf %14, %46 : vector<12x36xf32>
    %cst_21 = arith.constant dense<0.000000e+00> : vector<12x4xf32>
    %48 = tpu.matmul %47, %35, %cst_21 {dimension_numbers = #tpu.dot_dimension_numbers<[1], [0], [0], [1], [0, 0, 1, 1], [], []>, precision = #tpu.contract_precision<fp32>} : vector<12x36xf32>, vector<36x4xf32>, vector<12x4xf32> -> vector<12x4xf32>
    %49 = vector.broadcast %15 : vector<12x1xf32> to vector<12x4xf32>
    %50 = arith.mulf %48, %49 : vector<12x4xf32>
    %51 = vector.extract_strided_slice %17 {offsets = [0, 0], sizes = [12, 132], strides = [1, 1]} : vector<12x136xf32> to vector<12x132xf32>
    %cst_22 = arith.constant dense<0.000000e+00> : vector<36x132xf32>
    %52 = tpu.matmul %12, %51, %cst_22 {dimension_numbers = #tpu.dot_dimension_numbers<[1], [0], [0], [1], [0, 0, 1, 1], [], []>, precision = #tpu.contract_precision<fp32>} : vector<36x12xf32>, vector<12x132xf32>, vector<36x132xf32> -> vector<36x132xf32>
    %53 = vector.extract_strided_slice %52 {offsets = [0, 0], sizes = [36, 128], strides = [1, 1]} : vector<36x132xf32> to vector<36x128xf32>
    %54 = vector.extract_strided_slice %52 {offsets = [0, 128], sizes = [36, 4], strides = [1, 1]} : vector<36x132xf32> to vector<36x4xf32>
    %cst_23 = arith.constant dense<0.000000e+00> : vector<36x4xf32>
    %55 = tpu.matmul %13, %18, %cst_23 {dimension_numbers = #tpu.dot_dimension_numbers<[1], [0], [0], [1], [0, 0, 1, 1], [], []>, precision = #tpu.contract_precision<fp32>} : vector<36x12xf32>, vector<12x4xf32>, vector<36x4xf32> -> vector<36x4xf32>
    %cst_24 = arith.constant dense<0.000000e+00> : vector<36x4xf32>
    %56 = tpu.matmul %13, %50, %cst_24 {dimension_numbers = #tpu.dot_dimension_numbers<[1], [0], [0], [1], [0, 0, 1, 1], [], []>, precision = #tpu.contract_precision<fp32>} : vector<36x12xf32>, vector<12x4xf32>, vector<36x4xf32> -> vector<36x4xf32>
    %cst_25 = arith.constant 1.000000e+00 : f32
    %57 = vector.broadcast %cst_25 : f32 to vector<36x1xf32>
    %58 = arith.subf %57, %40 : vector<36x1xf32>
    %59 = vector.broadcast %58 : vector<36x1xf32> to vector<36x4xf32>
    %60 = arith.mulf %59, %56 : vector<36x4xf32>
    %61 = arith.addf %35, %60 : vector<36x4xf32>
    %62 = arith.addf %54, %55 : vector<36x4xf32>
    %63 = arith.addf %62, %61 : vector<36x4xf32>
    %cst_26 = arith.constant 0.000000e+00 : f32
    %64 = vector.broadcast %cst_26 : f32 to vector<36x4xf32>
    %65 = arith.cmpf ogt, %63, %64 : vector<36x4xf32>
    %cst_27 = arith.constant 2.000000e-01 : f32
    %66 = vector.broadcast %cst_27 : f32 to vector<36x4xf32>
    %67 = arith.mulf %66, %63 : vector<36x4xf32>
    %68 = arith.select %65, %63, %67 : vector<36x4xi1>, vector<36x4xf32>
    %cst_28 = arith.constant dense<0xFF800000> : vector<4xf32>
    %69 = vector.multi_reduction <maximumf>, %68, %cst_28 [0] : vector<36x4xf32> to vector<4xf32>
    %70 = vector.shape_cast %69 : vector<4xf32> to vector<1x4xf32>
    %71 = vector.broadcast %70 : vector<1x4xf32> to vector<36x4xf32>
    %72 = arith.subf %68, %71 : vector<36x4xf32>
    %73 = math.exp %72 : vector<36x4xf32>
    %cst_29 = arith.constant dense<0.000000e+00> : vector<12x4xf32>
    %74 = tpu.matmul %14, %73, %cst_29 {dimension_numbers = #tpu.dot_dimension_numbers<[1], [0], [0], [1], [0, 0, 1, 1], [], []>, precision = #tpu.contract_precision<fp32>} : vector<12x36xf32>, vector<36x4xf32>, vector<12x4xf32> -> vector<12x4xf32>
    %cst_30 = arith.constant dense<0.000000e+00> : vector<36x4xf32>
    %75 = tpu.matmul %13, %74, %cst_30 {dimension_numbers = #tpu.dot_dimension_numbers<[1], [0], [0], [1], [0, 0, 1, 1], [], []>, precision = #tpu.contract_precision<fp32>} : vector<36x12xf32>, vector<12x4xf32>, vector<36x4xf32> -> vector<36x4xf32>
    %76 = tpu.reciprocal %75 : vector<36x4xf32> -> vector<36x4xf32>
    %77 = arith.mulf %73, %76 : vector<36x4xf32>
    %78 = tpu.iota {dimensions = array<i32: 0>} : vector<4x128xi32>
    %79 = tpu.iota {dimensions = array<i32: 1>} : vector<4x128xi32>
    %c32_i32 = arith.constant 32 : i32
    %80 = vector.broadcast %c32_i32 : i32 to vector<4x128xi32>
    %81 = arith.muli %78, %80 : vector<4x128xi32>
    %82 = arith.cmpi sge, %79, %81 : vector<4x128xi32>
    %c1_i32 = arith.constant 1 : i32
    %83 = vector.broadcast %c1_i32 : i32 to vector<4x128xi32>
    %84 = arith.addi %78, %83 : vector<4x128xi32>
    %c32_i32_31 = arith.constant 32 : i32
    %85 = vector.broadcast %c32_i32_31 : i32 to vector<4x128xi32>
    %86 = arith.muli %84, %85 : vector<4x128xi32>
    %87 = arith.cmpi slt, %79, %86 : vector<4x128xi32>
    %88 = arith.andi %82, %87 : vector<4x128xi1>
    %89 = arith.extui %88 : vector<4x128xi1> to vector<4x128xi32>
    %90 = arith.sitofp %89 : vector<4x128xi32> to vector<4x128xf32>
    %cst_32 = arith.constant dense<0.000000e+00> : vector<36x128xf32>
    %91 = tpu.matmul %77, %90, %cst_32 {dimension_numbers = #tpu.dot_dimension_numbers<[1], [0], [0], [1], [0, 0, 1, 1], [], []>, precision = #tpu.contract_precision<fp32>} : vector<36x4xf32>, vector<4x128xf32>, vector<36x128xf32> -> vector<36x128xf32>
    %92 = arith.mulf %53, %91 : vector<36x128xf32>
    %cst_33 = arith.constant dense<0.000000e+00> : vector<12x128xf32>
    %93 = tpu.matmul %14, %92, %cst_33 {dimension_numbers = #tpu.dot_dimension_numbers<[1], [0], [0], [1], [0, 0, 1, 1], [], []>, precision = #tpu.contract_precision<fp32>} : vector<12x36xf32>, vector<36x128xf32>, vector<12x128xf32> -> vector<12x128xf32>
    %c0_34 = arith.constant 0 : index
    %c0_35 = arith.constant 0 : index
    %94 = vector.load %arg7[%c0_34, %c0_35] : memref<128x32xf32, #tpu.memory_space<vmem>>, vector<128x32xf32>
    %cst_36 = arith.constant dense<0.000000e+00> : vector<12x32xf32>
    %95 = tpu.matmul %93, %94, %cst_36 {dimension_numbers = #tpu.dot_dimension_numbers<[1], [0], [0], [1], [0, 0, 1, 1], [], []>, precision = #tpu.contract_precision<fp32>} : vector<12x128xf32>, vector<128x32xf32>, vector<12x32xf32> -> vector<12x32xf32>
    %96 = vector.broadcast %11 : vector<1x32xf32> to vector<12x32xf32>
    %97 = arith.addf %95, %96 : vector<12x32xf32>
    %cst_37 = arith.constant 0.000000e+00 : f32
    %98 = vector.broadcast %cst_37 : f32 to vector<12x32xf32>
    %99 = arith.maximumf %97, %98 : vector<12x32xf32>
    %c0_38 = arith.constant 0 : index
    %c0_39 = arith.constant 0 : index
    %c0_40 = arith.constant 0 : index
    %100 = vector.load %arg9[%c0_38, %c0_39, %c0_40] : memref<1x12x32xf32, #tpu.memory_space<vmem>>, vector<1x12x32xf32>
    %101 = vector.shape_cast %100 : vector<1x12x32xf32> to vector<12x32xf32>
    %102 = vector.shape_cast %99 : vector<12x32xf32> to vector<1x12x32xf32>
    tpu.vector_store %arg9[%c0_38, %c0_39, %c0_40], %102 {strides = array<i32>} : memref<1x12x32xf32, #tpu.memory_space<vmem>>, vector<1x12x32xf32>,
    return
  }
  func.func @transform_0(%arg0: i32) -> (i32, i32, i32) {
    %c0_i32 = arith.constant 0 : i32
    %c0_i32_0 = arith.constant 0 : i32
    %c0_i32_1 = arith.constant 0 : i32
    return %arg0, %c0_i32, %c0_i32_0 : i32, i32, i32
  }
  func.func @transform_1(%arg0: i32) -> (i32, i32, i32) {
    %c0_i32 = arith.constant 0 : i32
    %c0_i32_0 = arith.constant 0 : i32
    %c0_i32_1 = arith.constant 0 : i32
    return %arg0, %c0_i32, %c0_i32_0 : i32, i32, i32
  }
  func.func @transform_2(%arg0: i32) -> (i32, i32, i32) {
    %c0_i32 = arith.constant 0 : i32
    %c0_i32_0 = arith.constant 0 : i32
    %c0_i32_1 = arith.constant 0 : i32
    return %arg0, %c0_i32, %c0_i32_0 : i32, i32, i32
  }
  func.func @transform_3(%arg0: i32) -> (i32, i32, i32) {
    %c0_i32 = arith.constant 0 : i32
    %c0_i32_0 = arith.constant 0 : i32
    %c0_i32_1 = arith.constant 0 : i32
    return %arg0, %c0_i32, %c0_i32_0 : i32, i32, i32
  }
  func.func @transform_4(%arg0: i32) -> (i32, i32) {
    %c0_i32 = arith.constant 0 : i32
    %c0_i32_0 = arith.constant 0 : i32
    %c0_i32_1 = arith.constant 0 : i32
    return %c0_i32, %c0_i32_0 : i32, i32
  }
  func.func @transform_5(%arg0: i32) -> (i32, i32) {
    %c0_i32 = arith.constant 0 : i32
    %c0_i32_0 = arith.constant 0 : i32
    %c0_i32_1 = arith.constant 0 : i32
    return %c0_i32, %c0_i32_0 : i32, i32
  }
  func.func @transform_6(%arg0: i32) -> (i32, i32) {
    %c0_i32 = arith.constant 0 : i32
    %c0_i32_0 = arith.constant 0 : i32
    %c0_i32_1 = arith.constant 0 : i32
    return %c0_i32, %c0_i32_0 : i32, i32
  }
  func.func @transform_7(%arg0: i32) -> (i32, i32) {
    %c0_i32 = arith.constant 0 : i32
    %c0_i32_0 = arith.constant 0 : i32
    %c0_i32_1 = arith.constant 0 : i32
    return %c0_i32, %c0_i32_0 : i32, i32
  }
  func.func @transform_8(%arg0: i32) -> (i32, i32, i32) {
    %c0_i32 = arith.constant 0 : i32
    %c0_i32_0 = arith.constant 0 : i32
    %c0_i32_1 = arith.constant 0 : i32
    return %arg0, %c0_i32, %c0_i32_0 : i32, i32, i32
  }
}

</mosaic_0001>

<llo_original>
// kernel: path_quality_aware_conv.1
$region0: #{path_quality_aware_conv.1}
  #allocation0 [shape = 'u32[]', space=smem, size = 0x4, offset = 0x4, fixed_abs, tag = 'smem constant byte address 0x4 - core index']
  #allocation1 [shape = 'u32[144,128]{1,0:T(1,128)}', space=vmem, size = 0x12000, scoped, tag = 'internal scratch']
  %s0 = inlined_call_operand.vmem [shape: f32[2,12,16], index: 0, kind: input, shape index: {}]
  %s1 = inlined_call_operand.vmem [shape: f32[2,36,13], index: 1, kind: input, shape index: {}]
  %s2 = inlined_call_operand.vmem [shape: f32[2,36,24], index: 2, kind: input, shape index: {}]
  %s3 = inlined_call_operand.vmem [shape: f32[2,12,37], index: 3, kind: input, shape index: {}]
  %s4 = inlined_call_operand.vmem [shape: f32[16,136], index: 4, kind: input, shape index: {}]
  %s5 = inlined_call_operand.vmem [shape: f32[16,12], index: 5, kind: input, shape index: {}]
  %s6 = inlined_call_operand.vmem [shape: f32[128,32], index: 6, kind: input, shape index: {}]
  %s7 = inlined_call_operand.vmem [shape: f32[1,40], index: 7, kind: input, shape index: {}]
  %s8 = inlined_call_operand.vmem [shape: f32[2,12,32], index: 8, kind: output, shape index: {}]
  %s9 = sld [smem:[#allocation0]]
  $region65: #{path_quality_aware_conv.1} parent=0
    _
  %s11 = ssub.s32 1, %s9
  %s12 = scalar_select 0, %s11, %s9
  loop: start=0, step=1, limit=4
  $region2: #{path_quality_aware_conv.1} parent=0 // loop_pre_header
    _
  $region3: #{path_quality_aware_conv.1} parent=0 // loop_header
    %s14 = sphi 0, %s18
    %p15 = scmp.ge.s32.totalorder %s14, 4
    %s24 = sphi 0, %s26
    %s27 = sphi 0, %s24
    %s28 = sphi 0, %s27
    %s44 = sphi 0, %s28
    %s50 = sphi 0, %s52
    %s53 = sphi 0, %s50
    %s54 = sphi 0, %s53
    %s70 = sphi 0, %s54
    %s76 = sphi 0, %s78
    %s79 = sphi 0, %s76
    %s80 = sphi 0, %s79
    %s96 = sphi 0, %s80
    %s102 = sphi 0, %s104
    %s105 = sphi 0, %s102
    %s106 = sphi 0, %s105
    %s122 = sphi 0, %s106
    %s126 = sphi 0, %s126
    %s128 = sphi 0, %s126
    %s129 = sphi 0, %s128
    %s143 = sphi 0, %s129
    %s147 = sphi 0, %s147
    %s149 = sphi 0, %s147
    %s150 = sphi 0, %s149
    %s164 = sphi 0, %s150
    %s168 = sphi 0, %s168
    %s170 = sphi 0, %s168
    %s171 = sphi 0, %s170
    %s185 = sphi 0, %s171
    %s189 = sphi 0, %s189
    %s191 = sphi 0, %s189
    %s192 = sphi 0, %s191
    %s206 = sphi 0, %s192
    %s212 = sphi 0, %s214
    %s215 = sphi 0, %s212
    %s216 = sphi 0, %s215
    %s232 = sphi 0, %s216
  $region4: #{path_quality_aware_conv.1} parent=0 // loop_header_branch
    %17 = sbr.rel (%p15) target = $region8
  $region5: #{path_quality_aware_conv.1} parent=0 // loop_body
    %s19 = ssub.s32 %s14, 1
    %s20 = ssub.s32 %s14, 2
    %s21 = sadd.s32 %s14, 1
    %s22 = ssub.s32 %s14, %s21
    %p23 = scmp.eq.s32.totalorder %s22, 0
    %s25 = sadd.s32 %s24, 1
    %s26 = scalar_select %p23, %s24, %s25
    %p29 = pneg %p23
    %p30 = scmp.eq.s32.totalorder %s14, 1
    %p31 = por %p29, %p30
    %p32 = scmp.ne.s32.totalorder %s24, %s27
    %p33 = scmp.eq.s32.totalorder %s14, 0
    %p34 = por %p32, %p33
    %p35 = scmp.ne.s32.totalorder %s24, %s27
    %p36 = scmp.eq.s32.totalorder %s19, 1
    %p37 = por %p35, %p36
    %p38 = scmp.ne.s32.totalorder %s27, %s28
    %p39 = scmp.eq.s32.totalorder %s19, 0
    %p40 = por %p38, %p39
    %p41 = scmp.ne.s32.totalorder %s27, %s28
    %p42 = scmp.eq.s32.totalorder %s20, 1
    %p43 = por %p41, %p42
    %p45 = scmp.ne.s32.totalorder %s28, %s44
    %p46 = scmp.eq.s32.totalorder %s20, 0
    %p47 = por %p45, %p46
    %s48 = ssub.s32 %s14, %s21
    %p49 = scmp.eq.s32.totalorder %s48, 0
    %s51 = sadd.s32 %s50, 1
    %s52 = scalar_select %p49, %s50, %s51
    %p55 = pneg %p49
    %p56 = scmp.eq.s32.totalorder %s14, 1
    %p57 = por %p55, %p56
    %p58 = scmp.ne.s32.totalorder %s50, %s53
    %p59 = scmp.eq.s32.totalorder %s14, 0
    %p60 = por %p58, %p59
    %p61 = scmp.ne.s32.totalorder %s50, %s53
    %p62 = scmp.eq.s32.totalorder %s19, 1
    %p63 = por %p61, %p62
    %p64 = scmp.ne.s32.totalorder %s53, %s54
    %p65 = scmp.eq.s32.totalorder %s19, 0
    %p66 = por %p64, %p65
    %p67 = scmp.ne.s32.totalorder %s53, %s54
    %p68 = scmp.eq.s32.totalorder %s20, 1
    %p69 = por %p67, %p68
    %p71 = scmp.ne.s32.totalorder %s54, %s70
    %p72 = scmp.eq.s32.totalorder %s20, 0
    %p73 = por %p71, %p72
    %s74 = ssub.s32 %s14, %s21
    %p75 = scmp.eq.s32.totalorder %s74, 0
    %s77 = sadd.s32 %s76, 1
    %s78 = scalar_select %p75, %s76, %s77
    %p81 = pneg %p75
    %p82 = scmp.eq.s32.totalorder %s14, 1
    %p83 = por %p81, %p82
    %p84 = scmp.ne.s32.totalorder %s76, %s79
    %p85 = scmp.eq.s32.totalorder %s14, 0
    %p86 = por %p84, %p85
    %p87 = scmp.ne.s32.totalorder %s76, %s79
    %p88 = scmp.eq.s32.totalorder %s19, 1
    %p89 = por %p87, %p88
    %p90 = scmp.ne.s32.totalorder %s79, %s80
    %p91 = scmp.eq.s32.totalorder %s19, 0
    %p92 = por %p90, %p91
    %p93 = scmp.ne.s32.totalorder %s79, %s80
    %p94 = scmp.eq.s32.totalorder %s20, 1
    %p95 = por %p93, %p94
    %p97 = scmp.ne.s32.totalorder %s80, %s96
    %p98 = scmp.eq.s32.totalorder %s20, 0
    %p99 = por %p97, %p98
    %s100 = ssub.s32 %s14, %s21
    %p101 = scmp.eq.s32.totalorder %s100, 0
    %s103 = sadd.s32 %s102, 1
    %s104 = scalar_select %p101, %s102, %s103
    %p107 = pneg %p101
    %p108 = scmp.eq.s32.totalorder %s14, 1
    %p109 = por %p107, %p108
    %p110 = scmp.ne.s32.totalorder %s102, %s105
    %p111 = scmp.eq.s32.totalorder %s14, 0
    %p112 = por %p110, %p111
    %p113 = scmp.ne.s32.totalorder %s102, %s105
    %p114 = scmp.eq.s32.totalorder %s19, 1
    %p115 = por %p113, %p114
    %p116 = scmp.ne.s32.totalorder %s105, %s106
    %p117 = scmp.eq.s32.totalorder %s19, 0
    %p118 = por %p116, %p117
    %p119 = scmp.ne.s32.totalorder %s105, %s106
    %p120 = scmp.eq.s32.totalorder %s20, 1
    %p121 = por %p119, %p120
    %p123 = scmp.ne.s32.totalorder %s106, %s122
    %p124 = scmp.eq.s32.totalorder %s20, 0
    %p125 = por %p123, %p124
    %s127 = sadd.s32 %s126, 1
    %p130 = scmp.eq.s32.totalorder %s14, 1
    %p131 = scmp.ne.s32.totalorder %s126, %s128
    %p132 = scmp.eq.s32.totalorder %s14, 0
    %p133 = por %p131, %p132
    %p134 = scmp.ne.s32.totalorder %s126, %s128
    %p135 = scmp.eq.s32.totalorder %s19, 1
    %p136 = por %p134, %p135
    %p137 = scmp.ne.s32.totalorder %s128, %s129
    %p138 = scmp.eq.s32.totalorder %s19, 0
    %p139 = por %p137, %p138
    %p140 = scmp.ne.s32.totalorder %s128, %s129
    %p141 = scmp.eq.s32.totalorder %s20, 1
    %p142 = por %p140, %p141
    %p144 = scmp.ne.s32.totalorder %s129, %s143
    %p145 = scmp.eq.s32.totalorder %s20, 0
    %p146 = por %p144, %p145
    %s148 = sadd.s32 %s147, 1
    %p151 = scmp.eq.s32.totalorder %s14, 1
    %p152 = scmp.ne.s32.totalorder %s147, %s149
    %p153 = scmp.eq.s32.totalorder %s14, 0
    %p154 = por %p152, %p153
    %p155 = scmp.ne.s32.totalorder %s147, %s149
    %p156 = scmp.eq.s32.totalorder %s19, 1
    %p157 = por %p155, %p156
    %p158 = scmp.ne.s32.totalorder %s149, %s150
    %p159 = scmp.eq.s32.totalorder %s19, 0
    %p160 = por %p158, %p159
    %p161 = scmp.ne.s32.totalorder %s149, %s150
    %p162 = scmp.eq.s32.totalorder %s20, 1
    %p163 = por %p161, %p162
    %p165 = scmp.ne.s32.totalorder %s150, %s164
    %p166 = scmp.eq.s32.totalorder %s20, 0
    %p167 = por %p165, %p166
    %s169 = sadd.s32 %s168, 1
    %p172 = scmp.eq.s32.totalorder %s14, 1
    %p173 = scmp.ne.s32.totalorder %s168, %s170
    %p174 = scmp.eq.s32.totalorder %s14, 0
    %p175 = por %p173, %p174
    %p176 = scmp.ne.s32.totalorder %s168, %s170
    %p177 = scmp.eq.s32.totalorder %s19, 1
    %p178 = por %p176, %p177
    %p179 = scmp.ne.s32.totalorder %s170, %s171
    %p180 = scmp.eq.s32.totalorder %s19, 0
    %p181 = por %p179, %p180
    %p182 = scmp.ne.s32.totalorder %s170, %s171
    %p183 = scmp.eq.s32.totalorder %s20, 1
    %p184 = por %p182, %p183
    %p186 = scmp.ne.s32.totalorder %s171, %s185
    %p187 = scmp.eq.s32.totalorder %s20, 0
    %p188 = por %p186, %p187
    %s190 = sadd.s32 %s189, 1
    %p193 = scmp.eq.s32.totalorder %s14, 1
    %p194 = scmp.ne.s32.totalorder %s189, %s191
    %p195 = scmp.eq.s32.totalorder %s14, 0
    %p196 = por %p194, %p195
    %p197 = scmp.ne.s32.totalorder %s189, %s191
    %p198 = scmp.eq.s32.totalorder %s19, 1
    %p199 = por %p197, %p198
    %p200 = scmp.ne.s32.totalorder %s191, %s192
    %p201 = scmp.eq.s32.totalorder %s19, 0
    %p202 = por %p200, %p201
    %p203 = scmp.ne.s32.totalorder %s191, %s192
    %p204 = scmp.eq.s32.totalorder %s20, 1
    %p205 = por %p203, %p204
    %p207 = scmp.ne.s32.totalorder %s192, %s206
    %p208 = scmp.eq.s32.totalorder %s20, 0
    %p209 = por %p207, %p208
    %s210 = ssub.s32 %s14, %s21
    %p211 = scmp.eq.s32.totalorder %s210, 0
    %s213 = sadd.s32 %s212, 1
    %s214 = scalar_select %p211, %s212, %s213
    %p217 = pneg %p211
    %p218 = scmp.eq.s32.totalorder %s14, 1
    %p219 = por %p217, %p218
    %p220 = scmp.ne.s32.totalorder %s212, %s215
    %p221 = scmp.eq.s32.totalorder %s14, 0
    %p222 = por %p220, %p221
    %p223 = scmp.ne.s32.totalorder %s212, %s215
    %p224 = scmp.eq.s32.totalorder %s19, 1
    %p225 = por %p223, %p224
    %p226 = scmp.ne.s32.totalorder %s215, %s216
    %p227 = scmp.eq.s32.totalorder %s19, 0
    %p228 = por %p226, %p227
    %p229 = scmp.ne.s32.totalorder %s215, %s216
    %p230 = scmp.eq.s32.totalorder %s20, 1
    %p231 = por %p229, %p230
    %p233 = scmp.ne.s32.totalorder %s216, %s232
    %p234 = scmp.eq.s32.totalorder %s20, 0
    %p235 = por %p233, %p234
    %p236 = scmp.le.s32.totalorder 1, %s14
    %p237 = scmp.lt.s32.totalorder %s14, 3
    %p238 = pnand %p236, %p237
    %p239 = pneg %p238
    // Predicated region
    $region9: #{path_quality_aware_conv.1} parent=5 // pred_check
      _
    $region10: #{path_quality_aware_conv.1} parent=5 // pred_check_branch
      %241 = sbr.rel (%p238) target = $region12
    $region11: #{path_quality_aware_conv.1} parent=5 // pred_region
      %s242 = ssub.s32 %s14, 1
      // Predicated region
      $region13: #{path_quality_aware_conv.1} parent=11 // pred_check
        %p243 = pneg %p139
      $region14: #{path_quality_aware_conv.1} parent=11 // pred_check_branch
        %245 = sbr.rel (%p243) target = $region16
      $region15: #{path_quality_aware_conv.1} parent=11 // pred_region
        _
      $region16: #{path_quality_aware_conv.1} parent=11 // pred_fallthru
        _
      // Predicated region
      $region17: #{path_quality_aware_conv.1} parent=11 // pred_check
        %p246 = pneg %p160
      $region18: #{path_quality_aware_conv.1} parent=11 // pred_check_branch
        %248 = sbr.rel (%p246) target = $region20
      $region19: #{path_quality_aware_conv.1} parent=11 // pred_region
        _
      $region20: #{path_quality_aware_conv.1} parent=11 // pred_fallthru
        _
      // Predicated region
      $region21: #{path_quality_aware_conv.1} parent=11 // pred_check
        %p249 = pneg %p181
      $region22: #{path_quality_aware_conv.1} parent=11 // pred_check_branch
        %251 = sbr.rel (%p249) target = $region24
      $region23: #{path_quality_aware_conv.1} parent=11 // pred_region
        _
      $region24: #{path_quality_aware_conv.1} parent=11 // pred_fallthru
        _
      // Predicated region
      $region25: #{path_quality_aware_conv.1} parent=11 // pred_check
        %p252 = pneg %p202
      $region26: #{path_quality_aware_conv.1} parent=11 // pred_check_branch
        %254 = sbr.rel (%p252) target = $region28
      $region27: #{path_quality_aware_conv.1} parent=11 // pred_region
        _
      $region28: #{path_quality_aware_conv.1} parent=11 // pred_fallthru
        _
    $region12: #{path_quality_aware_conv.1} parent=5 // pred_fallthru
      _
    %p255 = scmp.lt.s32.totalorder %s14, 2
    // Predicated region
    $region29: #{path_quality_aware_conv.1} parent=5 // pred_check
      %p256 = pneg %p255
    $region30: #{path_quality_aware_conv.1} parent=5 // pred_check_branch
      %258 = sbr.rel (%p256) target = $region32
    $region31: #{path_quality_aware_conv.1} parent=5 // pred_region
      // Predicated region
      $region33: #{path_quality_aware_conv.1} parent=31 // pred_check
        %p259 = pneg %p34
      $region34: #{path_quality_aware_conv.1} parent=31 // pred_check_branch
        %261 = sbr.rel (%p259) target = $region36
      $region35: #{path_quality_aware_conv.1} parent=31 // pred_region
        %p262 = scmp.lt.s32.totalorder %s14, 1
        %s263 = scalar_select %p262, %s14, 1
        %s264 = smul.addr %s263, 2
        %s265 = smul.addr %s264, 8
        %s266 = scalar_lea.vmem %s0, %s265
      $region36: #{path_quality_aware_conv.1} parent=31 // pred_fallthru
        _
      // Predicated region
      $region37: #{path_quality_aware_conv.1} parent=31 // pred_check
        %p267 = pneg %p60
      $region38: #{path_quality_aware_conv.1} parent=31 // pred_check_branch
        %269 = sbr.rel (%p267) target = $region40
      $region39: #{path_quality_aware_conv.1} parent=31 // pred_region
        %p270 = scmp.lt.s32.totalorder %s14, 1
        %s271 = scalar_select %p270, %s14, 1
        %s272 = smul.addr %s271, 5
        %s273 = smul.addr %s272, 8
        %s274 = scalar_lea.vmem %s1, %s273
      $region40: #{path_quality_aware_conv.1} parent=31 // pred_fallthru
        _
      // Predicated region
      $region41: #{path_quality_aware_conv.1} parent=31 // pred_check
        %p275 = pneg %p86
      $region42: #{path_quality_aware_conv.1} parent=31 // pred_check_branch
        %277 = sbr.rel (%p275) target = $region44
      $region43: #{path_quality_aware_conv.1} parent=31 // pred_region
        %p278 = scmp.lt.s32.totalorder %s14, 1
        %s279 = scalar_select %p278, %s14, 1
        %s280 = smul.addr %s279, 5
        %s281 = smul.addr %s280, 8
        %s282 = scalar_lea.vmem %s2, %s281
      $region44: #{path_quality_aware_conv.1} parent=31 // pred_fallthru
        _
      // Predicated region
      $region45: #{path_quality_aware_conv.1} parent=31 // pred_check
        %p283 = pneg %p112
      $region46: #{path_quality_aware_conv.1} parent=31 // pred_check_branch
        %285 = sbr.rel (%p283) target = $region48
      $region47: #{path_quality_aware_conv.1} parent=31 // pred_region
        %p286 = scmp.lt.s32.totalorder %s14, 1
        %s287 = scalar_select %p286, %s14, 1
        %s288 = smul.addr %s287, 2
        %s289 = smul.addr %s288, 8
        %s290 = scalar_lea.vmem %s3, %s289
      $region48: #{path_quality_aware_conv.1} parent=31 // pred_fallthru
        _
    $region32: #{path_quality_aware_conv.1} parent=5 // pred_fallthru
      _
    %p291 = scmp.le.s32.totalorder 1, %s14
    %p292 = scmp.lt.s32.totalorder %s14, 3
    %p293 = pnand %p291, %p292
    %p294 = pneg %p293
    // Predicated region
    $region49: #{path_quality_aware_conv.1} parent=5 // pred_check
      _
    $region50: #{path_quality_aware_conv.1} parent=5 // pred_check_branch
      %296 = sbr.rel (%p293) target = $region52
    $region51: #{path_quality_aware_conv.1} parent=5 // pred_region
      %s297 = ssub.s32 %s14, 1
      %p298 = scmp.lt.s32.totalorder %s19, 1
      %s299 = scalar_select %p298, %s19, 1
      %s300 = smul.addr %s299, 2
      %s301 = smul.addr %s300, 8
      %s302 = scalar_lea.vmem %s0, %s301
      %p303 = pneg %p40
      %p304 = pneg %p37
      %p305 = scmp.lt.s32.totalorder %s19, 1
      %s306 = scalar_select %p305, %s19, 1
      %s307 = smul.addr %s306, 5
      %s308 = smul.addr %s307, 8
      %s309 = scalar_lea.vmem %s1, %s308
      %p310 = pneg %p66
      %p311 = pneg %p63
      %p312 = scmp.lt.s32.totalorder %s19, 1
      %s313 = scalar_select %p312, %s19, 1
      %s314 = smul.addr %s313, 5
      %s315 = smul.addr %s314, 8
      %s316 = scalar_lea.vmem %s2, %s315
      %p317 = pneg %p92
      %p318 = pneg %p89
      %p319 = scmp.lt.s32.totalorder %s19, 1
      %s320 = scalar_select %p319, %s19, 1
      %s321 = smul.addr %s320, 2
      %s322 = smul.addr %s321, 8
      %s323 = scalar_lea.vmem %s3, %s322
      %p324 = pneg %p118
      %p325 = pneg %p115
      %p326 = pneg %p139
      %p327 = pneg %p136
      %p328 = pneg %p160
      %p329 = pneg %p157
      %p330 = pneg %p181
      %p331 = pneg %p178
      %p332 = pneg %p202
      %p333 = pneg %p199
      %p334 = pneg %p228
      %p335 = pneg %p225
      %p336 = scmp.lt.s32.totalorder %s19, 1
      %s337 = scalar_select %p336, %s19, 1
      %s338 = smul.addr %s337, 2
      %s339 = smul.addr %s338, 8
      %s340 = scalar_lea.vmem %s8, %s339
      %p341 = scmp.lt.s32.totalorder %s19, 1
      %s342 = scalar_select %p341, %s19, 1
      %s343 = smul.addr %s342, 2
      %s344 = smul.addr %s343, 8
      %s345 = scalar_lea.vmem %s0, %s344
      %p346 = scmp.lt.s32.totalorder %s19, 1
      %s347 = scalar_select %p346, %s19, 1
      %s348 = smul.addr %s347, 5
      %s349 = smul.addr %s348, 8
      %s350 = scalar_lea.vmem %s1, %s349
      %p351 = scmp.lt.s32.totalorder %s19, 1
      %s352 = scalar_select %p351, %s19, 1
      %s353 = smul.addr %s352, 5
      %s354 = smul.addr %s353, 8
      %s355 = scalar_lea.vmem %s2, %s354
      %p356 = scmp.lt.s32.totalorder %s19, 1
      %s357 = scalar_select %p356, %s19, 1
      %s358 = smul.addr %s357, 2
      %s359 = smul.addr %s358, 8
      %s360 = scalar_lea.vmem %s3, %s359
      %p361 = scmp.lt.s32.totalorder %s19, 1
      %s362 = scalar_select %p361, %s19, 1
      %s363 = smul.addr %s362, 2
      %s364 = smul.addr %s363, 8
      %s365 = scalar_lea.vmem %s8, %s364
      %v366 = vld [vmem:[%s345] sm:$0xff]
      %v367 = vld [vmem:[%s345 + $0x8] sm:$0xf]
      %v368 = vld [vmem:[%s350] sm:$0xff]
      %v369 = vld [vmem:[%s350 + $0x8] sm:$0xff]
      %v370 = vld [vmem:[%s350 + $0x10] sm:$0xff]
      %v371 = vld [vmem:[%s350 + $0x18] sm:$0xff]
      %v372 = vld [vmem:[%s350 + $0x20] sm:$0xf]
      %v373 = vld [vmem:[%s355] sm:$0xff]
      %v374 = vld [vmem:[%s355 + $0x8] sm:$0xff]
      %v375 = vld [vmem:[%s355 + $0x10] sm:$0xff]
      %v376 = vld [vmem:[%s355 + $0x18] sm:$0xff]
      %v377 = vld [vmem:[%s355 + $0x20] sm:$0xf]
      %v378 = vld [vmem:[%s360] sm:$0xff]
      %v379 = vld [vmem:[%s360 + $0x8] sm:$0xf]
      %v380 = vld [vmem:[%s7] sm:$0x1]
      %v381 = vld [vmem:[%s4] sm:$0xff]
      %v382 = vld [vmem:[%s4 + $0x8] sm:$0xff]
      %v383 = vld [vmem:[%s4 + $0x10] sm:$0xff]
      %v384 = vld [vmem:[%s4 + $0x18] sm:$0xff]
      %vm385 = vcmask 130048
      %v387 = vsel %vm385, %v366, 0
      %v390 = vsel %vm385, %v367, 0
      %v392 = vand.u32 %v382, 4294901760
      %393 = vmatprep.subr.mxu0 %v392
      %v394 = vand.u32 %v381, 4294901760
      %395 = vmatpush1.msra.mxu0 %v394
      %v396 = vand.u32 %v384, 4294901760
      %397 = vmatprep.subr.mxu0 %v396
      %v398 = vand.u32 %v383, 4294901760
      %399 = vmatpush1.msra.mxu0 %v398
      %400 = vmatprep.subr.mxu0 0.0
      %401 = vmatpush1.msra.mxu0 0.0
      %402 = vmatprep.subr.mxu0 0.0
      %403 = vmatpush1.msra.mxu0 0.0
      %404 = vmatprep.subr.mxu0 0.0
      %405 = vmatpush1.msra.mxu0 0.0
      %406 = vmatprep.subr.mxu0 0.0
      %407 = vmatpush1.msra.mxu0 0.0
      %408 = vmatprep.subr.mxu0 0.0
      %409 = vmatpush1.msra.mxu0 0.0
      %410 = vmatprep.subr.mxu0 0.0
      %411 = vmatpush1.msra.mxu0 0.0
      %412 = vmatprep.subr.mxu0 0.0
      %413 = vmatpush1.msra.mxu0 0.0
      %414 = vmatprep.subr.mxu0 0.0
      %415 = vmatpush1.msra.mxu0 0.0
      %416 = vmatprep.subr.mxu0 0.0
      %417 = vmatpush1.msra.mxu0 0.0
      %418 = vmatprep.subr.mxu0 0.0
      %419 = vmatpush1.msra.mxu0 0.0
      %420 = vmatprep.subr.mxu0 0.0
      %421 = vmatpush1.msra.mxu0 0.0
      %422 = vmatprep.subr.mxu0 0.0
      %423 = vmatpush1.msra.mxu0 0.0
      %424 = vmatprep.subr.mxu0 0.0
      %425 = vmatpush1.msra.mxu0 0.0
      %426 = vmatprep.subr.mxu0 0.0
      %427 = vmatpush1.msra.mxu0 0.0
      %428 = vmatprep.subr.mxu0 0.0
      %429 = vmatpush1.msra.mxu0 0.0
      %430 = vmatprep.subr.mxu0 0.0
      %431 = vmatpush1.msra.mxu0 0.0
      %432 = vmatprep.subr.mxu0 0.0
      %433 = vmatpush1.msra.mxu0 0.0
      %434 = vmatprep.subr.mxu0 0.0
      %435 = vmatpush1.msra.mxu0 0.0
      %436 = vmatprep.subr.mxu0 0.0
      %437 = vmatpush1.msra.mxu0 0.0
      %438 = vmatprep.subr.mxu0 0.0
      %439 = vmatpush1.msra.mxu0 0.0
      %440 = vmatprep.subr.mxu0 0.0
      %441 = vmatpush1.msra.mxu0 0.0
      %442 = vmatprep.subr.mxu0 0.0
      %443 = vmatpush1.msra.mxu0 0.0
      %444 = vmatprep.subr.mxu0 0.0
      %445 = vmatpush1.msra.mxu0 0.0
      %446 = vmatprep.subr.mxu0 0.0
      %447 = vmatpush1.msra.mxu0 0.0
      %448 = vmatprep.subr.mxu0 0.0
      %449 = vmatpush1.msra.mxu0 0.0
      %450 = vmatprep.subr.mxu0 0.0
      %451 = vmatpush1.msra.mxu0 0.0
      %452 = vmatprep.subr.mxu0 0.0
      %453 = vmatpush1.msra.mxu0 0.0
      %454 = vmatprep.subr.mxu0 0.0
      %455 = vmatpush1.msra.mxu0 0.0
      %456 = vmatprep.subr.mxu0 0.0
      %457 = vmatpush1.msra.mxu0 0.0
      %458 = vmatprep.subr.mxu0 0.0
      %459 = vmatpush1.msra.mxu0 0.0
      %460 = vmatprep.mubr.f32.mxu0 0.0
      %v461 = vand.u32 %v387, 4294901760
      %v462 = vsub.f32 %v387, %v461
      %v463 = vand.u32 %v462, 4294901760
      %v464 = vsub.f32 %v462, %v463
      %v465 = vand.u32 %v464, 4294901760
      %466 = vmatmul.mubr.f32.gmra.mrb[0].mxu0 %v465
      %v467 = vpop.f32.mrb[0].mxu0
      %v468 = vadd.f32 0.0, %v467
      %v469 = vpop.f32.mrb[0].mxu0
      %v470 = vadd.f32 0.0, %v469
      %471 = vmatprep.mubr.f32.mxu0 0.0
      %v472 = vand.u32 %v390, 4294901760
      %v473 = vsub.f32 %v390, %v472
      %v474 = vand.u32 %v473, 4294901760
      %v475 = vsub.f32 %v473, %v474
      %v476 = vand.u32 %v475, 4294901760
      %477 = vmatmul.mubr.f32.gmra.mrb[0].mxu0 %v476
      %v478 = vpop.f32.mrb[0].mxu0
      %v479 = vadd.f32 0.0, %v478
      %v480 = vpop.f32.mrb[0].mxu0
      %v481 = vadd.f32 0.0, %v480
      %482 = vdwg.mxu0
      %v483 = vand.u32 %v382, 4294901760
      %v484 = vsub.f32 %v382, %v483
      %v485 = vand.u32 %v484, 4294901760
      %v486 = vsub.f32 %v484, %v485
      %v487 = vand.u32 %v486, 4294901760
      %488 = vmatprep.subr.mxu0 %v487
      %v489 = vand.u32 %v381, 4294901760
      %v490 = vsub.f32 %v381, %v489
      %v491 = vand.u32 %v490, 4294901760
      %v492 = vsub.f32 %v490, %v491
      %v493 = vand.u32 %v492, 4294901760
      %494 = vmatpush1.msra.mxu0 %v493
      %v495 = vand.u32 %v384, 4294901760
      %v496 = vsub.f32 %v384, %v495
      %v497 = vand.u32 %v496, 4294901760
      %v498 = vsub.f32 %v496, %v497
      %v499 = vand.u32 %v498, 4294901760
      %500 = vmatprep.subr.mxu0 %v499
      %v501 = vand.u32 %v383, 4294901760
      %v502 = vsub.f32 %v383, %v501
      %v503 = vand.u32 %v502, 4294901760
      %v504 = vsub.f32 %v502, %v503
      %v505 = vand.u32 %v504, 4294901760
      %506 = vmatpush1.msra.mxu0 %v505
      %507 = vmatprep.subr.mxu0 0.0
      %508 = vmatpush1.msra.mxu0 0.0
      %509 = vmatprep.subr.mxu0 0.0
      %510 = vmatpush1.msra.mxu0 0.0
      %511 = vmatprep.subr.mxu0 0.0
      %512 = vmatpush1.msra.mxu0 0.0
      %513 = vmatprep.subr.mxu0 0.0
      %514 = vmatpush1.msra.mxu0 0.0
      %515 = vmatprep.subr.mxu0 0.0
      %516 = vmatpush1.msra.mxu0 0.0
      %517 = vmatprep.subr.mxu0 0.0
      %518 = vmatpush1.msra.mxu0 0.0
      %519 = vmatprep.subr.mxu0 0.0
      %520 = vmatpush1.msra.mxu0 0.0
      %521 = vmatprep.subr.mxu0 0.0
      %522 = vmatpush1.msra.mxu0 0.0
      %523 = vmatprep.subr.mxu0 0.0
      %524 = vmatpush1.msra.mxu0 0.0
      %525 = vmatprep.subr.mxu0 0.0
      %526 = vmatpush1.msra.mxu0 0.0
      %527 = vmatprep.subr.mxu0 0.0
      %528 = vmatpush1.msra.mxu0 0.0
      %529 = vmatprep.subr.mxu0 0.0
      %530 = vmatpush1.msra.mxu0 0.0
      %531 = vmatprep.subr.mxu0 0.0
      %532 = vmatpush1.msra.mxu0 0.0
      %533 = vmatprep.subr.mxu0 0.0
      %534 = vmatpush1.msra.mxu0 0.0
      %535 = vmatprep.subr.mxu0 0.0
      %536 = vmatpush1.msra.mxu0 0.0
      %537 = vmatprep.subr.mxu0 0.0
      %538 = vmatpush1.msra.mxu0 0.0
      %539 = vmatprep.subr.mxu0 0.0
      %540 = vmatpush1.msra.mxu0 0.0
      %541 = vmatprep.subr.mxu0 0.0
      %542 = vmatpush1.msra.mxu0 0.0
      %543 = vmatprep.subr.mxu0 0.0
      %544 = vmatpush1.msra.mxu0 0.0
      %545 = vmatprep.subr.mxu0 0.0
      %546 = vmatpush1.msra.mxu0 0.0
      %547 = vmatprep.subr.mxu0 0.0
      %548 = vmatpush1.msra.mxu0 0.0
      %549 = vmatprep.subr.mxu0 0.0
      %550 = vmatpush1.msra.mxu0 0.0
      %551 = vmatprep.subr.mxu0 0.0
      %552 = vmatpush1.msra.mxu0 0.0
      %553 = vmatprep.subr.mxu0 0.0
      %554 = vmatpush1.msra.mxu0 0.0
      %555 = vmatprep.subr.mxu0 0.0
      %556 = vmatpush1.msra.mxu0 0.0
      %557 = vmatprep.subr.mxu0 0.0
      %558 = vmatpush1.msra.mxu0 0.0
      %559 = vmatprep.subr.mxu0 0.0
      %560 = vmatpush1.msra.mxu0 0.0
      %561 = vmatprep.subr.mxu0 0.0
      %562 = vmatpush1.msra.mxu0 0.0
      %563 = vmatprep.subr.mxu0 0.0
      %564 = vmatpush1.msra.mxu0 0.0
      %565 = vmatprep.subr.mxu0 0.0
      %566 = vmatpush1.msra.mxu0 0.0
      %567 = vmatprep.mubr.f32.mxu0 0.0
      %v568 = vand.u32 %v387, 4294901760
      %569 = vmatmul.mubr.f32.gmra.mrb[0].mxu0 %v568
      %v570 = vpop.f32.mrb[0].mxu0
      %v571 = vadd.f32 %v468, %v570
      %v572 = vpop.f32.mrb[0].mxu0
      %v573 = vadd.f32 %v470, %v572
      %574 = vmatprep.mubr.f32.mxu0 0.0
      %v575 = vand.u32 %v390, 4294901760
      %576 = vmatmul.mubr.f32.gmra.mrb[0].mxu0 %v575
      %v577 = vpop.f32.mrb[0].mxu0
      %v578 = vadd.f32 %v479, %v577
      %v579 = vpop.f32.mrb[0].mxu0
      %v580 = vadd.f32 %v481, %v579
      %581 = vdwg.mxu0
      %v582 = vand.u32 %v382, 4294901760
      %v583 = vsub.f32 %v382, %v582
      %584 = vmatprep.subr.mxu0 %v583
      %v585 = vand.u32 %v381, 4294901760
      %v586 = vsub.f32 %v381, %v585
      %587 = vmatpush1.msra.mxu0 %v586
      %v588 = vand.u32 %v384, 4294901760
      %v589 = vsub.f32 %v384, %v588
      %590 = vmatprep.subr.mxu0 %v589
      %v591 = vand.u32 %v383, 4294901760
      %v592 = vsub.f32 %v383, %v591
      %593 = vmatpush1.msra.mxu0 %v592
      %594 = vmatprep.subr.mxu0 0.0
      %595 = vmatpush1.msra.mxu0 0.0
      %596 = vmatprep.subr.mxu0 0.0
      %597 = vmatpush1.msra.mxu0 0.0
      %598 = vmatprep.subr.mxu0 0.0
      %599 = vmatpush1.msra.mxu0 0.0
      %600 = vmatprep.subr.mxu0 0.0
      %601 = vmatpush1.msra.mxu0 0.0
      %602 = vmatprep.subr.mxu0 0.0
      %603 = vmatpush1.msra.mxu0 0.0
      %604 = vmatprep.subr.mxu0 0.0
      %605 = vmatpush1.msra.mxu0 0.0
      %606 = vmatprep.subr.mxu0 0.0
      %607 = vmatpush1.msra.mxu0 0.0
      %608 = vmatprep.subr.mxu0 0.0
      %609 = vmatpush1.msra.mxu0 0.0
      %610 = vmatprep.subr.mxu0 0.0
      %611 = vmatpush1.msra.mxu0 0.0
      %612 = vmatprep.subr.mxu0 0.0
      %613 = vmatpush1.msra.mxu0 0.0
      %614 = vmatprep.subr.mxu0 0.0
      %615 = vmatpush1.msra.mxu0 0.0
      %616 = vmatprep.subr.mxu0 0.0
      %617 = vmatpush1.msra.mxu0 0.0
      %618 = vmatprep.subr.mxu0 0.0
      %619 = vmatpush1.msra.mxu0 0.0
      %620 = vmatprep.subr.mxu0 0.0
      %621 = vmatpush1.msra.mxu0 0.0
      %622 = vmatprep.subr.mxu0 0.0
      %623 = vmatpush1.msra.mxu0 0.0
      %624 = vmatprep.subr.mxu0 0.0
      %625 = vmatpush1.msra.mxu0 0.0
      %626 = vmatprep.subr.mxu0 0.0
      %627 = vmatpush1.msra.mxu0 0.0
      %628 = vmatprep.subr.mxu0 0.0
      %629 = vmatpush1.msra.mxu0 0.0
      %630 = vmatprep.subr.mxu0 0.0
      %631 = vmatpush1.msra.mxu0 0.0
      %632 = vmatprep.subr.mxu0 0.0
      %633 = vmatpush1.msra.mxu0 0.0
      %634 = vmatprep.subr.mxu0 0.0
      %635 = vmatpush1.msra.mxu0 0.0
      %636 = vmatprep.subr.mxu0 0.0
      %637 = vmatpush1.msra.mxu0 0.0
      %638 = vmatprep.subr.mxu0 0.0
      %639 = vmatpush1.msra.mxu0 0.0
      %640 = vmatprep.subr.mxu0 0.0
      %641 = vmatpush1.msra.mxu0 0.0
      %642 = vmatprep.subr.mxu0 0.0
      %643 = vmatpush1.msra.mxu0 0.0
      %644 = vmatprep.subr.mxu0 0.0
      %645 = vmatpush1.msra.mxu0 0.0
      %646 = vmatprep.subr.mxu0 0.0
      %647 = vmatpush1.msra.mxu0 0.0
      %648 = vmatprep.subr.mxu0 0.0
      %649 = vmatpush1.msra.mxu0 0.0
      %650 = vmatprep.subr.mxu0 0.0
      %651 = vmatpush1.msra.mxu0 0.0
      %652 = vmatprep.subr.mxu0 0.0
      %653 = vmatpush1.msra.mxu0 0.0
      %654 = vmatprep.mubr.f32.mxu0 0.0
      %v655 = vand.u32 %v387, 4294901760
      %v656 = vsub.f32 %v387, %v655
      %657 = vmatmul.mubr.f32.gmra.mrb[0].mxu0 %v656
      %v658 = vpop.f32.mrb[0].mxu0
      %v659 = vadd.f32 %v571, %v658
      %v660 = vpop.f32.mrb[0].mxu0
      %v661 = vadd.f32 %v573, %v660
      %662 = vmatprep.mubr.f32.mxu0 0.0
      %v663 = vand.u32 %v390, 4294901760
      %v664 = vsub.f32 %v390, %v663
      %665 = vmatmul.mubr.f32.gmra.mrb[0].mxu0 %v664
      %v666 = vpop.f32.mrb[0].mxu0
      %v667 = vadd.f32 %v578, %v666
      %v668 = vpop.f32.mrb[0].mxu0
      %v669 = vadd.f32 %v580, %v668
      %670 = vdwg.mxu0
      %v671 = vand.u32 %v382, 4294901760
      %672 = vmatprep.subr.mxu0 %v671
      %v673 = vand.u32 %v381, 4294901760
      %674 = vmatpush1.msra.mxu0 %v673
      %v675 = vand.u32 %v384, 4294901760
      %676 = vmatprep.subr.mxu0 %v675
      %v677 = vand.u32 %v383, 4294901760
      %678 = vmatpush1.msra.mxu0 %v677
      %679 = vmatprep.subr.mxu0 0.0
      %680 = vmatpush1.msra.mxu0 0.0
      %681 = vmatprep.subr.mxu0 0.0
      %682 = vmatpush1.msra.mxu0 0.0
      %683 = vmatprep.subr.mxu0 0.0
      %684 = vmatpush1.msra.mxu0 0.0
      %685 = vmatprep.subr.mxu0 0.0
      %686 = vmatpush1.msra.mxu0 0.0
      %687 = vmatprep.subr.mxu0 0.0
      %688 = vmatpush1.msra.mxu0 0.0
      %689 = vmatprep.subr.mxu0 0.0
      %690 = vmatpush1.msra.mxu0 0.0
      %691 = vmatprep.subr.mxu0 0.0
      %692 = vmatpush1.msra.mxu0 0.0
      %693 = vmatprep.subr.mxu0 0.0
      %694 = vmatpush1.msra.mxu0 0.0
      %695 = vmatprep.subr.mxu0 0.0
      %696 = vmatpush1.msra.mxu0 0.0
      %697 = vmatprep.subr.mxu0 0.0
      %698 = vmatpush1.msra.mxu0 0.0
      %699 = vmatprep.subr.mxu0 0.0
      %700 = vmatpush1.msra.mxu0 0.0
      %701 = vmatprep.subr.mxu0 0.0
      %702 = vmatpush1.msra.mxu0 0.0
      %703 = vmatprep.subr.mxu0 0.0
      %704 = vmatpush1.msra.mxu0 0.0
      %705 = vmatprep.subr.mxu0 0.0
      %706 = vmatpush1.msra.mxu0 0.0
      %707 = vmatprep.subr.mxu0 0.0
      %708 = vmatpush1.msra.mxu0 0.0
      %709 = vmatprep.subr.mxu0 0.0
      %710 = vmatpush1.msra.mxu0 0.0
      %711 = vmatprep.subr.mxu0 0.0
      %712 = vmatpush1.msra.mxu0 0.0
      %713 = vmatprep.subr.mxu0 0.0
      %714 = vmatpush1.msra.mxu0 0.0
      %715 = vmatprep.subr.mxu0 0.0
      %716 = vmatpush1.msra.mxu0 0.0
      %717 = vmatprep.subr.mxu0 0.0
      %718 = vmatpush1.msra.mxu0 0.0
      %719 = vmatprep.subr.mxu0 0.0
      %720 = vmatpush1.msra.mxu0 0.0
      %721 = vmatprep.subr.mxu0 0.0
      %722 = vmatpush1.msra.mxu0 0.0
      %723 = vmatprep.subr.mxu0 0.0
      %724 = vmatpush1.msra.mxu0 0.0
      %725 = vmatprep.subr.mxu0 0.0
      %726 = vmatpush1.msra.mxu0 0.0
      %727 = vmatprep.subr.mxu0 0.0
      %728 = vmatpush1.msra.mxu0 0.0
      %729 = vmatprep.subr.mxu0 0.0
      %730 = vmatpush1.msra.mxu0 0.0
      %731 = vmatprep.subr.mxu0 0.0
      %732 = vmatpush1.msra.mxu0 0.0
      %733 = vmatprep.subr.mxu0 0.0
      %734 = vmatpush1.msra.mxu0 0.0
      %735 = vmatprep.subr.mxu0 0.0
      %736 = vmatpush1.msra.mxu0 0.0
      %737 = vmatprep.subr.mxu0 0.0
      %738 = vmatpush1.msra.mxu0 0.0
      %739 = vmatprep.mubr.f32.mxu0 0.0
      %v740 = vand.u32 %v387, 4294901760
      %v741 = vsub.f32 %v387, %v740
      %v742 = vand.u32 %v741, 4294901760
      %743 = vmatmul.mubr.f32.gmra.mrb[0].mxu0 %v742
      %v744 = vpop.f32.mrb[0].mxu0
      %v745 = vadd.f32 %v659, %v744
      %v746 = vpop.f32.mrb[0].mxu0
      %v747 = vadd.f32 %v661, %v746
      %748 = vmatprep.mubr.f32.mxu0 0.0
      %v749 = vand.u32 %v390, 4294901760
      %v750 = vsub.f32 %v390, %v749
      %v751 = vand.u32 %v750, 4294901760
      %752 = vmatmul.mubr.f32.gmra.mrb[0].mxu0 %v751
      %v753 = vpop.f32.mrb[0].mxu0
      %v754 = vadd.f32 %v667, %v753
      %v755 = vpop.f32.mrb[0].mxu0
      %v756 = vadd.f32 %v669, %v755
      %757 = vdwg.mxu0
      %v758 = vand.u32 %v382, 4294901760
      %v759 = vsub.f32 %v382, %v758
      %v760 = vand.u32 %v759, 4294901760
      %761 = vmatprep.subr.mxu0 %v760
      %v762 = vand.u32 %v381, 4294901760
      %v763 = vsub.f32 %v381, %v762
      %v764 = vand.u32 %v763, 4294901760
      %765 = vmatpush1.msra.mxu0 %v764
      %v766 = vand.u32 %v384, 4294901760
      %v767 = vsub.f32 %v384, %v766
      %v768 = vand.u32 %v767, 4294901760
      %769 = vmatprep.subr.mxu0 %v768
      %v770 = vand.u32 %v383, 4294901760
      %v771 = vsub.f32 %v383, %v770
      %v772 = vand.u32 %v771, 4294901760
      %773 = vmatpush1.msra.mxu0 %v772
      %774 = vmatprep.subr.mxu0 0.0
      %775 = vmatpush1.msra.mxu0 0.0
      %776 = vmatprep.subr.mxu0 0.0
      %777 = vmatpush1.msra.mxu0 0.0
      %778 = vmatprep.subr.mxu0 0.0
      %779 = vmatpush1.msra.mxu0 0.0
      %780 = vmatprep.subr.mxu0 0.0
      %781 = vmatpush1.msra.mxu0 0.0
      %782 = vmatprep.subr.mxu0 0.0
      %783 = vmatpush1.msra.mxu0 0.0
      %784 = vmatprep.subr.mxu0 0.0
      %785 = vmatpush1.msra.mxu0 0.0
      %786 = vmatprep.subr.mxu0 0.0
      %787 = vmatpush1.msra.mxu0 0.0
      %788 = vmatprep.subr.mxu0 0.0
      %789 = vmatpush1.msra.mxu0 0.0
      %790 = vmatprep.subr.mxu0 0.0
      %791 = vmatpush1.msra.mxu0 0.0
      %792 = vmatprep.subr.mxu0 0.0
      %793 = vmatpush1.msra.mxu0 0.0
      %794 = vmatprep.subr.mxu0 0.0
      %795 = vmatpush1.msra.mxu0 0.0
      %796 = vmatprep.subr.mxu0 0.0
      %797 = vmatpush1.msra.mxu0 0.0
      %798 = vmatprep.subr.mxu0 0.0
      %799 = vmatpush1.msra.mxu0 0.0
      %800 = vmatprep.subr.mxu0 0.0
      %801 = vmatpush1.msra.mxu0 0.0
      %802 = vmatprep.subr.mxu0 0.0
      %803 = vmatpush1.msra.mxu0 0.0
      %804 = vmatprep.subr.mxu0 0.0
      %805 = vmatpush1.msra.mxu0 0.0
      %806 = vmatprep.subr.mxu0 0.0
      %807 = vmatpush1.msra.mxu0 0.0
      %808 = vmatprep.subr.mxu0 0.0
      %809 = vmatpush1.msra.mxu0 0.0
      %810 = vmatprep.subr.mxu0 0.0
      %811 = vmatpush1.msra.mxu0 0.0
      %812 = vmatprep.subr.mxu0 0.0
      %813 = vmatpush1.msra.mxu0 0.0
      %814 = vmatprep.subr.mxu0 0.0
      %815 = vmatpush1.msra.mxu0 0.0
      %816 = vmatprep.subr.mxu0 0.0
      %817 = vmatpush1.msra.mxu0 0.0
      %818 = vmatprep.subr.mxu0 0.0
      %819 = vmatpush1.msra.mxu0 0.0
      %820 = vmatprep.subr.mxu0 0.0
      %821 = vmatpush1.msra.mxu0 0.0
      %822 = vmatprep.subr.mxu0 0.0
      %823 = vmatpush1.msra.mxu0 0.0
      %824 = vmatprep.subr.mxu0 0.0
      %825 = vmatpush1.msra.mxu0 0.0
      %826 = vmatprep.subr.mxu0 0.0
      %827 = vmatpush1.msra.mxu0 0.0
      %828 = vmatprep.subr.mxu0 0.0
      %829 = vmatpush1.msra.mxu0 0.0
      %830 = vmatprep.subr.mxu0 0.0
      %831 = vmatpush1.msra.mxu0 0.0
      %832 = vmatprep.subr.mxu0 0.0
      %833 = vmatpush1.msra.mxu0 0.0
      %834 = vmatprep.mubr.f32.mxu0 0.0
      %v835 = vand.u32 %v387, 4294901760
      %836 = vmatmul.mubr.f32.gmra.mrb[0].mxu0 %v835
      %v837 = vpop.f32.mrb[0].mxu0
      %v838 = vadd.f32 %v745, %v837
      %v839 = vpop.f32.mrb[0].mxu0
      %v840 = vadd.f32 %v747, %v839
      %841 = vmatprep.mubr.f32.mxu0 0.0
      %v842 = vand.u32 %v390, 4294901760
      %843 = vmatmul.mubr.f32.gmra.mrb[0].mxu0 %v842
      %v844 = vpop.f32.mrb[0].mxu0
      %v845 = vadd.f32 %v754, %v844
      %v846 = vpop.f32.mrb[0].mxu0
      %v847 = vadd.f32 %v756, %v846
      %848 = vdwg.mxu0
      %v849 = vand.u32 %v382, 4294901760
      %850 = vmatprep.subr.mxu0 %v849
      %v851 = vand.u32 %v381, 4294901760
      %852 = vmatpush1.msra.mxu0 %v851
      %v853 = vand.u32 %v384, 4294901760
      %854 = vmatprep.subr.mxu0 %v853
      %v855 = vand.u32 %v383, 4294901760
      %856 = vmatpush1.msra.mxu0 %v855
      %857 = vmatprep.subr.mxu0 0.0
      %858 = vmatpush1.msra.mxu0 0.0
      %859 = vmatprep.subr.mxu0 0.0
      %860 = vmatpush1.msra.mxu0 0.0
      %861 = vmatprep.subr.mxu0 0.0
      %862 = vmatpush1.msra.mxu0 0.0
      %863 = vmatprep.subr.mxu0 0.0
      %864 = vmatpush1.msra.mxu0 0.0
      %865 = vmatprep.subr.mxu0 0.0
      %866 = vmatpush1.msra.mxu0 0.0
      %867 = vmatprep.subr.mxu0 0.0
      %868 = vmatpush1.msra.mxu0 0.0
      %869 = vmatprep.subr.mxu0 0.0
      %870 = vmatpush1.msra.mxu0 0.0
      %871 = vmatprep.subr.mxu0 0.0
      %872 = vmatpush1.msra.mxu0 0.0
      %873 = vmatprep.subr.mxu0 0.0
      %874 = vmatpush1.msra.mxu0 0.0
      %875 = vmatprep.subr.mxu0 0.0
      %876 = vmatpush1.msra.mxu0 0.0
      %877 = vmatprep.subr.mxu0 0.0
      %878 = vmatpush1.msra.mxu0 0.0
      %879 = vmatprep.subr.mxu0 0.0
      %880 = vmatpush1.msra.mxu0 0.0
      %881 = vmatprep.subr.mxu0 0.0
      %882 = vmatpush1.msra.mxu0 0.0
      %883 = vmatprep.subr.mxu0 0.0
      %884 = vmatpush1.msra.mxu0 0.0
      %885 = vmatprep.subr.mxu0 0.0
      %886 = vmatpush1.msra.mxu0 0.0
      %887 = vmatprep.subr.mxu0 0.0
      %888 = vmatpush1.msra.mxu0 0.0
      %889 = vmatprep.subr.mxu0 0.0
      %890 = vmatpush1.msra.mxu0 0.0
      %891 = vmatprep.subr.mxu0 0.0
      %892 = vmatpush1.msra.mxu0 0.0
      %893 = vmatprep.subr.mxu0 0.0
      %894 = vmatpush1.msra.mxu0 0.0
      %895 = vmatprep.subr.mxu0 0.0
      %896 = vmatpush1.msra.mxu0 0.0
      %897 = vmatprep.subr.mxu0 0.0
      %898 = vmatpush1.msra.mxu0 0.0
      %899 = vmatprep.subr.mxu0 0.0
      %900 = vmatpush1.msra.mxu0 0.0
      %901 = vmatprep.subr.mxu0 0.0
      %902 = vmatpush1.msra.mxu0 0.0
      %903 = vmatprep.subr.mxu0 0.0
      %904 = vmatpush1.msra.mxu0 0.0
      %905 = vmatprep.subr.mxu0 0.0
      %906 = vmatpush1.msra.mxu0 0.0
      %907 = vmatprep.subr.mxu0 0.0
      %908 = vmatpush1.msra.mxu0 0.0
      %909 = vmatprep.subr.mxu0 0.0
      %910 = vmatpush1.msra.mxu0 0.0
      %911 = vmatprep.subr.mxu0 0.0
      %912 = vmatpush1.msra.mxu0 0.0
      %913 = vmatprep.subr.mxu0 0.0
      %914 = vmatpush1.msra.mxu0 0.0
      %915 = vmatprep.subr.mxu0 0.0
      %916 = vmatpush1.msra.mxu0 0.0
      %917 = vmatprep.mubr.f32.mxu0 0.0
      %v918 = vand.u32 %v387, 4294901760
      %919 = vmatmul.mubr.f32.gmra.mrb[0].mxu0 %v918
      %v920 = vpop.f32.mrb[0].mxu0
      %v921 = vadd.f32 %v838, %v920
      %v922 = vpop.f32.mrb[0].mxu0
      %v923 = vadd.f32 %v840, %v922
      %924 = vmatprep.mubr.f32.mxu0 0.0
      %v925 = vand.u32 %v390, 4294901760
      %926 = vmatmul.mubr.f32.gmra.mrb[0].mxu0 %v925
      %v927 = vpop.f32.mrb[0].mxu0
      %v928 = vadd.f32 %v845, %v927
      %v929 = vpop.f32.mrb[0].mxu0
      %v930 = vadd.f32 %v847, %v929
      %931 = vdwg.mxu0
      %v932 = vld [vmem:[%s5] sm:$0xff]
      %v933 = vld [vmem:[%s5 + $0x8] sm:$0xf]
      %vm934 = vcmask 97280
      %v936 = vsel %vm934, %v368, 0
      %v939 = vsel %vm934, %v369, 0
      %v942 = vsel %vm934, %v370, 0
      %v945 = vsel %vm934, %v371, 0
      %v948 = vsel %vm934, %v372, 0
      %vm950 = vcmask 1043456
      %v952 = vsel %vm950, %v933, 0
      %954 = vmatprep.subr.mxu0 0.0
      %v955 = vand.u32 %v932, 4294901760
      %956 = vmatpush1.msra.mxu0 %v955
      %957 = vmatprep.subr.mxu0 0.0
      %v958 = vand.u32 %v952, 4294901760
      %959 = vmatpush1.msra.mxu0 %v958
      %960 = vmatprep.subr.mxu0 0.0
      %961 = vmatpush1.msra.mxu0 0.0
      %962 = vmatprep.subr.mxu0 0.0
      %963 = vmatpush1.msra.mxu0 0.0
      %964 = vmatprep.subr.mxu0 0.0
      %965 = vmatpush1.msra.mxu0 0.0
      %966 = vmatprep.subr.mxu0 0.0
      %967 = vmatpush1.msra.mxu0 0.0
      %968 = vmatprep.subr.mxu0 0.0
      %969 = vmatpush1.msra.mxu0 0.0
      %970 = vmatprep.subr.mxu0 0.0
      %971 = vmatpush1.msra.mxu0 0.0
      %972 = vmatprep.subr.mxu0 0.0
      %973 = vmatpush1.msra.mxu0 0.0
      %974 = vmatprep.subr.mxu0 0.0
      %975 = vmatpush1.msra.mxu0 0.0
      %976 = vmatprep.subr.mxu0 0.0
      %977 = vmatpush1.msra.mxu0 0.0
      %978 = vmatprep.subr.mxu0 0.0
      %979 = vmatpush1.msra.mxu0 0.0
      %980 = vmatprep.subr.mxu0 0.0
      %981 = vmatpush1.msra.mxu0 0.0
      %982 = vmatprep.subr.mxu0 0.0
      %983 = vmatpush1.msra.mxu0 0.0
      %984 = vmatprep.subr.mxu0 0.0
      %985 = vmatpush1.msra.mxu0 0.0
      %986 = vmatprep.subr.mxu0 0.0
      %987 = vmatpush1.msra.mxu0 0.0
      %988 = vmatprep.subr.mxu0 0.0
      %989 = vmatpush1.msra.mxu0 0.0
      %990 = vmatprep.subr.mxu0 0.0
      %991 = vmatpush1.msra.mxu0 0.0
      %992 = vmatprep.subr.mxu0 0.0
      %993 = vmatpush1.msra.mxu0 0.0
      %994 = vmatprep.subr.mxu0 0.0
      %995 = vmatpush1.msra.mxu0 0.0
      %996 = vmatprep.subr.mxu0 0.0
      %997 = vmatpush1.msra.mxu0 0.0
      %998 = vmatprep.subr.mxu0 0.0
      %999 = vmatpush1.msra.mxu0 0.0
      %1000 = vmatprep.subr.mxu0 0.0
      %1001 = vmatpush1.msra.mxu0 0.0
      %1002 = vmatprep.subr.mxu0 0.0
      %1003 = vmatpush1.msra.mxu0 0.0
      %1004 = vmatprep.subr.mxu0 0.0
      %1005 = vmatpush1.msra.mxu0 0.0
      %1006 = vmatprep.subr.mxu0 0.0
      %1007 = vmatpush1.msra.mxu0 0.0
      %1008 = vmatprep.subr.mxu0 0.0
      %1009 = vmatpush1.msra.mxu0 0.0
      %1010 = vmatprep.subr.mxu0 0.0
      %1011 = vmatpush1.msra.mxu0 0.0
      %1012 = vmatprep.subr.mxu0 0.0
      %1013 = vmatpush1.msra.mxu0 0.0
      %1014 = vmatprep.subr.mxu0 0.0
      %1015 = vmatpush1.msra.mxu0 0.0
      %1016 = vmatprep.subr.mxu0 0.0
      %1017 = vmatpush1.msra.mxu0 0.0
      %1018 = vmatprep.subr.mxu0 0.0
      %1019 = vmatpush1.msra.mxu0 0.0
      %1020 = vmatprep.mubr.f32.mxu0 0.0
      %v1021 = vand.u32 %v936, 4294901760
      %v1022 = vsub.f32 %v936, %v1021
      %v1023 = vand.u32 %v1022, 4294901760
      %v1024 = vsub.f32 %v1022, %v1023
      %v1025 = vand.u32 %v1024, 4294901760
      %1026 = vmatmul.mubr.f32.gmra.mrb[0].mxu0 %v1025
      %v1027 = vpop.f32.mrb[0].mxu0
      %v1028 = vadd.f32 0.0, %v1027
      %v1029 = vpop.f32.mrb[0].mxu0
      %1030 = vmatprep.mubr.f32.mxu0 0.0
      %v1031 = vand.u32 %v939, 4294901760
      %v1032 = vsub.f32 %v939, %v1031
      %v1033 = vand.u32 %v1032, 4294901760
      %v1034 = vsub.f32 %v1032, %v1033
      %v1035 = vand.u32 %v1034, 4294901760
      %1036 = vmatmul.mubr.f32.gmra.mrb[0].mxu0 %v1035
      %v1037 = vpop.f32.mrb[0].mxu0
      %v1038 = vadd.f32 0.0, %v1037
      %v1039 = vpop.f32.mrb[0].mxu0
      %1040 = vmatprep.mubr.f32.mxu0 0.0
      %v1041 = vand.u32 %v942, 4294901760
      %v1042 = vsub.f32 %v942, %v1041
      %v1043 = vand.u32 %v1042, 4294901760
      %v1044 = vsub.f32 %v1042, %v1043
      %v1045 = vand.u32 %v1044, 4294901760
      %1046 = vmatmul.mubr.f32.gmra.mrb[0].mxu0 %v1045
      %v1047 = vpop.f32.mrb[0].mxu0
      %v1048 = vadd.f32 0.0, %v1047
      %v1049 = vpop.f32.mrb[0].mxu0
      %1050 = vmatprep.mubr.f32.mxu0 0.0
      %v1051 = vand.u32 %v945, 4294901760
      %v1052 = vsub.f32 %v945, %v1051
      %v1053 = vand.u32 %v1052, 4294901760
      %v1054 = vsub.f32 %v1052, %v1053
      %v1055 = vand.u32 %v1054, 4294901760
      %1056 = vmatmul.mubr.f32.gmra.mrb[0].mxu0 %v1055
      %v1057 = vpop.f32.mrb[0].mxu0
      %v1058 = vadd.f32 0.0, %v1057
      %v1059 = vpop.f32.mrb[0].mxu0
      %1060 = vmatprep.mubr.f32.mxu0 0.0
      %v1061 = vand.u32 %v948, 4294901760
      %v1062 = vsub.f32 %v948, %v1061
      %v1063 = vand.u32 %v1062, 4294901760
      %v1064 = vsub.f32 %v1062, %v1063
      %v1065 = vand.u32 %v1064, 4294901760
      %1066 = vmatmul.mubr.f32.gmra.mrb[0].mxu0 %v1065
      %v1067 = vpop.f32.mrb[0].mxu0
      %v1068 = vadd.f32 0.0, %v1067
      %v1069 = vpop.f32.mrb[0].mxu0
      %1070 = vdwg.mxu0
      %1071 = vmatprep.subr.mxu0 0.0
      %v1072 = vand.u32 %v932, 4294901760
      %v1073 = vsub.f32 %v932, %v1072
      %v1074 = vand.u32 %v1073, 4294901760
      %v1075 = vsub.f32 %v1073, %v1074
      %v1076 = vand.u32 %v1075, 4294901760
      %1077 = vmatpush1.msra.mxu0 %v1076
      %1078 = vmatprep.subr.mxu0 0.0
      %v1079 = vand.u32 %v952, 4294901760
      %v1080 = vsub.f32 %v952, %v1079
      %v1081 = vand.u32 %v1080, 4294901760
      %v1082 = vsub.f32 %v1080, %v1081
      %v1083 = vand.u32 %v1082, 4294901760
      %1084 = vmatpush1.msra.mxu0 %v1083
      %1085 = vmatprep.subr.mxu0 0.0
      %1086 = vmatpush1.msra.mxu0 0.0
      %1087 = vmatprep.subr.mxu0 0.0
      %1088 = vmatpush1.msra.mxu0 0.0
      %1089 = vmatprep.subr.mxu0 0.0
      %1090 = vmatpush1.msra.mxu0 0.0
      %1091 = vmatprep.subr.mxu0 0.0
      %1092 = vmatpush1.msra.mxu0 0.0
      %1093 = vmatprep.subr.mxu0 0.0
      %1094 = vmatpush1.msra.mxu0 0.0
      %1095 = vmatprep.subr.mxu0 0.0
      %1096 = vmatpush1.msra.mxu0 0.0
      %1097 = vmatprep.subr.mxu0 0.0
      %1098 = vmatpush1.msra.mxu0 0.0
      %1099 = vmatprep.subr.mxu0 0.0
      %1100 = vmatpush1.msra.mxu0 0.0
      %1101 = vmatprep.subr.mxu0 0.0
      %1102 = vmatpush1.msra.mxu0 0.0
      %1103 = vmatprep.subr.mxu0 0.0
      %1104 = vmatpush1.msra.mxu0 0.0
      %1105 = vmatprep.subr.mxu0 0.0
      %1106 = vmatpush1.msra.mxu0 0.0
      %1107 = vmatprep.subr.mxu0 0.0
      %1108 = vmatpush1.msra.mxu0 0.0
      %1109 = vmatprep.subr.mxu0 0.0
      %1110 = vmatpush1.msra.mxu0 0.0
      %1111 = vmatprep.subr.mxu0 0.0
      %1112 = vmatpush1.msra.mxu0 0.0
      %1113 = vmatprep.subr.mxu0 0.0
      %1114 = vmatpush1.msra.mxu0 0.0
      %1115 = vmatprep.subr.mxu0 0.0
      %1116 = vmatpush1.msra.mxu0 0.0
      %1117 = vmatprep.subr.mxu0 0.0
      %1118 = vmatpush1.msra.mxu0 0.0
      %1119 = vmatprep.subr.mxu0 0.0
      %1120 = vmatpush1.msra.mxu0 0.0
      %1121 = vmatprep.subr.mxu0 0.0
      %1122 = vmatpush1.msra.mxu0 0.0
      %1123 = vmatprep.subr.mxu0 0.0
      %1124 = vmatpush1.msra.mxu0 0.0
      %1125 = vmatprep.subr.mxu0 0.0
      %1126 = vmatpush1.msra.mxu0 0.0
      %1127 = vmatprep.subr.mxu0 0.0
      %1128 = vmatpush1.msra.mxu0 0.0
      %1129 = vmatprep.subr.mxu0 0.0
      %1130 = vmatpush1.msra.mxu0 0.0
      %1131 = vmatprep.subr.mxu0 0.0
      %1132 = vmatpush1.msra.mxu0 0.0
      %1133 = vmatprep.subr.mxu0 0.0
      %1134 = vmatpush1.msra.mxu0 0.0
      %1135 = vmatprep.subr.mxu0 0.0
      %1136 = vmatpush1.msra.mxu0 0.0
      %1137 = vmatprep.subr.mxu0 0.0
      %1138 = vmatpush1.msra.mxu0 0.0
      %1139 = vmatprep.subr.mxu0 0.0
      %1140 = vmatpush1.msra.mxu0 0.0
      %1141 = vmatprep.subr.mxu0 0.0
      %1142 = vmatpush1.msra.mxu0 0.0
      %1143 = vmatprep.subr.mxu0 0.0
      %1144 = vmatpush1.msra.mxu0 0.0
      %1145 = vmatprep.mubr.f32.mxu0 0.0
      %v1146 = vand.u32 %v936, 4294901760
      %1147 = vmatmul.mubr.f32.gmra.mrb[0].mxu0 %v1146
      %v1148 = vpop.f32.mrb[0].mxu0
      %v1149 = vadd.f32 %v1028, %v1148
      %v1150 = vpop.f32.mrb[0].mxu0
      %1151 = vmatprep.mubr.f32.mxu0 0.0
      %v1152 = vand.u32 %v939, 4294901760
      %1153 = vmatmul.mubr.f32.gmra.mrb[0].mxu0 %v1152
      %v1154 = vpop.f32.mrb[0].mxu0
      %v1155 = vadd.f32 %v1038, %v1154
      %v1156 = vpop.f32.mrb[0].mxu0
      %1157 = vmatprep.mubr.f32.mxu0 0.0
      %v1158 = vand.u32 %v942, 4294901760
      %1159 = vmatmul.mubr.f32.gmra.mrb[0].mxu0 %v1158
      %v1160 = vpop.f32.mrb[0].mxu0
      %v1161 = vadd.f32 %v1048, %v1160
      %v1162 = vpop.f32.mrb[0].mxu0
      %1163 = vmatprep.mubr.f32.mxu0 0.0
      %v1164 = vand.u32 %v945, 4294901760
      %1165 = vmatmul.mubr.f32.gmra.mrb[0].mxu0 %v1164
      %v1166 = vpop.f32.mrb[0].mxu0
      %v1167 = vadd.f32 %v1058, %v1166
      %v1168 = vpop.f32.mrb[0].mxu0
      %1169 = vmatprep.mubr.f32.mxu0 0.0
      %v1170 = vand.u32 %v948, 4294901760
      %1171 = vmatmul.mubr.f32.gmra.mrb[0].mxu0 %v1170
      %v1172 = vpop.f32.mrb[0].mxu0
      %v1173 = vadd.f32 %v1068, %v1172
      %v1174 = vpop.f32.mrb[0].mxu0
      %1175 = vdwg.mxu0
      %1176 = vmatprep.subr.mxu0 0.0
      %v1177 = vand.u32 %v932, 4294901760
      %v1178 = vsub.f32 %v932, %v1177
      %1179 = vmatpush1.msra.mxu0 %v1178
      %1180 = vmatprep.subr.mxu0 0.0
      %v1181 = vand.u32 %v952, 4294901760
      %v1182 = vsub.f32 %v952, %v1181
      %1183 = vmatpush1.msra.mxu0 %v1182
      %1184 = vmatprep.subr.mxu0 0.0
      %1185 = vmatpush1.msra.mxu0 0.0
      %1186 = vmatprep.subr.mxu0 0.0
      %1187 = vmatpush1.msra.mxu0 0.0
      %1188 = vmatprep.subr.mxu0 0.0
      %1189 = vmatpush1.msra.mxu0 0.0
      %1190 = vmatprep.subr.mxu0 0.0
      %1191 = vmatpush1.msra.mxu0 0.0
      %1192 = vmatprep.subr.mxu0 0.0
      %1193 = vmatpush1.msra.mxu0 0.0
      %1194 = vmatprep.subr.mxu0 0.0
      %1195 = vmatpush1.msra.mxu0 0.0
      %1196 = vmatprep.subr.mxu0 0.0
      %1197 = vmatpush1.msra.mxu0 0.0
      %1198 = vmatprep.subr.mxu0 0.0
      %1199 = vmatpush1.msra.mxu0 0.0
      %1200 = vmatprep.subr.mxu0 0.0
      %1201 = vmatpush1.msra.mxu0 0.0
      %1202 = vmatprep.subr.mxu0 0.0
      %1203 = vmatpush1.msra.mxu0 0.0
      %1204 = vmatprep.subr.mxu0 0.0
      %1205 = vmatpush1.msra.mxu0 0.0
      %1206 = vmatprep.subr.mxu0 0.0
      %1207 = vmatpush1.msra.mxu0 0.0
      %1208 = vmatprep.subr.mxu0 0.0
      %1209 = vmatpush1.msra.mxu0 0.0
      %1210 = vmatprep.subr.mxu0 0.0
      %1211 = vmatpush1.msra.mxu0 0.0
      %1212 = vmatprep.subr.mxu0 0.0
      %1213 = vmatpush1.msra.mxu0 0.0
      %1214 = vmatprep.subr.mxu0 0.0
      %1215 = vmatpush1.msra.mxu0 0.0
      %1216 = vmatprep.subr.mxu0 0.0
      %1217 = vmatpush1.msra.mxu0 0.0
      %1218 = vmatprep.subr.mxu0 0.0
      %1219 = vmatpush1.msra.mxu0 0.0
      %1220 = vmatprep.subr.mxu0 0.0
      %1221 = vmatpush1.msra.mxu0 0.0
      %1222 = vmatprep.subr.mxu0 0.0
      %1223 = vmatpush1.msra.mxu0 0.0
      %1224 = vmatprep.subr.mxu0 0.0
      %1225 = vmatpush1.msra.mxu0 0.0
      %1226 = vmatprep.subr.mxu0 0.0
      %1227 = vmatpush1.msra.mxu0 0.0
      %1228 = vmatprep.subr.mxu0 0.0
      %1229 = vmatpush1.msra.mxu0 0.0
      %1230 = vmatprep.subr.mxu0 0.0
      %1231 = vmatpush1.msra.mxu0 0.0
      %1232 = vmatprep.subr.mxu0 0.0
      %1233 = vmatpush1.msra.mxu0 0.0
      %1234 = vmatprep.subr.mxu0 0.0
      %1235 = vmatpush1.msra.mxu0 0.0
      %1236 = vmatprep.subr.mxu0 0.0
      %1237 = vmatpush1.msra.mxu0 0.0
      %1238 = vmatprep.subr.mxu0 0.0
      %1239 = vmatpush1.msra.mxu0 0.0
      %1240 = vmatprep.subr.mxu0 0.0
      %1241 = vmatpush1.msra.mxu0 0.0
      %1242 = vmatprep.subr.mxu0 0.0
      %1243 = vmatpush1.msra.mxu0 0.0
      %1244 = vmatprep.mubr.f32.mxu0 0.0
      %v1245 = vand.u32 %v936, 4294901760
      %v1246 = vsub.f32 %v936, %v1245
      %1247 = vmatmul.mubr.f32.gmra.mrb[0].mxu0 %v1246
      %v1248 = vpop.f32.mrb[0].mxu0
      %v1249 = vadd.f32 %v1149, %v1248
      %v1250 = vpop.f32.mrb[0].mxu0
      %1251 = vmatprep.mubr.f32.mxu0 0.0
      %v1252 = vand.u32 %v939, 4294901760
      %v1253 = vsub.f32 %v939, %v1252
      %1254 = vmatmul.mubr.f32.gmra.mrb[0].mxu0 %v1253
      %v1255 = vpop.f32.mrb[0].mxu0
      %v1256 = vadd.f32 %v1155, %v1255
      %v1257 = vpop.f32.mrb[0].mxu0
      %1258 = vmatprep.mubr.f32.mxu0 0.0
      %v1259 = vand.u32 %v942, 4294901760
      %v1260 = vsub.f32 %v942, %v1259
      %1261 = vmatmul.mubr.f32.gmra.mrb[0].mxu0 %v1260
      %v1262 = vpop.f32.mrb[0].mxu0
      %v1263 = vadd.f32 %v1161, %v1262
      %v1264 = vpop.f32.mrb[0].mxu0
      %1265 = vmatprep.mubr.f32.mxu0 0.0
      %v1266 = vand.u32 %v945, 4294901760
      %v1267 = vsub.f32 %v945, %v1266
      %1268 = vmatmul.mubr.f32.gmra.mrb[0].mxu0 %v1267
      %v1269 = vpop.f32.mrb[0].mxu0
      %v1270 = vadd.f32 %v1167, %v1269
      %v1271 = vpop.f32.mrb[0].mxu0
      %1272 = vmatprep.mubr.f32.mxu0 0.0
      %v1273 = vand.u32 %v948, 4294901760
      %v1274 = vsub.f32 %v948, %v1273
      %1275 = vmatmul.mubr.f32.gmra.mrb[0].mxu0 %v1274
      %v1276 = vpop.f32.mrb[0].mxu0
      %v1277 = vadd.f32 %v1173, %v1276
      %v1278 = vpop.f32.mrb[0].mxu0
      %1279 = vdwg.mxu0
      %1280 = vmatprep.subr.mxu0 0.0
      %v1281 = vand.u32 %v932, 4294901760
      %1282 = vmatpush1.msra.mxu0 %v1281
      %1283 = vmatprep.subr.mxu0 0.0
      %v1284 = vand.u32 %v952, 4294901760
      %1285 = vmatpush1.msra.mxu0 %v1284
      %1286 = vmatprep.subr.mxu0 0.0
      %1287 = vmatpush1.msra.mxu0 0.0
      %1288 = vmatprep.subr.mxu0 0.0
      %1289 = vmatpush1.msra.mxu0 0.0
      %1290 = vmatprep.subr.mxu0 0.0
      %1291 = vmatpush1.msra.mxu0 0.0
      %1292 = vmatprep.subr.mxu0 0.0
      %1293 = vmatpush1.msra.mxu0 0.0
      %1294 = vmatprep.subr.mxu0 0.0
      %1295 = vmatpush1.msra.mxu0 0.0
      %1296 = vmatprep.subr.mxu0 0.0
      %1297 = vmatpush1.msra.mxu0 0.0
      %1298 = vmatprep.subr.mxu0 0.0
      %1299 = vmatpush1.msra.mxu0 0.0
      %1300 = vmatprep.subr.mxu0 0.0
      %1301 = vmatpush1.msra.mxu0 0.0
      %1302 = vmatprep.subr.mxu0 0.0
      %1303 = vmatpush1.msra.mxu0 0.0
      %1304 = vmatprep.subr.mxu0 0.0
      %1305 = vmatpush1.msra.mxu0 0.0
      %1306 = vmatprep.subr.mxu0 0.0
      %1307 = vmatpush1.msra.mxu0 0.0
      %1308 = vmatprep.subr.mxu0 0.0
      %1309 = vmatpush1.msra.mxu0 0.0
      %1310 = vmatprep.subr.mxu0 0.0
      %1311 = vmatpush1.msra.mxu0 0.0
      %1312 = vmatprep.subr.mxu0 0.0
      %1313 = vmatpush1.msra.mxu0 0.0
      %1314 = vmatprep.subr.mxu0 0.0
      %1315 = vmatpush1.msra.mxu0 0.0
      %1316 = vmatprep.subr.mxu0 0.0
      %1317 = vmatpush1.msra.mxu0 0.0
      %1318 = vmatprep.subr.mxu0 0.0
      %1319 = vmatpush1.msra.mxu0 0.0
      %1320 = vmatprep.subr.mxu0 0.0
      %1321 = vmatpush1.msra.mxu0 0.0
      %1322 = vmatprep.subr.mxu0 0.0
      %1323 = vmatpush1.msra.mxu0 0.0
      %1324 = vmatprep.subr.mxu0 0.0
      %1325 = vmatpush1.msra.mxu0 0.0
      %1326 = vmatprep.subr.mxu0 0.0
      %1327 = vmatpush1.msra.mxu0 0.0
      %1328 = vmatprep.subr.mxu0 0.0
      %1329 = vmatpush1.msra.mxu0 0.0
      %1330 = vmatprep.subr.mxu0 0.0
      %1331 = vmatpush1.msra.mxu0 0.0
      %1332 = vmatprep.subr.mxu0 0.0
      %1333 = vmatpush1.msra.mxu0 0.0
      %1334 = vmatprep.subr.mxu0 0.0
      %1335 = vmatpush1.msra.mxu0 0.0
      %1336 = vmatprep.subr.mxu0 0.0
      %1337 = vmatpush1.msra.mxu0 0.0
      %1338 = vmatprep.subr.mxu0 0.0
      %1339 = vmatpush1.msra.mxu0 0.0
      %1340 = vmatprep.subr.mxu0 0.0
      %1341 = vmatpush1.msra.mxu0 0.0
      %1342 = vmatprep.subr.mxu0 0.0
      %1343 = vmatpush1.msra.mxu0 0.0
      %1344 = vmatprep.subr.mxu0 0.0
      %1345 = vmatpush1.msra.mxu0 0.0
      %1346 = vmatprep.mubr.f32.mxu0 0.0
      %v1347 = vand.u32 %v936, 4294901760
      %v1348 = vsub.f32 %v936, %v1347
      %v1349 = vand.u32 %v1348, 4294901760
      %1350 = vmatmul.mubr.f32.gmra.mrb[0].mxu0 %v1349
      %v1351 = vpop.f32.mrb[0].mxu0
      %v1352 = vadd.f32 %v1249, %v1351
      %v1353 = vpop.f32.mrb[0].mxu0
      %1354 = vmatprep.mubr.f32.mxu0 0.0
      %v1355 = vand.u32 %v939, 4294901760
      %v1356 = vsub.f32 %v939, %v1355
      %v1357 = vand.u32 %v1356, 4294901760
      %1358 = vmatmul.mubr.f32.gmra.mrb[0].mxu0 %v1357
      %v1359 = vpop.f32.mrb[0].mxu0
      %v1360 = vadd.f32 %v1256, %v1359
      %v1361 = vpop.f32.mrb[0].mxu0
      %1362 = vmatprep.mubr.f32.mxu0 0.0
      %v1363 = vand.u32 %v942, 4294901760
      %v1364 = vsub.f32 %v942, %v1363
      %v1365 = vand.u32 %v1364, 4294901760
      %1366 = vmatmul.mubr.f32.gmra.mrb[0].mxu0 %v1365
      %v1367 = vpop.f32.mrb[0].mxu0
      %v1368 = vadd.f32 %v1263, %v1367
      %v1369 = vpop.f32.mrb[0].mxu0
      %1370 = vmatprep.mubr.f32.mxu0 0.0
      %v1371 = vand.u32 %v945, 4294901760
      %v1372 = vsub.f32 %v945, %v1371
      %v1373 = vand.u32 %v1372, 4294901760
      %1374 = vmatmul.mubr.f32.gmra.mrb[0].mxu0 %v1373
      %v1375 = vpop.f32.mrb[0].mxu0
      %v1376 = vadd.f32 %v1270, %v1375
      %v1377 = vpop.f32.mrb[0].mxu0
      %1378 = vmatprep.mubr.f32.mxu0 0.0
      %v1379 = vand.u32 %v948, 4294901760
      %v1380 = vsub.f32 %v948, %v1379
      %v1381 = vand.u32 %v1380, 4294901760
      %1382 = vmatmul.mubr.f32.gmra.mrb[0].mxu0 %v1381
      %v1383 = vpop.f32.mrb[0].mxu0
      %v1384 = vadd.f32 %v1277, %v1383
      %v1385 = vpop.f32.mrb[0].mxu0
      %1386 = vdwg.mxu0
      %1387 = vmatprep.subr.mxu0 0.0
      %v1388 = vand.u32 %v932, 4294901760
      %v1389 = vsub.f32 %v932, %v1388
      %v1390 = vand.u32 %v1389, 4294901760
      %1391 = vmatpush1.msra.mxu0 %v1390
      %1392 = vmatprep.subr.mxu0 0.0
      %v1393 = vand.u32 %v952, 4294901760
      %v1394 = vsub.f32 %v952, %v1393
      %v1395 = vand.u32 %v1394, 4294901760
      %1396 = vmatpush1.msra.mxu0 %v1395
      %1397 = vmatprep.subr.mxu0 0.0
      %1398 = vmatpush1.msra.mxu0 0.0
      %1399 = vmatprep.subr.mxu0 0.0
      %1400 = vmatpush1.msra.mxu0 0.0
      %1401 = vmatprep.subr.mxu0 0.0
      %1402 = vmatpush1.msra.mxu0 0.0
      %1403 = vmatprep.subr.mxu0 0.0
      %1404 = vmatpush1.msra.mxu0 0.0
      %1405 = vmatprep.subr.mxu0 0.0
      %1406 = vmatpush1.msra.mxu0 0.0
      %1407 = vmatprep.subr.mxu0 0.0
      %1408 = vmatpush1.msra.mxu0 0.0
      %1409 = vmatprep.subr.mxu0 0.0
      %1410 = vmatpush1.msra.mxu0 0.0
      %1411 = vmatprep.subr.mxu0 0.0
      %1412 = vmatpush1.msra.mxu0 0.0
      %1413 = vmatprep.subr.mxu0 0.0
      %1414 = vmatpush1.msra.mxu0 0.0
      %1415 = vmatprep.subr.mxu0 0.0
      %1416 = vmatpush1.msra.mxu0 0.0
      %1417 = vmatprep.subr.mxu0 0.0
      %1418 = vmatpush1.msra.mxu0 0.0
      %1419 = vmatprep.subr.mxu0 0.0
      %1420 = vmatpush1.msra.mxu0 0.0
      %1421 = vmatprep.subr.mxu0 0.0
      %1422 = vmatpush1.msra.mxu0 0.0
      %1423 = vmatprep.subr.mxu0 0.0
      %1424 = vmatpush1.msra.mxu0 0.0
      %1425 = vmatprep.subr.mxu0 0.0
      %1426 = vmatpush1.msra.mxu0 0.0
      %1427 = vmatprep.subr.mxu0 0.0
      %1428 = vmatpush1.msra.mxu0 0.0
      %1429 = vmatprep.subr.mxu0 0.0
      %1430 = vmatpush1.msra.mxu0 0.0
      %1431 = vmatprep.subr.mxu0 0.0
      %1432 = vmatpush1.msra.mxu0 0.0
      %1433 = vmatprep.subr.mxu0 0.0
      %1434 = vmatpush1.msra.mxu0 0.0
      %1435 = vmatprep.subr.mxu0 0.0
      %1436 = vmatpush1.msra.mxu0 0.0
      %1437 = vmatprep.subr.mxu0 0.0
      %1438 = vmatpush1.msra.mxu0 0.0
      %1439 = vmatprep.subr.mxu0 0.0
      %1440 = vmatpush1.msra.mxu0 0.0
      %1441 = vmatprep.subr.mxu0 0.0
      %1442 = vmatpush1.msra.mxu0 0.0
      %1443 = vmatprep.subr.mxu0 0.0
      %1444 = vmatpush1.msra.mxu0 0.0
      %1445 = vmatprep.subr.mxu0 0.0
      %1446 = vmatpush1.msra.mxu0 0.0
      %1447 = vmatprep.subr.mxu0 0.0
      %1448 = vmatpush1.msra.mxu0 0.0
      %1449 = vmatprep.subr.mxu0 0.0
      %1450 = vmatpush1.msra.mxu0 0.0
      %1451 = vmatprep.subr.mxu0 0.0
      %1452 = vmatpush1.msra.mxu0 0.0
      %1453 = vmatprep.subr.mxu0 0.0
      %1454 = vmatpush1.msra.mxu0 0.0
      %1455 = vmatprep.subr.mxu0 0.0
      %1456 = vmatpush1.msra.mxu0 0.0
      %1457 = vmatprep.mubr.f32.mxu0 0.0
      %v1458 = vand.u32 %v936, 4294901760
      %1459 = vmatmul.mubr.f32.gmra.mrb[0].mxu0 %v1458
      %v1460 = vpop.f32.mrb[0].mxu0
      %v1461 = vadd.f32 %v1352, %v1460
      %v1462 = vpop.f32.mrb[0].mxu0
      %1463 = vmatprep.mubr.f32.mxu0 0.0
      %v1464 = vand.u32 %v939, 4294901760
      %1465 = vmatmul.mubr.f32.gmra.mrb[0].mxu0 %v1464
      %v1466 = vpop.f32.mrb[0].mxu0
      %v1467 = vadd.f32 %v1360, %v1466
      %v1468 = vpop.f32.mrb[0].mxu0
      %1469 = vmatprep.mubr.f32.mxu0 0.0
      %v1470 = vand.u32 %v942, 4294901760
      %1471 = vmatmul.mubr.f32.gmra.mrb[0].mxu0 %v1470
      %v1472 = vpop.f32.mrb[0].mxu0
      %v1473 = vadd.f32 %v1368, %v1472
      %v1474 = vpop.f32.mrb[0].mxu0
      %1475 = vmatprep.mubr.f32.mxu0 0.0
      %v1476 = vand.u32 %v945, 4294901760
      %1477 = vmatmul.mubr.f32.gmra.mrb[0].mxu0 %v1476
      %v1478 = vpop.f32.mrb[0].mxu0
      %v1479 = vadd.f32 %v1376, %v1478
      %v1480 = vpop.f32.mrb[0].mxu0
      %1481 = vmatprep.mubr.f32.mxu0 0.0
      %v1482 = vand.u32 %v948, 4294901760
      %1483 = vmatmul.mubr.f32.gmra.mrb[0].mxu0 %v1482
      %v1484 = vpop.f32.mrb[0].mxu0
      %v1485 = vadd.f32 %v1384, %v1484
      %v1486 = vpop.f32.mrb[0].mxu0
      %1487 = vdwg.mxu0
      %1488 = vmatprep.subr.mxu0 0.0
      %v1489 = vand.u32 %v932, 4294901760
      %1490 = vmatpush1.msra.mxu0 %v1489
      %1491 = vmatprep.subr.mxu0 0.0
      %v1492 = vand.u32 %v952, 4294901760
      %1493 = vmatpush1.msra.mxu0 %v1492
      %1494 = vmatprep.subr.mxu0 0.0
      %1495 = vmatpush1.msra.mxu0 0.0
      %1496 = vmatprep.subr.mxu0 0.0
      %1497 = vmatpush1.msra.mxu0 0.0
      %1498 = vmatprep.subr.mxu0 0.0
      %1499 = vmatpush1.msra.mxu0 0.0
      %1500 = vmatprep.subr.mxu0 0.0
      %1501 = vmatpush1.msra.mxu0 0.0
      %1502 = vmatprep.subr.mxu0 0.0
      %1503 = vmatpush1.msra.mxu0 0.0
      %1504 = vmatprep.subr.mxu0 0.0
      %1505 = vmatpush1.msra.mxu0 0.0
      %1506 = vmatprep.subr.mxu0 0.0
      %1507 = vmatpush1.msra.mxu0 0.0
      %1508 = vmatprep.subr.mxu0 0.0
      %1509 = vmatpush1.msra.mxu0 0.0
      %1510 = vmatprep.subr.mxu0 0.0
      %1511 = vmatpush1.msra.mxu0 0.0
      %1512 = vmatprep.subr.mxu0 0.0
      %1513 = vmatpush1.msra.mxu0 0.0
      %1514 = vmatprep.subr.mxu0 0.0
      %1515 = vmatpush1.msra.mxu0 0.0
      %1516 = vmatprep.subr.mxu0 0.0
      %1517 = vmatpush1.msra.mxu0 0.0
      %1518 = vmatprep.subr.mxu0 0.0
      %1519 = vmatpush1.msra.mxu0 0.0
      %1520 = vmatprep.subr.mxu0 0.0
      %1521 = vmatpush1.msra.mxu0 0.0
      %1522 = vmatprep.subr.mxu0 0.0
      %1523 = vmatpush1.msra.mxu0 0.0
      %1524 = vmatprep.subr.mxu0 0.0
      %1525 = vmatpush1.msra.mxu0 0.0
      %1526 = vmatprep.subr.mxu0 0.0
      %1527 = vmatpush1.msra.mxu0 0.0
      %1528 = vmatprep.subr.mxu0 0.0
      %1529 = vmatpush1.msra.mxu0 0.0
      %1530 = vmatprep.subr.mxu0 0.0
      %1531 = vmatpush1.msra.mxu0 0.0
      %1532 = vmatprep.subr.mxu0 0.0
      %1533 = vmatpush1.msra.mxu0 0.0
      %1534 = vmatprep.subr.mxu0 0.0
      %1535 = vmatpush1.msra.mxu0 0.0
      %1536 = vmatprep.subr.mxu0 0.0
      %1537 = vmatpush1.msra.mxu0 0.0
      %1538 = vmatprep.subr.mxu0 0.0
      %1539 = vmatpush1.msra.mxu0 0.0
      %1540 = vmatprep.subr.mxu0 0.0
      %1541 = vmatpush1.msra.mxu0 0.0
      %1542 = vmatprep.subr.mxu0 0.0
      %1543 = vmatpush1.msra.mxu0 0.0
      %1544 = vmatprep.subr.mxu0 0.0
      %1545 = vmatpush1.msra.mxu0 0.0
      %1546 = vmatprep.subr.mxu0 0.0
      %1547 = vmatpush1.msra.mxu0 0.0
      %1548 = vmatprep.subr.mxu0 0.0
      %1549 = vmatpush1.msra.mxu0 0.0
      %1550 = vmatprep.subr.mxu0 0.0
      %1551 = vmatpush1.msra.mxu0 0.0
      %1552 = vmatprep.subr.mxu0 0.0
      %1553 = vmatpush1.msra.mxu0 0.0
      %1554 = vmatprep.mubr.f32.mxu0 0.0
      %v1555 = vand.u32 %v936, 4294901760
      %1556 = vmatmul.mubr.f32.gmra.mrb[0].mxu0 %v1555
      %v1557 = vpop.f32.mrb[0].mxu0
      %v1558 = vadd.f32 %v1461, %v1557
      %v1559 = vpop.f32.mrb[0].mxu0
      %1560 = vmatprep.mubr.f32.mxu0 0.0
      %v1561 = vand.u32 %v939, 4294901760
      %1562 = vmatmul.mubr.f32.gmra.mrb[0].mxu0 %v1561
      %v1563 = vpop.f32.mrb[0].mxu0
      %v1564 = vadd.f32 %v1467, %v1563
      %v1565 = vpop.f32.mrb[0].mxu0
      %1566 = vmatprep.mubr.f32.mxu0 0.0
      %v1567 = vand.u32 %v942, 4294901760
      %1568 = vmatmul.mubr.f32.gmra.mrb[0].mxu0 %v1567
      %v1569 = vpop.f32.mrb[0].mxu0
      %v1570 = vadd.f32 %v1473, %v1569
      %v1571 = vpop.f32.mrb[0].mxu0
      %1572 = vmatprep.mubr.f32.mxu0 0.0
      %v1573 = vand.u32 %v945, 4294901760
      %1574 = vmatmul.mubr.f32.gmra.mrb[0].mxu0 %v1573
      %v1575 = vpop.f32.mrb[0].mxu0
      %v1576 = vadd.f32 %v1479, %v1575
      %v1577 = vpop.f32.mrb[0].mxu0
      %1578 = vmatprep.mubr.f32.mxu0 0.0
      %v1579 = vand.u32 %v948, 4294901760
      %1580 = vmatmul.mubr.f32.gmra.mrb[0].mxu0 %v1579
      %v1581 = vpop.f32.mrb[0].mxu0
      %v1582 = vadd.f32 %v1485, %v1581
      %v1583 = vpop.f32.mrb[0].mxu0
      %1584 = vdwg.mxu0
      %v1586 = vlaneseq
      %v1587 = vshrl.u32 %v1586, 7
      %v1588 = vsub.s32 0, %v1587
      %v1589 = vrot.slane %v380, %v1588
      %1590 = vrot.lane.b32.xlu0 %v1589, 4
      %v1591 = vpop.permute.xlu0 %1590
      %v1593 = vadd.f32 %v1558, %v1591
      %v1594 = vadd.f32 %v1564, %v1591
      %v1595 = vadd.f32 %v1570, %v1591
      %v1596 = vadd.f32 %v1576, %v1591
      %v1597 = vadd.f32 %v1582, %v1591
      %v1598 = vmax.f32 %v1593, 0.0
      %v1599 = vmax.f32 %v1594, 0.0
      %v1600 = vmax.f32 %v1595, 0.0
      %v1601 = vmax.f32 %v1596, 0.0
      %v1602 = vmax.f32 %v1597, 0.0
      %v1603 = vld [vmem:[%s5 + $0xc] sm:$0xf]
      %1609 = vrot.lane.b32.xlu0 %v1598, 124
      %v1610 = vpop.permute.xlu0 %1609
      %1611 = vrot.lane.b32.xlu0 %v1599, 124
      %v1612 = vpop.permute.xlu0 %1611
      %1613 = vrot.lane.b32.xlu0 %v1600, 124
      %v1614 = vpop.permute.xlu0 %1613
      %1615 = vrot.lane.b32.xlu0 %v1601, 124
      %v1616 = vpop.permute.xlu0 %1615
      %1617 = vrot.lane.b32.xlu0 %v1602, 124
      %v1618 = vpop.permute.xlu0 %1617
      %1620 = vrot.lane.b32.xlu0 %v1603, 120
      %v1621 = vpop.permute.xlu0 %1620
      %1622 = vrot.lane.b32.xlu0 %v1589, 124
      %v1623 = vpop.permute.xlu0 %1622
      %vm1625 = vcmask 31744
      %v1626 = vsel %vm1625, %v1610, 0
      %v1628 = vsel %vm1625, %v1612, 0
      %v1630 = vsel %vm1625, %v1614, 0
      %v1632 = vsel %vm1625, %v1616, 0
      %v1634 = vsel %vm1625, %v1618, 0
      %v1636 = vsel %vm950, %v1621, 0
      %1638 = vmatprep.subr.mxu0 0.0
      %v1639 = vand.u32 %v1636, 4294901760
      %1640 = vmatpush1.msra.mxu0 %v1639
      %1641 = vmatprep.subr.mxu0 0.0
      %1642 = vmatpush1.msra.mxu0 0.0
      %1643 = vmatprep.subr.mxu0 0.0
      %1644 = vmatpush1.msra.mxu0 0.0
      %1645 = vmatprep.subr.mxu0 0.0
      %1646 = vmatpush1.msra.mxu0 0.0
      %1647 = vmatprep.subr.mxu0 0.0
      %1648 = vmatpush1.msra.mxu0 0.0
      %1649 = vmatprep.subr.mxu0 0.0
      %1650 = vmatpush1.msra.mxu0 0.0
      %1651 = vmatprep.subr.mxu0 0.0
      %1652 = vmatpush1.msra.mxu0 0.0
      %1653 = vmatprep.subr.mxu0 0.0
      %1654 = vmatpush1.msra.mxu0 0.0
      %1655 = vmatprep.subr.mxu0 0.0
      %1656 = vmatpush1.msra.mxu0 0.0
      %1657 = vmatprep.subr.mxu0 0.0
      %1658 = vmatpush1.msra.mxu0 0.0
      %1659 = vmatprep.subr.mxu0 0.0
      %1660 = vmatpush1.msra.mxu0 0.0
      %1661 = vmatprep.subr.mxu0 0.0
      %1662 = vmatpush1.msra.mxu0 0.0
      %1663 = vmatprep.subr.mxu0 0.0
      %1664 = vmatpush1.msra.mxu0 0.0
      %1665 = vmatprep.subr.mxu0 0.0
      %1666 = vmatpush1.msra.mxu0 0.0
      %1667 = vmatprep.subr.mxu0 0.0
      %1668 = vmatpush1.msra.mxu0 0.0
      %1669 = vmatprep.subr.mxu0 0.0
      %1670 = vmatpush1.msra.mxu0 0.0
      %1671 = vmatprep.subr.mxu0 0.0
      %1672 = vmatpush1.msra.mxu0 0.0
      %1673 = vmatprep.subr.mxu0 0.0
      %1674 = vmatpush1.msra.mxu0 0.0
      %1675 = vmatprep.subr.mxu0 0.0
      %1676 = vmatpush1.msra.mxu0 0.0
      %1677 = vmatprep.subr.mxu0 0.0
      %1678 = vmatpush1.msra.mxu0 0.0
      %1679 = vmatprep.subr.mxu0 0.0
      %1680 = vmatpush1.msra.mxu0 0.0
      %1681 = vmatprep.subr.mxu0 0.0
      %1682 = vmatpush1.msra.mxu0 0.0
      %1683 = vmatprep.subr.mxu0 0.0
      %1684 = vmatpush1.msra.mxu0 0.0
      %1685 = vmatprep.subr.mxu0 0.0
      %1686 = vmatpush1.msra.mxu0 0.0
      %1687 = vmatprep.subr.mxu0 0.0
      %1688 = vmatpush1.msra.mxu0 0.0
      %1689 = vmatprep.subr.mxu0 0.0
      %1690 = vmatpush1.msra.mxu0 0.0
      %1691 = vmatprep.subr.mxu0 0.0
      %1692 = vmatpush1.msra.mxu0 0.0
      %1693 = vmatprep.subr.mxu0 0.0
      %1694 = vmatpush1.msra.mxu0 0.0
      %1695 = vmatprep.subr.mxu0 0.0
      %1696 = vmatpush1.msra.mxu0 0.0
      %1697 = vmatprep.subr.mxu0 0.0
      %1698 = vmatpush1.msra.mxu0 0.0
      %1699 = vmatprep.subr.mxu0 0.0
      %1700 = vmatpush1.msra.mxu0 0.0
      %1701 = vmatprep.subr.mxu0 0.0
      %1702 = vmatpush1.msra.mxu0 0.0
      %1703 = vmatprep.mubr.f32.mxu0 0.0
      %v1704 = vand.u32 %v1626, 4294901760
      %v1705 = vsub.f32 %v1626, %v1704
      %v1706 = vand.u32 %v1705, 4294901760
      %v1707 = vsub.f32 %v1705, %v1706
      %v1708 = vand.u32 %v1707, 4294901760
      %1709 = vmatmul.mubr.f32.gmra.mrb[0].mxu0 %v1708
      %v1710 = vpop.f32.mrb[0].mxu0
      %v1711 = vadd.f32 %v1623, %v1710
      %v1712 = vpop.f32.mrb[0].mxu0
      %1713 = vmatprep.mubr.f32.mxu0 0.0
      %v1714 = vand.u32 %v1628, 4294901760
      %v1715 = vsub.f32 %v1628, %v1714
      %v1716 = vand.u32 %v1715, 4294901760
      %v1717 = vsub.f32 %v1715, %v1716
      %v1718 = vand.u32 %v1717, 4294901760
      %1719 = vmatmul.mubr.f32.gmra.mrb[0].mxu0 %v1718
      %v1720 = vpop.f32.mrb[0].mxu0
      %v1721 = vadd.f32 %v1623, %v1720
      %v1722 = vpop.f32.mrb[0].mxu0
      %1723 = vmatprep.mubr.f32.mxu0 0.0
      %v1724 = vand.u32 %v1630, 4294901760
      %v1725 = vsub.f32 %v1630, %v1724
      %v1726 = vand.u32 %v1725, 4294901760
      %v1727 = vsub.f32 %v1725, %v1726
      %v1728 = vand.u32 %v1727, 4294901760
      %1729 = vmatmul.mubr.f32.gmra.mrb[0].mxu0 %v1728
      %v1730 = vpop.f32.mrb[0].mxu0
      %v1731 = vadd.f32 %v1623, %v1730
      %v1732 = vpop.f32.mrb[0].mxu0
      %1733 = vmatprep.mubr.f32.mxu0 0.0
      %v1734 = vand.u32 %v1632, 4294901760
      %v1735 = vsub.f32 %v1632, %v1734
      %v1736 = vand.u32 %v1735, 4294901760
      %v1737 = vsub.f32 %v1735, %v1736
      %v1738 = vand.u32 %v1737, 4294901760
      %1739 = vmatmul.mubr.f32.gmra.mrb[0].mxu0 %v1738
      %v1740 = vpop.f32.mrb[0].mxu0
      %v1741 = vadd.f32 %v1623, %v1740
      %v1742 = vpop.f32.mrb[0].mxu0
      %1743 = vmatprep.mubr.f32.mxu0 0.0
      %v1744 = vand.u32 %v1634, 4294901760
      %v1745 = vsub.f32 %v1634, %v1744
      %v1746 = vand.u32 %v1745, 4294901760
      %v1747 = vsub.f32 %v1745, %v1746
      %v1748 = vand.u32 %v1747, 4294901760
      %1749 = vmatmul.mubr.f32.gmra.mrb[0].mxu0 %v1748
      %v1750 = vpop.f32.mrb[0].mxu0
      %v1751 = vadd.f32 %v1623, %v1750
      %v1752 = vpop.f32.mrb[0].mxu0
      %1753 = vdwg.mxu0
      %1754 = vmatprep.subr.mxu0 0.0
      %v1755 = vand.u32 %v1636, 4294901760
      %v1756 = vsub.f32 %v1636, %v1755
      %v1757 = vand.u32 %v1756, 4294901760
      %v1758 = vsub.f32 %v1756, %v1757
      %v1759 = vand.u32 %v1758, 4294901760
      %1760 = vmatpush1.msra.mxu0 %v1759
      %1761 = vmatprep.subr.mxu0 0.0
      %1762 = vmatpush1.msra.mxu0 0.0
      %1763 = vmatprep.subr.mxu0 0.0
      %1764 = vmatpush1.msra.mxu0 0.0
      %1765 = vmatprep.subr.mxu0 0.0
      %1766 = vmatpush1.msra.mxu0 0.0
      %1767 = vmatprep.subr.mxu0 0.0
      %1768 = vmatpush1.msra.mxu0 0.0
      %1769 = vmatprep.subr.mxu0 0.0
      %1770 = vmatpush1.msra.mxu0 0.0
      %1771 = vmatprep.subr.mxu0 0.0
      %1772 = vmatpush1.msra.mxu0 0.0
      %1773 = vmatprep.subr.mxu0 0.0
      %1774 = vmatpush1.msra.mxu0 0.0
      %1775 = vmatprep.subr.mxu0 0.0
      %1776 = vmatpush1.msra.mxu0 0.0
      %1777 = vmatprep.subr.mxu0 0.0
      %1778 = vmatpush1.msra.mxu0 0.0
      %1779 = vmatprep.subr.mxu0 0.0
      %1780 = vmatpush1.msra.mxu0 0.0
      %1781 = vmatprep.subr.mxu0 0.0
      %1782 = vmatpush1.msra.mxu0 0.0
      %1783 = vmatprep.subr.mxu0 0.0
      %1784 = vmatpush1.msra.mxu0 0.0
      %1785 = vmatprep.subr.mxu0 0.0
      %1786 = vmatpush1.msra.mxu0 0.0
      %1787 = vmatprep.subr.mxu0 0.0
      %1788 = vmatpush1.msra.mxu0 0.0
      %1789 = vmatprep.subr.mxu0 0.0
      %1790 = vmatpush1.msra.mxu0 0.0
      %1791 = vmatprep.subr.mxu0 0.0
      %1792 = vmatpush1.msra.mxu0 0.0
      %1793 = vmatprep.subr.mxu0 0.0
      %1794 = vmatpush1.msra.mxu0 0.0
      %1795 = vmatprep.subr.mxu0 0.0
      %1796 = vmatpush1.msra.mxu0 0.0
      %1797 = vmatprep.subr.mxu0 0.0
      %1798 = vmatpush1.msra.mxu0 0.0
      %1799 = vmatprep.subr.mxu0 0.0
      %1800 = vmatpush1.msra.mxu0 0.0
      %1801 = vmatprep.subr.mxu0 0.0
      %1802 = vmatpush1.msra.mxu0 0.0
      %1803 = vmatprep.subr.mxu0 0.0
      %1804 = vmatpush1.msra.mxu0 0.0
      %1805 = vmatprep.subr.mxu0 0.0
      %1806 = vmatpush1.msra.mxu0 0.0
      %1807 = vmatprep.subr.mxu0 0.0
      %1808 = vmatpush1.msra.mxu0 0.0
      %1809 = vmatprep.subr.mxu0 0.0
      %1810 = vmatpush1.msra.mxu0 0.0
      %1811 = vmatprep.subr.mxu0 0.0
      %1812 = vmatpush1.msra.mxu0 0.0
      %1813 = vmatprep.subr.mxu0 0.0
      %1814 = vmatpush1.msra.mxu0 0.0
      %1815 = vmatprep.subr.mxu0 0.0
      %1816 = vmatpush1.msra.mxu0 0.0
      %1817 = vmatprep.subr.mxu0 0.0
      %1818 = vmatpush1.msra.mxu0 0.0
      %1819 = vmatprep.subr.mxu0 0.0
      %1820 = vmatpush1.msra.mxu0 0.0
      %1821 = vmatprep.subr.mxu0 0.0
      %1822 = vmatpush1.msra.mxu0 0.0
      %1823 = vmatprep.mubr.f32.mxu0 0.0
      %v1824 = vand.u32 %v1626, 4294901760
      %1825 = vmatmul.mubr.f32.gmra.mrb[0].mxu0 %v1824
      %v1826 = vpop.f32.mrb[0].mxu0
      %v1827 = vadd.f32 %v1711, %v1826
      %v1828 = vpop.f32.mrb[0].mxu0
      %1829 = vmatprep.mubr.f32.mxu0 0.0
      %v1830 = vand.u32 %v1628, 4294901760
      %1831 = vmatmul.mubr.f32.gmra.mrb[0].mxu0 %v1830
      %v1832 = vpop.f32.mrb[0].mxu0
      %v1833 = vadd.f32 %v1721, %v1832
      %v1834 = vpop.f32.mrb[0].mxu0
      %1835 = vmatprep.mubr.f32.mxu0 0.0
      %v1836 = vand.u32 %v1630, 4294901760
      %1837 = vmatmul.mubr.f32.gmra.mrb[0].mxu0 %v1836
      %v1838 = vpop.f32.mrb[0].mxu0
      %v1839 = vadd.f32 %v1731, %v1838
      %v1840 = vpop.f32.mrb[0].mxu0
      %1841 = vmatprep.mubr.f32.mxu0 0.0
      %v1842 = vand.u32 %v1632, 4294901760
      %1843 = vmatmul.mubr.f32.gmra.mrb[0].mxu0 %v1842
      %v1844 = vpop.f32.mrb[0].mxu0
      %v1845 = vadd.f32 %v1741, %v1844
      %v1846 = vpop.f32.mrb[0].mxu0
      %1847 = vmatprep.mubr.f32.mxu0 0.0
      %v1848 = vand.u32 %v1634, 4294901760
      %1849 = vmatmul.mubr.f32.gmra.mrb[0].mxu0 %v1848
      %v1850 = vpop.f32.mrb[0].mxu0
      %v1851 = vadd.f32 %v1751, %v1850
      %v1852 = vpop.f32.mrb[0].mxu0
      %1853 = vdwg.mxu0
      %1854 = vmatprep.subr.mxu0 0.0
      %v1855 = vand.u32 %v1636, 4294901760
      %v1856 = vsub.f32 %v1636, %v1855
      %1857 = vmatpush1.msra.mxu0 %v1856
      %1858 = vmatprep.subr.mxu0 0.0
      %1859 = vmatpush1.msra.mxu0 0.0
      %1860 = vmatprep.subr.mxu0 0.0
      %1861 = vmatpush1.msra.mxu0 0.0
      %1862 = vmatprep.subr.mxu0 0.0
      %1863 = vmatpush1.msra.mxu0 0.0
      %1864 = vmatprep.subr.mxu0 0.0
      %1865 = vmatpush1.msra.mxu0 0.0
      %1866 = vmatprep.subr.mxu0 0.0
      %1867 = vmatpush1.msra.mxu0 0.0
      %1868 = vmatprep.subr.mxu0 0.0
      %1869 = vmatpush1.msra.mxu0 0.0
      %1870 = vmatprep.subr.mxu0 0.0
      %1871 = vmatpush1.msra.mxu0 0.0
      %1872 = vmatprep.subr.mxu0 0.0
      %1873 = vmatpush1.msra.mxu0 0.0
      %1874 = vmatprep.subr.mxu0 0.0
      %1875 = vmatpush1.msra.mxu0 0.0
      %1876 = vmatprep.subr.mxu0 0.0
      %1877 = vmatpush1.msra.mxu0 0.0
      %1878 = vmatprep.subr.mxu0 0.0
      %1879 = vmatpush1.msra.mxu0 0.0
      %1880 = vmatprep.subr.mxu0 0.0
      %1881 = vmatpush1.msra.mxu0 0.0
      %1882 = vmatprep.subr.mxu0 0.0
      %1883 = vmatpush1.msra.mxu0 0.0
      %1884 = vmatprep.subr.mxu0 0.0
      %1885 = vmatpush1.msra.mxu0 0.0
      %1886 = vmatprep.subr.mxu0 0.0
      %1887 = vmatpush1.msra.mxu0 0.0
      %1888 = vmatprep.subr.mxu0 0.0
      %1889 = vmatpush1.msra.mxu0 0.0
      %1890 = vmatprep.subr.mxu0 0.0
      %1891 = vmatpush1.msra.mxu0 0.0
      %1892 = vmatprep.subr.mxu0 0.0
      %1893 = vmatpush1.msra.mxu0 0.0
      %1894 = vmatprep.subr.mxu0 0.0
      %1895 = vmatpush1.msra.mxu0 0.0
      %1896 = vmatprep.subr.mxu0 0.0
      %1897 = vmatpush1.msra.mxu0 0.0
      %1898 = vmatprep.subr.mxu0 0.0
      %1899 = vmatpush1.msra.mxu0 0.0
      %1900 = vmatprep.subr.mxu0 0.0
      %1901 = vmatpush1.msra.mxu0 0.0
      %1902 = vmatprep.subr.mxu0 0.0
      %1903 = vmatpush1.msra.mxu0 0.0
      %1904 = vmatprep.subr.mxu0 0.0
      %1905 = vmatpush1.msra.mxu0 0.0
      %1906 = vmatprep.subr.mxu0 0.0
      %1907 = vmatpush1.msra.mxu0 0.0
      %1908 = vmatprep.subr.mxu0 0.0
      %1909 = vmatpush1.msra.mxu0 0.0
      %1910 = vmatprep.subr.mxu0 0.0
      %1911 = vmatpush1.msra.mxu0 0.0
      %1912 = vmatprep.subr.mxu0 0.0
      %1913 = vmatpush1.msra.mxu0 0.0
      %1914 = vmatprep.subr.mxu0 0.0
      %1915 = vmatpush1.msra.mxu0 0.0
      %1916 = vmatprep.subr.mxu0 0.0
      %1917 = vmatpush1.msra.mxu0 0.0
      %1918 = vmatprep.subr.mxu0 0.0
      %1919 = vmatpush1.msra.mxu0 0.0
      %1920 = vmatprep.mubr.f32.mxu0 0.0
      %v1921 = vand.u32 %v1626, 4294901760
      %v1922 = vsub.f32 %v1626, %v1921
      %1923 = vmatmul.mubr.f32.gmra.mrb[0].mxu0 %v1922
      %v1924 = vpop.f32.mrb[0].mxu0
      %v1925 = vadd.f32 %v1827, %v1924
      %v1926 = vpop.f32.mrb[0].mxu0
      %1927 = vmatprep.mubr.f32.mxu0 0.0
      %v1928 = vand.u32 %v1628, 4294901760
      %v1929 = vsub.f32 %v1628, %v1928
      %1930 = vmatmul.mubr.f32.gmra.mrb[0].mxu0 %v1929
      %v1931 = vpop.f32.mrb[0].mxu0
      %v1932 = vadd.f32 %v1833, %v1931
      %v1933 = vpop.f32.mrb[0].mxu0
      %1934 = vmatprep.mubr.f32.mxu0 0.0
      %v1935 = vand.u32 %v1630, 4294901760
      %v1936 = vsub.f32 %v1630, %v1935
      %1937 = vmatmul.mubr.f32.gmra.mrb[0].mxu0 %v1936
      %v1938 = vpop.f32.mrb[0].mxu0
      %v1939 = vadd.f32 %v1839, %v1938
      %v1940 = vpop.f32.mrb[0].mxu0
      %1941 = vmatprep.mubr.f32.mxu0 0.0
      %v1942 = vand.u32 %v1632, 4294901760
      %v1943 = vsub.f32 %v1632, %v1942
      %1944 = vmatmul.mubr.f32.gmra.mrb[0].mxu0 %v1943
      %v1945 = vpop.f32.mrb[0].mxu0
      %v1946 = vadd.f32 %v1845, %v1945
      %v1947 = vpop.f32.mrb[0].mxu0
      %1948 = vmatprep.mubr.f32.mxu0 0.0
      %v1949 = vand.u32 %v1634, 4294901760
      %v1950 = vsub.f32 %v1634, %v1949
      %1951 = vmatmul.mubr.f32.gmra.mrb[0].mxu0 %v1950
      %v1952 = vpop.f32.mrb[0].mxu0
      %v1953 = vadd.f32 %v1851, %v1952
      %v1954 = vpop.f32.mrb[0].mxu0
      %1955 = vdwg.mxu0
      %1956 = vmatprep.subr.mxu0 0.0
      %v1957 = vand.u32 %v1636, 4294901760
      %1958 = vmatpush1.msra.mxu0 %v1957
      %1959 = vmatprep.subr.mxu0 0.0
      %1960 = vmatpush1.msra.mxu0 0.0
      %1961 = vmatprep.subr.mxu0 0.0
      %1962 = vmatpush1.msra.mxu0 0.0
      %1963 = vmatprep.subr.mxu0 0.0
      %1964 = vmatpush1.msra.mxu0 0.0
      %1965 = vmatprep.subr.mxu0 0.0
      %1966 = vmatpush1.msra.mxu0 0.0
      %1967 = vmatprep.subr.mxu0 0.0
      %1968 = vmatpush1.msra.mxu0 0.0
      %1969 = vmatprep.subr.mxu0 0.0
      %1970 = vmatpush1.msra.mxu0 0.0
      %1971 = vmatprep.subr.mxu0 0.0
      %1972 = vmatpush1.msra.mxu0 0.0
      %1973 = vmatprep.subr.mxu0 0.0
      %1974 = vmatpush1.msra.mxu0 0.0
      %1975 = vmatprep.subr.mxu0 0.0
      %1976 = vmatpush1.msra.mxu0 0.0
      %1977 = vmatprep.subr.mxu0 0.0
      %1978 = vmatpush1.msra.mxu0 0.0
      %1979 = vmatprep.subr.mxu0 0.0
      %1980 = vmatpush1.msra.mxu0 0.0
      %1981 = vmatprep.subr.mxu0 0.0
      %1982 = vmatpush1.msra.mxu0 0.0
      %1983 = vmatprep.subr.mxu0 0.0
      %1984 = vmatpush1.msra.mxu0 0.0
      %1985 = vmatprep.subr.mxu0 0.0
      %1986 = vmatpush1.msra.mxu0 0.0
      %1987 = vmatprep.subr.mxu0 0.0
      %1988 = vmatpush1.msra.mxu0 0.0
      %1989 = vmatprep.subr.mxu0 0.0
      %1990 = vmatpush1.msra.mxu0 0.0
      %1991 = vmatprep.subr.mxu0 0.0
      %1992 = vmatpush1.msra.mxu0 0.0
      %1993 = vmatprep.subr.mxu0 0.0
      %1994 = vmatpush1.msra.mxu0 0.0
      %1995 = vmatprep.subr.mxu0 0.0
      %1996 = vmatpush1.msra.mxu0 0.0
      %1997 = vmatprep.subr.mxu0 0.0
      %1998 = vmatpush1.msra.mxu0 0.0
      %1999 = vmatprep.subr.mxu0 0.0
      %2000 = vmatpush1.msra.mxu0 0.0
      %2001 = vmatprep.subr.mxu0 0.0
      %2002 = vmatpush1.msra.mxu0 0.0
      %2003 = vmatprep.subr.mxu0 0.0
      %2004 = vmatpush1.msra.mxu0 0.0
      %2005 = vmatprep.subr.mxu0 0.0
      %2006 = vmatpush1.msra.mxu0 0.0
      %2007 = vmatprep.subr.mxu0 0.0
      %2008 = vmatpush1.msra.mxu0 0.0
      %2009 = vmatprep.subr.mxu0 0.0
      %2010 = vmatpush1.msra.mxu0 0.0
      %2011 = vmatprep.subr.mxu0 0.0
      %2012 = vmatpush1.msra.mxu0 0.0
      %2013 = vmatprep.subr.mxu0 0.0
      %2014 = vmatpush1.msra.mxu0 0.0
      %2015 = vmatprep.subr.mxu0 0.0
      %2016 = vmatpush1.msra.mxu0 0.0
      %2017 = vmatprep.subr.mxu0 0.0
      %2018 = vmatpush1.msra.mxu0 0.0
      %2019 = vmatprep.subr.mxu0 0.0
      %2020 = vmatpush1.msra.mxu0 0.0
      %2021 = vmatprep.mubr.f32.mxu0 0.0
      %v2022 = vand.u32 %v1626, 4294901760
      %v2023 = vsub.f32 %v1626, %v2022
      %v2024 = vand.u32 %v2023, 4294901760
      %2025 = vmatmul.mubr.f32.gmra.mrb[0].mxu0 %v2024
      %v2026 = vpop.f32.mrb[0].mxu0
      %v2027 = vadd.f32 %v1925, %v2026
      %v2028 = vpop.f32.mrb[0].mxu0
      %2029 = vmatprep.mubr.f32.mxu0 0.0
      %v2030 = vand.u32 %v1628, 4294901760
      %v2031 = vsub.f32 %v1628, %v2030
      %v2032 = vand.u32 %v2031, 4294901760
      %2033 = vmatmul.mubr.f32.gmra.mrb[0].mxu0 %v2032
      %v2034 = vpop.f32.mrb[0].mxu0
      %v2035 = vadd.f32 %v1932, %v2034
      %v2036 = vpop.f32.mrb[0].mxu0
      %2037 = vmatprep.mubr.f32.mxu0 0.0
      %v2038 = vand.u32 %v1630, 4294901760
      %v2039 = vsub.f32 %v1630, %v2038
      %v2040 = vand.u32 %v2039, 4294901760
      %2041 = vmatmul.mubr.f32.gmra.mrb[0].mxu0 %v2040
      %v2042 = vpop.f32.mrb[0].mxu0
      %v2043 = vadd.f32 %v1939, %v2042
      %v2044 = vpop.f32.mrb[0].mxu0
      %2045 = vmatprep.mubr.f32.mxu0 0.0
      %v2046 = vand.u32 %v1632, 4294901760
      %v2047 = vsub.f32 %v1632, %v2046
      %v2048 = vand.u32 %v2047, 4294901760
      %2049 = vmatmul.mubr.f32.gmra.mrb[0].mxu0 %v2048
      %v2050 = vpop.f32.mrb[0].mxu0
      %v2051 = vadd.f32 %v1946, %v2050
      %v2052 = vpop.f32.mrb[0].mxu0
      %2053 = vmatprep.mubr.f32.mxu0 0.0
      %v2054 = vand.u32 %v1634, 4294901760
      %v2055 = vsub.f32 %v1634, %v2054
      %v2056 = vand.u32 %v2055, 4294901760
      %2057 = vmatmul.mubr.f32.gmra.mrb[0].mxu0 %v2056
      %v2058 = vpop.f32.mrb[0].mxu0
      %v2059 = vadd.f32 %v1953, %v2058
      %v2060 = vpop.f32.mrb[0].mxu0
      %2061 = vdwg.mxu0
      %2062 = vmatprep.subr.mxu0 0.0
      %v2063 = vand.u32 %v1636, 4294901760
      %v2064 = vsub.f32 %v1636, %v2063
      %v2065 = vand.u32 %v2064, 4294901760
      %2066 = vmatpush1.msra.mxu0 %v2065
      %2067 = vmatprep.subr.mxu0 0.0
      %2068 = vmatpush1.msra.mxu0 0.0
      %2069 = vmatprep.subr.mxu0 0.0
      %2070 = vmatpush1.msra.mxu0 0.0
      %2071 = vmatprep.subr.mxu0 0.0
      %2072 = vmatpush1.msra.mxu0 0.0
      %2073 = vmatprep.subr.mxu0 0.0
      %2074 = vmatpush1.msra.mxu0 0.0
      %2075 = vmatprep.subr.mxu0 0.0
      %2076 = vmatpush1.msra.mxu0 0.0
      %2077 = vmatprep.subr.mxu0 0.0
      %2078 = vmatpush1.msra.mxu0 0.0
      %2079 = vmatprep.subr.mxu0 0.0
      %2080 = vmatpush1.msra.mxu0 0.0
      %2081 = vmatprep.subr.mxu0 0.0
      %2082 = vmatpush1.msra.mxu0 0.0
      %2083 = vmatprep.subr.mxu0 0.0
      %2084 = vmatpush1.msra.mxu0 0.0
      %2085 = vmatprep.subr.mxu0 0.0
      %2086 = vmatpush1.msra.mxu0 0.0
      %2087 = vmatprep.subr.mxu0 0.0
      %2088 = vmatpush1.msra.mxu0 0.0
      %2089 = vmatprep.subr.mxu0 0.0
      %2090 = vmatpush1.msra.mxu0 0.0
      %2091 = vmatprep.subr.mxu0 0.0
      %2092 = vmatpush1.msra.mxu0 0.0
      %2093 = vmatprep.subr.mxu0 0.0
      %2094 = vmatpush1.msra.mxu0 0.0
      %2095 = vmatprep.subr.mxu0 0.0
      %2096 = vmatpush1.msra.mxu0 0.0
      %2097 = vmatprep.subr.mxu0 0.0
      %2098 = vmatpush1.msra.mxu0 0.0
      %2099 = vmatprep.subr.mxu0 0.0
      %2100 = vmatpush1.msra.mxu0 0.0
      %2101 = vmatprep.subr.mxu0 0.0
      %2102 = vmatpush1.msra.mxu0 0.0
      %2103 = vmatprep.subr.mxu0 0.0
      %2104 = vmatpush1.msra.mxu0 0.0
      %2105 = vmatprep.subr.mxu0 0.0
      %2106 = vmatpush1.msra.mxu0 0.0
      %2107 = vmatprep.subr.mxu0 0.0
      %2108 = vmatpush1.msra.mxu0 0.0
      %2109 = vmatprep.subr.mxu0 0.0
      %2110 = vmatpush1.msra.mxu0 0.0
      %2111 = vmatprep.subr.mxu0 0.0
      %2112 = vmatpush1.msra.mxu0 0.0
      %2113 = vmatprep.subr.mxu0 0.0
      %2114 = vmatpush1.msra.mxu0 0.0
      %2115 = vmatprep.subr.mxu0 0.0
      %2116 = vmatpush1.msra.mxu0 0.0
      %2117 = vmatprep.subr.mxu0 0.0
      %2118 = vmatpush1.msra.mxu0 0.0
      %2119 = vmatprep.subr.mxu0 0.0
      %2120 = vmatpush1.msra.mxu0 0.0
      %2121 = vmatprep.subr.mxu0 0.0
      %2122 = vmatpush1.msra.mxu0 0.0
      %2123 = vmatprep.subr.mxu0 0.0
      %2124 = vmatpush1.msra.mxu0 0.0
      %2125 = vmatprep.subr.mxu0 0.0
      %2126 = vmatpush1.msra.mxu0 0.0
      %2127 = vmatprep.subr.mxu0 0.0
      %2128 = vmatpush1.msra.mxu0 0.0
      %2129 = vmatprep.mubr.f32.mxu0 0.0
      %v2130 = vand.u32 %v1626, 4294901760
      %2131 = vmatmul.mubr.f32.gmra.mrb[0].mxu0 %v2130
      %v2132 = vpop.f32.mrb[0].mxu0
      %v2133 = vadd.f32 %v2027, %v2132
      %v2134 = vpop.f32.mrb[0].mxu0
      %2135 = vmatprep.mubr.f32.mxu0 0.0
      %v2136 = vand.u32 %v1628, 4294901760
      %2137 = vmatmul.mubr.f32.gmra.mrb[0].mxu0 %v2136
      %v2138 = vpop.f32.mrb[0].mxu0
      %v2139 = vadd.f32 %v2035, %v2138
      %v2140 = vpop.f32.mrb[0].mxu0
      %2141 = vmatprep.mubr.f32.mxu0 0.0
      %v2142 = vand.u32 %v1630, 4294901760
      %2143 = vmatmul.mubr.f32.gmra.mrb[0].mxu0 %v2142
      %v2144 = vpop.f32.mrb[0].mxu0
      %v2145 = vadd.f32 %v2043, %v2144
      %v2146 = vpop.f32.mrb[0].mxu0
      %2147 = vmatprep.mubr.f32.mxu0 0.0
      %v2148 = vand.u32 %v1632, 4294901760
      %2149 = vmatmul.mubr.f32.gmra.mrb[0].mxu0 %v2148
      %v2150 = vpop.f32.mrb[0].mxu0
      %v2151 = vadd.f32 %v2051, %v2150
      %v2152 = vpop.f32.mrb[0].mxu0
      %2153 = vmatprep.mubr.f32.mxu0 0.0
      %v2154 = vand.u32 %v1634, 4294901760
      %2155 = vmatmul.mubr.f32.gmra.mrb[0].mxu0 %v2154
      %v2156 = vpop.f32.mrb[0].mxu0
      %v2157 = vadd.f32 %v2059, %v2156
      %v2158 = vpop.f32.mrb[0].mxu0
      %2159 = vdwg.mxu0
      %2160 = vmatprep.subr.mxu0 0.0
      %v2161 = vand.u32 %v1636, 4294901760
      %2162 = vmatpush1.msra.mxu0 %v2161
      %2163 = vmatprep.subr.mxu0 0.0
      %2164 = vmatpush1.msra.mxu0 0.0
      %2165 = vmatprep.subr.mxu0 0.0
      %2166 = vmatpush1.msra.mxu0 0.0
      %2167 = vmatprep.subr.mxu0 0.0
      %2168 = vmatpush1.msra.mxu0 0.0
      %2169 = vmatprep.subr.mxu0 0.0
      %2170 = vmatpush1.msra.mxu0 0.0
      %2171 = vmatprep.subr.mxu0 0.0
      %2172 = vmatpush1.msra.mxu0 0.0
      %2173 = vmatprep.subr.mxu0 0.0
      %2174 = vmatpush1.msra.mxu0 0.0
      %2175 = vmatprep.subr.mxu0 0.0
      %2176 = vmatpush1.msra.mxu0 0.0
      %2177 = vmatprep.subr.mxu0 0.0
      %2178 = vmatpush1.msra.mxu0 0.0
      %2179 = vmatprep.subr.mxu0 0.0
      %2180 = vmatpush1.msra.mxu0 0.0
      %2181 = vmatprep.subr.mxu0 0.0
      %2182 = vmatpush1.msra.mxu0 0.0
      %2183 = vmatprep.subr.mxu0 0.0
      %2184 = vmatpush1.msra.mxu0 0.0
      %2185 = vmatprep.subr.mxu0 0.0
      %2186 = vmatpush1.msra.mxu0 0.0
      %2187 = vmatprep.subr.mxu0 0.0
      %2188 = vmatpush1.msra.mxu0 0.0
      %2189 = vmatprep.subr.mxu0 0.0
      %2190 = vmatpush1.msra.mxu0 0.0
      %2191 = vmatprep.subr.mxu0 0.0
      %2192 = vmatpush1.msra.mxu0 0.0
      %2193 = vmatprep.subr.mxu0 0.0
      %2194 = vmatpush1.msra.mxu0 0.0
      %2195 = vmatprep.subr.mxu0 0.0
      %2196 = vmatpush1.msra.mxu0 0.0
      %2197 = vmatprep.subr.mxu0 0.0
      %2198 = vmatpush1.msra.mxu0 0.0
      %2199 = vmatprep.subr.mxu0 0.0
      %2200 = vmatpush1.msra.mxu0 0.0
      %2201 = vmatprep.subr.mxu0 0.0
      %2202 = vmatpush1.msra.mxu0 0.0
      %2203 = vmatprep.subr.mxu0 0.0
      %2204 = vmatpush1.msra.mxu0 0.0
      %2205 = vmatprep.subr.mxu0 0.0
      %2206 = vmatpush1.msra.mxu0 0.0
      %2207 = vmatprep.subr.mxu0 0.0
      %2208 = vmatpush1.msra.mxu0 0.0
      %2209 = vmatprep.subr.mxu0 0.0
      %2210 = vmatpush1.msra.mxu0 0.0
      %2211 = vmatprep.subr.mxu0 0.0
      %2212 = vmatpush1.msra.mxu0 0.0
      %2213 = vmatprep.subr.mxu0 0.0
      %2214 = vmatpush1.msra.mxu0 0.0
      %2215 = vmatprep.subr.mxu0 0.0
      %2216 = vmatpush1.msra.mxu0 0.0
      %2217 = vmatprep.subr.mxu0 0.0
      %2218 = vmatpush1.msra.mxu0 0.0
      %2219 = vmatprep.subr.mxu0 0.0
      %2220 = vmatpush1.msra.mxu0 0.0
      %2221 = vmatprep.subr.mxu0 0.0
      %2222 = vmatpush1.msra.mxu0 0.0
      %2223 = vmatprep.subr.mxu0 0.0
      %2224 = vmatpush1.msra.mxu0 0.0
      %2225 = vmatprep.mubr.f32.mxu0 0.0
      %v2226 = vand.u32 %v1626, 4294901760
      %2227 = vmatmul.mubr.f32.gmra.mrb[0].mxu0 %v2226
      %v2228 = vpop.f32.mrb[0].mxu0
      %v2229 = vadd.f32 %v2133, %v2228
      %v2230 = vpop.f32.mrb[0].mxu0
      %2231 = vmatprep.mubr.f32.mxu0 0.0
      %v2232 = vand.u32 %v1628, 4294901760
      %2233 = vmatmul.mubr.f32.gmra.mrb[0].mxu0 %v2232
      %v2234 = vpop.f32.mrb[0].mxu0
      %v2235 = vadd.f32 %v2139, %v2234
      %v2236 = vpop.f32.mrb[0].mxu0
      %2237 = vmatprep.mubr.f32.mxu0 0.0
      %v2238 = vand.u32 %v1630, 4294901760
      %2239 = vmatmul.mubr.f32.gmra.mrb[0].mxu0 %v2238
      %v2240 = vpop.f32.mrb[0].mxu0
      %v2241 = vadd.f32 %v2145, %v2240
      %v2242 = vpop.f32.mrb[0].mxu0
      %2243 = vmatprep.mubr.f32.mxu0 0.0
      %v2244 = vand.u32 %v1632, 4294901760
      %2245 = vmatmul.mubr.f32.gmra.mrb[0].mxu0 %v2244
      %v2246 = vpop.f32.mrb[0].mxu0
      %v2247 = vadd.f32 %v2151, %v2246
      %v2248 = vpop.f32.mrb[0].mxu0
      %2249 = vmatprep.mubr.f32.mxu0 0.0
      %v2250 = vand.u32 %v1634, 4294901760
      %2251 = vmatmul.mubr.f32.gmra.mrb[0].mxu0 %v2250
      %v2252 = vpop.f32.mrb[0].mxu0
      %v2253 = vadd.f32 %v2157, %v2252
      %v2254 = vpop.f32.mrb[0].mxu0
      %2255 = vdwg.mxu0
      %2256 = vset.pattern.permute.xlu0 12
      %2257 = vperm.xlu0 %2256, %v368
      %v2258 = vpop.permute.xlu0 %2257
      %2260 = vset.pattern.permute.xlu0 12
      %2261 = vperm.xlu0 %2260, %v369
      %v2262 = vpop.permute.xlu0 %2261
      %2264 = vset.pattern.permute.xlu0 12
      %2265 = vperm.xlu0 %2264, %v370
      %v2266 = vpop.permute.xlu0 %2265
      %2268 = vset.pattern.permute.xlu0 12
      %2269 = vperm.xlu0 %2268, %v371
      %v2270 = vpop.permute.xlu0 %2269
      %2272 = vset.pattern.permute.xlu0 12
      %2273 = vperm.xlu0 %2272, %v372
      %v2274 = vpop.permute.xlu0 %2273
      %v2276 = vmul.f32 %v2258, %v2229
      %v2277 = vmul.f32 %v2262, %v2235
      %v2278 = vmul.f32 %v2266, %v2241
      %v2279 = vmul.f32 %v2270, %v2247
      %v2280 = vmul.f32 %v2274, %v2253
      %v2281 = vadd.f32 %v1558, %v2276
      %v2282 = vadd.f32 %v1564, %v2277
      %v2283 = vadd.f32 %v1570, %v2278
      %v2284 = vadd.f32 %v1576, %v2279
      %v2285 = vadd.f32 %v1582, %v2280
      %v2286 = vlaneseq
      %v2287 = vshrl.u32 %v2286, 7
      %v2288 = vadd.s32 %v2287, 8
      %v2289 = vadd.s32 %v2287, 16
      %v2290 = vadd.s32 %v2287, 24
      %v2291 = vadd.s32 %v2287, 32
      %vm2292 = vcmp.lt.s32.totalorder %v2287, 24
      %vm2293 = vcmp.lt.s32.totalorder %v2288, 24
      %vm2294 = vcmp.lt.s32.totalorder %v2289, 24
      %vm2295 = vcmp.lt.s32.totalorder %v2290, 24
      %vm2296 = vcmp.lt.s32.totalorder %v2291, 24
      %v2297 = vsel %vm2292, 1, 0
      %v2298 = vsel %vm2293, 1, 0
      %v2299 = vsel %vm2294, 1, 0
      %v2300 = vsel %vm2295, 1, 0
      %v2301 = vsel %vm2296, 1, 0
      %v2302 = vcvt.s32.f32 %v2297
      %v2303 = vcvt.s32.f32 %v2298
      %v2304 = vcvt.s32.f32 %v2299
      %v2305 = vcvt.s32.f32 %v2300
      %v2306 = vcvt.s32.f32 %v2301
      %v2307 = vlaneseq
      %v2308 = vand.u32 %v2307, 127
      %vm2309 = vcmp.lt.s32.totalorder %v2308, 24
      %v2310 = vsel %vm2309, 1, 0
      %v2311 = vcvt.s32.f32 %v2310
      %v2312 = vmul.f32 %v378, %v2311
      %v2313 = vmul.f32 %v379, %v2311
      %vm2314 = vcmask 293888
      %v2316 = vsel %vm2314, %v2312, 0
      %v2319 = vsel %vm2314, %v2313, 0
      %v2322 = vsel %vm950, %v2285, 0
      %2324 = vmatprep.subr.mxu0 0.0
      %v2325 = vand.u32 %v2281, 4294901760
      %2326 = vmatpush1.msra.mxu0 %v2325
      %2327 = vmatprep.subr.mxu0 0.0
      %v2328 = vand.u32 %v2282, 4294901760
      %2329 = vmatpush1.msra.mxu0 %v2328
      %2330 = vmatprep.subr.mxu0 0.0
      %v2331 = vand.u32 %v2283, 4294901760
      %2332 = vmatpush1.msra.mxu0 %v2331
      %2333 = vmatprep.subr.mxu0 0.0
      %v2334 = vand.u32 %v2284, 4294901760
      %2335 = vmatpush1.msra.mxu0 %v2334
      %2336 = vmatprep.subr.mxu0 0.0
      %v2337 = vand.u32 %v2322, 4294901760
      %2338 = vmatpush1.msra.mxu0 %v2337
      %2339 = vmatprep.subr.mxu0 0.0
      %2340 = vmatpush1.msra.mxu0 0.0
      %2341 = vmatprep.subr.mxu0 0.0
      %2342 = vmatpush1.msra.mxu0 0.0
      %2343 = vmatprep.subr.mxu0 0.0
      %2344 = vmatpush1.msra.mxu0 0.0
      %2345 = vmatprep.subr.mxu0 0.0
      %2346 = vmatpush1.msra.mxu0 0.0
      %2347 = vmatprep.subr.mxu0 0.0
      %2348 = vmatpush1.msra.mxu0 0.0
      %2349 = vmatprep.subr.mxu0 0.0
      %2350 = vmatpush1.msra.mxu0 0.0
      %2351 = vmatprep.subr.mxu0 0.0
      %2352 = vmatpush1.msra.mxu0 0.0
      %2353 = vmatprep.subr.mxu0 0.0
      %2354 = vmatpush1.msra.mxu0 0.0
      %2355 = vmatprep.subr.mxu0 0.0
      %2356 = vmatpush1.msra.mxu0 0.0
      %2357 = vmatprep.subr.mxu0 0.0
      %2358 = vmatpush1.msra.mxu0 0.0
      %2359 = vmatprep.subr.mxu0 0.0
      %2360 = vmatpush1.msra.mxu0 0.0
      %2361 = vmatprep.subr.mxu0 0.0
      %2362 = vmatpush1.msra.mxu0 0.0
      %2363 = vmatprep.subr.mxu0 0.0
      %2364 = vmatpush1.msra.mxu0 0.0
      %2365 = vmatprep.subr.mxu0 0.0
      %2366 = vmatpush1.msra.mxu0 0.0
      %2367 = vmatprep.subr.mxu0 0.0
      %2368 = vmatpush1.msra.mxu0 0.0
      %2369 = vmatprep.subr.mxu0 0.0
      %2370 = vmatpush1.msra.mxu0 0.0
      %2371 = vmatprep.subr.mxu0 0.0
      %2372 = vmatpush1.msra.mxu0 0.0
      %2373 = vmatprep.subr.mxu0 0.0
      %2374 = vmatpush1.msra.mxu0 0.0
      %2375 = vmatprep.subr.mxu0 0.0
      %2376 = vmatpush1.msra.mxu0 0.0
      %2377 = vmatprep.subr.mxu0 0.0
      %2378 = vmatpush1.msra.mxu0 0.0
      %2379 = vmatprep.subr.mxu0 0.0
      %2380 = vmatpush1.msra.mxu0 0.0
      %2381 = vmatprep.subr.mxu0 0.0
      %2382 = vmatpush1.msra.mxu0 0.0
      %2383 = vmatprep.subr.mxu0 0.0
      %2384 = vmatpush1.msra.mxu0 0.0
      %2385 = vmatprep.subr.mxu0 0.0
      %2386 = vmatpush1.msra.mxu0 0.0
      %2387 = vmatprep.subr.mxu0 0.0
      %2388 = vmatpush1.msra.mxu0 0.0
      %2389 = vmatprep.subr.mxu0 0.0
      %2390 = vmatpush1.msra.mxu0 0.0
      %2391 = vmatprep.subr.mxu0 0.0
      %2392 = vmatpush1.msra.mxu0 0.0
      %2393 = vmatprep.mubr.f32.mxu0 0.0
      %v2394 = vand.u32 %v2316, 4294901760
      %v2395 = vsub.f32 %v2316, %v2394
      %v2396 = vand.u32 %v2395, 4294901760
      %v2397 = vsub.f32 %v2395, %v2396
      %v2398 = vand.u32 %v2397, 4294901760
      %2399 = vmatmul.mubr.f32.gmra.mrb[0].mxu0 %v2398
      %v2400 = vpop.f32.mrb[0].mxu0
      %v2401 = vadd.f32 0.0, %v2400
      %v2402 = vpop.f32.mrb[0].mxu0
      %2403 = vmatprep.mubr.f32.mxu0 0.0
      %v2404 = vand.u32 %v2319, 4294901760
      %v2405 = vsub.f32 %v2319, %v2404
      %v2406 = vand.u32 %v2405, 4294901760
      %v2407 = vsub.f32 %v2405, %v2406
      %v2408 = vand.u32 %v2407, 4294901760
      %2409 = vmatmul.mubr.f32.gmra.mrb[0].mxu0 %v2408
      %v2410 = vpop.f32.mrb[0].mxu0
      %v2411 = vadd.f32 0.0, %v2410
      %v2412 = vpop.f32.mrb[0].mxu0
      %2413 = vdwg.mxu0
      %2414 = vmatprep.subr.mxu0 0.0
      %v2415 = vand.u32 %v2281, 4294901760
      %v2416 = vsub.f32 %v2281, %v2415
      %v2417 = vand.u32 %v2416, 4294901760
      %v2418 = vsub.f32 %v2416, %v2417
      %v2419 = vand.u32 %v2418, 4294901760
      %2420 = vmatpush1.msra.mxu0 %v2419
      %2421 = vmatprep.subr.mxu0 0.0
      %v2422 = vand.u32 %v2282, 4294901760
      %v2423 = vsub.f32 %v2282, %v2422
      %v2424 = vand.u32 %v2423, 4294901760
      %v2425 = vsub.f32 %v2423, %v2424
      %v2426 = vand.u32 %v2425, 4294901760
      %2427 = vmatpush1.msra.mxu0 %v2426
      %2428 = vmatprep.subr.mxu0 0.0
      %v2429 = vand.u32 %v2283, 4294901760
      %v2430 = vsub.f32 %v2283, %v2429
      %v2431 = vand.u32 %v2430, 4294901760
      %v2432 = vsub.f32 %v2430, %v2431
      %v2433 = vand.u32 %v2432, 4294901760
      %2434 = vmatpush1.msra.mxu0 %v2433
      %2435 = vmatprep.subr.mxu0 0.0
      %v2436 = vand.u32 %v2284, 4294901760
      %v2437 = vsub.f32 %v2284, %v2436
      %v2438 = vand.u32 %v2437, 4294901760
      %v2439 = vsub.f32 %v2437, %v2438
      %v2440 = vand.u32 %v2439, 4294901760
      %2441 = vmatpush1.msra.mxu0 %v2440
      %2442 = vmatprep.subr.mxu0 0.0
      %v2443 = vand.u32 %v2322, 4294901760
      %v2444 = vsub.f32 %v2322, %v2443
      %v2445 = vand.u32 %v2444, 4294901760
      %v2446 = vsub.f32 %v2444, %v2445
      %v2447 = vand.u32 %v2446, 4294901760
      %2448 = vmatpush1.msra.mxu0 %v2447
      %2449 = vmatprep.subr.mxu0 0.0
      %2450 = vmatpush1.msra.mxu0 0.0
      %2451 = vmatprep.subr.mxu0 0.0
      %2452 = vmatpush1.msra.mxu0 0.0
      %2453 = vmatprep.subr.mxu0 0.0
      %2454 = vmatpush1.msra.mxu0 0.0
      %2455 = vmatprep.subr.mxu0 0.0
      %2456 = vmatpush1.msra.mxu0 0.0
      %2457 = vmatprep.subr.mxu0 0.0
      %2458 = vmatpush1.msra.mxu0 0.0
      %2459 = vmatprep.subr.mxu0 0.0
      %2460 = vmatpush1.msra.mxu0 0.0
      %2461 = vmatprep.subr.mxu0 0.0
      %2462 = vmatpush1.msra.mxu0 0.0
      %2463 = vmatprep.subr.mxu0 0.0
      %2464 = vmatpush1.msra.mxu0 0.0
      %2465 = vmatprep.subr.mxu0 0.0
      %2466 = vmatpush1.msra.mxu0 0.0
      %2467 = vmatprep.subr.mxu0 0.0
      %2468 = vmatpush1.msra.mxu0 0.0
      %2469 = vmatprep.subr.mxu0 0.0
      %2470 = vmatpush1.msra.mxu0 0.0
      %2471 = vmatprep.subr.mxu0 0.0
      %2472 = vmatpush1.msra.mxu0 0.0
      %2473 = vmatprep.subr.mxu0 0.0
      %2474 = vmatpush1.msra.mxu0 0.0
      %2475 = vmatprep.subr.mxu0 0.0
      %2476 = vmatpush1.msra.mxu0 0.0
      %2477 = vmatprep.subr.mxu0 0.0
      %2478 = vmatpush1.msra.mxu0 0.0
      %2479 = vmatprep.subr.mxu0 0.0
      %2480 = vmatpush1.msra.mxu0 0.0
      %2481 = vmatprep.subr.mxu0 0.0
      %2482 = vmatpush1.msra.mxu0 0.0
      %2483 = vmatprep.subr.mxu0 0.0
      %2484 = vmatpush1.msra.mxu0 0.0
      %2485 = vmatprep.subr.mxu0 0.0
      %2486 = vmatpush1.msra.mxu0 0.0
      %2487 = vmatprep.subr.mxu0 0.0
      %2488 = vmatpush1.msra.mxu0 0.0
      %2489 = vmatprep.subr.mxu0 0.0
      %2490 = vmatpush1.msra.mxu0 0.0
      %2491 = vmatprep.subr.mxu0 0.0
      %2492 = vmatpush1.msra.mxu0 0.0
      %2493 = vmatprep.subr.mxu0 0.0
      %2494 = vmatpush1.msra.mxu0 0.0
      %2495 = vmatprep.subr.mxu0 0.0
      %2496 = vmatpush1.msra.mxu0 0.0
      %2497 = vmatprep.subr.mxu0 0.0
      %2498 = vmatpush1.msra.mxu0 0.0
      %2499 = vmatprep.subr.mxu0 0.0
      %2500 = vmatpush1.msra.mxu0 0.0
      %2501 = vmatprep.subr.mxu0 0.0
      %2502 = vmatpush1.msra.mxu0 0.0
      %2503 = vmatprep.mubr.f32.mxu0 0.0
      %v2504 = vand.u32 %v2316, 4294901760
      %2505 = vmatmul.mubr.f32.gmra.mrb[0].mxu0 %v2504
      %v2506 = vpop.f32.mrb[0].mxu0
      %v2507 = vadd.f32 %v2401, %v2506
      %v2508 = vpop.f32.mrb[0].mxu0
      %2509 = vmatprep.mubr.f32.mxu0 0.0
      %v2510 = vand.u32 %v2319, 4294901760
      %2511 = vmatmul.mubr.f32.gmra.mrb[0].mxu0 %v2510
      %v2512 = vpop.f32.mrb[0].mxu0
      %v2513 = vadd.f32 %v2411, %v2512
      %v2514 = vpop.f32.mrb[0].mxu0
      %2515 = vdwg.mxu0
      %2516 = vmatprep.subr.mxu0 0.0
      %v2517 = vand.u32 %v2281, 4294901760
      %v2518 = vsub.f32 %v2281, %v2517
      %2519 = vmatpush1.msra.mxu0 %v2518
      %2520 = vmatprep.subr.mxu0 0.0
      %v2521 = vand.u32 %v2282, 4294901760
      %v2522 = vsub.f32 %v2282, %v2521
      %2523 = vmatpush1.msra.mxu0 %v2522
      %2524 = vmatprep.subr.mxu0 0.0
      %v2525 = vand.u32 %v2283, 4294901760
      %v2526 = vsub.f32 %v2283, %v2525
      %2527 = vmatpush1.msra.mxu0 %v2526
      %2528 = vmatprep.subr.mxu0 0.0
      %v2529 = vand.u32 %v2284, 4294901760
      %v2530 = vsub.f32 %v2284, %v2529
      %2531 = vmatpush1.msra.mxu0 %v2530
      %2532 = vmatprep.subr.mxu0 0.0
      %v2533 = vand.u32 %v2322, 4294901760
      %v2534 = vsub.f32 %v2322, %v2533
      %2535 = vmatpush1.msra.mxu0 %v2534
      %2536 = vmatprep.subr.mxu0 0.0
      %2537 = vmatpush1.msra.mxu0 0.0
      %2538 = vmatprep.subr.mxu0 0.0
      %2539 = vmatpush1.msra.mxu0 0.0
      %2540 = vmatprep.subr.mxu0 0.0
      %2541 = vmatpush1.msra.mxu0 0.0
      %2542 = vmatprep.subr.mxu0 0.0
      %2543 = vmatpush1.msra.mxu0 0.0
      %2544 = vmatprep.subr.mxu0 0.0
      %2545 = vmatpush1.msra.mxu0 0.0
      %2546 = vmatprep.subr.mxu0 0.0
      %2547 = vmatpush1.msra.mxu0 0.0
      %2548 = vmatprep.subr.mxu0 0.0
      %2549 = vmatpush1.msra.mxu0 0.0
      %2550 = vmatprep.subr.mxu0 0.0
      %2551 = vmatpush1.msra.mxu0 0.0
      %2552 = vmatprep.subr.mxu0 0.0
      %2553 = vmatpush1.msra.mxu0 0.0
      %2554 = vmatprep.subr.mxu0 0.0
      %2555 = vmatpush1.msra.mxu0 0.0
      %2556 = vmatprep.subr.mxu0 0.0
      %2557 = vmatpush1.msra.mxu0 0.0
      %2558 = vmatprep.subr.mxu0 0.0
      %2559 = vmatpush1.msra.mxu0 0.0
      %2560 = vmatprep.subr.mxu0 0.0
      %2561 = vmatpush1.msra.mxu0 0.0
      %2562 = vmatprep.subr.mxu0 0.0
      %2563 = vmatpush1.msra.mxu0 0.0
      %2564 = vmatprep.subr.mxu0 0.0
      %2565 = vmatpush1.msra.mxu0 0.0
      %2566 = vmatprep.subr.mxu0 0.0
      %2567 = vmatpush1.msra.mxu0 0.0
      %2568 = vmatprep.subr.mxu0 0.0
      %2569 = vmatpush1.msra.mxu0 0.0
      %2570 = vmatprep.subr.mxu0 0.0
      %2571 = vmatpush1.msra.mxu0 0.0
      %2572 = vmatprep.subr.mxu0 0.0
      %2573 = vmatpush1.msra.mxu0 0.0
      %2574 = vmatprep.subr.mxu0 0.0
      %2575 = vmatpush1.msra.mxu0 0.0
      %2576 = vmatprep.subr.mxu0 0.0
      %2577 = vmatpush1.msra.mxu0 0.0
      %2578 = vmatprep.subr.mxu0 0.0
      %2579 = vmatpush1.msra.mxu0 0.0
      %2580 = vmatprep.subr.mxu0 0.0
      %2581 = vmatpush1.msra.mxu0 0.0
      %2582 = vmatprep.subr.mxu0 0.0
      %2583 = vmatpush1.msra.mxu0 0.0
      %2584 = vmatprep.subr.mxu0 0.0
      %2585 = vmatpush1.msra.mxu0 0.0
      %2586 = vmatprep.subr.mxu0 0.0
      %2587 = vmatpush1.msra.mxu0 0.0
      %2588 = vmatprep.subr.mxu0 0.0
      %2589 = vmatpush1.msra.mxu0 0.0
      %2590 = vmatprep.mubr.f32.mxu0 0.0
      %v2591 = vand.u32 %v2316, 4294901760
      %v2592 = vsub.f32 %v2316, %v2591
      %2593 = vmatmul.mubr.f32.gmra.mrb[0].mxu0 %v2592
      %v2594 = vpop.f32.mrb[0].mxu0
      %v2595 = vadd.f32 %v2507, %v2594
      %v2596 = vpop.f32.mrb[0].mxu0
      %2597 = vmatprep.mubr.f32.mxu0 0.0
      %v2598 = vand.u32 %v2319, 4294901760
      %v2599 = vsub.f32 %v2319, %v2598
      %2600 = vmatmul.mubr.f32.gmra.mrb[0].mxu0 %v2599
      %v2601 = vpop.f32.mrb[0].mxu0
      %v2602 = vadd.f32 %v2513, %v2601
      %v2603 = vpop.f32.mrb[0].mxu0
      %2604 = vdwg.mxu0
      %2605 = vmatprep.subr.mxu0 0.0
      %v2606 = vand.u32 %v2281, 4294901760
      %2607 = vmatpush1.msra.mxu0 %v2606
      %2608 = vmatprep.subr.mxu0 0.0
      %v2609 = vand.u32 %v2282, 4294901760
      %2610 = vmatpush1.msra.mxu0 %v2609
      %2611 = vmatprep.subr.mxu0 0.0
      %v2612 = vand.u32 %v2283, 4294901760
      %2613 = vmatpush1.msra.mxu0 %v2612
      %2614 = vmatprep.subr.mxu0 0.0
      %v2615 = vand.u32 %v2284, 4294901760
      %2616 = vmatpush1.msra.mxu0 %v2615
      %2617 = vmatprep.subr.mxu0 0.0
      %v2618 = vand.u32 %v2322, 4294901760
      %2619 = vmatpush1.msra.mxu0 %v2618
      %2620 = vmatprep.subr.mxu0 0.0
      %2621 = vmatpush1.msra.mxu0 0.0
      %2622 = vmatprep.subr.mxu0 0.0
      %2623 = vmatpush1.msra.mxu0 0.0
      %2624 = vmatprep.subr.mxu0 0.0
      %2625 = vmatpush1.msra.mxu0 0.0
      %2626 = vmatprep.subr.mxu0 0.0
      %2627 = vmatpush1.msra.mxu0 0.0
      %2628 = vmatprep.subr.mxu0 0.0
      %2629 = vmatpush1.msra.mxu0 0.0
      %2630 = vmatprep.subr.mxu0 0.0
      %2631 = vmatpush1.msra.mxu0 0.0
      %2632 = vmatprep.subr.mxu0 0.0
      %2633 = vmatpush1.msra.mxu0 0.0
      %2634 = vmatprep.subr.mxu0 0.0
      %2635 = vmatpush1.msra.mxu0 0.0
      %2636 = vmatprep.subr.mxu0 0.0
      %2637 = vmatpush1.msra.mxu0 0.0
      %2638 = vmatprep.subr.mxu0 0.0
      %2639 = vmatpush1.msra.mxu0 0.0
      %2640 = vmatprep.subr.mxu0 0.0
      %2641 = vmatpush1.msra.mxu0 0.0
      %2642 = vmatprep.subr.mxu0 0.0
      %2643 = vmatpush1.msra.mxu0 0.0
      %2644 = vmatprep.subr.mxu0 0.0
      %2645 = vmatpush1.msra.mxu0 0.0
      %2646 = vmatprep.subr.mxu0 0.0
      %2647 = vmatpush1.msra.mxu0 0.0
      %2648 = vmatprep.subr.mxu0 0.0
      %2649 = vmatpush1.msra.mxu0 0.0
      %2650 = vmatprep.subr.mxu0 0.0
      %2651 = vmatpush1.msra.mxu0 0.0
      %2652 = vmatprep.subr.mxu0 0.0
      %2653 = vmatpush1.msra.mxu0 0.0
      %2654 = vmatprep.subr.mxu0 0.0
      %2655 = vmatpush1.msra.mxu0 0.0
      %2656 = vmatprep.subr.mxu0 0.0
      %2657 = vmatpush1.msra.mxu0 0.0
      %2658 = vmatprep.subr.mxu0 0.0
      %2659 = vmatpush1.msra.mxu0 0.0
      %2660 = vmatprep.subr.mxu0 0.0
      %2661 = vmatpush1.msra.mxu0 0.0
      %2662 = vmatprep.subr.mxu0 0.0
      %2663 = vmatpush1.msra.mxu0 0.0
      %2664 = vmatprep.subr.mxu0 0.0
      %2665 = vmatpush1.msra.mxu0 0.0
      %2666 = vmatprep.subr.mxu0 0.0
      %2667 = vmatpush1.msra.mxu0 0.0
      %2668 = vmatprep.subr.mxu0 0.0
      %2669 = vmatpush1.msra.mxu0 0.0
      %2670 = vmatprep.subr.mxu0 0.0
      %2671 = vmatpush1.msra.mxu0 0.0
      %2672 = vmatprep.subr.mxu0 0.0
      %2673 = vmatpush1.msra.mxu0 0.0
      %2674 = vmatprep.mubr.f32.mxu0 0.0
      %v2675 = vand.u32 %v2316, 4294901760
      %v2676 = vsub.f32 %v2316, %v2675
      %v2677 = vand.u32 %v2676, 4294901760
      %2678 = vmatmul.mubr.f32.gmra.mrb[0].mxu0 %v2677
      %v2679 = vpop.f32.mrb[0].mxu0
      %v2680 = vadd.f32 %v2595, %v2679
      %v2681 = vpop.f32.mrb[0].mxu0
      %2682 = vmatprep.mubr.f32.mxu0 0.0
      %v2683 = vand.u32 %v2319, 4294901760
      %v2684 = vsub.f32 %v2319, %v2683
      %v2685 = vand.u32 %v2684, 4294901760
      %2686 = vmatmul.mubr.f32.gmra.mrb[0].mxu0 %v2685
      %v2687 = vpop.f32.mrb[0].mxu0
      %v2688 = vadd.f32 %v2602, %v2687
      %v2689 = vpop.f32.mrb[0].mxu0
      %2690 = vdwg.mxu0
      %2691 = vmatprep.subr.mxu0 0.0
      %v2692 = vand.u32 %v2281, 4294901760
      %v2693 = vsub.f32 %v2281, %v2692
      %v2694 = vand.u32 %v2693, 4294901760
      %2695 = vmatpush1.msra.mxu0 %v2694
      %2696 = vmatprep.subr.mxu0 0.0
      %v2697 = vand.u32 %v2282, 4294901760
      %v2698 = vsub.f32 %v2282, %v2697
      %v2699 = vand.u32 %v2698, 4294901760
      %2700 = vmatpush1.msra.mxu0 %v2699
      %2701 = vmatprep.subr.mxu0 0.0
      %v2702 = vand.u32 %v2283, 4294901760
      %v2703 = vsub.f32 %v2283, %v2702
      %v2704 = vand.u32 %v2703, 4294901760
      %2705 = vmatpush1.msra.mxu0 %v2704
      %2706 = vmatprep.subr.mxu0 0.0
      %v2707 = vand.u32 %v2284, 4294901760
      %v2708 = vsub.f32 %v2284, %v2707
      %v2709 = vand.u32 %v2708, 4294901760
      %2710 = vmatpush1.msra.mxu0 %v2709
      %2711 = vmatprep.subr.mxu0 0.0
      %v2712 = vand.u32 %v2322, 4294901760
      %v2713 = vsub.f32 %v2322, %v2712
      %v2714 = vand.u32 %v2713, 4294901760
      %2715 = vmatpush1.msra.mxu0 %v2714
      %2716 = vmatprep.subr.mxu0 0.0
      %2717 = vmatpush1.msra.mxu0 0.0
      %2718 = vmatprep.subr.mxu0 0.0
      %2719 = vmatpush1.msra.mxu0 0.0
      %2720 = vmatprep.subr.mxu0 0.0
      %2721 = vmatpush1.msra.mxu0 0.0
      %2722 = vmatprep.subr.mxu0 0.0
      %2723 = vmatpush1.msra.mxu0 0.0
      %2724 = vmatprep.subr.mxu0 0.0
      %2725 = vmatpush1.msra.mxu0 0.0
      %2726 = vmatprep.subr.mxu0 0.0
      %2727 = vmatpush1.msra.mxu0 0.0
      %2728 = vmatprep.subr.mxu0 0.0
      %2729 = vmatpush1.msra.mxu0 0.0
      %2730 = vmatprep.subr.mxu0 0.0
      %2731 = vmatpush1.msra.mxu0 0.0
      %2732 = vmatprep.subr.mxu0 0.0
      %2733 = vmatpush1.msra.mxu0 0.0
      %2734 = vmatprep.subr.mxu0 0.0
      %2735 = vmatpush1.msra.mxu0 0.0
      %2736 = vmatprep.subr.mxu0 0.0
      %2737 = vmatpush1.msra.mxu0 0.0
      %2738 = vmatprep.subr.mxu0 0.0
      %2739 = vmatpush1.msra.mxu0 0.0
      %2740 = vmatprep.subr.mxu0 0.0
      %2741 = vmatpush1.msra.mxu0 0.0
      %2742 = vmatprep.subr.mxu0 0.0
      %2743 = vmatpush1.msra.mxu0 0.0
      %2744 = vmatprep.subr.mxu0 0.0
      %2745 = vmatpush1.msra.mxu0 0.0
      %2746 = vmatprep.subr.mxu0 0.0
      %2747 = vmatpush1.msra.mxu0 0.0
      %2748 = vmatprep.subr.mxu0 0.0
      %2749 = vmatpush1.msra.mxu0 0.0
      %2750 = vmatprep.subr.mxu0 0.0
      %2751 = vmatpush1.msra.mxu0 0.0
      %2752 = vmatprep.subr.mxu0 0.0
      %2753 = vmatpush1.msra.mxu0 0.0
      %2754 = vmatprep.subr.mxu0 0.0
      %2755 = vmatpush1.msra.mxu0 0.0
      %2756 = vmatprep.subr.mxu0 0.0
      %2757 = vmatpush1.msra.mxu0 0.0
      %2758 = vmatprep.subr.mxu0 0.0
      %2759 = vmatpush1.msra.mxu0 0.0
      %2760 = vmatprep.subr.mxu0 0.0
      %2761 = vmatpush1.msra.mxu0 0.0
      %2762 = vmatprep.subr.mxu0 0.0
      %2763 = vmatpush1.msra.mxu0 0.0
      %2764 = vmatprep.subr.mxu0 0.0
      %2765 = vmatpush1.msra.mxu0 0.0
      %2766 = vmatprep.subr.mxu0 0.0
      %2767 = vmatpush1.msra.mxu0 0.0
      %2768 = vmatprep.subr.mxu0 0.0
      %2769 = vmatpush1.msra.mxu0 0.0
      %2770 = vmatprep.mubr.f32.mxu0 0.0
      %v2771 = vand.u32 %v2316, 4294901760
      %2772 = vmatmul.mubr.f32.gmra.mrb[0].mxu0 %v2771
      %v2773 = vpop.f32.mrb[0].mxu0
      %v2774 = vadd.f32 %v2680, %v2773
      %v2775 = vpop.f32.mrb[0].mxu0
      %2776 = vmatprep.mubr.f32.mxu0 0.0
      %v2777 = vand.u32 %v2319, 4294901760
      %2778 = vmatmul.mubr.f32.gmra.mrb[0].mxu0 %v2777
      %v2779 = vpop.f32.mrb[0].mxu0
      %v2780 = vadd.f32 %v2688, %v2779
      %v2781 = vpop.f32.mrb[0].mxu0
      %2782 = vdwg.mxu0
      %2783 = vmatprep.subr.mxu0 0.0
      %v2784 = vand.u32 %v2281, 4294901760
      %2785 = vmatpush1.msra.mxu0 %v2784
      %2786 = vmatprep.subr.mxu0 0.0
      %v2787 = vand.u32 %v2282, 4294901760
      %2788 = vmatpush1.msra.mxu0 %v2787
      %2789 = vmatprep.subr.mxu0 0.0
      %v2790 = vand.u32 %v2283, 4294901760
      %2791 = vmatpush1.msra.mxu0 %v2790
      %2792 = vmatprep.subr.mxu0 0.0
      %v2793 = vand.u32 %v2284, 4294901760
      %2794 = vmatpush1.msra.mxu0 %v2793
      %2795 = vmatprep.subr.mxu0 0.0
      %v2796 = vand.u32 %v2322, 4294901760
      %2797 = vmatpush1.msra.mxu0 %v2796
      %2798 = vmatprep.subr.mxu0 0.0
      %2799 = vmatpush1.msra.mxu0 0.0
      %2800 = vmatprep.subr.mxu0 0.0
      %2801 = vmatpush1.msra.mxu0 0.0
      %2802 = vmatprep.subr.mxu0 0.0
      %2803 = vmatpush1.msra.mxu0 0.0
      %2804 = vmatprep.subr.mxu0 0.0
      %2805 = vmatpush1.msra.mxu0 0.0
      %2806 = vmatprep.subr.mxu0 0.0
      %2807 = vmatpush1.msra.mxu0 0.0
      %2808 = vmatprep.subr.mxu0 0.0
      %2809 = vmatpush1.msra.mxu0 0.0
      %2810 = vmatprep.subr.mxu0 0.0
      %2811 = vmatpush1.msra.mxu0 0.0
      %2812 = vmatprep.subr.mxu0 0.0
      %2813 = vmatpush1.msra.mxu0 0.0
      %2814 = vmatprep.subr.mxu0 0.0
      %2815 = vmatpush1.msra.mxu0 0.0
      %2816 = vmatprep.subr.mxu0 0.0
      %2817 = vmatpush1.msra.mxu0 0.0
      %2818 = vmatprep.subr.mxu0 0.0
      %2819 = vmatpush1.msra.mxu0 0.0
      %2820 = vmatprep.subr.mxu0 0.0
      %2821 = vmatpush1.msra.mxu0 0.0
      %2822 = vmatprep.subr.mxu0 0.0
      %2823 = vmatpush1.msra.mxu0 0.0
      %2824 = vmatprep.subr.mxu0 0.0
      %2825 = vmatpush1.msra.mxu0 0.0
      %2826 = vmatprep.subr.mxu0 0.0
      %2827 = vmatpush1.msra.mxu0 0.0
      %2828 = vmatprep.subr.mxu0 0.0
      %2829 = vmatpush1.msra.mxu0 0.0
      %2830 = vmatprep.subr.mxu0 0.0
      %2831 = vmatpush1.msra.mxu0 0.0
      %2832 = vmatprep.subr.mxu0 0.0
      %2833 = vmatpush1.msra.mxu0 0.0
      %2834 = vmatprep.subr.mxu0 0.0
      %2835 = vmatpush1.msra.mxu0 0.0
      %2836 = vmatprep.subr.mxu0 0.0
      %2837 = vmatpush1.msra.mxu0 0.0
      %2838 = vmatprep.subr.mxu0 0.0
      %2839 = vmatpush1.msra.mxu0 0.0
      %2840 = vmatprep.subr.mxu0 0.0
      %2841 = vmatpush1.msra.mxu0 0.0
      %2842 = vmatprep.subr.mxu0 0.0
      %2843 = vmatpush1.msra.mxu0 0.0
      %2844 = vmatprep.subr.mxu0 0.0
      %2845 = vmatpush1.msra.mxu0 0.0
      %2846 = vmatprep.subr.mxu0 0.0
      %2847 = vmatpush1.msra.mxu0 0.0
      %2848 = vmatprep.subr.mxu0 0.0
      %2849 = vmatpush1.msra.mxu0 0.0
      %2850 = vmatprep.subr.mxu0 0.0
      %2851 = vmatpush1.msra.mxu0 0.0
      %2852 = vmatprep.mubr.f32.mxu0 0.0
      %v2853 = vand.u32 %v2316, 4294901760
      %2854 = vmatmul.mubr.f32.gmra.mrb[0].mxu0 %v2853
      %v2855 = vpop.f32.mrb[0].mxu0
      %v2856 = vadd.f32 %v2774, %v2855
      %v2857 = vpop.f32.mrb[0].mxu0
      %2858 = vmatprep.mubr.f32.mxu0 0.0
      %v2859 = vand.u32 %v2319, 4294901760
      %2860 = vmatmul.mubr.f32.gmra.mrb[0].mxu0 %v2859
      %v2861 = vpop.f32.mrb[0].mxu0
      %v2862 = vadd.f32 %v2780, %v2861
      %v2863 = vpop.f32.mrb[0].mxu0
      %2864 = vdwg.mxu0
      %2866 = vset.pattern.permute.xlu0 36
      %2867 = vperm.xlu0 %2866, %v378
      %v2868 = vpop.permute.xlu0 %2867
      %2871 = vset.pattern.permute.xlu0 36
      %2872 = vperm.xlu0 %2871, %v379
      %v2873 = vpop.permute.xlu0 %2872
      %v2875 = vmul.f32 %v2856, %v2868
      %v2876 = vmul.f32 %v2862, %v2873
      %v2878 = vsel %vm934, %v373, 0
      %v2881 = vsel %vm934, %v374, 0
      %v2884 = vsel %vm934, %v375, 0
      %v2887 = vsel %vm934, %v376, 0
      %v2890 = vsel %vm934, %v377, 0
      %v2893 = vsel %vm950, %v928, 0
      %v2896 = vsel %vm950, %v930, 0
      %v2898 = vand.u32 %v923, 4294901760
      %2899 = vmatprep.subr.mxu0 %v2898
      %v2900 = vand.u32 %v921, 4294901760
      %2901 = vmatpush1.msra.mxu0 %v2900
      %v2902 = vand.u32 %v2896, 4294901760
      %2903 = vmatprep.subr.mxu0 %v2902
      %v2904 = vand.u32 %v2893, 4294901760
      %2905 = vmatpush1.msra.mxu0 %v2904
      %2906 = vmatprep.subr.mxu0 0.0
      %2907 = vmatpush1.msra.mxu0 0.0
      %2908 = vmatprep.subr.mxu0 0.0
      %2909 = vmatpush1.msra.mxu0 0.0
      %2910 = vmatprep.subr.mxu0 0.0
      %2911 = vmatpush1.msra.mxu0 0.0
      %2912 = vmatprep.subr.mxu0 0.0
      %2913 = vmatpush1.msra.mxu0 0.0
      %2914 = vmatprep.subr.mxu0 0.0
      %2915 = vmatpush1.msra.mxu0 0.0
      %2916 = vmatprep.subr.mxu0 0.0
      %2917 = vmatpush1.msra.mxu0 0.0
      %2918 = vmatprep.subr.mxu0 0.0
      %2919 = vmatpush1.msra.mxu0 0.0
      %2920 = vmatprep.subr.mxu0 0.0
      %2921 = vmatpush1.msra.mxu0 0.0
      %2922 = vmatprep.subr.mxu0 0.0
      %2923 = vmatpush1.msra.mxu0 0.0
      %2924 = vmatprep.subr.mxu0 0.0
      %2925 = vmatpush1.msra.mxu0 0.0
      %2926 = vmatprep.subr.mxu0 0.0
      %2927 = vmatpush1.msra.mxu0 0.0
      %2928 = vmatprep.subr.mxu0 0.0
      %2929 = vmatpush1.msra.mxu0 0.0
      %2930 = vmatprep.subr.mxu0 0.0
      %2931 = vmatpush1.msra.mxu0 0.0
      %2932 = vmatprep.subr.mxu0 0.0
      %2933 = vmatpush1.msra.mxu0 0.0
      %2934 = vmatprep.subr.mxu0 0.0
      %2935 = vmatpush1.msra.mxu0 0.0
      %2936 = vmatprep.subr.mxu0 0.0
      %2937 = vmatpush1.msra.mxu0 0.0
      %2938 = vmatprep.subr.mxu0 0.0
      %2939 = vmatpush1.msra.mxu0 0.0
      %2940 = vmatprep.subr.mxu0 0.0
      %2941 = vmatpush1.msra.mxu0 0.0
      %2942 = vmatprep.subr.mxu0 0.0
      %2943 = vmatpush1.msra.mxu0 0.0
      %2944 = vmatprep.subr.mxu0 0.0
      %2945 = vmatpush1.msra.mxu0 0.0
      %2946 = vmatprep.subr.mxu0 0.0
      %2947 = vmatpush1.msra.mxu0 0.0
      %2948 = vmatprep.subr.mxu0 0.0
      %2949 = vmatpush1.msra.mxu0 0.0
      %2950 = vmatprep.subr.mxu0 0.0
      %2951 = vmatpush1.msra.mxu0 0.0
      %2952 = vmatprep.subr.mxu0 0.0
      %2953 = vmatpush1.msra.mxu0 0.0
      %2954 = vmatprep.subr.mxu0 0.0
      %2955 = vmatpush1.msra.mxu0 0.0
      %2956 = vmatprep.subr.mxu0 0.0
      %2957 = vmatpush1.msra.mxu0 0.0
      %2958 = vmatprep.subr.mxu0 0.0
      %2959 = vmatpush1.msra.mxu0 0.0
      %2960 = vmatprep.subr.mxu0 0.0
      %2961 = vmatpush1.msra.mxu0 0.0
      %2962 = vmatprep.subr.mxu0 0.0
      %2963 = vmatpush1.msra.mxu0 0.0
      %2964 = vmatprep.subr.mxu0 0.0
      %2965 = vmatpush1.msra.mxu0 0.0
      %2966 = vmatprep.mubr.f32.mxu0 0.0
      %v2967 = vand.u32 %v2878, 4294901760
      %v2968 = vsub.f32 %v2878, %v2967
      %v2969 = vand.u32 %v2968, 4294901760
      %v2970 = vsub.f32 %v2968, %v2969
      %v2971 = vand.u32 %v2970, 4294901760
      %2972 = vmatmul.mubr.f32.gmra.mrb[0].mxu0 %v2971
      %v2973 = vpop.f32.mrb[0].mxu0
      %v2974 = vadd.f32 0.0, %v2973
      %v2975 = vpop.f32.mrb[0].mxu0
      %v2976 = vadd.f32 0.0, %v2975
      %2977 = vmatprep.mubr.f32.mxu0 0.0
      %v2978 = vand.u32 %v2881, 4294901760
      %v2979 = vsub.f32 %v2881, %v2978
      %v2980 = vand.u32 %v2979, 4294901760
      %v2981 = vsub.f32 %v2979, %v2980
      %v2982 = vand.u32 %v2981, 4294901760
      %2983 = vmatmul.mubr.f32.gmra.mrb[0].mxu0 %v2982
      %v2984 = vpop.f32.mrb[0].mxu0
      %v2985 = vadd.f32 0.0, %v2984
      %v2986 = vpop.f32.mrb[0].mxu0
      %v2987 = vadd.f32 0.0, %v2986
      %2988 = vmatprep.mubr.f32.mxu0 0.0
      %v2989 = vand.u32 %v2884, 4294901760
      %v2990 = vsub.f32 %v2884, %v2989
      %v2991 = vand.u32 %v2990, 4294901760
      %v2992 = vsub.f32 %v2990, %v2991
      %v2993 = vand.u32 %v2992, 4294901760
      %2994 = vmatmul.mubr.f32.gmra.mrb[0].mxu0 %v2993
      %v2995 = vpop.f32.mrb[0].mxu0
      %v2996 = vadd.f32 0.0, %v2995
      %v2997 = vpop.f32.mrb[0].mxu0
      %v2998 = vadd.f32 0.0, %v2997
      %2999 = vmatprep.mubr.f32.mxu0 0.0
      %v3000 = vand.u32 %v2887, 4294901760
      %v3001 = vsub.f32 %v2887, %v3000
      %v3002 = vand.u32 %v3001, 4294901760
      %v3003 = vsub.f32 %v3001, %v3002
      %v3004 = vand.u32 %v3003, 4294901760
      %3005 = vmatmul.mubr.f32.gmra.mrb[0].mxu0 %v3004
      %v3006 = vpop.f32.mrb[0].mxu0
      %v3007 = vadd.f32 0.0, %v3006
      %v3008 = vpop.f32.mrb[0].mxu0
      %v3009 = vadd.f32 0.0, %v3008
      %3010 = vmatprep.mubr.f32.mxu0 0.0
      %v3011 = vand.u32 %v2890, 4294901760
      %v3012 = vsub.f32 %v2890, %v3011
      %v3013 = vand.u32 %v3012, 4294901760
      %v3014 = vsub.f32 %v3012, %v3013
      %v3015 = vand.u32 %v3014, 4294901760
      %3016 = vmatmul.mubr.f32.gmra.mrb[0].mxu0 %v3015
      %v3017 = vpop.f32.mrb[0].mxu0
      %v3018 = vadd.f32 0.0, %v3017
      %v3019 = vpop.f32.mrb[0].mxu0
      %v3020 = vadd.f32 0.0, %v3019
      %3021 = vdwg.mxu0
      %v3022 = vand.u32 %v923, 4294901760
      %v3023 = vsub.f32 %v923, %v3022
      %v3024 = vand.u32 %v3023, 4294901760
      %v3025 = vsub.f32 %v3023, %v3024
      %v3026 = vand.u32 %v3025, 4294901760
      %3027 = vmatprep.subr.mxu0 %v3026
      %v3028 = vand.u32 %v921, 4294901760
      %v3029 = vsub.f32 %v921, %v3028
      %v3030 = vand.u32 %v3029, 4294901760
      %v3031 = vsub.f32 %v3029, %v3030
      %v3032 = vand.u32 %v3031, 4294901760
      %3033 = vmatpush1.msra.mxu0 %v3032
      %v3034 = vand.u32 %v2896, 4294901760
      %v3035 = vsub.f32 %v2896, %v3034
      %v3036 = vand.u32 %v3035, 4294901760
      %v3037 = vsub.f32 %v3035, %v3036
      %v3038 = vand.u32 %v3037, 4294901760
      %3039 = vmatprep.subr.mxu0 %v3038
      %v3040 = vand.u32 %v2893, 4294901760
      %v3041 = vsub.f32 %v2893, %v3040
      %v3042 = vand.u32 %v3041, 4294901760
      %v3043 = vsub.f32 %v3041, %v3042
      %v3044 = vand.u32 %v3043, 4294901760
      %3045 = vmatpush1.msra.mxu0 %v3044
      %3046 = vmatprep.subr.mxu0 0.0
      %3047 = vmatpush1.msra.mxu0 0.0
      %3048 = vmatprep.subr.mxu0 0.0
      %3049 = vmatpush1.msra.mxu0 0.0
      %3050 = vmatprep.subr.mxu0 0.0
      %3051 = vmatpush1.msra.mxu0 0.0
      %3052 = vmatprep.subr.mxu0 0.0
      %3053 = vmatpush1.msra.mxu0 0.0
      %3054 = vmatprep.subr.mxu0 0.0
      %3055 = vmatpush1.msra.mxu0 0.0
      %3056 = vmatprep.subr.mxu0 0.0
      %3057 = vmatpush1.msra.mxu0 0.0
      %3058 = vmatprep.subr.mxu0 0.0
      %3059 = vmatpush1.msra.mxu0 0.0
      %3060 = vmatprep.subr.mxu0 0.0
      %3061 = vmatpush1.msra.mxu0 0.0
      %3062 = vmatprep.subr.mxu0 0.0
      %3063 = vmatpush1.msra.mxu0 0.0
      %3064 = vmatprep.subr.mxu0 0.0
      %3065 = vmatpush1.msra.mxu0 0.0
      %3066 = vmatprep.subr.mxu0 0.0
      %3067 = vmatpush1.msra.mxu0 0.0
      %3068 = vmatprep.subr.mxu0 0.0
      %3069 = vmatpush1.msra.mxu0 0.0
      %3070 = vmatprep.subr.mxu0 0.0
      %3071 = vmatpush1.msra.mxu0 0.0
      %3072 = vmatprep.subr.mxu0 0.0
      %3073 = vmatpush1.msra.mxu0 0.0
      %3074 = vmatprep.subr.mxu0 0.0
      %3075 = vmatpush1.msra.mxu0 0.0
      %3076 = vmatprep.subr.mxu0 0.0
      %3077 = vmatpush1.msra.mxu0 0.0
      %3078 = vmatprep.subr.mxu0 0.0
      %3079 = vmatpush1.msra.mxu0 0.0
      %3080 = vmatprep.subr.mxu0 0.0
      %3081 = vmatpush1.msra.mxu0 0.0
      %3082 = vmatprep.subr.mxu0 0.0
      %3083 = vmatpush1.msra.mxu0 0.0
      %3084 = vmatprep.subr.mxu0 0.0
      %3085 = vmatpush1.msra.mxu0 0.0
      %3086 = vmatprep.subr.mxu0 0.0
      %3087 = vmatpush1.msra.mxu0 0.0
      %3088 = vmatprep.subr.mxu0 0.0
      %3089 = vmatpush1.msra.mxu0 0.0
      %3090 = vmatprep.subr.mxu0 0.0
      %3091 = vmatpush1.msra.mxu0 0.0
      %3092 = vmatprep.subr.mxu0 0.0
      %3093 = vmatpush1.msra.mxu0 0.0
      %3094 = vmatprep.subr.mxu0 0.0
      %3095 = vmatpush1.msra.mxu0 0.0
      %3096 = vmatprep.subr.mxu0 0.0
      %3097 = vmatpush1.msra.mxu0 0.0
      %3098 = vmatprep.subr.mxu0 0.0
      %3099 = vmatpush1.msra.mxu0 0.0
      %3100 = vmatprep.subr.mxu0 0.0
      %3101 = vmatpush1.msra.mxu0 0.0
      %3102 = vmatprep.subr.mxu0 0.0
      %3103 = vmatpush1.msra.mxu0 0.0
      %3104 = vmatprep.subr.mxu0 0.0
      %3105 = vmatpush1.msra.mxu0 0.0
      %3106 = vmatprep.mubr.f32.mxu0 0.0
      %v3107 = vand.u32 %v2878, 4294901760
      %3108 = vmatmul.mubr.f32.gmra.mrb[0].mxu0 %v3107
      %v3109 = vpop.f32.mrb[0].mxu0
      %v3110 = vadd.f32 %v2974, %v3109
      %v3111 = vpop.f32.mrb[0].mxu0
      %v3112 = vadd.f32 %v2976, %v3111
      %3113 = vmatprep.mubr.f32.mxu0 0.0
      %v3114 = vand.u32 %v2881, 4294901760
      %3115 = vmatmul.mubr.f32.gmra.mrb[0].mxu0 %v3114
      %v3116 = vpop.f32.mrb[0].mxu0
      %v3117 = vadd.f32 %v2985, %v3116
      %v3118 = vpop.f32.mrb[0].mxu0
      %v3119 = vadd.f32 %v2987, %v3118
      %3120 = vmatprep.mubr.f32.mxu0 0.0
      %v3121 = vand.u32 %v2884, 4294901760
      %3122 = vmatmul.mubr.f32.gmra.mrb[0].mxu0 %v3121
      %v3123 = vpop.f32.mrb[0].mxu0
      %v3124 = vadd.f32 %v2996, %v3123
      %v3125 = vpop.f32.mrb[0].mxu0
      %v3126 = vadd.f32 %v2998, %v3125
      %3127 = vmatprep.mubr.f32.mxu0 0.0
      %v3128 = vand.u32 %v2887, 4294901760
      %3129 = vmatmul.mubr.f32.gmra.mrb[0].mxu0 %v3128
      %v3130 = vpop.f32.mrb[0].mxu0
      %v3131 = vadd.f32 %v3007, %v3130
      %v3132 = vpop.f32.mrb[0].mxu0
      %v3133 = vadd.f32 %v3009, %v3132
      %3134 = vmatprep.mubr.f32.mxu0 0.0
      %v3135 = vand.u32 %v2890, 4294901760
      %3136 = vmatmul.mubr.f32.gmra.mrb[0].mxu0 %v3135
      %v3137 = vpop.f32.mrb[0].mxu0
      %v3138 = vadd.f32 %v3018, %v3137
      %v3139 = vpop.f32.mrb[0].mxu0
      %v3140 = vadd.f32 %v3020, %v3139
      %3141 = vdwg.mxu0
      %v3142 = vand.u32 %v923, 4294901760
      %v3143 = vsub.f32 %v923, %v3142
      %3144 = vmatprep.subr.mxu0 %v3143
      %v3145 = vand.u32 %v921, 4294901760
      %v3146 = vsub.f32 %v921, %v3145
      %3147 = vmatpush1.msra.mxu0 %v3146
      %v3148 = vand.u32 %v2896, 4294901760
      %v3149 = vsub.f32 %v2896, %v3148
      %3150 = vmatprep.subr.mxu0 %v3149
      %v3151 = vand.u32 %v2893, 4294901760
      %v3152 = vsub.f32 %v2893, %v3151
      %3153 = vmatpush1.msra.mxu0 %v3152
      %3154 = vmatprep.subr.mxu0 0.0
      %3155 = vmatpush1.msra.mxu0 0.0
      %3156 = vmatprep.subr.mxu0 0.0
      %3157 = vmatpush1.msra.mxu0 0.0
      %3158 = vmatprep.subr.mxu0 0.0
      %3159 = vmatpush1.msra.mxu0 0.0
      %3160 = vmatprep.subr.mxu0 0.0
      %3161 = vmatpush1.msra.mxu0 0.0
      %3162 = vmatprep.subr.mxu0 0.0
      %3163 = vmatpush1.msra.mxu0 0.0
      %3164 = vmatprep.subr.mxu0 0.0
      %3165 = vmatpush1.msra.mxu0 0.0
      %3166 = vmatprep.subr.mxu0 0.0
      %3167 = vmatpush1.msra.mxu0 0.0
      %3168 = vmatprep.subr.mxu0 0.0
      %3169 = vmatpush1.msra.mxu0 0.0
      %3170 = vmatprep.subr.mxu0 0.0
      %3171 = vmatpush1.msra.mxu0 0.0
      %3172 = vmatprep.subr.mxu0 0.0
      %3173 = vmatpush1.msra.mxu0 0.0
      %3174 = vmatprep.subr.mxu0 0.0
      %3175 = vmatpush1.msra.mxu0 0.0
      %3176 = vmatprep.subr.mxu0 0.0
      %3177 = vmatpush1.msra.mxu0 0.0
      %3178 = vmatprep.subr.mxu0 0.0
      %3179 = vmatpush1.msra.mxu0 0.0
      %3180 = vmatprep.subr.mxu0 0.0
      %3181 = vmatpush1.msra.mxu0 0.0
      %3182 = vmatprep.subr.mxu0 0.0
      %3183 = vmatpush1.msra.mxu0 0.0
      %3184 = vmatprep.subr.mxu0 0.0
      %3185 = vmatpush1.msra.mxu0 0.0
      %3186 = vmatprep.subr.mxu0 0.0
      %3187 = vmatpush1.msra.mxu0 0.0
      %3188 = vmatprep.subr.mxu0 0.0
      %3189 = vmatpush1.msra.mxu0 0.0
      %3190 = vmatprep.subr.mxu0 0.0
      %3191 = vmatpush1.msra.mxu0 0.0
      %3192 = vmatprep.subr.mxu0 0.0
      %3193 = vmatpush1.msra.mxu0 0.0
      %3194 = vmatprep.subr.mxu0 0.0
      %3195 = vmatpush1.msra.mxu0 0.0
      %3196 = vmatprep.subr.mxu0 0.0
      %3197 = vmatpush1.msra.mxu0 0.0
      %3198 = vmatprep.subr.mxu0 0.0
      %3199 = vmatpush1.msra.mxu0 0.0
      %3200 = vmatprep.subr.mxu0 0.0
      %3201 = vmatpush1.msra.mxu0 0.0
      %3202 = vmatprep.subr.mxu0 0.0
      %3203 = vmatpush1.msra.mxu0 0.0
      %3204 = vmatprep.subr.mxu0 0.0
      %3205 = vmatpush1.msra.mxu0 0.0
      %3206 = vmatprep.subr.mxu0 0.0
      %3207 = vmatpush1.msra.mxu0 0.0
      %3208 = vmatprep.subr.mxu0 0.0
      %3209 = vmatpush1.msra.mxu0 0.0
      %3210 = vmatprep.subr.mxu0 0.0
      %3211 = vmatpush1.msra.mxu0 0.0
      %3212 = vmatprep.subr.mxu0 0.0
      %3213 = vmatpush1.msra.mxu0 0.0
      %3214 = vmatprep.mubr.f32.mxu0 0.0
      %v3215 = vand.u32 %v2878, 4294901760
      %v3216 = vsub.f32 %v2878, %v3215
      %3217 = vmatmul.mubr.f32.gmra.mrb[0].mxu0 %v3216
      %v3218 = vpop.f32.mrb[0].mxu0
      %v3219 = vadd.f32 %v3110, %v3218
      %v3220 = vpop.f32.mrb[0].mxu0
      %v3221 = vadd.f32 %v3112, %v3220
      %3222 = vmatprep.mubr.f32.mxu0 0.0
      %v3223 = vand.u32 %v2881, 4294901760
      %v3224 = vsub.f32 %v2881, %v3223
      %3225 = vmatmul.mubr.f32.gmra.mrb[0].mxu0 %v3224
      %v3226 = vpop.f32.mrb[0].mxu0
      %v3227 = vadd.f32 %v3117, %v3226
      %v3228 = vpop.f32.mrb[0].mxu0
      %v3229 = vadd.f32 %v3119, %v3228
      %3230 = vmatprep.mubr.f32.mxu0 0.0
      %v3231 = vand.u32 %v2884, 4294901760
      %v3232 = vsub.f32 %v2884, %v3231
      %3233 = vmatmul.mubr.f32.gmra.mrb[0].mxu0 %v3232
      %v3234 = vpop.f32.mrb[0].mxu0
      %v3235 = vadd.f32 %v3124, %v3234
      %v3236 = vpop.f32.mrb[0].mxu0
      %v3237 = vadd.f32 %v3126, %v3236
      %3238 = vmatprep.mubr.f32.mxu0 0.0
      %v3239 = vand.u32 %v2887, 4294901760
      %v3240 = vsub.f32 %v2887, %v3239
      %3241 = vmatmul.mubr.f32.gmra.mrb[0].mxu0 %v3240
      %v3242 = vpop.f32.mrb[0].mxu0
      %v3243 = vadd.f32 %v3131, %v3242
      %v3244 = vpop.f32.mrb[0].mxu0
      %v3245 = vadd.f32 %v3133, %v3244
      %3246 = vmatprep.mubr.f32.mxu0 0.0
      %v3247 = vand.u32 %v2890, 4294901760
      %v3248 = vsub.f32 %v2890, %v3247
      %3249 = vmatmul.mubr.f32.gmra.mrb[0].mxu0 %v3248
      %v3250 = vpop.f32.mrb[0].mxu0
      %v3251 = vadd.f32 %v3138, %v3250
      %v3252 = vpop.f32.mrb[0].mxu0
      %v3253 = vadd.f32 %v3140, %v3252
      %3254 = vdwg.mxu0
      %v3255 = vand.u32 %v923, 4294901760
      %3256 = vmatprep.subr.mxu0 %v3255
      %v3257 = vand.u32 %v921, 4294901760
      %3258 = vmatpush1.msra.mxu0 %v3257
      %v3259 = vand.u32 %v2896, 4294901760
      %3260 = vmatprep.subr.mxu0 %v3259
      %v3261 = vand.u32 %v2893, 4294901760
      %3262 = vmatpush1.msra.mxu0 %v3261
      %3263 = vmatprep.subr.mxu0 0.0
      %3264 = vmatpush1.msra.mxu0 0.0
      %3265 = vmatprep.subr.mxu0 0.0
      %3266 = vmatpush1.msra.mxu0 0.0
      %3267 = vmatprep.subr.mxu0 0.0
      %3268 = vmatpush1.msra.mxu0 0.0
      %3269 = vmatprep.subr.mxu0 0.0
      %3270 = vmatpush1.msra.mxu0 0.0
      %3271 = vmatprep.subr.mxu0 0.0
      %3272 = vmatpush1.msra.mxu0 0.0
      %3273 = vmatprep.subr.mxu0 0.0
      %3274 = vmatpush1.msra.mxu0 0.0
      %3275 = vmatprep.subr.mxu0 0.0
      %3276 = vmatpush1.msra.mxu0 0.0
      %3277 = vmatprep.subr.mxu0 0.0
      %3278 = vmatpush1.msra.mxu0 0.0
      %3279 = vmatprep.subr.mxu0 0.0
      %3280 = vmatpush1.msra.mxu0 0.0
      %3281 = vmatprep.subr.mxu0 0.0
      %3282 = vmatpush1.msra.mxu0 0.0
      %3283 = vmatprep.subr.mxu0 0.0
      %3284 = vmatpush1.msra.mxu0 0.0
      %3285 = vmatprep.subr.mxu0 0.0
      %3286 = vmatpush1.msra.mxu0 0.0
      %3287 = vmatprep.subr.mxu0 0.0
      %3288 = vmatpush1.msra.mxu0 0.0
      %3289 = vmatprep.subr.mxu0 0.0
      %3290 = vmatpush1.msra.mxu0 0.0
      %3291 = vmatprep.subr.mxu0 0.0
      %3292 = vmatpush1.msra.mxu0 0.0
      %3293 = vmatprep.subr.mxu0 0.0
      %3294 = vmatpush1.msra.mxu0 0.0
      %3295 = vmatprep.subr.mxu0 0.0
      %3296 = vmatpush1.msra.mxu0 0.0
      %3297 = vmatprep.subr.mxu0 0.0
      %3298 = vmatpush1.msra.mxu0 0.0
      %3299 = vmatprep.subr.mxu0 0.0
      %3300 = vmatpush1.msra.mxu0 0.0
      %3301 = vmatprep.subr.mxu0 0.0
      %3302 = vmatpush1.msra.mxu0 0.0
      %3303 = vmatprep.subr.mxu0 0.0
      %3304 = vmatpush1.msra.mxu0 0.0
      %3305 = vmatprep.subr.mxu0 0.0
      %3306 = vmatpush1.msra.mxu0 0.0
      %3307 = vmatprep.subr.mxu0 0.0
      %3308 = vmatpush1.msra.mxu0 0.0
      %3309 = vmatprep.subr.mxu0 0.0
      %3310 = vmatpush1.msra.mxu0 0.0
      %3311 = vmatprep.subr.mxu0 0.0
      %3312 = vmatpush1.msra.mxu0 0.0
      %3313 = vmatprep.subr.mxu0 0.0
      %3314 = vmatpush1.msra.mxu0 0.0
      %3315 = vmatprep.subr.mxu0 0.0
      %3316 = vmatpush1.msra.mxu0 0.0
      %3317 = vmatprep.subr.mxu0 0.0
      %3318 = vmatpush1.msra.mxu0 0.0
      %3319 = vmatprep.subr.mxu0 0.0
      %3320 = vmatpush1.msra.mxu0 0.0
      %3321 = vmatprep.subr.mxu0 0.0
      %3322 = vmatpush1.msra.mxu0 0.0
      %3323 = vmatprep.mubr.f32.mxu0 0.0
      %v3324 = vand.u32 %v2878, 4294901760
      %v3325 = vsub.f32 %v2878, %v3324
      %v3326 = vand.u32 %v3325, 4294901760
      %3327 = vmatmul.mubr.f32.gmra.mrb[0].mxu0 %v3326
      %v3328 = vpop.f32.mrb[0].mxu0
      %v3329 = vadd.f32 %v3219, %v3328
      %v3330 = vpop.f32.mrb[0].mxu0
      %v3331 = vadd.f32 %v3221, %v3330
      %3332 = vmatprep.mubr.f32.mxu0 0.0
      %v3333 = vand.u32 %v2881, 4294901760
      %v3334 = vsub.f32 %v2881, %v3333
      %v3335 = vand.u32 %v3334, 4294901760
      %3336 = vmatmul.mubr.f32.gmra.mrb[0].mxu0 %v3335
      %v3337 = vpop.f32.mrb[0].mxu0
      %v3338 = vadd.f32 %v3227, %v3337
      %v3339 = vpop.f32.mrb[0].mxu0
      %v3340 = vadd.f32 %v3229, %v3339
      %3341 = vmatprep.mubr.f32.mxu0 0.0
      %v3342 = vand.u32 %v2884, 4294901760
      %v3343 = vsub.f32 %v2884, %v3342
      %v3344 = vand.u32 %v3343, 4294901760
      %3345 = vmatmul.mubr.f32.gmra.mrb[0].mxu0 %v3344
      %v3346 = vpop.f32.mrb[0].mxu0
      %v3347 = vadd.f32 %v3235, %v3346
      %v3348 = vpop.f32.mrb[0].mxu0
      %v3349 = vadd.f32 %v3237, %v3348
      %3350 = vmatprep.mubr.f32.mxu0 0.0
      %v3351 = vand.u32 %v2887, 4294901760
      %v3352 = vsub.f32 %v2887, %v3351
      %v3353 = vand.u32 %v3352, 4294901760
      %3354 = vmatmul.mubr.f32.gmra.mrb[0].mxu0 %v3353
      %v3355 = vpop.f32.mrb[0].mxu0
      %v3356 = vadd.f32 %v3243, %v3355
      %v3357 = vpop.f32.mrb[0].mxu0
      %v3358 = vadd.f32 %v3245, %v3357
      %3359 = vmatprep.mubr.f32.mxu0 0.0
      %v3360 = vand.u32 %v2890, 4294901760
      %v3361 = vsub.f32 %v2890, %v3360
      %v3362 = vand.u32 %v3361, 4294901760
      %3363 = vmatmul.mubr.f32.gmra.mrb[0].mxu0 %v3362
      %v3364 = vpop.f32.mrb[0].mxu0
      %v3365 = vadd.f32 %v3251, %v3364
      %v3366 = vpop.f32.mrb[0].mxu0
      %v3367 = vadd.f32 %v3253, %v3366
      %3368 = vdwg.mxu0
      %v3369 = vand.u32 %v923, 4294901760
      %v3370 = vsub.f32 %v923, %v3369
      %v3371 = vand.u32 %v3370, 4294901760
      %3372 = vmatprep.subr.mxu0 %v3371
      %v3373 = vand.u32 %v921, 4294901760
      %v3374 = vsub.f32 %v921, %v3373
      %v3375 = vand.u32 %v3374, 4294901760
      %3376 = vmatpush1.msra.mxu0 %v3375
      %v3377 = vand.u32 %v2896, 4294901760
      %v3378 = vsub.f32 %v2896, %v3377
      %v3379 = vand.u32 %v3378, 4294901760
      %3380 = vmatprep.subr.mxu0 %v3379
      %v3381 = vand.u32 %v2893, 4294901760
      %v3382 = vsub.f32 %v2893, %v3381
      %v3383 = vand.u32 %v3382, 4294901760
      %3384 = vmatpush1.msra.mxu0 %v3383
      %3385 = vmatprep.subr.mxu0 0.0
      %3386 = vmatpush1.msra.mxu0 0.0
      %3387 = vmatprep.subr.mxu0 0.0
      %3388 = vmatpush1.msra.mxu0 0.0
      %3389 = vmatprep.subr.mxu0 0.0
      %3390 = vmatpush1.msra.mxu0 0.0
      %3391 = vmatprep.subr.mxu0 0.0
      %3392 = vmatpush1.msra.mxu0 0.0
      %3393 = vmatprep.subr.mxu0 0.0
      %3394 = vmatpush1.msra.mxu0 0.0
      %3395 = vmatprep.subr.mxu0 0.0
      %3396 = vmatpush1.msra.mxu0 0.0
      %3397 = vmatprep.subr.mxu0 0.0
      %3398 = vmatpush1.msra.mxu0 0.0
      %3399 = vmatprep.subr.mxu0 0.0
      %3400 = vmatpush1.msra.mxu0 0.0
      %3401 = vmatprep.subr.mxu0 0.0
      %3402 = vmatpush1.msra.mxu0 0.0
      %3403 = vmatprep.subr.mxu0 0.0
      %3404 = vmatpush1.msra.mxu0 0.0
      %3405 = vmatprep.subr.mxu0 0.0
      %3406 = vmatpush1.msra.mxu0 0.0
      %3407 = vmatprep.subr.mxu0 0.0
      %3408 = vmatpush1.msra.mxu0 0.0
      %3409 = vmatprep.subr.mxu0 0.0
      %3410 = vmatpush1.msra.mxu0 0.0
      %3411 = vmatprep.subr.mxu0 0.0
      %3412 = vmatpush1.msra.mxu0 0.0
      %3413 = vmatprep.subr.mxu0 0.0
      %3414 = vmatpush1.msra.mxu0 0.0
      %3415 = vmatprep.subr.mxu0 0.0
      %3416 = vmatpush1.msra.mxu0 0.0
      %3417 = vmatprep.subr.mxu0 0.0
      %3418 = vmatpush1.msra.mxu0 0.0
      %3419 = vmatprep.subr.mxu0 0.0
      %3420 = vmatpush1.msra.mxu0 0.0
      %3421 = vmatprep.subr.mxu0 0.0
      %3422 = vmatpush1.msra.mxu0 0.0
      %3423 = vmatprep.subr.mxu0 0.0
      %3424 = vmatpush1.msra.mxu0 0.0
      %3425 = vmatprep.subr.mxu0 0.0
      %3426 = vmatpush1.msra.mxu0 0.0
      %3427 = vmatprep.subr.mxu0 0.0
      %3428 = vmatpush1.msra.mxu0 0.0
      %3429 = vmatprep.subr.mxu0 0.0
      %3430 = vmatpush1.msra.mxu0 0.0
      %3431 = vmatprep.subr.mxu0 0.0
      %3432 = vmatpush1.msra.mxu0 0.0
      %3433 = vmatprep.subr.mxu0 0.0
      %3434 = vmatpush1.msra.mxu0 0.0
      %3435 = vmatprep.subr.mxu0 0.0
      %3436 = vmatpush1.msra.mxu0 0.0
      %3437 = vmatprep.subr.mxu0 0.0
      %3438 = vmatpush1.msra.mxu0 0.0
      %3439 = vmatprep.subr.mxu0 0.0
      %3440 = vmatpush1.msra.mxu0 0.0
      %3441 = vmatprep.subr.mxu0 0.0
      %3442 = vmatpush1.msra.mxu0 0.0
      %3443 = vmatprep.subr.mxu0 0.0
      %3444 = vmatpush1.msra.mxu0 0.0
      %3445 = vmatprep.mubr.f32.mxu0 0.0
      %v3446 = vand.u32 %v2878, 4294901760
      %3447 = vmatmul.mubr.f32.gmra.mrb[0].mxu0 %v3446
      %v3448 = vpop.f32.mrb[0].mxu0
      %v3449 = vadd.f32 %v3329, %v3448
      %v3450 = vpop.f32.mrb[0].mxu0
      %v3451 = vadd.f32 %v3331, %v3450
      %3452 = vmatprep.mubr.f32.mxu0 0.0
      %v3453 = vand.u32 %v2881, 4294901760
      %3454 = vmatmul.mubr.f32.gmra.mrb[0].mxu0 %v3453
      %v3455 = vpop.f32.mrb[0].mxu0
      %v3456 = vadd.f32 %v3338, %v3455
      %v3457 = vpop.f32.mrb[0].mxu0
      %v3458 = vadd.f32 %v3340, %v3457
      %3459 = vmatprep.mubr.f32.mxu0 0.0
      %v3460 = vand.u32 %v2884, 4294901760
      %3461 = vmatmul.mubr.f32.gmra.mrb[0].mxu0 %v3460
      %v3462 = vpop.f32.mrb[0].mxu0
      %v3463 = vadd.f32 %v3347, %v3462
      %v3464 = vpop.f32.mrb[0].mxu0
      %v3465 = vadd.f32 %v3349, %v3464
      %3466 = vmatprep.mubr.f32.mxu0 0.0
      %v3467 = vand.u32 %v2887, 4294901760
      %3468 = vmatmul.mubr.f32.gmra.mrb[0].mxu0 %v3467
      %v3469 = vpop.f32.mrb[0].mxu0
      %v3470 = vadd.f32 %v3356, %v3469
      %v3471 = vpop.f32.mrb[0].mxu0
      %v3472 = vadd.f32 %v3358, %v3471
      %3473 = vmatprep.mubr.f32.mxu0 0.0
      %v3474 = vand.u32 %v2890, 4294901760
      %3475 = vmatmul.mubr.f32.gmra.mrb[0].mxu0 %v3474
      %v3476 = vpop.f32.mrb[0].mxu0
      %v3477 = vadd.f32 %v3365, %v3476
      %v3478 = vpop.f32.mrb[0].mxu0
      %v3479 = vadd.f32 %v3367, %v3478
      %3480 = vdwg.mxu0
      %v3481 = vand.u32 %v923, 4294901760
      %3482 = vmatprep.subr.mxu0 %v3481
      %v3483 = vand.u32 %v921, 4294901760
      %3484 = vmatpush1.msra.mxu0 %v3483
      %v3485 = vand.u32 %v2896, 4294901760
      %3486 = vmatprep.subr.mxu0 %v3485
      %v3487 = vand.u32 %v2893, 4294901760
      %3488 = vmatpush1.msra.mxu0 %v3487
      %3489 = vmatprep.subr.mxu0 0.0
      %3490 = vmatpush1.msra.mxu0 0.0
      %3491 = vmatprep.subr.mxu0 0.0
      %3492 = vmatpush1.msra.mxu0 0.0
      %3493 = vmatprep.subr.mxu0 0.0
      %3494 = vmatpush1.msra.mxu0 0.0
      %3495 = vmatprep.subr.mxu0 0.0
      %3496 = vmatpush1.msra.mxu0 0.0
      %3497 = vmatprep.subr.mxu0 0.0
      %3498 = vmatpush1.msra.mxu0 0.0
      %3499 = vmatprep.subr.mxu0 0.0
      %3500 = vmatpush1.msra.mxu0 0.0
      %3501 = vmatprep.subr.mxu0 0.0
      %3502 = vmatpush1.msra.mxu0 0.0
      %3503 = vmatprep.subr.mxu0 0.0
      %3504 = vmatpush1.msra.mxu0 0.0
      %3505 = vmatprep.subr.mxu0 0.0
      %3506 = vmatpush1.msra.mxu0 0.0
      %3507 = vmatprep.subr.mxu0 0.0
      %3508 = vmatpush1.msra.mxu0 0.0
      %3509 = vmatprep.subr.mxu0 0.0
      %3510 = vmatpush1.msra.mxu0 0.0
      %3511 = vmatprep.subr.mxu0 0.0
      %3512 = vmatpush1.msra.mxu0 0.0
      %3513 = vmatprep.subr.mxu0 0.0
      %3514 = vmatpush1.msra.mxu0 0.0
      %3515 = vmatprep.subr.mxu0 0.0
      %3516 = vmatpush1.msra.mxu0 0.0
      %3517 = vmatprep.subr.mxu0 0.0
      %3518 = vmatpush1.msra.mxu0 0.0
      %3519 = vmatprep.subr.mxu0 0.0
      %3520 = vmatpush1.msra.mxu0 0.0
      %3521 = vmatprep.subr.mxu0 0.0
      %3522 = vmatpush1.msra.mxu0 0.0
      %3523 = vmatprep.subr.mxu0 0.0
      %3524 = vmatpush1.msra.mxu0 0.0
      %3525 = vmatprep.subr.mxu0 0.0
      %3526 = vmatpush1.msra.mxu0 0.0
      %3527 = vmatprep.subr.mxu0 0.0
      %3528 = vmatpush1.msra.mxu0 0.0
      %3529 = vmatprep.subr.mxu0 0.0
      %3530 = vmatpush1.msra.mxu0 0.0
      %3531 = vmatprep.subr.mxu0 0.0
      %3532 = vmatpush1.msra.mxu0 0.0
      %3533 = vmatprep.subr.mxu0 0.0
      %3534 = vmatpush1.msra.mxu0 0.0
      %3535 = vmatprep.subr.mxu0 0.0
      %3536 = vmatpush1.msra.mxu0 0.0
      %3537 = vmatprep.subr.mxu0 0.0
      %3538 = vmatpush1.msra.mxu0 0.0
      %3539 = vmatprep.subr.mxu0 0.0
      %3540 = vmatpush1.msra.mxu0 0.0
      %3541 = vmatprep.subr.mxu0 0.0
      %3542 = vmatpush1.msra.mxu0 0.0
      %3543 = vmatprep.subr.mxu0 0.0
      %3544 = vmatpush1.msra.mxu0 0.0
      %3545 = vmatprep.subr.mxu0 0.0
      %3546 = vmatpush1.msra.mxu0 0.0
      %3547 = vmatprep.subr.mxu0 0.0
      %3548 = vmatpush1.msra.mxu0 0.0
      %3549 = vmatprep.mubr.f32.mxu0 0.0
      %v3550 = vand.u32 %v2878, 4294901760
      %3551 = vmatmul.mubr.f32.gmra.mrb[0].mxu0 %v3550
      %v3552 = vpop.f32.mrb[0].mxu0
      %v3553 = vadd.f32 %v3449, %v3552
      %v3554 = vpop.f32.mrb[0].mxu0
      %v3555 = vadd.f32 %v3451, %v3554
      %3556 = vmatprep.mubr.f32.mxu0 0.0
      %v3557 = vand.u32 %v2881, 4294901760
      %3558 = vmatmul.mubr.f32.gmra.mrb[0].mxu0 %v3557
      %v3559 = vpop.f32.mrb[0].mxu0
      %v3560 = vadd.f32 %v3456, %v3559
      %v3561 = vpop.f32.mrb[0].mxu0
      %v3562 = vadd.f32 %v3458, %v3561
      %3563 = vmatprep.mubr.f32.mxu0 0.0
      %v3564 = vand.u32 %v2884, 4294901760
      %3565 = vmatmul.mubr.f32.gmra.mrb[0].mxu0 %v3564
      %v3566 = vpop.f32.mrb[0].mxu0
      %v3567 = vadd.f32 %v3463, %v3566
      %v3568 = vpop.f32.mrb[0].mxu0
      %v3569 = vadd.f32 %v3465, %v3568
      %3570 = vmatprep.mubr.f32.mxu0 0.0
      %v3571 = vand.u32 %v2887, 4294901760
      %3572 = vmatmul.mubr.f32.gmra.mrb[0].mxu0 %v3571
      %v3573 = vpop.f32.mrb[0].mxu0
      %v3574 = vadd.f32 %v3470, %v3573
      %v3575 = vpop.f32.mrb[0].mxu0
      %v3576 = vadd.f32 %v3472, %v3575
      %3577 = vmatprep.mubr.f32.mxu0 0.0
      %v3578 = vand.u32 %v2890, 4294901760
      %3579 = vmatmul.mubr.f32.gmra.mrb[0].mxu0 %v3578
      %v3580 = vpop.f32.mrb[0].mxu0
      %v3581 = vadd.f32 %v3477, %v3580
      %v3582 = vpop.f32.mrb[0].mxu0
      %v3583 = vadd.f32 %v3479, %v3582
      %3584 = vdwg.mxu0
      %3585 = vrot.lane.b32.xlu0 %v373, 116
      %v3586 = vpop.permute.xlu0 %3585
      %3587 = vrot.lane.b32.xlu0 %v374, 116
      %v3588 = vpop.permute.xlu0 %3587
      %3589 = vrot.lane.b32.xlu0 %v375, 116
      %v3590 = vpop.permute.xlu0 %3589
      %3591 = vrot.lane.b32.xlu0 %v376, 116
      %v3592 = vpop.permute.xlu0 %3591
      %3593 = vrot.lane.b32.xlu0 %v377, 116
      %v3594 = vpop.permute.xlu0 %3593
      %3596 = vrot.lane.b32.xlu0 %v923, 124
      %v3597 = vpop.permute.xlu0 %3596
      %3598 = vrot.lane.b32.xlu0 %v930, 124
      %v3599 = vpop.permute.xlu0 %3598
      %v3601 = vsel %vm934, %v3586, 0
      %v3603 = vsel %vm934, %v3588, 0
      %v3605 = vsel %vm934, %v3590, 0
      %v3607 = vsel %vm934, %v3592, 0
      %v3609 = vsel %vm934, %v3594, 0
      %v3611 = vsel %vm950, %v3599, 0
      %3613 = vmatprep.subr.mxu0 0.0
      %v3614 = vand.u32 %v3597, 4294901760
      %3615 = vmatpush1.msra.mxu0 %v3614
      %3616 = vmatprep.subr.mxu0 0.0
      %v3617 = vand.u32 %v3611, 4294901760
      %3618 = vmatpush1.msra.mxu0 %v3617
      %3619 = vmatprep.subr.mxu0 0.0
      %3620 = vmatpush1.msra.mxu0 0.0
      %3621 = vmatprep.subr.mxu0 0.0
      %3622 = vmatpush1.msra.mxu0 0.0
      %3623 = vmatprep.subr.mxu0 0.0
      %3624 = vmatpush1.msra.mxu0 0.0
      %3625 = vmatprep.subr.mxu0 0.0
      %3626 = vmatpush1.msra.mxu0 0.0
      %3627 = vmatprep.subr.mxu0 0.0
      %3628 = vmatpush1.msra.mxu0 0.0
      %3629 = vmatprep.subr.mxu0 0.0
      %3630 = vmatpush1.msra.mxu0 0.0
      %3631 = vmatprep.subr.mxu0 0.0
      %3632 = vmatpush1.msra.mxu0 0.0
      %3633 = vmatprep.subr.mxu0 0.0
      %3634 = vmatpush1.msra.mxu0 0.0
      %3635 = vmatprep.subr.mxu0 0.0
      %3636 = vmatpush1.msra.mxu0 0.0
      %3637 = vmatprep.subr.mxu0 0.0
      %3638 = vmatpush1.msra.mxu0 0.0
      %3639 = vmatprep.subr.mxu0 0.0
      %3640 = vmatpush1.msra.mxu0 0.0
      %3641 = vmatprep.subr.mxu0 0.0
      %3642 = vmatpush1.msra.mxu0 0.0
      %3643 = vmatprep.subr.mxu0 0.0
      %3644 = vmatpush1.msra.mxu0 0.0
      %3645 = vmatprep.subr.mxu0 0.0
      %3646 = vmatpush1.msra.mxu0 0.0
      %3647 = vmatprep.subr.mxu0 0.0
      %3648 = vmatpush1.msra.mxu0 0.0
      %3649 = vmatprep.subr.mxu0 0.0
      %3650 = vmatpush1.msra.mxu0 0.0
      %3651 = vmatprep.subr.mxu0 0.0
      %3652 = vmatpush1.msra.mxu0 0.0
      %3653 = vmatprep.subr.mxu0 0.0
      %3654 = vmatpush1.msra.mxu0 0.0
      %3655 = vmatprep.subr.mxu0 0.0
      %3656 = vmatpush1.msra.mxu0 0.0
      %3657 = vmatprep.subr.mxu0 0.0
      %3658 = vmatpush1.msra.mxu0 0.0
      %3659 = vmatprep.subr.mxu0 0.0
      %3660 = vmatpush1.msra.mxu0 0.0
      %3661 = vmatprep.subr.mxu0 0.0
      %3662 = vmatpush1.msra.mxu0 0.0
      %3663 = vmatprep.subr.mxu0 0.0
      %3664 = vmatpush1.msra.mxu0 0.0
      %3665 = vmatprep.subr.mxu0 0.0
      %3666 = vmatpush1.msra.mxu0 0.0
      %3667 = vmatprep.subr.mxu0 0.0
      %3668 = vmatpush1.msra.mxu0 0.0
      %3669 = vmatprep.subr.mxu0 0.0
      %3670 = vmatpush1.msra.mxu0 0.0
      %3671 = vmatprep.subr.mxu0 0.0
      %3672 = vmatpush1.msra.mxu0 0.0
      %3673 = vmatprep.subr.mxu0 0.0
      %3674 = vmatpush1.msra.mxu0 0.0
      %3675 = vmatprep.subr.mxu0 0.0
      %3676 = vmatpush1.msra.mxu0 0.0
      %3677 = vmatprep.subr.mxu0 0.0
      %3678 = vmatpush1.msra.mxu0 0.0
      %3679 = vmatprep.mubr.f32.mxu0 0.0
      %v3680 = vand.u32 %v3601, 4294901760
      %v3681 = vsub.f32 %v3601, %v3680
      %v3682 = vand.u32 %v3681, 4294901760
      %v3683 = vsub.f32 %v3681, %v3682
      %v3684 = vand.u32 %v3683, 4294901760
      %3685 = vmatmul.mubr.f32.gmra.mrb[0].mxu0 %v3684
      %v3686 = vpop.f32.mrb[0].mxu0
      %v3687 = vadd.f32 0.0, %v3686
      %v3688 = vpop.f32.mrb[0].mxu0
      %3689 = vmatprep.mubr.f32.mxu0 0.0
      %v3690 = vand.u32 %v3603, 4294901760
      %v3691 = vsub.f32 %v3603, %v3690
      %v3692 = vand.u32 %v3691, 4294901760
      %v3693 = vsub.f32 %v3691, %v3692
      %v3694 = vand.u32 %v3693, 4294901760
      %3695 = vmatmul.mubr.f32.gmra.mrb[0].mxu0 %v3694
      %v3696 = vpop.f32.mrb[0].mxu0
      %v3697 = vadd.f32 0.0, %v3696
      %v3698 = vpop.f32.mrb[0].mxu0
      %3699 = vmatprep.mubr.f32.mxu0 0.0
      %v3700 = vand.u32 %v3605, 4294901760
      %v3701 = vsub.f32 %v3605, %v3700
      %v3702 = vand.u32 %v3701, 4294901760
      %v3703 = vsub.f32 %v3701, %v3702
      %v3704 = vand.u32 %v3703, 4294901760
      %3705 = vmatmul.mubr.f32.gmra.mrb[0].mxu0 %v3704
      %v3706 = vpop.f32.mrb[0].mxu0
      %v3707 = vadd.f32 0.0, %v3706
      %v3708 = vpop.f32.mrb[0].mxu0
      %3709 = vmatprep.mubr.f32.mxu0 0.0
      %v3710 = vand.u32 %v3607, 4294901760
      %v3711 = vsub.f32 %v3607, %v3710
      %v3712 = vand.u32 %v3711, 4294901760
      %v3713 = vsub.f32 %v3711, %v3712
      %v3714 = vand.u32 %v3713, 4294901760
      %3715 = vmatmul.mubr.f32.gmra.mrb[0].mxu0 %v3714
      %v3716 = vpop.f32.mrb[0].mxu0
      %v3717 = vadd.f32 0.0, %v3716
      %v3718 = vpop.f32.mrb[0].mxu0
      %3719 = vmatprep.mubr.f32.mxu0 0.0
      %v3720 = vand.u32 %v3609, 4294901760
      %v3721 = vsub.f32 %v3609, %v3720
      %v3722 = vand.u32 %v3721, 4294901760
      %v3723 = vsub.f32 %v3721, %v3722
      %v3724 = vand.u32 %v3723, 4294901760
      %3725 = vmatmul.mubr.f32.gmra.mrb[0].mxu0 %v3724
      %v3726 = vpop.f32.mrb[0].mxu0
      %v3727 = vadd.f32 0.0, %v3726
      %v3728 = vpop.f32.mrb[0].mxu0
      %3729 = vdwg.mxu0
      %3730 = vmatprep.subr.mxu0 0.0
      %v3731 = vand.u32 %v3597, 4294901760
      %v3732 = vsub.f32 %v3597, %v3731
      %v3733 = vand.u32 %v3732, 4294901760
      %v3734 = vsub.f32 %v3732, %v3733
      %v3735 = vand.u32 %v3734, 4294901760
      %3736 = vmatpush1.msra.mxu0 %v3735
      %3737 = vmatprep.subr.mxu0 0.0
      %v3738 = vand.u32 %v3611, 4294901760
      %v3739 = vsub.f32 %v3611, %v3738
      %v3740 = vand.u32 %v3739, 4294901760
      %v3741 = vsub.f32 %v3739, %v3740
      %v3742 = vand.u32 %v3741, 4294901760
      %3743 = vmatpush1.msra.mxu0 %v3742
      %3744 = vmatprep.subr.mxu0 0.0
      %3745 = vmatpush1.msra.mxu0 0.0
      %3746 = vmatprep.subr.mxu0 0.0
      %3747 = vmatpush1.msra.mxu0 0.0
      %3748 = vmatprep.subr.mxu0 0.0
      %3749 = vmatpush1.msra.mxu0 0.0
      %3750 = vmatprep.subr.mxu0 0.0
      %3751 = vmatpush1.msra.mxu0 0.0
      %3752 = vmatprep.subr.mxu0 0.0
      %3753 = vmatpush1.msra.mxu0 0.0
      %3754 = vmatprep.subr.mxu0 0.0
      %3755 = vmatpush1.msra.mxu0 0.0
      %3756 = vmatprep.subr.mxu0 0.0
      %3757 = vmatpush1.msra.mxu0 0.0
      %3758 = vmatprep.subr.mxu0 0.0
      %3759 = vmatpush1.msra.mxu0 0.0
      %3760 = vmatprep.subr.mxu0 0.0
      %3761 = vmatpush1.msra.mxu0 0.0
      %3762 = vmatprep.subr.mxu0 0.0
      %3763 = vmatpush1.msra.mxu0 0.0
      %3764 = vmatprep.subr.mxu0 0.0
      %3765 = vmatpush1.msra.mxu0 0.0
      %3766 = vmatprep.subr.mxu0 0.0
      %3767 = vmatpush1.msra.mxu0 0.0
      %3768 = vmatprep.subr.mxu0 0.0
      %3769 = vmatpush1.msra.mxu0 0.0
      %3770 = vmatprep.subr.mxu0 0.0
      %3771 = vmatpush1.msra.mxu0 0.0
      %3772 = vmatprep.subr.mxu0 0.0
      %3773 = vmatpush1.msra.mxu0 0.0
      %3774 = vmatprep.subr.mxu0 0.0
      %3775 = vmatpush1.msra.mxu0 0.0
      %3776 = vmatprep.subr.mxu0 0.0
      %3777 = vmatpush1.msra.mxu0 0.0
      %3778 = vmatprep.subr.mxu0 0.0
      %3779 = vmatpush1.msra.mxu0 0.0
      %3780 = vmatprep.subr.mxu0 0.0
      %3781 = vmatpush1.msra.mxu0 0.0
      %3782 = vmatprep.subr.mxu0 0.0
      %3783 = vmatpush1.msra.mxu0 0.0
      %3784 = vmatprep.subr.mxu0 0.0
      %3785 = vmatpush1.msra.mxu0 0.0
      %3786 = vmatprep.subr.mxu0 0.0
      %3787 = vmatpush1.msra.mxu0 0.0
      %3788 = vmatprep.subr.mxu0 0.0
      %3789 = vmatpush1.msra.mxu0 0.0
      %3790 = vmatprep.subr.mxu0 0.0
      %3791 = vmatpush1.msra.mxu0 0.0
      %3792 = vmatprep.subr.mxu0 0.0
      %3793 = vmatpush1.msra.mxu0 0.0
      %3794 = vmatprep.subr.mxu0 0.0
      %3795 = vmatpush1.msra.mxu0 0.0
      %3796 = vmatprep.subr.mxu0 0.0
      %3797 = vmatpush1.msra.mxu0 0.0
      %3798 = vmatprep.subr.mxu0 0.0
      %3799 = vmatpush1.msra.mxu0 0.0
      %3800 = vmatprep.subr.mxu0 0.0
      %3801 = vmatpush1.msra.mxu0 0.0
      %3802 = vmatprep.subr.mxu0 0.0
      %3803 = vmatpush1.msra.mxu0 0.0
      %3804 = vmatprep.mubr.f32.mxu0 0.0
      %v3805 = vand.u32 %v3601, 4294901760
      %3806 = vmatmul.mubr.f32.gmra.mrb[0].mxu0 %v3805
      %v3807 = vpop.f32.mrb[0].mxu0
      %v3808 = vadd.f32 %v3687, %v3807
      %v3809 = vpop.f32.mrb[0].mxu0
      %3810 = vmatprep.mubr.f32.mxu0 0.0
      %v3811 = vand.u32 %v3603, 4294901760
      %3812 = vmatmul.mubr.f32.gmra.mrb[0].mxu0 %v3811
      %v3813 = vpop.f32.mrb[0].mxu0
      %v3814 = vadd.f32 %v3697, %v3813
      %v3815 = vpop.f32.mrb[0].mxu0
      %3816 = vmatprep.mubr.f32.mxu0 0.0
      %v3817 = vand.u32 %v3605, 4294901760
      %3818 = vmatmul.mubr.f32.gmra.mrb[0].mxu0 %v3817
      %v3819 = vpop.f32.mrb[0].mxu0
      %v3820 = vadd.f32 %v3707, %v3819
      %v3821 = vpop.f32.mrb[0].mxu0
      %3822 = vmatprep.mubr.f32.mxu0 0.0
      %v3823 = vand.u32 %v3607, 4294901760
      %3824 = vmatmul.mubr.f32.gmra.mrb[0].mxu0 %v3823
      %v3825 = vpop.f32.mrb[0].mxu0
      %v3826 = vadd.f32 %v3717, %v3825
      %v3827 = vpop.f32.mrb[0].mxu0
      %3828 = vmatprep.mubr.f32.mxu0 0.0
      %v3829 = vand.u32 %v3609, 4294901760
      %3830 = vmatmul.mubr.f32.gmra.mrb[0].mxu0 %v3829
      %v3831 = vpop.f32.mrb[0].mxu0
      %v3832 = vadd.f32 %v3727, %v3831
      %v3833 = vpop.f32.mrb[0].mxu0
      %3834 = vdwg.mxu0
      %3835 = vmatprep.subr.mxu0 0.0
      %v3836 = vand.u32 %v3597, 4294901760
      %v3837 = vsub.f32 %v3597, %v3836
      %3838 = vmatpush1.msra.mxu0 %v3837
      %3839 = vmatprep.subr.mxu0 0.0
      %v3840 = vand.u32 %v3611, 4294901760
      %v3841 = vsub.f32 %v3611, %v3840
      %3842 = vmatpush1.msra.mxu0 %v3841
      %3843 = vmatprep.subr.mxu0 0.0
      %3844 = vmatpush1.msra.mxu0 0.0
      %3845 = vmatprep.subr.mxu0 0.0
      %3846 = vmatpush1.msra.mxu0 0.0
      %3847 = vmatprep.subr.mxu0 0.0
      %3848 = vmatpush1.msra.mxu0 0.0
      %3849 = vmatprep.subr.mxu0 0.0
      %3850 = vmatpush1.msra.mxu0 0.0
      %3851 = vmatprep.subr.mxu0 0.0
      %3852 = vmatpush1.msra.mxu0 0.0
      %3853 = vmatprep.subr.mxu0 0.0
      %3854 = vmatpush1.msra.mxu0 0.0
      %3855 = vmatprep.subr.mxu0 0.0
      %3856 = vmatpush1.msra.mxu0 0.0
      %3857 = vmatprep.subr.mxu0 0.0
      %3858 = vmatpush1.msra.mxu0 0.0
      %3859 = vmatprep.subr.mxu0 0.0
      %3860 = vmatpush1.msra.mxu0 0.0
      %3861 = vmatprep.subr.mxu0 0.0
      %3862 = vmatpush1.msra.mxu0 0.0
      %3863 = vmatprep.subr.mxu0 0.0
      %3864 = vmatpush1.msra.mxu0 0.0
      %3865 = vmatprep.subr.mxu0 0.0
      %3866 = vmatpush1.msra.mxu0 0.0
      %3867 = vmatprep.subr.mxu0 0.0
      %3868 = vmatpush1.msra.mxu0 0.0
      %3869 = vmatprep.subr.mxu0 0.0
      %3870 = vmatpush1.msra.mxu0 0.0
      %3871 = vmatprep.subr.mxu0 0.0
      %3872 = vmatpush1.msra.mxu0 0.0
      %3873 = vmatprep.subr.mxu0 0.0
      %3874 = vmatpush1.msra.mxu0 0.0
      %3875 = vmatprep.subr.mxu0 0.0
      %3876 = vmatpush1.msra.mxu0 0.0
      %3877 = vmatprep.subr.mxu0 0.0
      %3878 = vmatpush1.msra.mxu0 0.0
      %3879 = vmatprep.subr.mxu0 0.0
      %3880 = vmatpush1.msra.mxu0 0.0
      %3881 = vmatprep.subr.mxu0 0.0
      %3882 = vmatpush1.msra.mxu0 0.0
      %3883 = vmatprep.subr.mxu0 0.0
      %3884 = vmatpush1.msra.mxu0 0.0
      %3885 = vmatprep.subr.mxu0 0.0
      %3886 = vmatpush1.msra.mxu0 0.0
      %3887 = vmatprep.subr.mxu0 0.0
      %3888 = vmatpush1.msra.mxu0 0.0
      %3889 = vmatprep.subr.mxu0 0.0
      %3890 = vmatpush1.msra.mxu0 0.0
      %3891 = vmatprep.subr.mxu0 0.0
      %3892 = vmatpush1.msra.mxu0 0.0
      %3893 = vmatprep.subr.mxu0 0.0
      %3894 = vmatpush1.msra.mxu0 0.0
      %3895 = vmatprep.subr.mxu0 0.0
      %3896 = vmatpush1.msra.mxu0 0.0
      %3897 = vmatprep.subr.mxu0 0.0
      %3898 = vmatpush1.msra.mxu0 0.0
      %3899 = vmatprep.subr.mxu0 0.0
      %3900 = vmatpush1.msra.mxu0 0.0
      %3901 = vmatprep.subr.mxu0 0.0
      %3902 = vmatpush1.msra.mxu0 0.0
      %3903 = vmatprep.mubr.f32.mxu0 0.0
      %v3904 = vand.u32 %v3601, 4294901760
      %v3905 = vsub.f32 %v3601, %v3904
      %3906 = vmatmul.mubr.f32.gmra.mrb[0].mxu0 %v3905
      %v3907 = vpop.f32.mrb[0].mxu0
      %v3908 = vadd.f32 %v3808, %v3907
      %v3909 = vpop.f32.mrb[0].mxu0
      %3910 = vmatprep.mubr.f32.mxu0 0.0
      %v3911 = vand.u32 %v3603, 4294901760
      %v3912 = vsub.f32 %v3603, %v3911
      %3913 = vmatmul.mubr.f32.gmra.mrb[0].mxu0 %v3912
      %v3914 = vpop.f32.mrb[0].mxu0
      %v3915 = vadd.f32 %v3814, %v3914
      %v3916 = vpop.f32.mrb[0].mxu0
      %3917 = vmatprep.mubr.f32.mxu0 0.0
      %v3918 = vand.u32 %v3605, 4294901760
      %v3919 = vsub.f32 %v3605, %v3918
      %3920 = vmatmul.mubr.f32.gmra.mrb[0].mxu0 %v3919
      %v3921 = vpop.f32.mrb[0].mxu0
      %v3922 = vadd.f32 %v3820, %v3921
      %v3923 = vpop.f32.mrb[0].mxu0
      %3924 = vmatprep.mubr.f32.mxu0 0.0
      %v3925 = vand.u32 %v3607, 4294901760
      %v3926 = vsub.f32 %v3607, %v3925
      %3927 = vmatmul.mubr.f32.gmra.mrb[0].mxu0 %v3926
      %v3928 = vpop.f32.mrb[0].mxu0
      %v3929 = vadd.f32 %v3826, %v3928
      %v3930 = vpop.f32.mrb[0].mxu0
      %3931 = vmatprep.mubr.f32.mxu0 0.0
      %v3932 = vand.u32 %v3609, 4294901760
      %v3933 = vsub.f32 %v3609, %v3932
      %3934 = vmatmul.mubr.f32.gmra.mrb[0].mxu0 %v3933
      %v3935 = vpop.f32.mrb[0].mxu0
      %v3936 = vadd.f32 %v3832, %v3935
      %v3937 = vpop.f32.mrb[0].mxu0
      %3938 = vdwg.mxu0
      %3939 = vmatprep.subr.mxu0 0.0
      %v3940 = vand.u32 %v3597, 4294901760
      %3941 = vmatpush1.msra.mxu0 %v3940
      %3942 = vmatprep.subr.mxu0 0.0
      %v3943 = vand.u32 %v3611, 4294901760
      %3944 = vmatpush1.msra.mxu0 %v3943
      %3945 = vmatprep.subr.mxu0 0.0
      %3946 = vmatpush1.msra.mxu0 0.0
      %3947 = vmatprep.subr.mxu0 0.0
      %3948 = vmatpush1.msra.mxu0 0.0
      %3949 = vmatprep.subr.mxu0 0.0
      %3950 = vmatpush1.msra.mxu0 0.0
      %3951 = vmatprep.subr.mxu0 0.0
      %3952 = vmatpush1.msra.mxu0 0.0
      %3953 = vmatprep.subr.mxu0 0.0
      %3954 = vmatpush1.msra.mxu0 0.0
      %3955 = vmatprep.subr.mxu0 0.0
      %3956 = vmatpush1.msra.mxu0 0.0
      %3957 = vmatprep.subr.mxu0 0.0
      %3958 = vmatpush1.msra.mxu0 0.0
      %3959 = vmatprep.subr.mxu0 0.0
      %3960 = vmatpush1.msra.mxu0 0.0
      %3961 = vmatprep.subr.mxu0 0.0
      %3962 = vmatpush1.msra.mxu0 0.0
      %3963 = vmatprep.subr.mxu0 0.0
      %3964 = vmatpush1.msra.mxu0 0.0
      %3965 = vmatprep.subr.mxu0 0.0
      %3966 = vmatpush1.msra.mxu0 0.0
      %3967 = vmatprep.subr.mxu0 0.0
      %3968 = vmatpush1.msra.mxu0 0.0
      %3969 = vmatprep.subr.mxu0 0.0
      %3970 = vmatpush1.msra.mxu0 0.0
      %3971 = vmatprep.subr.mxu0 0.0
      %3972 = vmatpush1.msra.mxu0 0.0
      %3973 = vmatprep.subr.mxu0 0.0
      %3974 = vmatpush1.msra.mxu0 0.0
      %3975 = vmatprep.subr.mxu0 0.0
      %3976 = vmatpush1.msra.mxu0 0.0
      %3977 = vmatprep.subr.mxu0 0.0
      %3978 = vmatpush1.msra.mxu0 0.0
      %3979 = vmatprep.subr.mxu0 0.0
      %3980 = vmatpush1.msra.mxu0 0.0
      %3981 = vmatprep.subr.mxu0 0.0
      %3982 = vmatpush1.msra.mxu0 0.0
      %3983 = vmatprep.subr.mxu0 0.0
      %3984 = vmatpush1.msra.mxu0 0.0
      %3985 = vmatprep.subr.mxu0 0.0
      %3986 = vmatpush1.msra.mxu0 0.0
      %3987 = vmatprep.subr.mxu0 0.0
      %3988 = vmatpush1.msra.mxu0 0.0
      %3989 = vmatprep.subr.mxu0 0.0
      %3990 = vmatpush1.msra.mxu0 0.0
      %3991 = vmatprep.subr.mxu0 0.0
      %3992 = vmatpush1.msra.mxu0 0.0
      %3993 = vmatprep.subr.mxu0 0.0
      %3994 = vmatpush1.msra.mxu0 0.0
      %3995 = vmatprep.subr.mxu0 0.0
      %3996 = vmatpush1.msra.mxu0 0.0
      %3997 = vmatprep.subr.mxu0 0.0
      %3998 = vmatpush1.msra.mxu0 0.0
      %3999 = vmatprep.subr.mxu0 0.0
      %4000 = vmatpush1.msra.mxu0 0.0
      %4001 = vmatprep.subr.mxu0 0.0
      %4002 = vmatpush1.msra.mxu0 0.0
      %4003 = vmatprep.subr.mxu0 0.0
      %4004 = vmatpush1.msra.mxu0 0.0
      %4005 = vmatprep.mubr.f32.mxu0 0.0
      %v4006 = vand.u32 %v3601, 4294901760
      %v4007 = vsub.f32 %v3601, %v4006
      %v4008 = vand.u32 %v4007, 4294901760
      %4009 = vmatmul.mubr.f32.gmra.mrb[0].mxu0 %v4008
      %v4010 = vpop.f32.mrb[0].mxu0
      %v4011 = vadd.f32 %v3908, %v4010
      %v4012 = vpop.f32.mrb[0].mxu0
      %4013 = vmatprep.mubr.f32.mxu0 0.0
      %v4014 = vand.u32 %v3603, 4294901760
      %v4015 = vsub.f32 %v3603, %v4014
      %v4016 = vand.u32 %v4015, 4294901760
      %4017 = vmatmul.mubr.f32.gmra.mrb[0].mxu0 %v4016
      %v4018 = vpop.f32.mrb[0].mxu0
      %v4019 = vadd.f32 %v3915, %v4018
      %v4020 = vpop.f32.mrb[0].mxu0
      %4021 = vmatprep.mubr.f32.mxu0 0.0
      %v4022 = vand.u32 %v3605, 4294901760
      %v4023 = vsub.f32 %v3605, %v4022
      %v4024 = vand.u32 %v4023, 4294901760
      %4025 = vmatmul.mubr.f32.gmra.mrb[0].mxu0 %v4024
      %v4026 = vpop.f32.mrb[0].mxu0
      %v4027 = vadd.f32 %v3922, %v4026
      %v4028 = vpop.f32.mrb[0].mxu0
      %4029 = vmatprep.mubr.f32.mxu0 0.0
      %v4030 = vand.u32 %v3607, 4294901760
      %v4031 = vsub.f32 %v3607, %v4030
      %v4032 = vand.u32 %v4031, 4294901760
      %4033 = vmatmul.mubr.f32.gmra.mrb[0].mxu0 %v4032
      %v4034 = vpop.f32.mrb[0].mxu0
      %v4035 = vadd.f32 %v3929, %v4034
      %v4036 = vpop.f32.mrb[0].mxu0
      %4037 = vmatprep.mubr.f32.mxu0 0.0
      %v4038 = vand.u32 %v3609, 4294901760
      %v4039 = vsub.f32 %v3609, %v4038
      %v4040 = vand.u32 %v4039, 4294901760
      %4041 = vmatmul.mubr.f32.gmra.mrb[0].mxu0 %v4040
      %v4042 = vpop.f32.mrb[0].mxu0
      %v4043 = vadd.f32 %v3936, %v4042
      %v4044 = vpop.f32.mrb[0].mxu0
      %4045 = vdwg.mxu0
      %4046 = vmatprep.subr.mxu0 0.0
      %v4047 = vand.u32 %v3597, 4294901760
      %v4048 = vsub.f32 %v3597, %v4047
      %v4049 = vand.u32 %v4048, 4294901760
      %4050 = vmatpush1.msra.mxu0 %v4049
      %4051 = vmatprep.subr.mxu0 0.0
      %v4052 = vand.u32 %v3611, 4294901760
      %v4053 = vsub.f32 %v3611, %v4052
      %v4054 = vand.u32 %v4053, 4294901760
      %4055 = vmatpush1.msra.mxu0 %v4054
      %4056 = vmatprep.subr.mxu0 0.0
      %4057 = vmatpush1.msra.mxu0 0.0
      %4058 = vmatprep.subr.mxu0 0.0
      %4059 = vmatpush1.msra.mxu0 0.0
      %4060 = vmatprep.subr.mxu0 0.0
      %4061 = vmatpush1.msra.mxu0 0.0
      %4062 = vmatprep.subr.mxu0 0.0
      %4063 = vmatpush1.msra.mxu0 0.0
      %4064 = vmatprep.subr.mxu0 0.0
      %4065 = vmatpush1.msra.mxu0 0.0
      %4066 = vmatprep.subr.mxu0 0.0
      %4067 = vmatpush1.msra.mxu0 0.0
      %4068 = vmatprep.subr.mxu0 0.0
      %4069 = vmatpush1.msra.mxu0 0.0
      %4070 = vmatprep.subr.mxu0 0.0
      %4071 = vmatpush1.msra.mxu0 0.0
      %4072 = vmatprep.subr.mxu0 0.0
      %4073 = vmatpush1.msra.mxu0 0.0
      %4074 = vmatprep.subr.mxu0 0.0
      %4075 = vmatpush1.msra.mxu0 0.0
      %4076 = vmatprep.subr.mxu0 0.0
      %4077 = vmatpush1.msra.mxu0 0.0
      %4078 = vmatprep.subr.mxu0 0.0
      %4079 = vmatpush1.msra.mxu0 0.0
      %4080 = vmatprep.subr.mxu0 0.0
      %4081 = vmatpush1.msra.mxu0 0.0
      %4082 = vmatprep.subr.mxu0 0.0
      %4083 = vmatpush1.msra.mxu0 0.0
      %4084 = vmatprep.subr.mxu0 0.0
      %4085 = vmatpush1.msra.mxu0 0.0
      %4086 = vmatprep.subr.mxu0 0.0
      %4087 = vmatpush1.msra.mxu0 0.0
      %4088 = vmatprep.subr.mxu0 0.0
      %4089 = vmatpush1.msra.mxu0 0.0
      %4090 = vmatprep.subr.mxu0 0.0
      %4091 = vmatpush1.msra.mxu0 0.0
      %4092 = vmatprep.subr.mxu0 0.0
      %4093 = vmatpush1.msra.mxu0 0.0
      %4094 = vmatprep.subr.mxu0 0.0
      %4095 = vmatpush1.msra.mxu0 0.0
      %4096 = vmatprep.subr.mxu0 0.0
      %4097 = vmatpush1.msra.mxu0 0.0
      %4098 = vmatprep.subr.mxu0 0.0
      %4099 = vmatpush1.msra.mxu0 0.0
      %4100 = vmatprep.subr.mxu0 0.0
      %4101 = vmatpush1.msra.mxu0 0.0
      %4102 = vmatprep.subr.mxu0 0.0
      %4103 = vmatpush1.msra.mxu0 0.0
      %4104 = vmatprep.subr.mxu0 0.0
      %4105 = vmatpush1.msra.mxu0 0.0
      %4106 = vmatprep.subr.mxu0 0.0
      %4107 = vmatpush1.msra.mxu0 0.0
      %4108 = vmatprep.subr.mxu0 0.0
      %4109 = vmatpush1.msra.mxu0 0.0
      %4110 = vmatprep.subr.mxu0 0.0
      %4111 = vmatpush1.msra.mxu0 0.0
      %4112 = vmatprep.subr.mxu0 0.0
      %4113 = vmatpush1.msra.mxu0 0.0
      %4114 = vmatprep.subr.mxu0 0.0
      %4115 = vmatpush1.msra.mxu0 0.0
      %4116 = vmatprep.mubr.f32.mxu0 0.0
      %v4117 = vand.u32 %v3601, 4294901760
      %4118 = vmatmul.mubr.f32.gmra.mrb[0].mxu0 %v4117
      %v4119 = vpop.f32.mrb[0].mxu0
      %v4120 = vadd.f32 %v4011, %v4119
      %v4121 = vpop.f32.mrb[0].mxu0
      %4122 = vmatprep.mubr.f32.mxu0 0.0
      %v4123 = vand.u32 %v3603, 4294901760
      %4124 = vmatmul.mubr.f32.gmra.mrb[0].mxu0 %v4123
      %v4125 = vpop.f32.mrb[0].mxu0
      %v4126 = vadd.f32 %v4019, %v4125
      %v4127 = vpop.f32.mrb[0].mxu0
      %4128 = vmatprep.mubr.f32.mxu0 0.0
      %v4129 = vand.u32 %v3605, 4294901760
      %4130 = vmatmul.mubr.f32.gmra.mrb[0].mxu0 %v4129
      %v4131 = vpop.f32.mrb[0].mxu0
      %v4132 = vadd.f32 %v4027, %v4131
      %v4133 = vpop.f32.mrb[0].mxu0
      %4134 = vmatprep.mubr.f32.mxu0 0.0
      %v4135 = vand.u32 %v3607, 4294901760
      %4136 = vmatmul.mubr.f32.gmra.mrb[0].mxu0 %v4135
      %v4137 = vpop.f32.mrb[0].mxu0
      %v4138 = vadd.f32 %v4035, %v4137
      %v4139 = vpop.f32.mrb[0].mxu0
      %4140 = vmatprep.mubr.f32.mxu0 0.0
      %v4141 = vand.u32 %v3609, 4294901760
      %4142 = vmatmul.mubr.f32.gmra.mrb[0].mxu0 %v4141
      %v4143 = vpop.f32.mrb[0].mxu0
      %v4144 = vadd.f32 %v4043, %v4143
      %v4145 = vpop.f32.mrb[0].mxu0
      %4146 = vdwg.mxu0
      %4147 = vmatprep.subr.mxu0 0.0
      %v4148 = vand.u32 %v3597, 4294901760
      %4149 = vmatpush1.msra.mxu0 %v4148
      %4150 = vmatprep.subr.mxu0 0.0
      %v4151 = vand.u32 %v3611, 4294901760
      %4152 = vmatpush1.msra.mxu0 %v4151
      %4153 = vmatprep.subr.mxu0 0.0
      %4154 = vmatpush1.msra.mxu0 0.0
      %4155 = vmatprep.subr.mxu0 0.0
      %4156 = vmatpush1.msra.mxu0 0.0
      %4157 = vmatprep.subr.mxu0 0.0
      %4158 = vmatpush1.msra.mxu0 0.0
      %4159 = vmatprep.subr.mxu0 0.0
      %4160 = vmatpush1.msra.mxu0 0.0
      %4161 = vmatprep.subr.mxu0 0.0
      %4162 = vmatpush1.msra.mxu0 0.0
      %4163 = vmatprep.subr.mxu0 0.0
      %4164 = vmatpush1.msra.mxu0 0.0
      %4165 = vmatprep.subr.mxu0 0.0
      %4166 = vmatpush1.msra.mxu0 0.0
      %4167 = vmatprep.subr.mxu0 0.0
      %4168 = vmatpush1.msra.mxu0 0.0
      %4169 = vmatprep.subr.mxu0 0.0
      %4170 = vmatpush1.msra.mxu0 0.0
      %4171 = vmatprep.subr.mxu0 0.0
      %4172 = vmatpush1.msra.mxu0 0.0
      %4173 = vmatprep.subr.mxu0 0.0
      %4174 = vmatpush1.msra.mxu0 0.0
      %4175 = vmatprep.subr.mxu0 0.0
      %4176 = vmatpush1.msra.mxu0 0.0
      %4177 = vmatprep.subr.mxu0 0.0
      %4178 = vmatpush1.msra.mxu0 0.0
      %4179 = vmatprep.subr.mxu0 0.0
      %4180 = vmatpush1.msra.mxu0 0.0
      %4181 = vmatprep.subr.mxu0 0.0
      %4182 = vmatpush1.msra.mxu0 0.0
      %4183 = vmatprep.subr.mxu0 0.0
      %4184 = vmatpush1.msra.mxu0 0.0
      %4185 = vmatprep.subr.mxu0 0.0
      %4186 = vmatpush1.msra.mxu0 0.0
      %4187 = vmatprep.subr.mxu0 0.0
      %4188 = vmatpush1.msra.mxu0 0.0
      %4189 = vmatprep.subr.mxu0 0.0
      %4190 = vmatpush1.msra.mxu0 0.0
      %4191 = vmatprep.subr.mxu0 0.0
      %4192 = vmatpush1.msra.mxu0 0.0
      %4193 = vmatprep.subr.mxu0 0.0
      %4194 = vmatpush1.msra.mxu0 0.0
      %4195 = vmatprep.subr.mxu0 0.0
      %4196 = vmatpush1.msra.mxu0 0.0
      %4197 = vmatprep.subr.mxu0 0.0
      %4198 = vmatpush1.msra.mxu0 0.0
      %4199 = vmatprep.subr.mxu0 0.0
      %4200 = vmatpush1.msra.mxu0 0.0
      %4201 = vmatprep.subr.mxu0 0.0
      %4202 = vmatpush1.msra.mxu0 0.0
      %4203 = vmatprep.subr.mxu0 0.0
      %4204 = vmatpush1.msra.mxu0 0.0
      %4205 = vmatprep.subr.mxu0 0.0
      %4206 = vmatpush1.msra.mxu0 0.0
      %4207 = vmatprep.subr.mxu0 0.0
      %4208 = vmatpush1.msra.mxu0 0.0
      %4209 = vmatprep.subr.mxu0 0.0
      %4210 = vmatpush1.msra.mxu0 0.0
      %4211 = vmatprep.subr.mxu0 0.0
      %4212 = vmatpush1.msra.mxu0 0.0
      %4213 = vmatprep.mubr.f32.mxu0 0.0
      %v4214 = vand.u32 %v3601, 4294901760
      %4215 = vmatmul.mubr.f32.gmra.mrb[0].mxu0 %v4214
      %v4216 = vpop.f32.mrb[0].mxu0
      %v4217 = vadd.f32 %v4120, %v4216
      %v4218 = vpop.f32.mrb[0].mxu0
      %4219 = vmatprep.mubr.f32.mxu0 0.0
      %v4220 = vand.u32 %v3603, 4294901760
      %4221 = vmatmul.mubr.f32.gmra.mrb[0].mxu0 %v4220
      %v4222 = vpop.f32.mrb[0].mxu0
      %v4223 = vadd.f32 %v4126, %v4222
      %v4224 = vpop.f32.mrb[0].mxu0
      %4225 = vmatprep.mubr.f32.mxu0 0.0
      %v4226 = vand.u32 %v3605, 4294901760
      %4227 = vmatmul.mubr.f32.gmra.mrb[0].mxu0 %v4226
      %v4228 = vpop.f32.mrb[0].mxu0
      %v4229 = vadd.f32 %v4132, %v4228
      %v4230 = vpop.f32.mrb[0].mxu0
      %4231 = vmatprep.mubr.f32.mxu0 0.0
      %v4232 = vand.u32 %v3607, 4294901760
      %4233 = vmatmul.mubr.f32.gmra.mrb[0].mxu0 %v4232
      %v4234 = vpop.f32.mrb[0].mxu0
      %v4235 = vadd.f32 %v4138, %v4234
      %v4236 = vpop.f32.mrb[0].mxu0
      %4237 = vmatprep.mubr.f32.mxu0 0.0
      %v4238 = vand.u32 %v3609, 4294901760
      %4239 = vmatmul.mubr.f32.gmra.mrb[0].mxu0 %v4238
      %v4240 = vpop.f32.mrb[0].mxu0
      %v4241 = vadd.f32 %v4144, %v4240
      %v4242 = vpop.f32.mrb[0].mxu0
      %4243 = vdwg.mxu0
      %v4245 = vsel %vm950, %v2876, 0
      %4247 = vmatprep.subr.mxu0 0.0
      %v4248 = vand.u32 %v2875, 4294901760
      %4249 = vmatpush1.msra.mxu0 %v4248
      %4250 = vmatprep.subr.mxu0 0.0
      %v4251 = vand.u32 %v4245, 4294901760
      %4252 = vmatpush1.msra.mxu0 %v4251
      %4253 = vmatprep.subr.mxu0 0.0
      %4254 = vmatpush1.msra.mxu0 0.0
      %4255 = vmatprep.subr.mxu0 0.0
      %4256 = vmatpush1.msra.mxu0 0.0
      %4257 = vmatprep.subr.mxu0 0.0
      %4258 = vmatpush1.msra.mxu0 0.0
      %4259 = vmatprep.subr.mxu0 0.0
      %4260 = vmatpush1.msra.mxu0 0.0
      %4261 = vmatprep.subr.mxu0 0.0
      %4262 = vmatpush1.msra.mxu0 0.0
      %4263 = vmatprep.subr.mxu0 0.0
      %4264 = vmatpush1.msra.mxu0 0.0
      %4265 = vmatprep.subr.mxu0 0.0
      %4266 = vmatpush1.msra.mxu0 0.0
      %4267 = vmatprep.subr.mxu0 0.0
      %4268 = vmatpush1.msra.mxu0 0.0
      %4269 = vmatprep.subr.mxu0 0.0
      %4270 = vmatpush1.msra.mxu0 0.0
      %4271 = vmatprep.subr.mxu0 0.0
      %4272 = vmatpush1.msra.mxu0 0.0
      %4273 = vmatprep.subr.mxu0 0.0
      %4274 = vmatpush1.msra.mxu0 0.0
      %4275 = vmatprep.subr.mxu0 0.0
      %4276 = vmatpush1.msra.mxu0 0.0
      %4277 = vmatprep.subr.mxu0 0.0
      %4278 = vmatpush1.msra.mxu0 0.0
      %4279 = vmatprep.subr.mxu0 0.0
      %4280 = vmatpush1.msra.mxu0 0.0
      %4281 = vmatprep.subr.mxu0 0.0
      %4282 = vmatpush1.msra.mxu0 0.0
      %4283 = vmatprep.subr.mxu0 0.0
      %4284 = vmatpush1.msra.mxu0 0.0
      %4285 = vmatprep.subr.mxu0 0.0
      %4286 = vmatpush1.msra.mxu0 0.0
      %4287 = vmatprep.subr.mxu0 0.0
      %4288 = vmatpush1.msra.mxu0 0.0
      %4289 = vmatprep.subr.mxu0 0.0
      %4290 = vmatpush1.msra.mxu0 0.0
      %4291 = vmatprep.subr.mxu0 0.0
      %4292 = vmatpush1.msra.mxu0 0.0
      %4293 = vmatprep.subr.mxu0 0.0
      %4294 = vmatpush1.msra.mxu0 0.0
      %4295 = vmatprep.subr.mxu0 0.0
      %4296 = vmatpush1.msra.mxu0 0.0
      %4297 = vmatprep.subr.mxu0 0.0
      %4298 = vmatpush1.msra.mxu0 0.0
      %4299 = vmatprep.subr.mxu0 0.0
      %4300 = vmatpush1.msra.mxu0 0.0
      %4301 = vmatprep.subr.mxu0 0.0
      %4302 = vmatpush1.msra.mxu0 0.0
      %4303 = vmatprep.subr.mxu0 0.0
      %4304 = vmatpush1.msra.mxu0 0.0
      %4305 = vmatprep.subr.mxu0 0.0
      %4306 = vmatpush1.msra.mxu0 0.0
      %4307 = vmatprep.subr.mxu0 0.0
      %4308 = vmatpush1.msra.mxu0 0.0
      %4309 = vmatprep.subr.mxu0 0.0
      %4310 = vmatpush1.msra.mxu0 0.0
      %4311 = vmatprep.subr.mxu0 0.0
      %4312 = vmatpush1.msra.mxu0 0.0
      %4313 = vmatprep.mubr.f32.mxu0 0.0
      %v4314 = vand.u32 %v3601, 4294901760
      %v4315 = vsub.f32 %v3601, %v4314
      %v4316 = vand.u32 %v4315, 4294901760
      %v4317 = vsub.f32 %v4315, %v4316
      %v4318 = vand.u32 %v4317, 4294901760
      %4319 = vmatmul.mubr.f32.gmra.mrb[0].mxu0 %v4318
      %v4320 = vpop.f32.mrb[0].mxu0
      %v4321 = vadd.f32 0.0, %v4320
      %v4322 = vpop.f32.mrb[0].mxu0
      %4323 = vmatprep.mubr.f32.mxu0 0.0
      %v4324 = vand.u32 %v3603, 4294901760
      %v4325 = vsub.f32 %v3603, %v4324
      %v4326 = vand.u32 %v4325, 4294901760
      %v4327 = vsub.f32 %v4325, %v4326
      %v4328 = vand.u32 %v4327, 4294901760
      %4329 = vmatmul.mubr.f32.gmra.mrb[0].mxu0 %v4328
      %v4330 = vpop.f32.mrb[0].mxu0
      %v4331 = vadd.f32 0.0, %v4330
      %v4332 = vpop.f32.mrb[0].mxu0
      %4333 = vmatprep.mubr.f32.mxu0 0.0
      %v4334 = vand.u32 %v3605, 4294901760
      %v4335 = vsub.f32 %v3605, %v4334
      %v4336 = vand.u32 %v4335, 4294901760
      %v4337 = vsub.f32 %v4335, %v4336
      %v4338 = vand.u32 %v4337, 4294901760
      %4339 = vmatmul.mubr.f32.gmra.mrb[0].mxu0 %v4338
      %v4340 = vpop.f32.mrb[0].mxu0
      %v4341 = vadd.f32 0.0, %v4340
      %v4342 = vpop.f32.mrb[0].mxu0
      %4343 = vmatprep.mubr.f32.mxu0 0.0
      %v4344 = vand.u32 %v3607, 4294901760
      %v4345 = vsub.f32 %v3607, %v4344
      %v4346 = vand.u32 %v4345, 4294901760
      %v4347 = vsub.f32 %v4345, %v4346
      %v4348 = vand.u32 %v4347, 4294901760
      %4349 = vmatmul.mubr.f32.gmra.mrb[0].mxu0 %v4348
      %v4350 = vpop.f32.mrb[0].mxu0
      %v4351 = vadd.f32 0.0, %v4350
      %v4352 = vpop.f32.mrb[0].mxu0
      %4353 = vmatprep.mubr.f32.mxu0 0.0
      %v4354 = vand.u32 %v3609, 4294901760
      %v4355 = vsub.f32 %v3609, %v4354
      %v4356 = vand.u32 %v4355, 4294901760
      %v4357 = vsub.f32 %v4355, %v4356
      %v4358 = vand.u32 %v4357, 4294901760
      %4359 = vmatmul.mubr.f32.gmra.mrb[0].mxu0 %v4358
      %v4360 = vpop.f32.mrb[0].mxu0
      %v4361 = vadd.f32 0.0, %v4360
      %v4362 = vpop.f32.mrb[0].mxu0
      %4363 = vdwg.mxu0
      %4364 = vmatprep.subr.mxu0 0.0
      %v4365 = vand.u32 %v2875, 4294901760
      %v4366 = vsub.f32 %v2875, %v4365
      %v4367 = vand.u32 %v4366, 4294901760
      %v4368 = vsub.f32 %v4366, %v4367
      %v4369 = vand.u32 %v4368, 4294901760
      %4370 = vmatpush1.msra.mxu0 %v4369
      %4371 = vmatprep.subr.mxu0 0.0
      %v4372 = vand.u32 %v4245, 4294901760
      %v4373 = vsub.f32 %v4245, %v4372
      %v4374 = vand.u32 %v4373, 4294901760
      %v4375 = vsub.f32 %v4373, %v4374
      %v4376 = vand.u32 %v4375, 4294901760
      %4377 = vmatpush1.msra.mxu0 %v4376
      %4378 = vmatprep.subr.mxu0 0.0
      %4379 = vmatpush1.msra.mxu0 0.0
      %4380 = vmatprep.subr.mxu0 0.0
      %4381 = vmatpush1.msra.mxu0 0.0
      %4382 = vmatprep.subr.mxu0 0.0
      %4383 = vmatpush1.msra.mxu0 0.0
      %4384 = vmatprep.subr.mxu0 0.0
      %4385 = vmatpush1.msra.mxu0 0.0
      %4386 = vmatprep.subr.mxu0 0.0
      %4387 = vmatpush1.msra.mxu0 0.0
      %4388 = vmatprep.subr.mxu0 0.0
      %4389 = vmatpush1.msra.mxu0 0.0
      %4390 = vmatprep.subr.mxu0 0.0
      %4391 = vmatpush1.msra.mxu0 0.0
      %4392 = vmatprep.subr.mxu0 0.0
      %4393 = vmatpush1.msra.mxu0 0.0
      %4394 = vmatprep.subr.mxu0 0.0
      %4395 = vmatpush1.msra.mxu0 0.0
      %4396 = vmatprep.subr.mxu0 0.0
      %4397 = vmatpush1.msra.mxu0 0.0
      %4398 = vmatprep.subr.mxu0 0.0
      %4399 = vmatpush1.msra.mxu0 0.0
      %4400 = vmatprep.subr.mxu0 0.0
      %4401 = vmatpush1.msra.mxu0 0.0
      %4402 = vmatprep.subr.mxu0 0.0
      %4403 = vmatpush1.msra.mxu0 0.0
      %4404 = vmatprep.subr.mxu0 0.0
      %4405 = vmatpush1.msra.mxu0 0.0
      %4406 = vmatprep.subr.mxu0 0.0
      %4407 = vmatpush1.msra.mxu0 0.0
      %4408 = vmatprep.subr.mxu0 0.0
      %4409 = vmatpush1.msra.mxu0 0.0
      %4410 = vmatprep.subr.mxu0 0.0
      %4411 = vmatpush1.msra.mxu0 0.0
      %4412 = vmatprep.subr.mxu0 0.0
      %4413 = vmatpush1.msra.mxu0 0.0
      %4414 = vmatprep.subr.mxu0 0.0
      %4415 = vmatpush1.msra.mxu0 0.0
      %4416 = vmatprep.subr.mxu0 0.0
      %4417 = vmatpush1.msra.mxu0 0.0
      %4418 = vmatprep.subr.mxu0 0.0
      %4419 = vmatpush1.msra.mxu0 0.0
      %4420 = vmatprep.subr.mxu0 0.0
      %4421 = vmatpush1.msra.mxu0 0.0
      %4422 = vmatprep.subr.mxu0 0.0
      %4423 = vmatpush1.msra.mxu0 0.0
      %4424 = vmatprep.subr.mxu0 0.0
      %4425 = vmatpush1.msra.mxu0 0.0
      %4426 = vmatprep.subr.mxu0 0.0
      %4427 = vmatpush1.msra.mxu0 0.0
      %4428 = vmatprep.subr.mxu0 0.0
      %4429 = vmatpush1.msra.mxu0 0.0
      %4430 = vmatprep.subr.mxu0 0.0
      %4431 = vmatpush1.msra.mxu0 0.0
      %4432 = vmatprep.subr.mxu0 0.0
      %4433 = vmatpush1.msra.mxu0 0.0
      %4434 = vmatprep.subr.mxu0 0.0
      %4435 = vmatpush1.msra.mxu0 0.0
      %4436 = vmatprep.subr.mxu0 0.0
      %4437 = vmatpush1.msra.mxu0 0.0
      %4438 = vmatprep.mubr.f32.mxu0 0.0
      %v4439 = vand.u32 %v3601, 4294901760
      %4440 = vmatmul.mubr.f32.gmra.mrb[0].mxu0 %v4439
      %v4441 = vpop.f32.mrb[0].mxu0
      %v4442 = vadd.f32 %v4321, %v4441
      %v4443 = vpop.f32.mrb[0].mxu0
      %4444 = vmatprep.mubr.f32.mxu0 0.0
      %v4445 = vand.u32 %v3603, 4294901760
      %4446 = vmatmul.mubr.f32.gmra.mrb[0].mxu0 %v4445
      %v4447 = vpop.f32.mrb[0].mxu0
      %v4448 = vadd.f32 %v4331, %v4447
      %v4449 = vpop.f32.mrb[0].mxu0
      %4450 = vmatprep.mubr.f32.mxu0 0.0
      %v4451 = vand.u32 %v3605, 4294901760
      %4452 = vmatmul.mubr.f32.gmra.mrb[0].mxu0 %v4451
      %v4453 = vpop.f32.mrb[0].mxu0
      %v4454 = vadd.f32 %v4341, %v4453
      %v4455 = vpop.f32.mrb[0].mxu0
      %4456 = vmatprep.mubr.f32.mxu0 0.0
      %v4457 = vand.u32 %v3607, 4294901760
      %4458 = vmatmul.mubr.f32.gmra.mrb[0].mxu0 %v4457
      %v4459 = vpop.f32.mrb[0].mxu0
      %v4460 = vadd.f32 %v4351, %v4459
      %v4461 = vpop.f32.mrb[0].mxu0
      %4462 = vmatprep.mubr.f32.mxu0 0.0
      %v4463 = vand.u32 %v3609, 4294901760
      %4464 = vmatmul.mubr.f32.gmra.mrb[0].mxu0 %v4463
      %v4465 = vpop.f32.mrb[0].mxu0
      %v4466 = vadd.f32 %v4361, %v4465
      %v4467 = vpop.f32.mrb[0].mxu0
      %4468 = vdwg.mxu0
      %4469 = vmatprep.subr.mxu0 0.0
      %v4470 = vand.u32 %v2875, 4294901760
      %v4471 = vsub.f32 %v2875, %v4470
      %4472 = vmatpush1.msra.mxu0 %v4471
      %4473 = vmatprep.subr.mxu0 0.0
      %v4474 = vand.u32 %v4245, 4294901760
      %v4475 = vsub.f32 %v4245, %v4474
      %4476 = vmatpush1.msra.mxu0 %v4475
      %4477 = vmatprep.subr.mxu0 0.0
      %4478 = vmatpush1.msra.mxu0 0.0
      %4479 = vmatprep.subr.mxu0 0.0
      %4480 = vmatpush1.msra.mxu0 0.0
      %4481 = vmatprep.subr.mxu0 0.0
      %4482 = vmatpush1.msra.mxu0 0.0
      %4483 = vmatprep.subr.mxu0 0.0
      %4484 = vmatpush1.msra.mxu0 0.0
      %4485 = vmatprep.subr.mxu0 0.0
      %4486 = vmatpush1.msra.mxu0 0.0
      %4487 = vmatprep.subr.mxu0 0.0
      %4488 = vmatpush1.msra.mxu0 0.0
      %4489 = vmatprep.subr.mxu0 0.0
      %4490 = vmatpush1.msra.mxu0 0.0
      %4491 = vmatprep.subr.mxu0 0.0
      %4492 = vmatpush1.msra.mxu0 0.0
      %4493 = vmatprep.subr.mxu0 0.0
      %4494 = vmatpush1.msra.mxu0 0.0
      %4495 = vmatprep.subr.mxu0 0.0
      %4496 = vmatpush1.msra.mxu0 0.0
      %4497 = vmatprep.subr.mxu0 0.0
      %4498 = vmatpush1.msra.mxu0 0.0
      %4499 = vmatprep.subr.mxu0 0.0
      %4500 = vmatpush1.msra.mxu0 0.0
      %4501 = vmatprep.subr.mxu0 0.0
      %4502 = vmatpush1.msra.mxu0 0.0
      %4503 = vmatprep.subr.mxu0 0.0
      %4504 = vmatpush1.msra.mxu0 0.0
      %4505 = vmatprep.subr.mxu0 0.0
      %4506 = vmatpush1.msra.mxu0 0.0
      %4507 = vmatprep.subr.mxu0 0.0
      %4508 = vmatpush1.msra.mxu0 0.0
      %4509 = vmatprep.subr.mxu0 0.0
      %4510 = vmatpush1.msra.mxu0 0.0
      %4511 = vmatprep.subr.mxu0 0.0
      %4512 = vmatpush1.msra.mxu0 0.0
      %4513 = vmatprep.subr.mxu0 0.0
      %4514 = vmatpush1.msra.mxu0 0.0
      %4515 = vmatprep.subr.mxu0 0.0
      %4516 = vmatpush1.msra.mxu0 0.0
      %4517 = vmatprep.subr.mxu0 0.0
      %4518 = vmatpush1.msra.mxu0 0.0
      %4519 = vmatprep.subr.mxu0 0.0
      %4520 = vmatpush1.msra.mxu0 0.0
      %4521 = vmatprep.subr.mxu0 0.0
      %4522 = vmatpush1.msra.mxu0 0.0
      %4523 = vmatprep.subr.mxu0 0.0
      %4524 = vmatpush1.msra.mxu0 0.0
      %4525 = vmatprep.subr.mxu0 0.0
      %4526 = vmatpush1.msra.mxu0 0.0
      %4527 = vmatprep.subr.mxu0 0.0
      %4528 = vmatpush1.msra.mxu0 0.0
      %4529 = vmatprep.subr.mxu0 0.0
      %4530 = vmatpush1.msra.mxu0 0.0
      %4531 = vmatprep.subr.mxu0 0.0
      %4532 = vmatpush1.msra.mxu0 0.0
      %4533 = vmatprep.subr.mxu0 0.0
      %4534 = vmatpush1.msra.mxu0 0.0
      %4535 = vmatprep.subr.mxu0 0.0
      %4536 = vmatpush1.msra.mxu0 0.0
      %4537 = vmatprep.mubr.f32.mxu0 0.0
      %v4538 = vand.u32 %v3601, 4294901760
      %v4539 = vsub.f32 %v3601, %v4538
      %4540 = vmatmul.mubr.f32.gmra.mrb[0].mxu0 %v4539
      %v4541 = vpop.f32.mrb[0].mxu0
      %v4542 = vadd.f32 %v4442, %v4541
      %v4543 = vpop.f32.mrb[0].mxu0
      %4544 = vmatprep.mubr.f32.mxu0 0.0
      %v4545 = vand.u32 %v3603, 4294901760
      %v4546 = vsub.f32 %v3603, %v4545
      %4547 = vmatmul.mubr.f32.gmra.mrb[0].mxu0 %v4546
      %v4548 = vpop.f32.mrb[0].mxu0
      %v4549 = vadd.f32 %v4448, %v4548
      %v4550 = vpop.f32.mrb[0].mxu0
      %4551 = vmatprep.mubr.f32.mxu0 0.0
      %v4552 = vand.u32 %v3605, 4294901760
      %v4553 = vsub.f32 %v3605, %v4552
      %4554 = vmatmul.mubr.f32.gmra.mrb[0].mxu0 %v4553
      %v4555 = vpop.f32.mrb[0].mxu0
      %v4556 = vadd.f32 %v4454, %v4555
      %v4557 = vpop.f32.mrb[0].mxu0
      %4558 = vmatprep.mubr.f32.mxu0 0.0
      %v4559 = vand.u32 %v3607, 4294901760
      %v4560 = vsub.f32 %v3607, %v4559
      %4561 = vmatmul.mubr.f32.gmra.mrb[0].mxu0 %v4560
      %v4562 = vpop.f32.mrb[0].mxu0
      %v4563 = vadd.f32 %v4460, %v4562
      %v4564 = vpop.f32.mrb[0].mxu0
      %4565 = vmatprep.mubr.f32.mxu0 0.0
      %v4566 = vand.u32 %v3609, 4294901760
      %v4567 = vsub.f32 %v3609, %v4566
      %4568 = vmatmul.mubr.f32.gmra.mrb[0].mxu0 %v4567
      %v4569 = vpop.f32.mrb[0].mxu0
      %v4570 = vadd.f32 %v4466, %v4569
      %v4571 = vpop.f32.mrb[0].mxu0
      %4572 = vdwg.mxu0
      %4573 = vmatprep.subr.mxu0 0.0
      %v4574 = vand.u32 %v2875, 4294901760
      %4575 = vmatpush1.msra.mxu0 %v4574
      %4576 = vmatprep.subr.mxu0 0.0
      %v4577 = vand.u32 %v4245, 4294901760
      %4578 = vmatpush1.msra.mxu0 %v4577
      %4579 = vmatprep.subr.mxu0 0.0
      %4580 = vmatpush1.msra.mxu0 0.0
      %4581 = vmatprep.subr.mxu0 0.0
      %4582 = vmatpush1.msra.mxu0 0.0
      %4583 = vmatprep.subr.mxu0 0.0
      %4584 = vmatpush1.msra.mxu0 0.0
      %4585 = vmatprep.subr.mxu0 0.0
      %4586 = vmatpush1.msra.mxu0 0.0
      %4587 = vmatprep.subr.mxu0 0.0
      %4588 = vmatpush1.msra.mxu0 0.0
      %4589 = vmatprep.subr.mxu0 0.0
      %4590 = vmatpush1.msra.mxu0 0.0
      %4591 = vmatprep.subr.mxu0 0.0
      %4592 = vmatpush1.msra.mxu0 0.0
      %4593 = vmatprep.subr.mxu0 0.0
      %4594 = vmatpush1.msra.mxu0 0.0
      %4595 = vmatprep.subr.mxu0 0.0
      %4596 = vmatpush1.msra.mxu0 0.0
      %4597 = vmatprep.subr.mxu0 0.0
      %4598 = vmatpush1.msra.mxu0 0.0
      %4599 = vmatprep.subr.mxu0 0.0
      %4600 = vmatpush1.msra.mxu0 0.0
      %4601 = vmatprep.subr.mxu0 0.0
      %4602 = vmatpush1.msra.mxu0 0.0
      %4603 = vmatprep.subr.mxu0 0.0
      %4604 = vmatpush1.msra.mxu0 0.0
      %4605 = vmatprep.subr.mxu0 0.0
      %4606 = vmatpush1.msra.mxu0 0.0
      %4607 = vmatprep.subr.mxu0 0.0
      %4608 = vmatpush1.msra.mxu0 0.0
      %4609 = vmatprep.subr.mxu0 0.0
      %4610 = vmatpush1.msra.mxu0 0.0
      %4611 = vmatprep.subr.mxu0 0.0
      %4612 = vmatpush1.msra.mxu0 0.0
      %4613 = vmatprep.subr.mxu0 0.0
      %4614 = vmatpush1.msra.mxu0 0.0
      %4615 = vmatprep.subr.mxu0 0.0
      %4616 = vmatpush1.msra.mxu0 0.0
      %4617 = vmatprep.subr.mxu0 0.0
      %4618 = vmatpush1.msra.mxu0 0.0
      %4619 = vmatprep.subr.mxu0 0.0
      %4620 = vmatpush1.msra.mxu0 0.0
      %4621 = vmatprep.subr.mxu0 0.0
      %4622 = vmatpush1.msra.mxu0 0.0
      %4623 = vmatprep.subr.mxu0 0.0
      %4624 = vmatpush1.msra.mxu0 0.0
      %4625 = vmatprep.subr.mxu0 0.0
      %4626 = vmatpush1.msra.mxu0 0.0
      %4627 = vmatprep.subr.mxu0 0.0
      %4628 = vmatpush1.msra.mxu0 0.0
      %4629 = vmatprep.subr.mxu0 0.0
      %4630 = vmatpush1.msra.mxu0 0.0
      %4631 = vmatprep.subr.mxu0 0.0
      %4632 = vmatpush1.msra.mxu0 0.0
      %4633 = vmatprep.subr.mxu0 0.0
      %4634 = vmatpush1.msra.mxu0 0.0
      %4635 = vmatprep.subr.mxu0 0.0
      %4636 = vmatpush1.msra.mxu0 0.0
      %4637 = vmatprep.subr.mxu0 0.0
      %4638 = vmatpush1.msra.mxu0 0.0
      %4639 = vmatprep.mubr.f32.mxu0 0.0
      %v4640 = vand.u32 %v3601, 4294901760
      %v4641 = vsub.f32 %v3601, %v4640
      %v4642 = vand.u32 %v4641, 4294901760
      %4643 = vmatmul.mubr.f32.gmra.mrb[0].mxu0 %v4642
      %v4644 = vpop.f32.mrb[0].mxu0
      %v4645 = vadd.f32 %v4542, %v4644
      %v4646 = vpop.f32.mrb[0].mxu0
      %4647 = vmatprep.mubr.f32.mxu0 0.0
      %v4648 = vand.u32 %v3603, 4294901760
      %v4649 = vsub.f32 %v3603, %v4648
      %v4650 = vand.u32 %v4649, 4294901760
      %4651 = vmatmul.mubr.f32.gmra.mrb[0].mxu0 %v4650
      %v4652 = vpop.f32.mrb[0].mxu0
      %v4653 = vadd.f32 %v4549, %v4652
      %v4654 = vpop.f32.mrb[0].mxu0
      %4655 = vmatprep.mubr.f32.mxu0 0.0
      %v4656 = vand.u32 %v3605, 4294901760
      %v4657 = vsub.f32 %v3605, %v4656
      %v4658 = vand.u32 %v4657, 4294901760
      %4659 = vmatmul.mubr.f32.gmra.mrb[0].mxu0 %v4658
      %v4660 = vpop.f32.mrb[0].mxu0
      %v4661 = vadd.f32 %v4556, %v4660
      %v4662 = vpop.f32.mrb[0].mxu0
      %4663 = vmatprep.mubr.f32.mxu0 0.0
      %v4664 = vand.u32 %v3607, 4294901760
      %v4665 = vsub.f32 %v3607, %v4664
      %v4666 = vand.u32 %v4665, 4294901760
      %4667 = vmatmul.mubr.f32.gmra.mrb[0].mxu0 %v4666
      %v4668 = vpop.f32.mrb[0].mxu0
      %v4669 = vadd.f32 %v4563, %v4668
      %v4670 = vpop.f32.mrb[0].mxu0
      %4671 = vmatprep.mubr.f32.mxu0 0.0
      %v4672 = vand.u32 %v3609, 4294901760
      %v4673 = vsub.f32 %v3609, %v4672
      %v4674 = vand.u32 %v4673, 4294901760
      %4675 = vmatmul.mubr.f32.gmra.mrb[0].mxu0 %v4674
      %v4676 = vpop.f32.mrb[0].mxu0
      %v4677 = vadd.f32 %v4570, %v4676
      %v4678 = vpop.f32.mrb[0].mxu0
      %4679 = vdwg.mxu0
      %4680 = vmatprep.subr.mxu0 0.0
      %v4681 = vand.u32 %v2875, 4294901760
      %v4682 = vsub.f32 %v2875, %v4681
      %v4683 = vand.u32 %v4682, 4294901760
      %4684 = vmatpush1.msra.mxu0 %v4683
      %4685 = vmatprep.subr.mxu0 0.0
      %v4686 = vand.u32 %v4245, 4294901760
      %v4687 = vsub.f32 %v4245, %v4686
      %v4688 = vand.u32 %v4687, 4294901760
      %4689 = vmatpush1.msra.mxu0 %v4688
      %4690 = vmatprep.subr.mxu0 0.0
      %4691 = vmatpush1.msra.mxu0 0.0
      %4692 = vmatprep.subr.mxu0 0.0
      %4693 = vmatpush1.msra.mxu0 0.0
      %4694 = vmatprep.subr.mxu0 0.0
      %4695 = vmatpush1.msra.mxu0 0.0
      %4696 = vmatprep.subr.mxu0 0.0
      %4697 = vmatpush1.msra.mxu0 0.0
      %4698 = vmatprep.subr.mxu0 0.0
      %4699 = vmatpush1.msra.mxu0 0.0
      %4700 = vmatprep.subr.mxu0 0.0
      %4701 = vmatpush1.msra.mxu0 0.0
      %4702 = vmatprep.subr.mxu0 0.0
      %4703 = vmatpush1.msra.mxu0 0.0
      %4704 = vmatprep.subr.mxu0 0.0
      %4705 = vmatpush1.msra.mxu0 0.0
      %4706 = vmatprep.subr.mxu0 0.0
      %4707 = vmatpush1.msra.mxu0 0.0
      %4708 = vmatprep.subr.mxu0 0.0
      %4709 = vmatpush1.msra.mxu0 0.0
      %4710 = vmatprep.subr.mxu0 0.0
      %4711 = vmatpush1.msra.mxu0 0.0
      %4712 = vmatprep.subr.mxu0 0.0
      %4713 = vmatpush1.msra.mxu0 0.0
      %4714 = vmatprep.subr.mxu0 0.0
      %4715 = vmatpush1.msra.mxu0 0.0
      %4716 = vmatprep.subr.mxu0 0.0
      %4717 = vmatpush1.msra.mxu0 0.0
      %4718 = vmatprep.subr.mxu0 0.0
      %4719 = vmatpush1.msra.mxu0 0.0
      %4720 = vmatprep.subr.mxu0 0.0
      %4721 = vmatpush1.msra.mxu0 0.0
      %4722 = vmatprep.subr.mxu0 0.0
      %4723 = vmatpush1.msra.mxu0 0.0
      %4724 = vmatprep.subr.mxu0 0.0
      %4725 = vmatpush1.msra.mxu0 0.0
      %4726 = vmatprep.subr.mxu0 0.0
      %4727 = vmatpush1.msra.mxu0 0.0
      %4728 = vmatprep.subr.mxu0 0.0
      %4729 = vmatpush1.msra.mxu0 0.0
      %4730 = vmatprep.subr.mxu0 0.0
      %4731 = vmatpush1.msra.mxu0 0.0
      %4732 = vmatprep.subr.mxu0 0.0
      %4733 = vmatpush1.msra.mxu0 0.0
      %4734 = vmatprep.subr.mxu0 0.0
      %4735 = vmatpush1.msra.mxu0 0.0
      %4736 = vmatprep.subr.mxu0 0.0
      %4737 = vmatpush1.msra.mxu0 0.0
      %4738 = vmatprep.subr.mxu0 0.0
      %4739 = vmatpush1.msra.mxu0 0.0
      %4740 = vmatprep.subr.mxu0 0.0
      %4741 = vmatpush1.msra.mxu0 0.0
      %4742 = vmatprep.subr.mxu0 0.0
      %4743 = vmatpush1.msra.mxu0 0.0
      %4744 = vmatprep.subr.mxu0 0.0
      %4745 = vmatpush1.msra.mxu0 0.0
      %4746 = vmatprep.subr.mxu0 0.0
      %4747 = vmatpush1.msra.mxu0 0.0
      %4748 = vmatprep.subr.mxu0 0.0
      %4749 = vmatpush1.msra.mxu0 0.0
      %4750 = vmatprep.mubr.f32.mxu0 0.0
      %v4751 = vand.u32 %v3601, 4294901760
      %4752 = vmatmul.mubr.f32.gmra.mrb[0].mxu0 %v4751
      %v4753 = vpop.f32.mrb[0].mxu0
      %v4754 = vadd.f32 %v4645, %v4753
      %v4755 = vpop.f32.mrb[0].mxu0
      %4756 = vmatprep.mubr.f32.mxu0 0.0
      %v4757 = vand.u32 %v3603, 4294901760
      %4758 = vmatmul.mubr.f32.gmra.mrb[0].mxu0 %v4757
      %v4759 = vpop.f32.mrb[0].mxu0
      %v4760 = vadd.f32 %v4653, %v4759
      %v4761 = vpop.f32.mrb[0].mxu0
      %4762 = vmatprep.mubr.f32.mxu0 0.0
      %v4763 = vand.u32 %v3605, 4294901760
      %4764 = vmatmul.mubr.f32.gmra.mrb[0].mxu0 %v4763
      %v4765 = vpop.f32.mrb[0].mxu0
      %v4766 = vadd.f32 %v4661, %v4765
      %v4767 = vpop.f32.mrb[0].mxu0
      %4768 = vmatprep.mubr.f32.mxu0 0.0
      %v4769 = vand.u32 %v3607, 4294901760
      %4770 = vmatmul.mubr.f32.gmra.mrb[0].mxu0 %v4769
      %v4771 = vpop.f32.mrb[0].mxu0
      %v4772 = vadd.f32 %v4669, %v4771
      %v4773 = vpop.f32.mrb[0].mxu0
      %4774 = vmatprep.mubr.f32.mxu0 0.0
      %v4775 = vand.u32 %v3609, 4294901760
      %4776 = vmatmul.mubr.f32.gmra.mrb[0].mxu0 %v4775
      %v4777 = vpop.f32.mrb[0].mxu0
      %v4778 = vadd.f32 %v4677, %v4777
      %v4779 = vpop.f32.mrb[0].mxu0
      %4780 = vdwg.mxu0
      %4781 = vmatprep.subr.mxu0 0.0
      %v4782 = vand.u32 %v2875, 4294901760
      %4783 = vmatpush1.msra.mxu0 %v4782
      %4784 = vmatprep.subr.mxu0 0.0
      %v4785 = vand.u32 %v4245, 4294901760
      %4786 = vmatpush1.msra.mxu0 %v4785
      %4787 = vmatprep.subr.mxu0 0.0
      %4788 = vmatpush1.msra.mxu0 0.0
      %4789 = vmatprep.subr.mxu0 0.0
      %4790 = vmatpush1.msra.mxu0 0.0
      %4791 = vmatprep.subr.mxu0 0.0
      %4792 = vmatpush1.msra.mxu0 0.0
      %4793 = vmatprep.subr.mxu0 0.0
      %4794 = vmatpush1.msra.mxu0 0.0
      %4795 = vmatprep.subr.mxu0 0.0
      %4796 = vmatpush1.msra.mxu0 0.0
      %4797 = vmatprep.subr.mxu0 0.0
      %4798 = vmatpush1.msra.mxu0 0.0
      %4799 = vmatprep.subr.mxu0 0.0
      %4800 = vmatpush1.msra.mxu0 0.0
      %4801 = vmatprep.subr.mxu0 0.0
      %4802 = vmatpush1.msra.mxu0 0.0
      %4803 = vmatprep.subr.mxu0 0.0
      %4804 = vmatpush1.msra.mxu0 0.0
      %4805 = vmatprep.subr.mxu0 0.0
      %4806 = vmatpush1.msra.mxu0 0.0
      %4807 = vmatprep.subr.mxu0 0.0
      %4808 = vmatpush1.msra.mxu0 0.0
      %4809 = vmatprep.subr.mxu0 0.0
      %4810 = vmatpush1.msra.mxu0 0.0
      %4811 = vmatprep.subr.mxu0 0.0
      %4812 = vmatpush1.msra.mxu0 0.0
      %4813 = vmatprep.subr.mxu0 0.0
      %4814 = vmatpush1.msra.mxu0 0.0
      %4815 = vmatprep.subr.mxu0 0.0
      %4816 = vmatpush1.msra.mxu0 0.0
      %4817 = vmatprep.subr.mxu0 0.0
      %4818 = vmatpush1.msra.mxu0 0.0
      %4819 = vmatprep.subr.mxu0 0.0
      %4820 = vmatpush1.msra.mxu0 0.0
      %4821 = vmatprep.subr.mxu0 0.0
      %4822 = vmatpush1.msra.mxu0 0.0
      %4823 = vmatprep.subr.mxu0 0.0
      %4824 = vmatpush1.msra.mxu0 0.0
      %4825 = vmatprep.subr.mxu0 0.0
      %4826 = vmatpush1.msra.mxu0 0.0
      %4827 = vmatprep.subr.mxu0 0.0
      %4828 = vmatpush1.msra.mxu0 0.0
      %4829 = vmatprep.subr.mxu0 0.0
      %4830 = vmatpush1.msra.mxu0 0.0
      %4831 = vmatprep.subr.mxu0 0.0
      %4832 = vmatpush1.msra.mxu0 0.0
      %4833 = vmatprep.subr.mxu0 0.0
      %4834 = vmatpush1.msra.mxu0 0.0
      %4835 = vmatprep.subr.mxu0 0.0
      %4836 = vmatpush1.msra.mxu0 0.0
      %4837 = vmatprep.subr.mxu0 0.0
      %4838 = vmatpush1.msra.mxu0 0.0
      %4839 = vmatprep.subr.mxu0 0.0
      %4840 = vmatpush1.msra.mxu0 0.0
      %4841 = vmatprep.subr.mxu0 0.0
      %4842 = vmatpush1.msra.mxu0 0.0
      %4843 = vmatprep.subr.mxu0 0.0
      %4844 = vmatpush1.msra.mxu0 0.0
      %4845 = vmatprep.subr.mxu0 0.0
      %4846 = vmatpush1.msra.mxu0 0.0
      %4847 = vmatprep.mubr.f32.mxu0 0.0
      %v4848 = vand.u32 %v3601, 4294901760
      %4849 = vmatmul.mubr.f32.gmra.mrb[0].mxu0 %v4848
      %v4850 = vpop.f32.mrb[0].mxu0
      %v4851 = vadd.f32 %v4754, %v4850
      %v4852 = vpop.f32.mrb[0].mxu0
      %4853 = vmatprep.mubr.f32.mxu0 0.0
      %v4854 = vand.u32 %v3603, 4294901760
      %4855 = vmatmul.mubr.f32.gmra.mrb[0].mxu0 %v4854
      %v4856 = vpop.f32.mrb[0].mxu0
      %v4857 = vadd.f32 %v4760, %v4856
      %v4858 = vpop.f32.mrb[0].mxu0
      %4859 = vmatprep.mubr.f32.mxu0 0.0
      %v4860 = vand.u32 %v3605, 4294901760
      %4861 = vmatmul.mubr.f32.gmra.mrb[0].mxu0 %v4860
      %v4862 = vpop.f32.mrb[0].mxu0
      %v4863 = vadd.f32 %v4766, %v4862
      %v4864 = vpop.f32.mrb[0].mxu0
      %4865 = vmatprep.mubr.f32.mxu0 0.0
      %v4866 = vand.u32 %v3607, 4294901760
      %4867 = vmatmul.mubr.f32.gmra.mrb[0].mxu0 %v4866
      %v4868 = vpop.f32.mrb[0].mxu0
      %v4869 = vadd.f32 %v4772, %v4868
      %v4870 = vpop.f32.mrb[0].mxu0
      %4871 = vmatprep.mubr.f32.mxu0 0.0
      %v4872 = vand.u32 %v3609, 4294901760
      %4873 = vmatmul.mubr.f32.gmra.mrb[0].mxu0 %v4872
      %v4874 = vpop.f32.mrb[0].mxu0
      %v4875 = vadd.f32 %v4778, %v4874
      %v4876 = vpop.f32.mrb[0].mxu0
      %4877 = vdwg.mxu0
      %v4878 = vsub.f32 1.0, %v2302
      %v4879 = vsub.f32 1.0, %v2303
      %v4880 = vsub.f32 1.0, %v2304
      %v4881 = vsub.f32 1.0, %v2305
      %v4882 = vsub.f32 1.0, %v2306
      %v4883 = vmul.f32 %v4878, %v4851
      %v4884 = vmul.f32 %v4879, %v4857
      %v4885 = vmul.f32 %v4880, %v4863
      %v4886 = vmul.f32 %v4881, %v4869
      %v4887 = vmul.f32 %v4882, %v4875
      %v4888 = vadd.f32 %v2281, %v4883
      %v4889 = vadd.f32 %v2282, %v4884
      %v4890 = vadd.f32 %v2283, %v4885
      %v4891 = vadd.f32 %v2284, %v4886
      %v4892 = vadd.f32 %v2285, %v4887
      %v4893 = vadd.f32 %v3555, %v4217
      %v4894 = vadd.f32 %v3562, %v4223
      %v4895 = vadd.f32 %v3569, %v4229
      %v4896 = vadd.f32 %v3576, %v4235
      %v4897 = vadd.f32 %v3583, %v4241
      %v4898 = vadd.f32 %v4893, %v4888
      %v4899 = vadd.f32 %v4894, %v4889
      %v4900 = vadd.f32 %v4895, %v4890
      %v4901 = vadd.f32 %v4896, %v4891
      %v4902 = vadd.f32 %v4897, %v4892
      %vm4903 = vcmp.gt.f32.partialorder %v4898, 0.0
      %vm4904 = vcmp.gt.f32.partialorder %v4899, 0.0
      %vm4905 = vcmp.gt.f32.partialorder %v4900, 0.0
      %vm4906 = vcmp.gt.f32.partialorder %v4901, 0.0
      %vm4907 = vcmp.gt.f32.partialorder %v4902, 0.0
      %v4908 = vmul.f32 %v4898, 0.2
      %v4909 = vmul.f32 %v4899, 0.2
      %v4910 = vmul.f32 %v4900, 0.2
      %v4911 = vmul.f32 %v4901, 0.2
      %v4912 = vmul.f32 %v4902, 0.2
      %v4913 = vsel %vm4903, %v4898, %v4908
      %v4914 = vsel %vm4904, %v4899, %v4909
      %v4915 = vsel %vm4905, %v4900, %v4910
      %v4916 = vsel %vm4906, %v4901, %v4911
      %v4917 = vsel %vm4907, %v4902, %v4912
      %v4918 = vsel %vm1625, %v4913, -inf
      %v4919 = vsel %vm1625, %v4914, -inf
      %v4920 = vsel %vm1625, %v4915, -inf
      %v4921 = vsel %vm1625, %v4916, -inf
      %vm4922 = vcmask 27648
      %v4923 = vsel %vm4922, %v4917, -inf
      %v4924 = vmax.f32 %v4918, %v4923
      %v4925 = vmax.f32 %v4924, %v4919
      %v4926 = vmax.f32 %v4920, %v4921
      %v4927 = vmax.f32 %v4925, %v4926
      %v4928 = vrot.slane %v4927, 4
      %v4929 = vmax.f32 %v4927, %v4928
      %v4930 = vrot.slane %v4929, 2
      %v4931 = vmax.f32 %v4929, %v4930
      %v4932 = vrot.slane %v4931, 1
      %v4933 = vmax.f32 %v4931, %v4932
      %v4934 = vsub.f32 %v4913, %v4933
      %v4935 = vsub.f32 %v4914, %v4933
      %v4936 = vsub.f32 %v4915, %v4933
      %v4937 = vsub.f32 %v4916, %v4933
      %v4938 = vsub.f32 %v4917, %v4933
      %v4939 = vmul.f32 %v4934, 1.442695
      %v4940 = vpow.pop %v4939
      %v4941 = vmul.f32 %v4935, 1.442695
      %v4942 = vpow.pop %v4941
      %v4943 = vmul.f32 %v4936, 1.442695
      %v4944 = vpow.pop %v4943
      %v4945 = vmul.f32 %v4937, 1.442695
      %v4946 = vpow.pop %v4945
      %v4947 = vmul.f32 %v4938, 1.442695
      %v4948 = vpow.pop %v4947
      %v4949 = vsel %vm2314, %v378, 0
      %v4951 = vsel %vm2314, %v379, 0
      %v4954 = vsel %vm950, %v4948, 0
      %4956 = vmatprep.subr.mxu0 0.0
      %v4957 = vand.u32 %v4940, 4294901760
      %4958 = vmatpush1.msra.mxu0 %v4957
      %4959 = vmatprep.subr.mxu0 0.0
      %v4960 = vand.u32 %v4942, 4294901760
      %4961 = vmatpush1.msra.mxu0 %v4960
      %4962 = vmatprep.subr.mxu0 0.0
      %v4963 = vand.u32 %v4944, 4294901760
      %4964 = vmatpush1.msra.mxu0 %v4963
      %4965 = vmatprep.subr.mxu0 0.0
      %v4966 = vand.u32 %v4946, 4294901760
      %4967 = vmatpush1.msra.mxu0 %v4966
      %4968 = vmatprep.subr.mxu0 0.0
      %v4969 = vand.u32 %v4954, 4294901760
      %4970 = vmatpush1.msra.mxu0 %v4969
      %4971 = vmatprep.subr.mxu0 0.0
      %4972 = vmatpush1.msra.mxu0 0.0
      %4973 = vmatprep.subr.mxu0 0.0
      %4974 = vmatpush1.msra.mxu0 0.0
      %4975 = vmatprep.subr.mxu0 0.0
      %4976 = vmatpush1.msra.mxu0 0.0
      %4977 = vmatprep.subr.mxu0 0.0
      %4978 = vmatpush1.msra.mxu0 0.0
      %4979 = vmatprep.subr.mxu0 0.0
      %4980 = vmatpush1.msra.mxu0 0.0
      %4981 = vmatprep.subr.mxu0 0.0
      %4982 = vmatpush1.msra.mxu0 0.0
      %4983 = vmatprep.subr.mxu0 0.0
      %4984 = vmatpush1.msra.mxu0 0.0
      %4985 = vmatprep.subr.mxu0 0.0
      %4986 = vmatpush1.msra.mxu0 0.0
      %4987 = vmatprep.subr.mxu0 0.0
      %4988 = vmatpush1.msra.mxu0 0.0
      %4989 = vmatprep.subr.mxu0 0.0
      %4990 = vmatpush1.msra.mxu0 0.0
      %4991 = vmatprep.subr.mxu0 0.0
      %4992 = vmatpush1.msra.mxu0 0.0
      %4993 = vmatprep.subr.mxu0 0.0
      %4994 = vmatpush1.msra.mxu0 0.0
      %4995 = vmatprep.subr.mxu0 0.0
      %4996 = vmatpush1.msra.mxu0 0.0
      %4997 = vmatprep.subr.mxu0 0.0
      %4998 = vmatpush1.msra.mxu0 0.0
      %4999 = vmatprep.subr.mxu0 0.0
      %5000 = vmatpush1.msra.mxu0 0.0
      %5001 = vmatprep.subr.mxu0 0.0
      %5002 = vmatpush1.msra.mxu0 0.0
      %5003 = vmatprep.subr.mxu0 0.0
      %5004 = vmatpush1.msra.mxu0 0.0
      %5005 = vmatprep.subr.mxu0 0.0
      %5006 = vmatpush1.msra.mxu0 0.0
      %5007 = vmatprep.subr.mxu0 0.0
      %5008 = vmatpush1.msra.mxu0 0.0
      %5009 = vmatprep.subr.mxu0 0.0
      %5010 = vmatpush1.msra.mxu0 0.0
      %5011 = vmatprep.subr.mxu0 0.0
      %5012 = vmatpush1.msra.mxu0 0.0
      %5013 = vmatprep.subr.mxu0 0.0
      %5014 = vmatpush1.msra.mxu0 0.0
      %5015 = vmatprep.subr.mxu0 0.0
      %5016 = vmatpush1.msra.mxu0 0.0
      %5017 = vmatprep.subr.mxu0 0.0
      %5018 = vmatpush1.msra.mxu0 0.0
      %5019 = vmatprep.subr.mxu0 0.0
      %5020 = vmatpush1.msra.mxu0 0.0
      %5021 = vmatprep.subr.mxu0 0.0
      %5022 = vmatpush1.msra.mxu0 0.0
      %5023 = vmatprep.subr.mxu0 0.0
      %5024 = vmatpush1.msra.mxu0 0.0
      %5025 = vmatprep.mubr.f32.mxu0 0.0
      %v5026 = vand.u32 %v4949, 4294901760
      %v5027 = vsub.f32 %v4949, %v5026
      %v5028 = vand.u32 %v5027, 4294901760
      %v5029 = vsub.f32 %v5027, %v5028
      %v5030 = vand.u32 %v5029, 4294901760
      %5031 = vmatmul.mubr.f32.gmra.mrb[0].mxu0 %v5030
      %v5032 = vpop.f32.mrb[0].mxu0
      %v5033 = vadd.f32 0.0, %v5032
      %v5034 = vpop.f32.mrb[0].mxu0
      %5035 = vmatprep.mubr.f32.mxu0 0.0
      %v5036 = vand.u32 %v4951, 4294901760
      %v5037 = vsub.f32 %v4951, %v5036
      %v5038 = vand.u32 %v5037, 4294901760
      %v5039 = vsub.f32 %v5037, %v5038
      %v5040 = vand.u32 %v5039, 4294901760
      %5041 = vmatmul.mubr.f32.gmra.mrb[0].mxu0 %v5040
      %v5042 = vpop.f32.mrb[0].mxu0
      %v5043 = vadd.f32 0.0, %v5042
      %v5044 = vpop.f32.mrb[0].mxu0
      %5045 = vdwg.mxu0
      %5046 = vmatprep.subr.mxu0 0.0
      %v5047 = vand.u32 %v4940, 4294901760
      %v5048 = vsub.f32 %v4940, %v5047
      %v5049 = vand.u32 %v5048, 4294901760
      %v5050 = vsub.f32 %v5048, %v5049
      %v5051 = vand.u32 %v5050, 4294901760
      %5052 = vmatpush1.msra.mxu0 %v5051
      %5053 = vmatprep.subr.mxu0 0.0
      %v5054 = vand.u32 %v4942, 4294901760
      %v5055 = vsub.f32 %v4942, %v5054
      %v5056 = vand.u32 %v5055, 4294901760
      %v5057 = vsub.f32 %v5055, %v5056
      %v5058 = vand.u32 %v5057, 4294901760
      %5059 = vmatpush1.msra.mxu0 %v5058
      %5060 = vmatprep.subr.mxu0 0.0
      %v5061 = vand.u32 %v4944, 4294901760
      %v5062 = vsub.f32 %v4944, %v5061
      %v5063 = vand.u32 %v5062, 4294901760
      %v5064 = vsub.f32 %v5062, %v5063
      %v5065 = vand.u32 %v5064, 4294901760
      %5066 = vmatpush1.msra.mxu0 %v5065
      %5067 = vmatprep.subr.mxu0 0.0
      %v5068 = vand.u32 %v4946, 4294901760
      %v5069 = vsub.f32 %v4946, %v5068
      %v5070 = vand.u32 %v5069, 4294901760
      %v5071 = vsub.f32 %v5069, %v5070
      %v5072 = vand.u32 %v5071, 4294901760
      %5073 = vmatpush1.msra.mxu0 %v5072
      %5074 = vmatprep.subr.mxu0 0.0
      %v5075 = vand.u32 %v4954, 4294901760
      %v5076 = vsub.f32 %v4954, %v5075
      %v5077 = vand.u32 %v5076, 4294901760
      %v5078 = vsub.f32 %v5076, %v5077
      %v5079 = vand.u32 %v5078, 4294901760
      %5080 = vmatpush1.msra.mxu0 %v5079
      %5081 = vmatprep.subr.mxu0 0.0
      %5082 = vmatpush1.msra.mxu0 0.0
      %5083 = vmatprep.subr.mxu0 0.0
      %5084 = vmatpush1.msra.mxu0 0.0
      %5085 = vmatprep.subr.mxu0 0.0
      %5086 = vmatpush1.msra.mxu0 0.0
      %5087 = vmatprep.subr.mxu0 0.0
      %5088 = vmatpush1.msra.mxu0 0.0
      %5089 = vmatprep.subr.mxu0 0.0
      %5090 = vmatpush1.msra.mxu0 0.0
      %5091 = vmatprep.subr.mxu0 0.0
      %5092 = vmatpush1.msra.mxu0 0.0
      %5093 = vmatprep.subr.mxu0 0.0
      %5094 = vmatpush1.msra.mxu0 0.0
      %5095 = vmatprep.subr.mxu0 0.0
      %5096 = vmatpush1.msra.mxu0 0.0
      %5097 = vmatprep.subr.mxu0 0.0
      %5098 = vmatpush1.msra.mxu0 0.0
      %5099 = vmatprep.subr.mxu0 0.0
      %5100 = vmatpush1.msra.mxu0 0.0
      %5101 = vmatprep.subr.mxu0 0.0
      %5102 = vmatpush1.msra.mxu0 0.0
      %5103 = vmatprep.subr.mxu0 0.0
      %5104 = vmatpush1.msra.mxu0 0.0
      %5105 = vmatprep.subr.mxu0 0.0
      %5106 = vmatpush1.msra.mxu0 0.0
      %5107 = vmatprep.subr.mxu0 0.0
      %5108 = vmatpush1.msra.mxu0 0.0
      %5109 = vmatprep.subr.mxu0 0.0
      %5110 = vmatpush1.msra.mxu0 0.0
      %5111 = vmatprep.subr.mxu0 0.0
      %5112 = vmatpush1.msra.mxu0 0.0
      %5113 = vmatprep.subr.mxu0 0.0
      %5114 = vmatpush1.msra.mxu0 0.0
      %5115 = vmatprep.subr.mxu0 0.0
      %5116 = vmatpush1.msra.mxu0 0.0
      %5117 = vmatprep.subr.mxu0 0.0
      %5118 = vmatpush1.msra.mxu0 0.0
      %5119 = vmatprep.subr.mxu0 0.0
      %5120 = vmatpush1.msra.mxu0 0.0
      %5121 = vmatprep.subr.mxu0 0.0
      %5122 = vmatpush1.msra.mxu0 0.0
      %5123 = vmatprep.subr.mxu0 0.0
      %5124 = vmatpush1.msra.mxu0 0.0
      %5125 = vmatprep.subr.mxu0 0.0
      %5126 = vmatpush1.msra.mxu0 0.0
      %5127 = vmatprep.subr.mxu0 0.0
      %5128 = vmatpush1.msra.mxu0 0.0
      %5129 = vmatprep.subr.mxu0 0.0
      %5130 = vmatpush1.msra.mxu0 0.0
      %5131 = vmatprep.subr.mxu0 0.0
      %5132 = vmatpush1.msra.mxu0 0.0
      %5133 = vmatprep.subr.mxu0 0.0
      %5134 = vmatpush1.msra.mxu0 0.0
      %5135 = vmatprep.mubr.f32.mxu0 0.0
      %v5136 = vand.u32 %v4949, 4294901760
      %5137 = vmatmul.mubr.f32.gmra.mrb[0].mxu0 %v5136
      %v5138 = vpop.f32.mrb[0].mxu0
      %v5139 = vadd.f32 %v5033, %v5138
      %v5140 = vpop.f32.mrb[0].mxu0
      %5141 = vmatprep.mubr.f32.mxu0 0.0
      %v5142 = vand.u32 %v4951, 4294901760
      %5143 = vmatmul.mubr.f32.gmra.mrb[0].mxu0 %v5142
      %v5144 = vpop.f32.mrb[0].mxu0
      %v5145 = vadd.f32 %v5043, %v5144
      %v5146 = vpop.f32.mrb[0].mxu0
      %5147 = vdwg.mxu0
      %5148 = vmatprep.subr.mxu0 0.0
      %v5149 = vand.u32 %v4940, 4294901760
      %v5150 = vsub.f32 %v4940, %v5149
      %5151 = vmatpush1.msra.mxu0 %v5150
      %5152 = vmatprep.subr.mxu0 0.0
      %v5153 = vand.u32 %v4942, 4294901760
      %v5154 = vsub.f32 %v4942, %v5153
      %5155 = vmatpush1.msra.mxu0 %v5154
      %5156 = vmatprep.subr.mxu0 0.0
      %v5157 = vand.u32 %v4944, 4294901760
      %v5158 = vsub.f32 %v4944, %v5157
      %5159 = vmatpush1.msra.mxu0 %v5158
      %5160 = vmatprep.subr.mxu0 0.0
      %v5161 = vand.u32 %v4946, 4294901760
      %v5162 = vsub.f32 %v4946, %v5161
      %5163 = vmatpush1.msra.mxu0 %v5162
      %5164 = vmatprep.subr.mxu0 0.0
      %v5165 = vand.u32 %v4954, 4294901760
      %v5166 = vsub.f32 %v4954, %v5165
      %5167 = vmatpush1.msra.mxu0 %v5166
      %5168 = vmatprep.subr.mxu0 0.0
      %5169 = vmatpush1.msra.mxu0 0.0
      %5170 = vmatprep.subr.mxu0 0.0
      %5171 = vmatpush1.msra.mxu0 0.0
      %5172 = vmatprep.subr.mxu0 0.0
      %5173 = vmatpush1.msra.mxu0 0.0
      %5174 = vmatprep.subr.mxu0 0.0
      %5175 = vmatpush1.msra.mxu0 0.0
      %5176 = vmatprep.subr.mxu0 0.0
      %5177 = vmatpush1.msra.mxu0 0.0
      %5178 = vmatprep.subr.mxu0 0.0
      %5179 = vmatpush1.msra.mxu0 0.0
      %5180 = vmatprep.subr.mxu0 0.0
      %5181 = vmatpush1.msra.mxu0 0.0
      %5182 = vmatprep.subr.mxu0 0.0
      %5183 = vmatpush1.msra.mxu0 0.0
      %5184 = vmatprep.subr.mxu0 0.0
      %5185 = vmatpush1.msra.mxu0 0.0
      %5186 = vmatprep.subr.mxu0 0.0
      %5187 = vmatpush1.msra.mxu0 0.0
      %5188 = vmatprep.subr.mxu0 0.0
      %5189 = vmatpush1.msra.mxu0 0.0
      %5190 = vmatprep.subr.mxu0 0.0
      %5191 = vmatpush1.msra.mxu0 0.0
      %5192 = vmatprep.subr.mxu0 0.0
      %5193 = vmatpush1.msra.mxu0 0.0
      %5194 = vmatprep.subr.mxu0 0.0
      %5195 = vmatpush1.msra.mxu0 0.0
      %5196 = vmatprep.subr.mxu0 0.0
      %5197 = vmatpush1.msra.mxu0 0.0
      %5198 = vmatprep.subr.mxu0 0.0
      %5199 = vmatpush1.msra.mxu0 0.0
      %5200 = vmatprep.subr.mxu0 0.0
      %5201 = vmatpush1.msra.mxu0 0.0
      %5202 = vmatprep.subr.mxu0 0.0
      %5203 = vmatpush1.msra.mxu0 0.0
      %5204 = vmatprep.subr.mxu0 0.0
      %5205 = vmatpush1.msra.mxu0 0.0
      %5206 = vmatprep.subr.mxu0 0.0
      %5207 = vmatpush1.msra.mxu0 0.0
      %5208 = vmatprep.subr.mxu0 0.0
      %5209 = vmatpush1.msra.mxu0 0.0
      %5210 = vmatprep.subr.mxu0 0.0
      %5211 = vmatpush1.msra.mxu0 0.0
      %5212 = vmatprep.subr.mxu0 0.0
      %5213 = vmatpush1.msra.mxu0 0.0
      %5214 = vmatprep.subr.mxu0 0.0
      %5215 = vmatpush1.msra.mxu0 0.0
      %5216 = vmatprep.subr.mxu0 0.0
      %5217 = vmatpush1.msra.mxu0 0.0
      %5218 = vmatprep.subr.mxu0 0.0
      %5219 = vmatpush1.msra.mxu0 0.0
      %5220 = vmatprep.subr.mxu0 0.0
      %5221 = vmatpush1.msra.mxu0 0.0
      %5222 = vmatprep.mubr.f32.mxu0 0.0
      %v5223 = vand.u32 %v4949, 4294901760
      %v5224 = vsub.f32 %v4949, %v5223
      %5225 = vmatmul.mubr.f32.gmra.mrb[0].mxu0 %v5224
      %v5226 = vpop.f32.mrb[0].mxu0
      %v5227 = vadd.f32 %v5139, %v5226
      %v5228 = vpop.f32.mrb[0].mxu0
      %5229 = vmatprep.mubr.f32.mxu0 0.0
      %v5230 = vand.u32 %v4951, 4294901760
      %v5231 = vsub.f32 %v4951, %v5230
      %5232 = vmatmul.mubr.f32.gmra.mrb[0].mxu0 %v5231
      %v5233 = vpop.f32.mrb[0].mxu0
      %v5234 = vadd.f32 %v5145, %v5233
      %v5235 = vpop.f32.mrb[0].mxu0
      %5236 = vdwg.mxu0
      %5237 = vmatprep.subr.mxu0 0.0
      %v5238 = vand.u32 %v4940, 4294901760
      %5239 = vmatpush1.msra.mxu0 %v5238
      %5240 = vmatprep.subr.mxu0 0.0
      %v5241 = vand.u32 %v4942, 4294901760
      %5242 = vmatpush1.msra.mxu0 %v5241
      %5243 = vmatprep.subr.mxu0 0.0
      %v5244 = vand.u32 %v4944, 4294901760
      %5245 = vmatpush1.msra.mxu0 %v5244
      %5246 = vmatprep.subr.mxu0 0.0
      %v5247 = vand.u32 %v4946, 4294901760
      %5248 = vmatpush1.msra.mxu0 %v5247
      %5249 = vmatprep.subr.mxu0 0.0
      %v5250 = vand.u32 %v4954, 4294901760
      %5251 = vmatpush1.msra.mxu0 %v5250
      %5252 = vmatprep.subr.mxu0 0.0
      %5253 = vmatpush1.msra.mxu0 0.0
      %5254 = vmatprep.subr.mxu0 0.0
      %5255 = vmatpush1.msra.mxu0 0.0
      %5256 = vmatprep.subr.mxu0 0.0
      %5257 = vmatpush1.msra.mxu0 0.0
      %5258 = vmatprep.subr.mxu0 0.0
      %5259 = vmatpush1.msra.mxu0 0.0
      %5260 = vmatprep.subr.mxu0 0.0
      %5261 = vmatpush1.msra.mxu0 0.0
      %5262 = vmatprep.subr.mxu0 0.0
      %5263 = vmatpush1.msra.mxu0 0.0
      %5264 = vmatprep.subr.mxu0 0.0
      %5265 = vmatpush1.msra.mxu0 0.0
      %5266 = vmatprep.subr.mxu0 0.0
      %5267 = vmatpush1.msra.mxu0 0.0
      %5268 = vmatprep.subr.mxu0 0.0
      %5269 = vmatpush1.msra.mxu0 0.0
      %5270 = vmatprep.subr.mxu0 0.0
      %5271 = vmatpush1.msra.mxu0 0.0
      %5272 = vmatprep.subr.mxu0 0.0
      %5273 = vmatpush1.msra.mxu0 0.0
      %5274 = vmatprep.subr.mxu0 0.0
      %5275 = vmatpush1.msra.mxu0 0.0
      %5276 = vmatprep.subr.mxu0 0.0
      %5277 = vmatpush1.msra.mxu0 0.0
      %5278 = vmatprep.subr.mxu0 0.0
      %5279 = vmatpush1.msra.mxu0 0.0
      %5280 = vmatprep.subr.mxu0 0.0
      %5281 = vmatpush1.msra.mxu0 0.0
      %5282 = vmatprep.subr.mxu0 0.0
      %5283 = vmatpush1.msra.mxu0 0.0
      %5284 = vmatprep.subr.mxu0 0.0
      %5285 = vmatpush1.msra.mxu0 0.0
      %5286 = vmatprep.subr.mxu0 0.0
      %5287 = vmatpush1.msra.mxu0 0.0
      %5288 = vmatprep.subr.mxu0 0.0
      %5289 = vmatpush1.msra.mxu0 0.0
      %5290 = vmatprep.subr.mxu0 0.0
      %5291 = vmatpush1.msra.mxu0 0.0
      %5292 = vmatprep.subr.mxu0 0.0
      %5293 = vmatpush1.msra.mxu0 0.0
      %5294 = vmatprep.subr.mxu0 0.0
      %5295 = vmatpush1.msra.mxu0 0.0
      %5296 = vmatprep.subr.mxu0 0.0
      %5297 = vmatpush1.msra.mxu0 0.0
      %5298 = vmatprep.subr.mxu0 0.0
      %5299 = vmatpush1.msra.mxu0 0.0
      %5300 = vmatprep.subr.mxu0 0.0
      %5301 = vmatpush1.msra.mxu0 0.0
      %5302 = vmatprep.subr.mxu0 0.0
      %5303 = vmatpush1.msra.mxu0 0.0
      %5304 = vmatprep.subr.mxu0 0.0
      %5305 = vmatpush1.msra.mxu0 0.0
      %5306 = vmatprep.mubr.f32.mxu0 0.0
      %v5307 = vand.u32 %v4949, 4294901760
      %v5308 = vsub.f32 %v4949, %v5307
      %v5309 = vand.u32 %v5308, 4294901760
      %5310 = vmatmul.mubr.f32.gmra.mrb[0].mxu0 %v5309
      %v5311 = vpop.f32.mrb[0].mxu0
      %v5312 = vadd.f32 %v5227, %v5311
      %v5313 = vpop.f32.mrb[0].mxu0
      %5314 = vmatprep.mubr.f32.mxu0 0.0
      %v5315 = vand.u32 %v4951, 4294901760
      %v5316 = vsub.f32 %v4951, %v5315
      %v5317 = vand.u32 %v5316, 4294901760
      %5318 = vmatmul.mubr.f32.gmra.mrb[0].mxu0 %v5317
      %v5319 = vpop.f32.mrb[0].mxu0
      %v5320 = vadd.f32 %v5234, %v5319
      %v5321 = vpop.f32.mrb[0].mxu0
      %5322 = vdwg.mxu0
      %5323 = vmatprep.subr.mxu0 0.0
      %v5324 = vand.u32 %v4940, 4294901760
      %v5325 = vsub.f32 %v4940, %v5324
      %v5326 = vand.u32 %v5325, 4294901760
      %5327 = vmatpush1.msra.mxu0 %v5326
      %5328 = vmatprep.subr.mxu0 0.0
      %v5329 = vand.u32 %v4942, 4294901760
      %v5330 = vsub.f32 %v4942, %v5329
      %v5331 = vand.u32 %v5330, 4294901760
      %5332 = vmatpush1.msra.mxu0 %v5331
      %5333 = vmatprep.subr.mxu0 0.0
      %v5334 = vand.u32 %v4944, 4294901760
      %v5335 = vsub.f32 %v4944, %v5334
      %v5336 = vand.u32 %v5335, 4294901760
      %5337 = vmatpush1.msra.mxu0 %v5336
      %5338 = vmatprep.subr.mxu0 0.0
      %v5339 = vand.u32 %v4946, 4294901760
      %v5340 = vsub.f32 %v4946, %v5339
      %v5341 = vand.u32 %v5340, 4294901760
      %5342 = vmatpush1.msra.mxu0 %v5341
      %5343 = vmatprep.subr.mxu0 0.0
      %v5344 = vand.u32 %v4954, 4294901760
      %v5345 = vsub.f32 %v4954, %v5344
      %v5346 = vand.u32 %v5345, 4294901760
      %5347 = vmatpush1.msra.mxu0 %v5346
      %5348 = vmatprep.subr.mxu0 0.0
      %5349 = vmatpush1.msra.mxu0 0.0
      %5350 = vmatprep.subr.mxu0 0.0
      %5351 = vmatpush1.msra.mxu0 0.0
      %5352 = vmatprep.subr.mxu0 0.0
      %5353 = vmatpush1.msra.mxu0 0.0
      %5354 = vmatprep.subr.mxu0 0.0
      %5355 = vmatpush1.msra.mxu0 0.0
      %5356 = vmatprep.subr.mxu0 0.0
      %5357 = vmatpush1.msra.mxu0 0.0
      %5358 = vmatprep.subr.mxu0 0.0
      %5359 = vmatpush1.msra.mxu0 0.0
      %5360 = vmatprep.subr.mxu0 0.0
      %5361 = vmatpush1.msra.mxu0 0.0
      %5362 = vmatprep.subr.mxu0 0.0
      %5363 = vmatpush1.msra.mxu0 0.0
      %5364 = vmatprep.subr.mxu0 0.0
      %5365 = vmatpush1.msra.mxu0 0.0
      %5366 = vmatprep.subr.mxu0 0.0
      %5367 = vmatpush1.msra.mxu0 0.0
      %5368 = vmatprep.subr.mxu0 0.0
      %5369 = vmatpush1.msra.mxu0 0.0
      %5370 = vmatprep.subr.mxu0 0.0
      %5371 = vmatpush1.msra.mxu0 0.0
      %5372 = vmatprep.subr.mxu0 0.0
      %5373 = vmatpush1.msra.mxu0 0.0
      %5374 = vmatprep.subr.mxu0 0.0
      %5375 = vmatpush1.msra.mxu0 0.0
      %5376 = vmatprep.subr.mxu0 0.0
      %5377 = vmatpush1.msra.mxu0 0.0
      %5378 = vmatprep.subr.mxu0 0.0
      %5379 = vmatpush1.msra.mxu0 0.0
      %5380 = vmatprep.subr.mxu0 0.0
      %5381 = vmatpush1.msra.mxu0 0.0
      %5382 = vmatprep.subr.mxu0 0.0
      %5383 = vmatpush1.msra.mxu0 0.0
      %5384 = vmatprep.subr.mxu0 0.0
      %5385 = vmatpush1.msra.mxu0 0.0
      %5386 = vmatprep.subr.mxu0 0.0
      %5387 = vmatpush1.msra.mxu0 0.0
      %5388 = vmatprep.subr.mxu0 0.0
      %5389 = vmatpush1.msra.mxu0 0.0
      %5390 = vmatprep.subr.mxu0 0.0
      %5391 = vmatpush1.msra.mxu0 0.0
      %5392 = vmatprep.subr.mxu0 0.0
      %5393 = vmatpush1.msra.mxu0 0.0
      %5394 = vmatprep.subr.mxu0 0.0
      %5395 = vmatpush1.msra.mxu0 0.0
      %5396 = vmatprep.subr.mxu0 0.0
      %5397 = vmatpush1.msra.mxu0 0.0
      %5398 = vmatprep.subr.mxu0 0.0
      %5399 = vmatpush1.msra.mxu0 0.0
      %5400 = vmatprep.subr.mxu0 0.0
      %5401 = vmatpush1.msra.mxu0 0.0
      %5402 = vmatprep.mubr.f32.mxu0 0.0
      %v5403 = vand.u32 %v4949, 4294901760
      %5404 = vmatmul.mubr.f32.gmra.mrb[0].mxu0 %v5403
      %v5405 = vpop.f32.mrb[0].mxu0
      %v5406 = vadd.f32 %v5312, %v5405
      %v5407 = vpop.f32.mrb[0].mxu0
      %5408 = vmatprep.mubr.f32.mxu0 0.0
      %v5409 = vand.u32 %v4951, 4294901760
      %5410 = vmatmul.mubr.f32.gmra.mrb[0].mxu0 %v5409
      %v5411 = vpop.f32.mrb[0].mxu0
      %v5412 = vadd.f32 %v5320, %v5411
      %v5413 = vpop.f32.mrb[0].mxu0
      %5414 = vdwg.mxu0
      %5415 = vmatprep.subr.mxu0 0.0
      %v5416 = vand.u32 %v4940, 4294901760
      %5417 = vmatpush1.msra.mxu0 %v5416
      %5418 = vmatprep.subr.mxu0 0.0
      %v5419 = vand.u32 %v4942, 4294901760
      %5420 = vmatpush1.msra.mxu0 %v5419
      %5421 = vmatprep.subr.mxu0 0.0
      %v5422 = vand.u32 %v4944, 4294901760
      %5423 = vmatpush1.msra.mxu0 %v5422
      %5424 = vmatprep.subr.mxu0 0.0
      %v5425 = vand.u32 %v4946, 4294901760
      %5426 = vmatpush1.msra.mxu0 %v5425
      %5427 = vmatprep.subr.mxu0 0.0
      %v5428 = vand.u32 %v4954, 4294901760
      %5429 = vmatpush1.msra.mxu0 %v5428
      %5430 = vmatprep.subr.mxu0 0.0
      %5431 = vmatpush1.msra.mxu0 0.0
      %5432 = vmatprep.subr.mxu0 0.0
      %5433 = vmatpush1.msra.mxu0 0.0
      %5434 = vmatprep.subr.mxu0 0.0
      %5435 = vmatpush1.msra.mxu0 0.0
      %5436 = vmatprep.subr.mxu0 0.0
      %5437 = vmatpush1.msra.mxu0 0.0
      %5438 = vmatprep.subr.mxu0 0.0
      %5439 = vmatpush1.msra.mxu0 0.0
      %5440 = vmatprep.subr.mxu0 0.0
      %5441 = vmatpush1.msra.mxu0 0.0
      %5442 = vmatprep.subr.mxu0 0.0
      %5443 = vmatpush1.msra.mxu0 0.0
      %5444 = vmatprep.subr.mxu0 0.0
      %5445 = vmatpush1.msra.mxu0 0.0
      %5446 = vmatprep.subr.mxu0 0.0
      %5447 = vmatpush1.msra.mxu0 0.0
      %5448 = vmatprep.subr.mxu0 0.0
      %5449 = vmatpush1.msra.mxu0 0.0
      %5450 = vmatprep.subr.mxu0 0.0
      %5451 = vmatpush1.msra.mxu0 0.0
      %5452 = vmatprep.subr.mxu0 0.0
      %5453 = vmatpush1.msra.mxu0 0.0
      %5454 = vmatprep.subr.mxu0 0.0
      %5455 = vmatpush1.msra.mxu0 0.0
      %5456 = vmatprep.subr.mxu0 0.0
      %5457 = vmatpush1.msra.mxu0 0.0
      %5458 = vmatprep.subr.mxu0 0.0
      %5459 = vmatpush1.msra.mxu0 0.0
      %5460 = vmatprep.subr.mxu0 0.0
      %5461 = vmatpush1.msra.mxu0 0.0
      %5462 = vmatprep.subr.mxu0 0.0
      %5463 = vmatpush1.msra.mxu0 0.0
      %5464 = vmatprep.subr.mxu0 0.0
      %5465 = vmatpush1.msra.mxu0 0.0
      %5466 = vmatprep.subr.mxu0 0.0
      %5467 = vmatpush1.msra.mxu0 0.0
      %5468 = vmatprep.subr.mxu0 0.0
      %5469 = vmatpush1.msra.mxu0 0.0
      %5470 = vmatprep.subr.mxu0 0.0
      %5471 = vmatpush1.msra.mxu0 0.0
      %5472 = vmatprep.subr.mxu0 0.0
      %5473 = vmatpush1.msra.mxu0 0.0
      %5474 = vmatprep.subr.mxu0 0.0
      %5475 = vmatpush1.msra.mxu0 0.0
      %5476 = vmatprep.subr.mxu0 0.0
      %5477 = vmatpush1.msra.mxu0 0.0
      %5478 = vmatprep.subr.mxu0 0.0
      %5479 = vmatpush1.msra.mxu0 0.0
      %5480 = vmatprep.subr.mxu0 0.0
      %5481 = vmatpush1.msra.mxu0 0.0
      %5482 = vmatprep.subr.mxu0 0.0
      %5483 = vmatpush1.msra.mxu0 0.0
      %5484 = vmatprep.mubr.f32.mxu0 0.0
      %v5485 = vand.u32 %v4949, 4294901760
      %5486 = vmatmul.mubr.f32.gmra.mrb[0].mxu0 %v5485
      %v5487 = vpop.f32.mrb[0].mxu0
      %v5488 = vadd.f32 %v5406, %v5487
      %v5489 = vpop.f32.mrb[0].mxu0
      %5490 = vmatprep.mubr.f32.mxu0 0.0
      %v5491 = vand.u32 %v4951, 4294901760
      %5492 = vmatmul.mubr.f32.gmra.mrb[0].mxu0 %v5491
      %v5493 = vpop.f32.mrb[0].mxu0
      %v5494 = vadd.f32 %v5412, %v5493
      %v5495 = vpop.f32.mrb[0].mxu0
      %5496 = vdwg.mxu0
      %v5498 = vsel %vm950, %v5494, 0
      %5500 = vmatprep.subr.mxu0 0.0
      %v5501 = vand.u32 %v5488, 4294901760
      %5502 = vmatpush1.msra.mxu0 %v5501
      %5503 = vmatprep.subr.mxu0 0.0
      %v5504 = vand.u32 %v5498, 4294901760
      %5505 = vmatpush1.msra.mxu0 %v5504
      %5506 = vmatprep.subr.mxu0 0.0
      %5507 = vmatpush1.msra.mxu0 0.0
      %5508 = vmatprep.subr.mxu0 0.0
      %5509 = vmatpush1.msra.mxu0 0.0
      %5510 = vmatprep.subr.mxu0 0.0
      %5511 = vmatpush1.msra.mxu0 0.0
      %5512 = vmatprep.subr.mxu0 0.0
      %5513 = vmatpush1.msra.mxu0 0.0
      %5514 = vmatprep.subr.mxu0 0.0
      %5515 = vmatpush1.msra.mxu0 0.0
      %5516 = vmatprep.subr.mxu0 0.0
      %5517 = vmatpush1.msra.mxu0 0.0
      %5518 = vmatprep.subr.mxu0 0.0
      %5519 = vmatpush1.msra.mxu0 0.0
      %5520 = vmatprep.subr.mxu0 0.0
      %5521 = vmatpush1.msra.mxu0 0.0
      %5522 = vmatprep.subr.mxu0 0.0
      %5523 = vmatpush1.msra.mxu0 0.0
      %5524 = vmatprep.subr.mxu0 0.0
      %5525 = vmatpush1.msra.mxu0 0.0
      %5526 = vmatprep.subr.mxu0 0.0
      %5527 = vmatpush1.msra.mxu0 0.0
      %5528 = vmatprep.subr.mxu0 0.0
      %5529 = vmatpush1.msra.mxu0 0.0
      %5530 = vmatprep.subr.mxu0 0.0
      %5531 = vmatpush1.msra.mxu0 0.0
      %5532 = vmatprep.subr.mxu0 0.0
      %5533 = vmatpush1.msra.mxu0 0.0
      %5534 = vmatprep.subr.mxu0 0.0
      %5535 = vmatpush1.msra.mxu0 0.0
      %5536 = vmatprep.subr.mxu0 0.0
      %5537 = vmatpush1.msra.mxu0 0.0
      %5538 = vmatprep.subr.mxu0 0.0
      %5539 = vmatpush1.msra.mxu0 0.0
      %5540 = vmatprep.subr.mxu0 0.0
      %5541 = vmatpush1.msra.mxu0 0.0
      %5542 = vmatprep.subr.mxu0 0.0
      %5543 = vmatpush1.msra.mxu0 0.0
      %5544 = vmatprep.subr.mxu0 0.0
      %5545 = vmatpush1.msra.mxu0 0.0
      %5546 = vmatprep.subr.mxu0 0.0
      %5547 = vmatpush1.msra.mxu0 0.0
      %5548 = vmatprep.subr.mxu0 0.0
      %5549 = vmatpush1.msra.mxu0 0.0
      %5550 = vmatprep.subr.mxu0 0.0
      %5551 = vmatpush1.msra.mxu0 0.0
      %5552 = vmatprep.subr.mxu0 0.0
      %5553 = vmatpush1.msra.mxu0 0.0
      %5554 = vmatprep.subr.mxu0 0.0
      %5555 = vmatpush1.msra.mxu0 0.0
      %5556 = vmatprep.subr.mxu0 0.0
      %5557 = vmatpush1.msra.mxu0 0.0
      %5558 = vmatprep.subr.mxu0 0.0
      %5559 = vmatpush1.msra.mxu0 0.0
      %5560 = vmatprep.subr.mxu0 0.0
      %5561 = vmatpush1.msra.mxu0 0.0
      %5562 = vmatprep.subr.mxu0 0.0
      %5563 = vmatpush1.msra.mxu0 0.0
      %5564 = vmatprep.subr.mxu0 0.0
      %5565 = vmatpush1.msra.mxu0 0.0
      %5566 = vmatprep.mubr.f32.mxu0 0.0
      %v5567 = vand.u32 %v3601, 4294901760
      %v5568 = vsub.f32 %v3601, %v5567
      %v5569 = vand.u32 %v5568, 4294901760
      %v5570 = vsub.f32 %v5568, %v5569
      %v5571 = vand.u32 %v5570, 4294901760
      %5572 = vmatmul.mubr.f32.gmra.mrb[0].mxu0 %v5571
      %v5573 = vpop.f32.mrb[0].mxu0
      %v5574 = vadd.f32 0.0, %v5573
      %v5575 = vpop.f32.mrb[0].mxu0
      %5576 = vmatprep.mubr.f32.mxu0 0.0
      %v5577 = vand.u32 %v3603, 4294901760
      %v5578 = vsub.f32 %v3603, %v5577
      %v5579 = vand.u32 %v5578, 4294901760
      %v5580 = vsub.f32 %v5578, %v5579
      %v5581 = vand.u32 %v5580, 4294901760
      %5582 = vmatmul.mubr.f32.gmra.mrb[0].mxu0 %v5581
      %v5583 = vpop.f32.mrb[0].mxu0
      %v5584 = vadd.f32 0.0, %v5583
      %v5585 = vpop.f32.mrb[0].mxu0
      %5586 = vmatprep.mubr.f32.mxu0 0.0
      %v5587 = vand.u32 %v3605, 4294901760
      %v5588 = vsub.f32 %v3605, %v5587
      %v5589 = vand.u32 %v5588, 4294901760
      %v5590 = vsub.f32 %v5588, %v5589
      %v5591 = vand.u32 %v5590, 4294901760
      %5592 = vmatmul.mubr.f32.gmra.mrb[0].mxu0 %v5591
      %v5593 = vpop.f32.mrb[0].mxu0
      %v5594 = vadd.f32 0.0, %v5593
      %v5595 = vpop.f32.mrb[0].mxu0
      %5596 = vmatprep.mubr.f32.mxu0 0.0
      %v5597 = vand.u32 %v3607, 4294901760
      %v5598 = vsub.f32 %v3607, %v5597
      %v5599 = vand.u32 %v5598, 4294901760
      %v5600 = vsub.f32 %v5598, %v5599
      %v5601 = vand.u32 %v5600, 4294901760
      %5602 = vmatmul.mubr.f32.gmra.mrb[0].mxu0 %v5601
      %v5603 = vpop.f32.mrb[0].mxu0
      %v5604 = vadd.f32 0.0, %v5603
      %v5605 = vpop.f32.mrb[0].mxu0
      %5606 = vmatprep.mubr.f32.mxu0 0.0
      %v5607 = vand.u32 %v3609, 4294901760
      %v5608 = vsub.f32 %v3609, %v5607
      %v5609 = vand.u32 %v5608, 4294901760
      %v5610 = vsub.f32 %v5608, %v5609
      %v5611 = vand.u32 %v5610, 4294901760
      %5612 = vmatmul.mubr.f32.gmra.mrb[0].mxu0 %v5611
      %v5613 = vpop.f32.mrb[0].mxu0
      %v5614 = vadd.f32 0.0, %v5613
      %v5615 = vpop.f32.mrb[0].mxu0
      %5616 = vdwg.mxu0
      %5617 = vmatprep.subr.mxu0 0.0
      %v5618 = vand.u32 %v5488, 4294901760
      %v5619 = vsub.f32 %v5488, %v5618
      %v5620 = vand.u32 %v5619, 4294901760
      %v5621 = vsub.f32 %v5619, %v5620
      %v5622 = vand.u32 %v5621, 4294901760
      %5623 = vmatpush1.msra.mxu0 %v5622
      %5624 = vmatprep.subr.mxu0 0.0
      %v5625 = vand.u32 %v5498, 4294901760
      %v5626 = vsub.f32 %v5498, %v5625
      %v5627 = vand.u32 %v5626, 4294901760
      %v5628 = vsub.f32 %v5626, %v5627
      %v5629 = vand.u32 %v5628, 4294901760
      %5630 = vmatpush1.msra.mxu0 %v5629
      %5631 = vmatprep.subr.mxu0 0.0
      %5632 = vmatpush1.msra.mxu0 0.0
      %5633 = vmatprep.subr.mxu0 0.0
      %5634 = vmatpush1.msra.mxu0 0.0
      %5635 = vmatprep.subr.mxu0 0.0
      %5636 = vmatpush1.msra.mxu0 0.0
      %5637 = vmatprep.subr.mxu0 0.0
      %5638 = vmatpush1.msra.mxu0 0.0
      %5639 = vmatprep.subr.mxu0 0.0
      %5640 = vmatpush1.msra.mxu0 0.0
      %5641 = vmatprep.subr.mxu0 0.0
      %5642 = vmatpush1.msra.mxu0 0.0
      %5643 = vmatprep.subr.mxu0 0.0
      %5644 = vmatpush1.msra.mxu0 0.0
      %5645 = vmatprep.subr.mxu0 0.0
      %5646 = vmatpush1.msra.mxu0 0.0
      %5647 = vmatprep.subr.mxu0 0.0
      %5648 = vmatpush1.msra.mxu0 0.0
      %5649 = vmatprep.subr.mxu0 0.0
      %5650 = vmatpush1.msra.mxu0 0.0
      %5651 = vmatprep.subr.mxu0 0.0
      %5652 = vmatpush1.msra.mxu0 0.0
      %5653 = vmatprep.subr.mxu0 0.0
      %5654 = vmatpush1.msra.mxu0 0.0
      %5655 = vmatprep.subr.mxu0 0.0
      %5656 = vmatpush1.msra.mxu0 0.0
      %5657 = vmatprep.subr.mxu0 0.0
      %5658 = vmatpush1.msra.mxu0 0.0
      %5659 = vmatprep.subr.mxu0 0.0
      %5660 = vmatpush1.msra.mxu0 0.0
      %5661 = vmatprep.subr.mxu0 0.0
      %5662 = vmatpush1.msra.mxu0 0.0
      %5663 = vmatprep.subr.mxu0 0.0
      %5664 = vmatpush1.msra.mxu0 0.0
      %5665 = vmatprep.subr.mxu0 0.0
      %5666 = vmatpush1.msra.mxu0 0.0
      %5667 = vmatprep.subr.mxu0 0.0
      %5668 = vmatpush1.msra.mxu0 0.0
      %5669 = vmatprep.subr.mxu0 0.0
      %5670 = vmatpush1.msra.mxu0 0.0
      %5671 = vmatprep.subr.mxu0 0.0
      %5672 = vmatpush1.msra.mxu0 0.0
      %5673 = vmatprep.subr.mxu0 0.0
      %5674 = vmatpush1.msra.mxu0 0.0
      %5675 = vmatprep.subr.mxu0 0.0
      %5676 = vmatpush1.msra.mxu0 0.0
      %5677 = vmatprep.subr.mxu0 0.0
      %5678 = vmatpush1.msra.mxu0 0.0
      %5679 = vmatprep.subr.mxu0 0.0
      %5680 = vmatpush1.msra.mxu0 0.0
      %5681 = vmatprep.subr.mxu0 0.0
      %5682 = vmatpush1.msra.mxu0 0.0
      %5683 = vmatprep.subr.mxu0 0.0
      %5684 = vmatpush1.msra.mxu0 0.0
      %5685 = vmatprep.subr.mxu0 0.0
      %5686 = vmatpush1.msra.mxu0 0.0
      %5687 = vmatprep.subr.mxu0 0.0
      %5688 = vmatpush1.msra.mxu0 0.0
      %5689 = vmatprep.subr.mxu0 0.0
      %5690 = vmatpush1.msra.mxu0 0.0
      %5691 = vmatprep.mubr.f32.mxu0 0.0
      %v5692 = vand.u32 %v3601, 4294901760
      %5693 = vmatmul.mubr.f32.gmra.mrb[0].mxu0 %v5692
      %v5694 = vpop.f32.mrb[0].mxu0
      %v5695 = vadd.f32 %v5574, %v5694
      %v5696 = vpop.f32.mrb[0].mxu0
      %5697 = vmatprep.mubr.f32.mxu0 0.0
      %v5698 = vand.u32 %v3603, 4294901760
      %5699 = vmatmul.mubr.f32.gmra.mrb[0].mxu0 %v5698
      %v5700 = vpop.f32.mrb[0].mxu0
      %v5701 = vadd.f32 %v5584, %v5700
      %v5702 = vpop.f32.mrb[0].mxu0
      %5703 = vmatprep.mubr.f32.mxu0 0.0
      %v5704 = vand.u32 %v3605, 4294901760
      %5705 = vmatmul.mubr.f32.gmra.mrb[0].mxu0 %v5704
      %v5706 = vpop.f32.mrb[0].mxu0
      %v5707 = vadd.f32 %v5594, %v5706
      %v5708 = vpop.f32.mrb[0].mxu0
      %5709 = vmatprep.mubr.f32.mxu0 0.0
      %v5710 = vand.u32 %v3607, 4294901760
      %5711 = vmatmul.mubr.f32.gmra.mrb[0].mxu0 %v5710
      %v5712 = vpop.f32.mrb[0].mxu0
      %v5713 = vadd.f32 %v5604, %v5712
      %v5714 = vpop.f32.mrb[0].mxu0
      %5715 = vmatprep.mubr.f32.mxu0 0.0
      %v5716 = vand.u32 %v3609, 4294901760
      %5717 = vmatmul.mubr.f32.gmra.mrb[0].mxu0 %v5716
      %v5718 = vpop.f32.mrb[0].mxu0
      %v5719 = vadd.f32 %v5614, %v5718
      %v5720 = vpop.f32.mrb[0].mxu0
      %5721 = vdwg.mxu0
      %5722 = vmatprep.subr.mxu0 0.0
      %v5723 = vand.u32 %v5488, 4294901760
      %v5724 = vsub.f32 %v5488, %v5723
      %5725 = vmatpush1.msra.mxu0 %v5724
      %5726 = vmatprep.subr.mxu0 0.0
      %v5727 = vand.u32 %v5498, 4294901760
      %v5728 = vsub.f32 %v5498, %v5727
      %5729 = vmatpush1.msra.mxu0 %v5728
      %5730 = vmatprep.subr.mxu0 0.0
      %5731 = vmatpush1.msra.mxu0 0.0
      %5732 = vmatprep.subr.mxu0 0.0
      %5733 = vmatpush1.msra.mxu0 0.0
      %5734 = vmatprep.subr.mxu0 0.0
      %5735 = vmatpush1.msra.mxu0 0.0
      %5736 = vmatprep.subr.mxu0 0.0
      %5737 = vmatpush1.msra.mxu0 0.0
      %5738 = vmatprep.subr.mxu0 0.0
      %5739 = vmatpush1.msra.mxu0 0.0
      %5740 = vmatprep.subr.mxu0 0.0
      %5741 = vmatpush1.msra.mxu0 0.0
      %5742 = vmatprep.subr.mxu0 0.0
      %5743 = vmatpush1.msra.mxu0 0.0
      %5744 = vmatprep.subr.mxu0 0.0
      %5745 = vmatpush1.msra.mxu0 0.0
      %5746 = vmatprep.subr.mxu0 0.0
      %5747 = vmatpush1.msra.mxu0 0.0
      %5748 = vmatprep.subr.mxu0 0.0
      %5749 = vmatpush1.msra.mxu0 0.0
      %5750 = vmatprep.subr.mxu0 0.0
      %5751 = vmatpush1.msra.mxu0 0.0
      %5752 = vmatprep.subr.mxu0 0.0
      %5753 = vmatpush1.msra.mxu0 0.0
      %5754 = vmatprep.subr.mxu0 0.0
      %5755 = vmatpush1.msra.mxu0 0.0
      %5756 = vmatprep.subr.mxu0 0.0
      %5757 = vmatpush1.msra.mxu0 0.0
      %5758 = vmatprep.subr.mxu0 0.0
      %5759 = vmatpush1.msra.mxu0 0.0
      %5760 = vmatprep.subr.mxu0 0.0
      %5761 = vmatpush1.msra.mxu0 0.0
      %5762 = vmatprep.subr.mxu0 0.0
      %5763 = vmatpush1.msra.mxu0 0.0
      %5764 = vmatprep.subr.mxu0 0.0
      %5765 = vmatpush1.msra.mxu0 0.0
      %5766 = vmatprep.subr.mxu0 0.0
      %5767 = vmatpush1.msra.mxu0 0.0
      %5768 = vmatprep.subr.mxu0 0.0
      %5769 = vmatpush1.msra.mxu0 0.0
      %5770 = vmatprep.subr.mxu0 0.0
      %5771 = vmatpush1.msra.mxu0 0.0
      %5772 = vmatprep.subr.mxu0 0.0
      %5773 = vmatpush1.msra.mxu0 0.0
      %5774 = vmatprep.subr.mxu0 0.0
      %5775 = vmatpush1.msra.mxu0 0.0
      %5776 = vmatprep.subr.mxu0 0.0
      %5777 = vmatpush1.msra.mxu0 0.0
      %5778 = vmatprep.subr.mxu0 0.0
      %5779 = vmatpush1.msra.mxu0 0.0
      %5780 = vmatprep.subr.mxu0 0.0
      %5781 = vmatpush1.msra.mxu0 0.0
      %5782 = vmatprep.subr.mxu0 0.0
      %5783 = vmatpush1.msra.mxu0 0.0
      %5784 = vmatprep.subr.mxu0 0.0
      %5785 = vmatpush1.msra.mxu0 0.0
      %5786 = vmatprep.subr.mxu0 0.0
      %5787 = vmatpush1.msra.mxu0 0.0
      %5788 = vmatprep.subr.mxu0 0.0
      %5789 = vmatpush1.msra.mxu0 0.0
      %5790 = vmatprep.mubr.f32.mxu0 0.0
      %v5791 = vand.u32 %v3601, 4294901760
      %v5792 = vsub.f32 %v3601, %v5791
      %5793 = vmatmul.mubr.f32.gmra.mrb[0].mxu0 %v5792
      %v5794 = vpop.f32.mrb[0].mxu0
      %v5795 = vadd.f32 %v5695, %v5794
      %v5796 = vpop.f32.mrb[0].mxu0
      %5797 = vmatprep.mubr.f32.mxu0 0.0
      %v5798 = vand.u32 %v3603, 4294901760
      %v5799 = vsub.f32 %v3603, %v5798
      %5800 = vmatmul.mubr.f32.gmra.mrb[0].mxu0 %v5799
      %v5801 = vpop.f32.mrb[0].mxu0
      %v5802 = vadd.f32 %v5701, %v5801
      %v5803 = vpop.f32.mrb[0].mxu0
      %5804 = vmatprep.mubr.f32.mxu0 0.0
      %v5805 = vand.u32 %v3605, 4294901760
      %v5806 = vsub.f32 %v3605, %v5805
      %5807 = vmatmul.mubr.f32.gmra.mrb[0].mxu0 %v5806
      %v5808 = vpop.f32.mrb[0].mxu0
      %v5809 = vadd.f32 %v5707, %v5808
      %v5810 = vpop.f32.mrb[0].mxu0
      %5811 = vmatprep.mubr.f32.mxu0 0.0
      %v5812 = vand.u32 %v3607, 4294901760
      %v5813 = vsub.f32 %v3607, %v5812
      %5814 = vmatmul.mubr.f32.gmra.mrb[0].mxu0 %v5813
      %v5815 = vpop.f32.mrb[0].mxu0
      %v5816 = vadd.f32 %v5713, %v5815
      %v5817 = vpop.f32.mrb[0].mxu0
      %5818 = vmatprep.mubr.f32.mxu0 0.0
      %v5819 = vand.u32 %v3609, 4294901760
      %v5820 = vsub.f32 %v3609, %v5819
      %5821 = vmatmul.mubr.f32.gmra.mrb[0].mxu0 %v5820
      %v5822 = vpop.f32.mrb[0].mxu0
      %v5823 = vadd.f32 %v5719, %v5822
      %v5824 = vpop.f32.mrb[0].mxu0
      %5825 = vdwg.mxu0
      %5826 = vmatprep.subr.mxu0 0.0
      %v5827 = vand.u32 %v5488, 4294901760
      %5828 = vmatpush1.msra.mxu0 %v5827
      %5829 = vmatprep.subr.mxu0 0.0
      %v5830 = vand.u32 %v5498, 4294901760
      %5831 = vmatpush1.msra.mxu0 %v5830
      %5832 = vmatprep.subr.mxu0 0.0
      %5833 = vmatpush1.msra.mxu0 0.0
      %5834 = vmatprep.subr.mxu0 0.0
      %5835 = vmatpush1.msra.mxu0 0.0
      %5836 = vmatprep.subr.mxu0 0.0
      %5837 = vmatpush1.msra.mxu0 0.0
      %5838 = vmatprep.subr.mxu0 0.0
      %5839 = vmatpush1.msra.mxu0 0.0
      %5840 = vmatprep.subr.mxu0 0.0
      %5841 = vmatpush1.msra.mxu0 0.0
      %5842 = vmatprep.subr.mxu0 0.0
      %5843 = vmatpush1.msra.mxu0 0.0
      %5844 = vmatprep.subr.mxu0 0.0
      %5845 = vmatpush1.msra.mxu0 0.0
      %5846 = vmatprep.subr.mxu0 0.0
      %5847 = vmatpush1.msra.mxu0 0.0
      %5848 = vmatprep.subr.mxu0 0.0
      %5849 = vmatpush1.msra.mxu0 0.0
      %5850 = vmatprep.subr.mxu0 0.0
      %5851 = vmatpush1.msra.mxu0 0.0
      %5852 = vmatprep.subr.mxu0 0.0
      %5853 = vmatpush1.msra.mxu0 0.0
      %5854 = vmatprep.subr.mxu0 0.0
      %5855 = vmatpush1.msra.mxu0 0.0
      %5856 = vmatprep.subr.mxu0 0.0
      %5857 = vmatpush1.msra.mxu0 0.0
      %5858 = vmatprep.subr.mxu0 0.0
      %5859 = vmatpush1.msra.mxu0 0.0
      %5860 = vmatprep.subr.mxu0 0.0
      %5861 = vmatpush1.msra.mxu0 0.0
      %5862 = vmatprep.subr.mxu0 0.0
      %5863 = vmatpush1.msra.mxu0 0.0
      %5864 = vmatprep.subr.mxu0 0.0
      %5865 = vmatpush1.msra.mxu0 0.0
      %5866 = vmatprep.subr.mxu0 0.0
      %5867 = vmatpush1.msra.mxu0 0.0
      %5868 = vmatprep.subr.mxu0 0.0
      %5869 = vmatpush1.msra.mxu0 0.0
      %5870 = vmatprep.subr.mxu0 0.0
      %5871 = vmatpush1.msra.mxu0 0.0
      %5872 = vmatprep.subr.mxu0 0.0
      %5873 = vmatpush1.msra.mxu0 0.0
      %5874 = vmatprep.subr.mxu0 0.0
      %5875 = vmatpush1.msra.mxu0 0.0
      %5876 = vmatprep.subr.mxu0 0.0
      %5877 = vmatpush1.msra.mxu0 0.0
      %5878 = vmatprep.subr.mxu0 0.0
      %5879 = vmatpush1.msra.mxu0 0.0
      %5880 = vmatprep.subr.mxu0 0.0
      %5881 = vmatpush1.msra.mxu0 0.0
      %5882 = vmatprep.subr.mxu0 0.0
      %5883 = vmatpush1.msra.mxu0 0.0
      %5884 = vmatprep.subr.mxu0 0.0
      %5885 = vmatpush1.msra.mxu0 0.0
      %5886 = vmatprep.subr.mxu0 0.0
      %5887 = vmatpush1.msra.mxu0 0.0
      %5888 = vmatprep.subr.mxu0 0.0
      %5889 = vmatpush1.msra.mxu0 0.0
      %5890 = vmatprep.subr.mxu0 0.0
      %5891 = vmatpush1.msra.mxu0 0.0
      %5892 = vmatprep.mubr.f32.mxu0 0.0
      %v5893 = vand.u32 %v3601, 4294901760
      %v5894 = vsub.f32 %v3601, %v5893
      %v5895 = vand.u32 %v5894, 4294901760
      %5896 = vmatmul.mubr.f32.gmra.mrb[0].mxu0 %v5895
      %v5897 = vpop.f32.mrb[0].mxu0
      %v5898 = vadd.f32 %v5795, %v5897
      %v5899 = vpop.f32.mrb[0].mxu0
      %5900 = vmatprep.mubr.f32.mxu0 0.0
      %v5901 = vand.u32 %v3603, 4294901760
      %v5902 = vsub.f32 %v3603, %v5901
      %v5903 = vand.u32 %v5902, 4294901760
      %5904 = vmatmul.mubr.f32.gmra.mrb[0].mxu0 %v5903
      %v5905 = vpop.f32.mrb[0].mxu0
      %v5906 = vadd.f32 %v5802, %v5905
      %v5907 = vpop.f32.mrb[0].mxu0
      %5908 = vmatprep.mubr.f32.mxu0 0.0
      %v5909 = vand.u32 %v3605, 4294901760
      %v5910 = vsub.f32 %v3605, %v5909
      %v5911 = vand.u32 %v5910, 4294901760
      %5912 = vmatmul.mubr.f32.gmra.mrb[0].mxu0 %v5911
      %v5913 = vpop.f32.mrb[0].mxu0
      %v5914 = vadd.f32 %v5809, %v5913
      %v5915 = vpop.f32.mrb[0].mxu0
      %5916 = vmatprep.mubr.f32.mxu0 0.0
      %v5917 = vand.u32 %v3607, 4294901760
      %v5918 = vsub.f32 %v3607, %v5917
      %v5919 = vand.u32 %v5918, 4294901760
      %5920 = vmatmul.mubr.f32.gmra.mrb[0].mxu0 %v5919
      %v5921 = vpop.f32.mrb[0].mxu0
      %v5922 = vadd.f32 %v5816, %v5921
      %v5923 = vpop.f32.mrb[0].mxu0
      %5924 = vmatprep.mubr.f32.mxu0 0.0
      %v5925 = vand.u32 %v3609, 4294901760
      %v5926 = vsub.f32 %v3609, %v5925
      %v5927 = vand.u32 %v5926, 4294901760
      %5928 = vmatmul.mubr.f32.gmra.mrb[0].mxu0 %v5927
      %v5929 = vpop.f32.mrb[0].mxu0
      %v5930 = vadd.f32 %v5823, %v5929
      %v5931 = vpop.f32.mrb[0].mxu0
      %5932 = vdwg.mxu0
      %5933 = vmatprep.subr.mxu0 0.0
      %v5934 = vand.u32 %v5488, 4294901760
      %v5935 = vsub.f32 %v5488, %v5934
      %v5936 = vand.u32 %v5935, 4294901760
      %5937 = vmatpush1.msra.mxu0 %v5936
      %5938 = vmatprep.subr.mxu0 0.0
      %v5939 = vand.u32 %v5498, 4294901760
      %v5940 = vsub.f32 %v5498, %v5939
      %v5941 = vand.u32 %v5940, 4294901760
      %5942 = vmatpush1.msra.mxu0 %v5941
      %5943 = vmatprep.subr.mxu0 0.0
      %5944 = vmatpush1.msra.mxu0 0.0
      %5945 = vmatprep.subr.mxu0 0.0
      %5946 = vmatpush1.msra.mxu0 0.0
      %5947 = vmatprep.subr.mxu0 0.0
      %5948 = vmatpush1.msra.mxu0 0.0
      %5949 = vmatprep.subr.mxu0 0.0
      %5950 = vmatpush1.msra.mxu0 0.0
      %5951 = vmatprep.subr.mxu0 0.0
      %5952 = vmatpush1.msra.mxu0 0.0
      %5953 = vmatprep.subr.mxu0 0.0
      %5954 = vmatpush1.msra.mxu0 0.0
      %5955 = vmatprep.subr.mxu0 0.0
      %5956 = vmatpush1.msra.mxu0 0.0
      %5957 = vmatprep.subr.mxu0 0.0
      %5958 = vmatpush1.msra.mxu0 0.0
      %5959 = vmatprep.subr.mxu0 0.0
      %5960 = vmatpush1.msra.mxu0 0.0
      %5961 = vmatprep.subr.mxu0 0.0
      %5962 = vmatpush1.msra.mxu0 0.0
      %5963 = vmatprep.subr.mxu0 0.0
      %5964 = vmatpush1.msra.mxu0 0.0
      %5965 = vmatprep.subr.mxu0 0.0
      %5966 = vmatpush1.msra.mxu0 0.0
      %5967 = vmatprep.subr.mxu0 0.0
      %5968 = vmatpush1.msra.mxu0 0.0
      %5969 = vmatprep.subr.mxu0 0.0
      %5970 = vmatpush1.msra.mxu0 0.0
      %5971 = vmatprep.subr.mxu0 0.0
      %5972 = vmatpush1.msra.mxu0 0.0
      %5973 = vmatprep.subr.mxu0 0.0
      %5974 = vmatpush1.msra.mxu0 0.0
      %5975 = vmatprep.subr.mxu0 0.0
      %5976 = vmatpush1.msra.mxu0 0.0
      %5977 = vmatprep.subr.mxu0 0.0
      %5978 = vmatpush1.msra.mxu0 0.0
      %5979 = vmatprep.subr.mxu0 0.0
      %5980 = vmatpush1.msra.mxu0 0.0
      %5981 = vmatprep.subr.mxu0 0.0
      %5982 = vmatpush1.msra.mxu0 0.0
      %5983 = vmatprep.subr.mxu0 0.0
      %5984 = vmatpush1.msra.mxu0 0.0
      %5985 = vmatprep.subr.mxu0 0.0
      %5986 = vmatpush1.msra.mxu0 0.0
      %5987 = vmatprep.subr.mxu0 0.0
      %5988 = vmatpush1.msra.mxu0 0.0
      %5989 = vmatprep.subr.mxu0 0.0
      %5990 = vmatpush1.msra.mxu0 0.0
      %5991 = vmatprep.subr.mxu0 0.0
      %5992 = vmatpush1.msra.mxu0 0.0
      %5993 = vmatprep.subr.mxu0 0.0
      %5994 = vmatpush1.msra.mxu0 0.0
      %5995 = vmatprep.subr.mxu0 0.0
      %5996 = vmatpush1.msra.mxu0 0.0
      %5997 = vmatprep.subr.mxu0 0.0
      %5998 = vmatpush1.msra.mxu0 0.0
      %5999 = vmatprep.subr.mxu0 0.0
      %6000 = vmatpush1.msra.mxu0 0.0
      %6001 = vmatprep.subr.mxu0 0.0
      %6002 = vmatpush1.msra.mxu0 0.0
      %6003 = vmatprep.mubr.f32.mxu0 0.0
      %v6004 = vand.u32 %v3601, 4294901760
      %6005 = vmatmul.mubr.f32.gmra.mrb[0].mxu0 %v6004
      %v6006 = vpop.f32.mrb[0].mxu0
      %v6007 = vadd.f32 %v5898, %v6006
      %v6008 = vpop.f32.mrb[0].mxu0
      %6009 = vmatprep.mubr.f32.mxu0 0.0
      %v6010 = vand.u32 %v3603, 4294901760
      %6011 = vmatmul.mubr.f32.gmra.mrb[0].mxu0 %v6010
      %v6012 = vpop.f32.mrb[0].mxu0
      %v6013 = vadd.f32 %v5906, %v6012
      %v6014 = vpop.f32.mrb[0].mxu0
      %6015 = vmatprep.mubr.f32.mxu0 0.0
      %v6016 = vand.u32 %v3605, 4294901760
      %6017 = vmatmul.mubr.f32.gmra.mrb[0].mxu0 %v6016
      %v6018 = vpop.f32.mrb[0].mxu0
      %v6019 = vadd.f32 %v5914, %v6018
      %v6020 = vpop.f32.mrb[0].mxu0
      %6021 = vmatprep.mubr.f32.mxu0 0.0
      %v6022 = vand.u32 %v3607, 4294901760
      %6023 = vmatmul.mubr.f32.gmra.mrb[0].mxu0 %v6022
      %v6024 = vpop.f32.mrb[0].mxu0
      %v6025 = vadd.f32 %v5922, %v6024
      %v6026 = vpop.f32.mrb[0].mxu0
      %6027 = vmatprep.mubr.f32.mxu0 0.0
      %v6028 = vand.u32 %v3609, 4294901760
      %6029 = vmatmul.mubr.f32.gmra.mrb[0].mxu0 %v6028
      %v6030 = vpop.f32.mrb[0].mxu0
      %v6031 = vadd.f32 %v5930, %v6030
      %v6032 = vpop.f32.mrb[0].mxu0
      %6033 = vdwg.mxu0
      %6034 = vmatprep.subr.mxu0 0.0
      %v6035 = vand.u32 %v5488, 4294901760
      %6036 = vmatpush1.msra.mxu0 %v6035
      %6037 = vmatprep.subr.mxu0 0.0
      %v6038 = vand.u32 %v5498, 4294901760
      %6039 = vmatpush1.msra.mxu0 %v6038
      %6040 = vmatprep.subr.mxu0 0.0
      %6041 = vmatpush1.msra.mxu0 0.0
      %6042 = vmatprep.subr.mxu0 0.0
      %6043 = vmatpush1.msra.mxu0 0.0
      %6044 = vmatprep.subr.mxu0 0.0
      %6045 = vmatpush1.msra.mxu0 0.0
      %6046 = vmatprep.subr.mxu0 0.0
      %6047 = vmatpush1.msra.mxu0 0.0
      %6048 = vmatprep.subr.mxu0 0.0
      %6049 = vmatpush1.msra.mxu0 0.0
      %6050 = vmatprep.subr.mxu0 0.0
      %6051 = vmatpush1.msra.mxu0 0.0
      %6052 = vmatprep.subr.mxu0 0.0
      %6053 = vmatpush1.msra.mxu0 0.0
      %6054 = vmatprep.subr.mxu0 0.0
      %6055 = vmatpush1.msra.mxu0 0.0
      %6056 = vmatprep.subr.mxu0 0.0
      %6057 = vmatpush1.msra.mxu0 0.0
      %6058 = vmatprep.subr.mxu0 0.0
      %6059 = vmatpush1.msra.mxu0 0.0
      %6060 = vmatprep.subr.mxu0 0.0
      %6061 = vmatpush1.msra.mxu0 0.0
      %6062 = vmatprep.subr.mxu0 0.0
      %6063 = vmatpush1.msra.mxu0 0.0
      %6064 = vmatprep.subr.mxu0 0.0
      %6065 = vmatpush1.msra.mxu0 0.0
      %6066 = vmatprep.subr.mxu0 0.0
      %6067 = vmatpush1.msra.mxu0 0.0
      %6068 = vmatprep.subr.mxu0 0.0
      %6069 = vmatpush1.msra.mxu0 0.0
      %6070 = vmatprep.subr.mxu0 0.0
      %6071 = vmatpush1.msra.mxu0 0.0
      %6072 = vmatprep.subr.mxu0 0.0
      %6073 = vmatpush1.msra.mxu0 0.0
      %6074 = vmatprep.subr.mxu0 0.0
      %6075 = vmatpush1.msra.mxu0 0.0
      %6076 = vmatprep.subr.mxu0 0.0
      %6077 = vmatpush1.msra.mxu0 0.0
      %6078 = vmatprep.subr.mxu0 0.0
      %6079 = vmatpush1.msra.mxu0 0.0
      %6080 = vmatprep.subr.mxu0 0.0
      %6081 = vmatpush1.msra.mxu0 0.0
      %6082 = vmatprep.subr.mxu0 0.0
      %6083 = vmatpush1.msra.mxu0 0.0
      %6084 = vmatprep.subr.mxu0 0.0
      %6085 = vmatpush1.msra.mxu0 0.0
      %6086 = vmatprep.subr.mxu0 0.0
      %6087 = vmatpush1.msra.mxu0 0.0
      %6088 = vmatprep.subr.mxu0 0.0
      %6089 = vmatpush1.msra.mxu0 0.0
      %6090 = vmatprep.subr.mxu0 0.0
      %6091 = vmatpush1.msra.mxu0 0.0
      %6092 = vmatprep.subr.mxu0 0.0
      %6093 = vmatpush1.msra.mxu0 0.0
      %6094 = vmatprep.subr.mxu0 0.0
      %6095 = vmatpush1.msra.mxu0 0.0
      %6096 = vmatprep.subr.mxu0 0.0
      %6097 = vmatpush1.msra.mxu0 0.0
      %6098 = vmatprep.subr.mxu0 0.0
      %6099 = vmatpush1.msra.mxu0 0.0
      %6100 = vmatprep.mubr.f32.mxu0 0.0
      %v6101 = vand.u32 %v3601, 4294901760
      %6102 = vmatmul.mubr.f32.gmra.mrb[0].mxu0 %v6101
      %v6103 = vpop.f32.mrb[0].mxu0
      %v6104 = vadd.f32 %v6007, %v6103
      %v6105 = vpop.f32.mrb[0].mxu0
      %6106 = vmatprep.mubr.f32.mxu0 0.0
      %v6107 = vand.u32 %v3603, 4294901760
      %6108 = vmatmul.mubr.f32.gmra.mrb[0].mxu0 %v6107
      %v6109 = vpop.f32.mrb[0].mxu0
      %v6110 = vadd.f32 %v6013, %v6109
      %v6111 = vpop.f32.mrb[0].mxu0
      %6112 = vmatprep.mubr.f32.mxu0 0.0
      %v6113 = vand.u32 %v3605, 4294901760
      %6114 = vmatmul.mubr.f32.gmra.mrb[0].mxu0 %v6113
      %v6115 = vpop.f32.mrb[0].mxu0
      %v6116 = vadd.f32 %v6019, %v6115
      %v6117 = vpop.f32.mrb[0].mxu0
      %6118 = vmatprep.mubr.f32.mxu0 0.0
      %v6119 = vand.u32 %v3607, 4294901760
      %6120 = vmatmul.mubr.f32.gmra.mrb[0].mxu0 %v6119
      %v6121 = vpop.f32.mrb[0].mxu0
      %v6122 = vadd.f32 %v6025, %v6121
      %v6123 = vpop.f32.mrb[0].mxu0
      %6124 = vmatprep.mubr.f32.mxu0 0.0
      %v6125 = vand.u32 %v3609, 4294901760
      %6126 = vmatmul.mubr.f32.gmra.mrb[0].mxu0 %v6125
      %v6127 = vpop.f32.mrb[0].mxu0
      %v6128 = vadd.f32 %v6031, %v6127
      %v6129 = vpop.f32.mrb[0].mxu0
      %6130 = vdwg.mxu0
      %v6131 = vrcp.pop %v6104
      %v6132 = vrcp.pop %v6110
      %v6133 = vrcp.pop %v6116
      %v6134 = vrcp.pop %v6122
      %v6135 = vrcp.pop %v6128
      %v6136 = vmul.f32 %v4940, %v6131
      %v6137 = vmul.f32 %v4942, %v6132
      %v6138 = vmul.f32 %v4944, %v6133
      %v6139 = vmul.f32 %v4946, %v6134
      %v6140 = vmul.f32 %v4948, %v6135
      %v6141 = vmul.u32 %v2287, 32
      %vm6142 = vcmp.ge.s32.totalorder %v2308, %v6141
      %v6143 = vadd.s32 %v2287, 1
      %v6144 = vmul.u32 %v6143, 32
      %vm6145 = vcmp.lt.s32.totalorder %v2308, %v6144
      %vm6146 = vmand %vm6142, %vm6145
      %v6147 = vsel %vm6146, 1, 0
      %v6148 = vcvt.s32.f32 %v6147
      %v6150 = vsel %vm1625, %v6136, 0
      %v6153 = vsel %vm1625, %v6137, 0
      %v6156 = vsel %vm1625, %v6138, 0
      %v6159 = vsel %vm1625, %v6139, 0
      %v6162 = vsel %vm1625, %v6140, 0
      %v6165 = vsel %vm950, %v6148, 0
      %6167 = vmatprep.subr.mxu0 0.0
      %v6168 = vand.u32 %v6165, 4294901760
      %6169 = vmatpush1.msra.mxu0 %v6168
      %6170 = vmatprep.subr.mxu0 0.0
      %6171 = vmatpush1.msra.mxu0 0.0
      %6172 = vmatprep.subr.mxu0 0.0
      %6173 = vmatpush1.msra.mxu0 0.0
      %6174 = vmatprep.subr.mxu0 0.0
      %6175 = vmatpush1.msra.mxu0 0.0
      %6176 = vmatprep.subr.mxu0 0.0
      %6177 = vmatpush1.msra.mxu0 0.0
      %6178 = vmatprep.subr.mxu0 0.0
      %6179 = vmatpush1.msra.mxu0 0.0
      %6180 = vmatprep.subr.mxu0 0.0
      %6181 = vmatpush1.msra.mxu0 0.0
      %6182 = vmatprep.subr.mxu0 0.0
      %6183 = vmatpush1.msra.mxu0 0.0
      %6184 = vmatprep.subr.mxu0 0.0
      %6185 = vmatpush1.msra.mxu0 0.0
      %6186 = vmatprep.subr.mxu0 0.0
      %6187 = vmatpush1.msra.mxu0 0.0
      %6188 = vmatprep.subr.mxu0 0.0
      %6189 = vmatpush1.msra.mxu0 0.0
      %6190 = vmatprep.subr.mxu0 0.0
      %6191 = vmatpush1.msra.mxu0 0.0
      %6192 = vmatprep.subr.mxu0 0.0
      %6193 = vmatpush1.msra.mxu0 0.0
      %6194 = vmatprep.subr.mxu0 0.0
      %6195 = vmatpush1.msra.mxu0 0.0
      %6196 = vmatprep.subr.mxu0 0.0
      %6197 = vmatpush1.msra.mxu0 0.0
      %6198 = vmatprep.subr.mxu0 0.0
      %6199 = vmatpush1.msra.mxu0 0.0
      %6200 = vmatprep.subr.mxu0 0.0
      %6201 = vmatpush1.msra.mxu0 0.0
      %6202 = vmatprep.subr.mxu0 0.0
      %6203 = vmatpush1.msra.mxu0 0.0
      %6204 = vmatprep.subr.mxu0 0.0
      %6205 = vmatpush1.msra.mxu0 0.0
      %6206 = vmatprep.subr.mxu0 0.0
      %6207 = vmatpush1.msra.mxu0 0.0
      %6208 = vmatprep.subr.mxu0 0.0
      %6209 = vmatpush1.msra.mxu0 0.0
      %6210 = vmatprep.subr.mxu0 0.0
      %6211 = vmatpush1.msra.mxu0 0.0
      %6212 = vmatprep.subr.mxu0 0.0
      %6213 = vmatpush1.msra.mxu0 0.0
      %6214 = vmatprep.subr.mxu0 0.0
      %6215 = vmatpush1.msra.mxu0 0.0
      %6216 = vmatprep.subr.mxu0 0.0
      %6217 = vmatpush1.msra.mxu0 0.0
      %6218 = vmatprep.subr.mxu0 0.0
      %6219 = vmatpush1.msra.mxu0 0.0
      %6220 = vmatprep.subr.mxu0 0.0
      %6221 = vmatpush1.msra.mxu0 0.0
      %6222 = vmatprep.subr.mxu0 0.0
      %6223 = vmatpush1.msra.mxu0 0.0
      %6224 = vmatprep.subr.mxu0 0.0
      %6225 = vmatpush1.msra.mxu0 0.0
      %6226 = vmatprep.subr.mxu0 0.0
      %6227 = vmatpush1.msra.mxu0 0.0
      %6228 = vmatprep.subr.mxu0 0.0
      %6229 = vmatpush1.msra.mxu0 0.0
      %6230 = vmatprep.subr.mxu0 0.0
      %6231 = vmatpush1.msra.mxu0 0.0
      %6232 = vmatprep.mubr.f32.mxu0 0.0
      %v6233 = vand.u32 %v6150, 4294901760
      %v6234 = vsub.f32 %v6150, %v6233
      %v6235 = vand.u32 %v6234, 4294901760
      %v6236 = vsub.f32 %v6234, %v6235
      %v6237 = vand.u32 %v6236, 4294901760
      %6238 = vmatmul.mubr.f32.gmra.mrb[0].mxu0 %v6237
      %v6239 = vpop.f32.mrb[0].mxu0
      %v6240 = vadd.f32 0.0, %v6239
      %v6241 = vpop.f32.mrb[0].mxu0
      %6242 = vmatprep.mubr.f32.mxu0 0.0
      %v6243 = vand.u32 %v6153, 4294901760
      %v6244 = vsub.f32 %v6153, %v6243
      %v6245 = vand.u32 %v6244, 4294901760
      %v6246 = vsub.f32 %v6244, %v6245
      %v6247 = vand.u32 %v6246, 4294901760
      %6248 = vmatmul.mubr.f32.gmra.mrb[0].mxu0 %v6247
      %v6249 = vpop.f32.mrb[0].mxu0
      %v6250 = vadd.f32 0.0, %v6249
      %v6251 = vpop.f32.mrb[0].mxu0
      %6252 = vmatprep.mubr.f32.mxu0 0.0
      %v6253 = vand.u32 %v6156, 4294901760
      %v6254 = vsub.f32 %v6156, %v6253
      %v6255 = vand.u32 %v6254, 4294901760
      %v6256 = vsub.f32 %v6254, %v6255
      %v6257 = vand.u32 %v6256, 4294901760
      %6258 = vmatmul.mubr.f32.gmra.mrb[0].mxu0 %v6257
      %v6259 = vpop.f32.mrb[0].mxu0
      %v6260 = vadd.f32 0.0, %v6259
      %v6261 = vpop.f32.mrb[0].mxu0
      %6262 = vmatprep.mubr.f32.mxu0 0.0
      %v6263 = vand.u32 %v6159, 4294901760
      %v6264 = vsub.f32 %v6159, %v6263
      %v6265 = vand.u32 %v6264, 4294901760
      %v6266 = vsub.f32 %v6264, %v6265
      %v6267 = vand.u32 %v6266, 4294901760
      %6268 = vmatmul.mubr.f32.gmra.mrb[0].mxu0 %v6267
      %v6269 = vpop.f32.mrb[0].mxu0
      %v6270 = vadd.f32 0.0, %v6269
      %v6271 = vpop.f32.mrb[0].mxu0
      %6272 = vmatprep.mubr.f32.mxu0 0.0
      %v6273 = vand.u32 %v6162, 4294901760
      %v6274 = vsub.f32 %v6162, %v6273
      %v6275 = vand.u32 %v6274, 4294901760
      %v6276 = vsub.f32 %v6274, %v6275
      %v6277 = vand.u32 %v6276, 4294901760
      %6278 = vmatmul.mubr.f32.gmra.mrb[0].mxu0 %v6277
      %v6279 = vpop.f32.mrb[0].mxu0
      %v6280 = vadd.f32 0.0, %v6279
      %v6281 = vpop.f32.mrb[0].mxu0
      %6282 = vdwg.mxu0
      %6283 = vmatprep.subr.mxu0 0.0
      %v6284 = vand.u32 %v6165, 4294901760
      %v6285 = vsub.f32 %v6165, %v6284
      %v6286 = vand.u32 %v6285, 4294901760
      %v6287 = vsub.f32 %v6285, %v6286
      %v6288 = vand.u32 %v6287, 4294901760
      %6289 = vmatpush1.msra.mxu0 %v6288
      %6290 = vmatprep.subr.mxu0 0.0
      %6291 = vmatpush1.msra.mxu0 0.0
      %6292 = vmatprep.subr.mxu0 0.0
      %6293 = vmatpush1.msra.mxu0 0.0
      %6294 = vmatprep.subr.mxu0 0.0
      %6295 = vmatpush1.msra.mxu0 0.0
      %6296 = vmatprep.subr.mxu0 0.0
      %6297 = vmatpush1.msra.mxu0 0.0
      %6298 = vmatprep.subr.mxu0 0.0
      %6299 = vmatpush1.msra.mxu0 0.0
      %6300 = vmatprep.subr.mxu0 0.0
      %6301 = vmatpush1.msra.mxu0 0.0
      %6302 = vmatprep.subr.mxu0 0.0
      %6303 = vmatpush1.msra.mxu0 0.0
      %6304 = vmatprep.subr.mxu0 0.0
      %6305 = vmatpush1.msra.mxu0 0.0
      %6306 = vmatprep.subr.mxu0 0.0
      %6307 = vmatpush1.msra.mxu0 0.0
      %6308 = vmatprep.subr.mxu0 0.0
      %6309 = vmatpush1.msra.mxu0 0.0
      %6310 = vmatprep.subr.mxu0 0.0
      %6311 = vmatpush1.msra.mxu0 0.0
      %6312 = vmatprep.subr.mxu0 0.0
      %6313 = vmatpush1.msra.mxu0 0.0
      %6314 = vmatprep.subr.mxu0 0.0
      %6315 = vmatpush1.msra.mxu0 0.0
      %6316 = vmatprep.subr.mxu0 0.0
      %6317 = vmatpush1.msra.mxu0 0.0
      %6318 = vmatprep.subr.mxu0 0.0
      %6319 = vmatpush1.msra.mxu0 0.0
      %6320 = vmatprep.subr.mxu0 0.0
      %6321 = vmatpush1.msra.mxu0 0.0
      %6322 = vmatprep.subr.mxu0 0.0
      %6323 = vmatpush1.msra.mxu0 0.0
      %6324 = vmatprep.subr.mxu0 0.0
      %6325 = vmatpush1.msra.mxu0 0.0
      %6326 = vmatprep.subr.mxu0 0.0
      %6327 = vmatpush1.msra.mxu0 0.0
      %6328 = vmatprep.subr.mxu0 0.0
      %6329 = vmatpush1.msra.mxu0 0.0
      %6330 = vmatprep.subr.mxu0 0.0
      %6331 = vmatpush1.msra.mxu0 0.0
      %6332 = vmatprep.subr.mxu0 0.0
      %6333 = vmatpush1.msra.mxu0 0.0
      %6334 = vmatprep.subr.mxu0 0.0
      %6335 = vmatpush1.msra.mxu0 0.0
      %6336 = vmatprep.subr.mxu0 0.0
      %6337 = vmatpush1.msra.mxu0 0.0
      %6338 = vmatprep.subr.mxu0 0.0
      %6339 = vmatpush1.msra.mxu0 0.0
      %6340 = vmatprep.subr.mxu0 0.0
      %6341 = vmatpush1.msra.mxu0 0.0
      %6342 = vmatprep.subr.mxu0 0.0
      %6343 = vmatpush1.msra.mxu0 0.0
      %6344 = vmatprep.subr.mxu0 0.0
      %6345 = vmatpush1.msra.mxu0 0.0
      %6346 = vmatprep.subr.mxu0 0.0
      %6347 = vmatpush1.msra.mxu0 0.0
      %6348 = vmatprep.subr.mxu0 0.0
      %6349 = vmatpush1.msra.mxu0 0.0
      %6350 = vmatprep.subr.mxu0 0.0
      %6351 = vmatpush1.msra.mxu0 0.0
      %6352 = vmatprep.mubr.f32.mxu0 0.0
      %v6353 = vand.u32 %v6150, 4294901760
      %6354 = vmatmul.mubr.f32.gmra.mrb[0].mxu0 %v6353
      %v6355 = vpop.f32.mrb[0].mxu0
      %v6356 = vadd.f32 %v6240, %v6355
      %v6357 = vpop.f32.mrb[0].mxu0
      %6358 = vmatprep.mubr.f32.mxu0 0.0
      %v6359 = vand.u32 %v6153, 4294901760
      %6360 = vmatmul.mubr.f32.gmra.mrb[0].mxu0 %v6359
      %v6361 = vpop.f32.mrb[0].mxu0
      %v6362 = vadd.f32 %v6250, %v6361
      %v6363 = vpop.f32.mrb[0].mxu0
      %6364 = vmatprep.mubr.f32.mxu0 0.0
      %v6365 = vand.u32 %v6156, 4294901760
      %6366 = vmatmul.mubr.f32.gmra.mrb[0].mxu0 %v6365
      %v6367 = vpop.f32.mrb[0].mxu0
      %v6368 = vadd.f32 %v6260, %v6367
      %v6369 = vpop.f32.mrb[0].mxu0
      %6370 = vmatprep.mubr.f32.mxu0 0.0
      %v6371 = vand.u32 %v6159, 4294901760
      %6372 = vmatmul.mubr.f32.gmra.mrb[0].mxu0 %v6371
      %v6373 = vpop.f32.mrb[0].mxu0
      %v6374 = vadd.f32 %v6270, %v6373
      %v6375 = vpop.f32.mrb[0].mxu0
      %6376 = vmatprep.mubr.f32.mxu0 0.0
      %v6377 = vand.u32 %v6162, 4294901760
      %6378 = vmatmul.mubr.f32.gmra.mrb[0].mxu0 %v6377
      %v6379 = vpop.f32.mrb[0].mxu0
      %v6380 = vadd.f32 %v6280, %v6379
      %v6381 = vpop.f32.mrb[0].mxu0
      %6382 = vdwg.mxu0
      %6383 = vmatprep.subr.mxu0 0.0
      %v6384 = vand.u32 %v6165, 4294901760
      %v6385 = vsub.f32 %v6165, %v6384
      %6386 = vmatpush1.msra.mxu0 %v6385
      %6387 = vmatprep.subr.mxu0 0.0
      %6388 = vmatpush1.msra.mxu0 0.0
      %6389 = vmatprep.subr.mxu0 0.0
      %6390 = vmatpush1.msra.mxu0 0.0
      %6391 = vmatprep.subr.mxu0 0.0
      %6392 = vmatpush1.msra.mxu0 0.0
      %6393 = vmatprep.subr.mxu0 0.0
      %6394 = vmatpush1.msra.mxu0 0.0
      %6395 = vmatprep.subr.mxu0 0.0
      %6396 = vmatpush1.msra.mxu0 0.0
      %6397 = vmatprep.subr.mxu0 0.0
      %6398 = vmatpush1.msra.mxu0 0.0
      %6399 = vmatprep.subr.mxu0 0.0
      %6400 = vmatpush1.msra.mxu0 0.0
      %6401 = vmatprep.subr.mxu0 0.0
      %6402 = vmatpush1.msra.mxu0 0.0
      %6403 = vmatprep.subr.mxu0 0.0
      %6404 = vmatpush1.msra.mxu0 0.0
      %6405 = vmatprep.subr.mxu0 0.0
      %6406 = vmatpush1.msra.mxu0 0.0
      %6407 = vmatprep.subr.mxu0 0.0
      %6408 = vmatpush1.msra.mxu0 0.0
      %6409 = vmatprep.subr.mxu0 0.0
      %6410 = vmatpush1.msra.mxu0 0.0
      %6411 = vmatprep.subr.mxu0 0.0
      %6412 = vmatpush1.msra.mxu0 0.0
      %6413 = vmatprep.subr.mxu0 0.0
      %6414 = vmatpush1.msra.mxu0 0.0
      %6415 = vmatprep.subr.mxu0 0.0
      %6416 = vmatpush1.msra.mxu0 0.0
      %6417 = vmatprep.subr.mxu0 0.0
      %6418 = vmatpush1.msra.mxu0 0.0
      %6419 = vmatprep.subr.mxu0 0.0
      %6420 = vmatpush1.msra.mxu0 0.0
      %6421 = vmatprep.subr.mxu0 0.0
      %6422 = vmatpush1.msra.mxu0 0.0
      %6423 = vmatprep.subr.mxu0 0.0
      %6424 = vmatpush1.msra.mxu0 0.0
      %6425 = vmatprep.subr.mxu0 0.0
      %6426 = vmatpush1.msra.mxu0 0.0
      %6427 = vmatprep.subr.mxu0 0.0
      %6428 = vmatpush1.msra.mxu0 0.0
      %6429 = vmatprep.subr.mxu0 0.0
      %6430 = vmatpush1.msra.mxu0 0.0
      %6431 = vmatprep.subr.mxu0 0.0
      %6432 = vmatpush1.msra.mxu0 0.0
      %6433 = vmatprep.subr.mxu0 0.0
      %6434 = vmatpush1.msra.mxu0 0.0
      %6435 = vmatprep.subr.mxu0 0.0
      %6436 = vmatpush1.msra.mxu0 0.0
      %6437 = vmatprep.subr.mxu0 0.0
      %6438 = vmatpush1.msra.mxu0 0.0
      %6439 = vmatprep.subr.mxu0 0.0
      %6440 = vmatpush1.msra.mxu0 0.0
      %6441 = vmatprep.subr.mxu0 0.0
      %6442 = vmatpush1.msra.mxu0 0.0
      %6443 = vmatprep.subr.mxu0 0.0
      %6444 = vmatpush1.msra.mxu0 0.0
      %6445 = vmatprep.subr.mxu0 0.0
      %6446 = vmatpush1.msra.mxu0 0.0
      %6447 = vmatprep.subr.mxu0 0.0
      %6448 = vmatpush1.msra.mxu0 0.0
      %6449 = vmatprep.mubr.f32.mxu0 0.0
      %v6450 = vand.u32 %v6150, 4294901760
      %v6451 = vsub.f32 %v6150, %v6450
      %6452 = vmatmul.mubr.f32.gmra.mrb[0].mxu0 %v6451
      %v6453 = vpop.f32.mrb[0].mxu0
      %v6454 = vadd.f32 %v6356, %v6453
      %v6455 = vpop.f32.mrb[0].mxu0
      %6456 = vmatprep.mubr.f32.mxu0 0.0
      %v6457 = vand.u32 %v6153, 4294901760
      %v6458 = vsub.f32 %v6153, %v6457
      %6459 = vmatmul.mubr.f32.gmra.mrb[0].mxu0 %v6458
      %v6460 = vpop.f32.mrb[0].mxu0
      %v6461 = vadd.f32 %v6362, %v6460
      %v6462 = vpop.f32.mrb[0].mxu0
      %6463 = vmatprep.mubr.f32.mxu0 0.0
      %v6464 = vand.u32 %v6156, 4294901760
      %v6465 = vsub.f32 %v6156, %v6464
      %6466 = vmatmul.mubr.f32.gmra.mrb[0].mxu0 %v6465
      %v6467 = vpop.f32.mrb[0].mxu0
      %v6468 = vadd.f32 %v6368, %v6467
      %v6469 = vpop.f32.mrb[0].mxu0
      %6470 = vmatprep.mubr.f32.mxu0 0.0
      %v6471 = vand.u32 %v6159, 4294901760
      %v6472 = vsub.f32 %v6159, %v6471
      %6473 = vmatmul.mubr.f32.gmra.mrb[0].mxu0 %v6472
      %v6474 = vpop.f32.mrb[0].mxu0
      %v6475 = vadd.f32 %v6374, %v6474
      %v6476 = vpop.f32.mrb[0].mxu0
      %6477 = vmatprep.mubr.f32.mxu0 0.0
      %v6478 = vand.u32 %v6162, 4294901760
      %v6479 = vsub.f32 %v6162, %v6478
      %6480 = vmatmul.mubr.f32.gmra.mrb[0].mxu0 %v6479
      %v6481 = vpop.f32.mrb[0].mxu0
      %v6482 = vadd.f32 %v6380, %v6481
      %v6483 = vpop.f32.mrb[0].mxu0
      %6484 = vdwg.mxu0
      %6485 = vmatprep.subr.mxu0 0.0
      %v6486 = vand.u32 %v6165, 4294901760
      %6487 = vmatpush1.msra.mxu0 %v6486
      %6488 = vmatprep.subr.mxu0 0.0
      %6489 = vmatpush1.msra.mxu0 0.0
      %6490 = vmatprep.subr.mxu0 0.0
      %6491 = vmatpush1.msra.mxu0 0.0
      %6492 = vmatprep.subr.mxu0 0.0
      %6493 = vmatpush1.msra.mxu0 0.0
      %6494 = vmatprep.subr.mxu0 0.0
      %6495 = vmatpush1.msra.mxu0 0.0
      %6496 = vmatprep.subr.mxu0 0.0
      %6497 = vmatpush1.msra.mxu0 0.0
      %6498 = vmatprep.subr.mxu0 0.0
      %6499 = vmatpush1.msra.mxu0 0.0
      %6500 = vmatprep.subr.mxu0 0.0
      %6501 = vmatpush1.msra.mxu0 0.0
      %6502 = vmatprep.subr.mxu0 0.0
      %6503 = vmatpush1.msra.mxu0 0.0
      %6504 = vmatprep.subr.mxu0 0.0
      %6505 = vmatpush1.msra.mxu0 0.0
      %6506 = vmatprep.subr.mxu0 0.0
      %6507 = vmatpush1.msra.mxu0 0.0
      %6508 = vmatprep.subr.mxu0 0.0
      %6509 = vmatpush1.msra.mxu0 0.0
      %6510 = vmatprep.subr.mxu0 0.0
      %6511 = vmatpush1.msra.mxu0 0.0
      %6512 = vmatprep.subr.mxu0 0.0
      %6513 = vmatpush1.msra.mxu0 0.0
      %6514 = vmatprep.subr.mxu0 0.0
      %6515 = vmatpush1.msra.mxu0 0.0
      %6516 = vmatprep.subr.mxu0 0.0
      %6517 = vmatpush1.msra.mxu0 0.0
      %6518 = vmatprep.subr.mxu0 0.0
      %6519 = vmatpush1.msra.mxu0 0.0
      %6520 = vmatprep.subr.mxu0 0.0
      %6521 = vmatpush1.msra.mxu0 0.0
      %6522 = vmatprep.subr.mxu0 0.0
      %6523 = vmatpush1.msra.mxu0 0.0
      %6524 = vmatprep.subr.mxu0 0.0
      %6525 = vmatpush1.msra.mxu0 0.0
      %6526 = vmatprep.subr.mxu0 0.0
      %6527 = vmatpush1.msra.mxu0 0.0
      %6528 = vmatprep.subr.mxu0 0.0
      %6529 = vmatpush1.msra.mxu0 0.0
      %6530 = vmatprep.subr.mxu0 0.0
      %6531 = vmatpush1.msra.mxu0 0.0
      %6532 = vmatprep.subr.mxu0 0.0
      %6533 = vmatpush1.msra.mxu0 0.0
      %6534 = vmatprep.subr.mxu0 0.0
      %6535 = vmatpush1.msra.mxu0 0.0
      %6536 = vmatprep.subr.mxu0 0.0
      %6537 = vmatpush1.msra.mxu0 0.0
      %6538 = vmatprep.subr.mxu0 0.0
      %6539 = vmatpush1.msra.mxu0 0.0
      %6540 = vmatprep.subr.mxu0 0.0
      %6541 = vmatpush1.msra.mxu0 0.0
      %6542 = vmatprep.subr.mxu0 0.0
      %6543 = vmatpush1.msra.mxu0 0.0
      %6544 = vmatprep.subr.mxu0 0.0
      %6545 = vmatpush1.msra.mxu0 0.0
      %6546 = vmatprep.subr.mxu0 0.0
      %6547 = vmatpush1.msra.mxu0 0.0
      %6548 = vmatprep.subr.mxu0 0.0
      %6549 = vmatpush1.msra.mxu0 0.0
      %6550 = vmatprep.mubr.f32.mxu0 0.0
      %v6551 = vand.u32 %v6150, 4294901760
      %v6552 = vsub.f32 %v6150, %v6551
      %v6553 = vand.u32 %v6552, 4294901760
      %6554 = vmatmul.mubr.f32.gmra.mrb[0].mxu0 %v6553
      %v6555 = vpop.f32.mrb[0].mxu0
      %v6556 = vadd.f32 %v6454, %v6555
      %v6557 = vpop.f32.mrb[0].mxu0
      %6558 = vmatprep.mubr.f32.mxu0 0.0
      %v6559 = vand.u32 %v6153, 4294901760
      %v6560 = vsub.f32 %v6153, %v6559
      %v6561 = vand.u32 %v6560, 4294901760
      %6562 = vmatmul.mubr.f32.gmra.mrb[0].mxu0 %v6561
      %v6563 = vpop.f32.mrb[0].mxu0
      %v6564 = vadd.f32 %v6461, %v6563
      %v6565 = vpop.f32.mrb[0].mxu0
      %6566 = vmatprep.mubr.f32.mxu0 0.0
      %v6567 = vand.u32 %v6156, 4294901760
      %v6568 = vsub.f32 %v6156, %v6567
      %v6569 = vand.u32 %v6568, 4294901760
      %6570 = vmatmul.mubr.f32.gmra.mrb[0].mxu0 %v6569
      %v6571 = vpop.f32.mrb[0].mxu0
      %v6572 = vadd.f32 %v6468, %v6571
      %v6573 = vpop.f32.mrb[0].mxu0
      %6574 = vmatprep.mubr.f32.mxu0 0.0
      %v6575 = vand.u32 %v6159, 4294901760
      %v6576 = vsub.f32 %v6159, %v6575
      %v6577 = vand.u32 %v6576, 4294901760
      %6578 = vmatmul.mubr.f32.gmra.mrb[0].mxu0 %v6577
      %v6579 = vpop.f32.mrb[0].mxu0
      %v6580 = vadd.f32 %v6475, %v6579
      %v6581 = vpop.f32.mrb[0].mxu0
      %6582 = vmatprep.mubr.f32.mxu0 0.0
      %v6583 = vand.u32 %v6162, 4294901760
      %v6584 = vsub.f32 %v6162, %v6583
      %v6585 = vand.u32 %v6584, 4294901760
      %6586 = vmatmul.mubr.f32.gmra.mrb[0].mxu0 %v6585
      %v6587 = vpop.f32.mrb[0].mxu0
      %v6588 = vadd.f32 %v6482, %v6587
      %v6589 = vpop.f32.mrb[0].mxu0
      %6590 = vdwg.mxu0
      %6591 = vmatprep.subr.mxu0 0.0
      %v6592 = vand.u32 %v6165, 4294901760
      %v6593 = vsub.f32 %v6165, %v6592
      %v6594 = vand.u32 %v6593, 4294901760
      %6595 = vmatpush1.msra.mxu0 %v6594
      %6596 = vmatprep.subr.mxu0 0.0
      %6597 = vmatpush1.msra.mxu0 0.0
      %6598 = vmatprep.subr.mxu0 0.0
      %6599 = vmatpush1.msra.mxu0 0.0
      %6600 = vmatprep.subr.mxu0 0.0
      %6601 = vmatpush1.msra.mxu0 0.0
      %6602 = vmatprep.subr.mxu0 0.0
      %6603 = vmatpush1.msra.mxu0 0.0
      %6604 = vmatprep.subr.mxu0 0.0
      %6605 = vmatpush1.msra.mxu0 0.0
      %6606 = vmatprep.subr.mxu0 0.0
      %6607 = vmatpush1.msra.mxu0 0.0
      %6608 = vmatprep.subr.mxu0 0.0
      %6609 = vmatpush1.msra.mxu0 0.0
      %6610 = vmatprep.subr.mxu0 0.0
      %6611 = vmatpush1.msra.mxu0 0.0
      %6612 = vmatprep.subr.mxu0 0.0
      %6613 = vmatpush1.msra.mxu0 0.0
      %6614 = vmatprep.subr.mxu0 0.0
      %6615 = vmatpush1.msra.mxu0 0.0
      %6616 = vmatprep.subr.mxu0 0.0
      %6617 = vmatpush1.msra.mxu0 0.0
      %6618 = vmatprep.subr.mxu0 0.0
      %6619 = vmatpush1.msra.mxu0 0.0
      %6620 = vmatprep.subr.mxu0 0.0
      %6621 = vmatpush1.msra.mxu0 0.0
      %6622 = vmatprep.subr.mxu0 0.0
      %6623 = vmatpush1.msra.mxu0 0.0
      %6624 = vmatprep.subr.mxu0 0.0
      %6625 = vmatpush1.msra.mxu0 0.0
      %6626 = vmatprep.subr.mxu0 0.0
      %6627 = vmatpush1.msra.mxu0 0.0
      %6628 = vmatprep.subr.mxu0 0.0
      %6629 = vmatpush1.msra.mxu0 0.0
      %6630 = vmatprep.subr.mxu0 0.0
      %6631 = vmatpush1.msra.mxu0 0.0
      %6632 = vmatprep.subr.mxu0 0.0
      %6633 = vmatpush1.msra.mxu0 0.0
      %6634 = vmatprep.subr.mxu0 0.0
      %6635 = vmatpush1.msra.mxu0 0.0
      %6636 = vmatprep.subr.mxu0 0.0
      %6637 = vmatpush1.msra.mxu0 0.0
      %6638 = vmatprep.subr.mxu0 0.0
      %6639 = vmatpush1.msra.mxu0 0.0
      %6640 = vmatprep.subr.mxu0 0.0
      %6641 = vmatpush1.msra.mxu0 0.0
      %6642 = vmatprep.subr.mxu0 0.0
      %6643 = vmatpush1.msra.mxu0 0.0
      %6644 = vmatprep.subr.mxu0 0.0
      %6645 = vmatpush1.msra.mxu0 0.0
      %6646 = vmatprep.subr.mxu0 0.0
      %6647 = vmatpush1.msra.mxu0 0.0
      %6648 = vmatprep.subr.mxu0 0.0
      %6649 = vmatpush1.msra.mxu0 0.0
      %6650 = vmatprep.subr.mxu0 0.0
      %6651 = vmatpush1.msra.mxu0 0.0
      %6652 = vmatprep.subr.mxu0 0.0
      %6653 = vmatpush1.msra.mxu0 0.0
      %6654 = vmatprep.subr.mxu0 0.0
      %6655 = vmatpush1.msra.mxu0 0.0
      %6656 = vmatprep.subr.mxu0 0.0
      %6657 = vmatpush1.msra.mxu0 0.0
      %6658 = vmatprep.mubr.f32.mxu0 0.0
      %v6659 = vand.u32 %v6150, 4294901760
      %6660 = vmatmul.mubr.f32.gmra.mrb[0].mxu0 %v6659
      %v6661 = vpop.f32.mrb[0].mxu0
      %v6662 = vadd.f32 %v6556, %v6661
      %v6663 = vpop.f32.mrb[0].mxu0
      %6664 = vmatprep.mubr.f32.mxu0 0.0
      %v6665 = vand.u32 %v6153, 4294901760
      %6666 = vmatmul.mubr.f32.gmra.mrb[0].mxu0 %v6665
      %v6667 = vpop.f32.mrb[0].mxu0
      %v6668 = vadd.f32 %v6564, %v6667
      %v6669 = vpop.f32.mrb[0].mxu0
      %6670 = vmatprep.mubr.f32.mxu0 0.0
      %v6671 = vand.u32 %v6156, 4294901760
      %6672 = vmatmul.mubr.f32.gmra.mrb[0].mxu0 %v6671
      %v6673 = vpop.f32.mrb[0].mxu0
      %v6674 = vadd.f32 %v6572, %v6673
      %v6675 = vpop.f32.mrb[0].mxu0
      %6676 = vmatprep.mubr.f32.mxu0 0.0
      %v6677 = vand.u32 %v6159, 4294901760
      %6678 = vmatmul.mubr.f32.gmra.mrb[0].mxu0 %v6677
      %v6679 = vpop.f32.mrb[0].mxu0
      %v6680 = vadd.f32 %v6580, %v6679
      %v6681 = vpop.f32.mrb[0].mxu0
      %6682 = vmatprep.mubr.f32.mxu0 0.0
      %v6683 = vand.u32 %v6162, 4294901760
      %6684 = vmatmul.mubr.f32.gmra.mrb[0].mxu0 %v6683
      %v6685 = vpop.f32.mrb[0].mxu0
      %v6686 = vadd.f32 %v6588, %v6685
      %v6687 = vpop.f32.mrb[0].mxu0
      %6688 = vdwg.mxu0
      %6689 = vmatprep.subr.mxu0 0.0
      %v6690 = vand.u32 %v6165, 4294901760
      %6691 = vmatpush1.msra.mxu0 %v6690
      %6692 = vmatprep.subr.mxu0 0.0
      %6693 = vmatpush1.msra.mxu0 0.0
      %6694 = vmatprep.subr.mxu0 0.0
      %6695 = vmatpush1.msra.mxu0 0.0
      %6696 = vmatprep.subr.mxu0 0.0
      %6697 = vmatpush1.msra.mxu0 0.0
      %6698 = vmatprep.subr.mxu0 0.0
      %6699 = vmatpush1.msra.mxu0 0.0
      %6700 = vmatprep.subr.mxu0 0.0
      %6701 = vmatpush1.msra.mxu0 0.0
      %6702 = vmatprep.subr.mxu0 0.0
      %6703 = vmatpush1.msra.mxu0 0.0
      %6704 = vmatprep.subr.mxu0 0.0
      %6705 = vmatpush1.msra.mxu0 0.0
      %6706 = vmatprep.subr.mxu0 0.0
      %6707 = vmatpush1.msra.mxu0 0.0
      %6708 = vmatprep.subr.mxu0 0.0
      %6709 = vmatpush1.msra.mxu0 0.0
      %6710 = vmatprep.subr.mxu0 0.0
      %6711 = vmatpush1.msra.mxu0 0.0
      %6712 = vmatprep.subr.mxu0 0.0
      %6713 = vmatpush1.msra.mxu0 0.0
      %6714 = vmatprep.subr.mxu0 0.0
      %6715 = vmatpush1.msra.mxu0 0.0
      %6716 = vmatprep.subr.mxu0 0.0
      %6717 = vmatpush1.msra.mxu0 0.0
      %6718 = vmatprep.subr.mxu0 0.0
      %6719 = vmatpush1.msra.mxu0 0.0
      %6720 = vmatprep.subr.mxu0 0.0
      %6721 = vmatpush1.msra.mxu0 0.0
      %6722 = vmatprep.subr.mxu0 0.0
      %6723 = vmatpush1.msra.mxu0 0.0
      %6724 = vmatprep.subr.mxu0 0.0
      %6725 = vmatpush1.msra.mxu0 0.0
      %6726 = vmatprep.subr.mxu0 0.0
      %6727 = vmatpush1.msra.mxu0 0.0
      %6728 = vmatprep.subr.mxu0 0.0
      %6729 = vmatpush1.msra.mxu0 0.0
      %6730 = vmatprep.subr.mxu0 0.0
      %6731 = vmatpush1.msra.mxu0 0.0
      %6732 = vmatprep.subr.mxu0 0.0
      %6733 = vmatpush1.msra.mxu0 0.0
      %6734 = vmatprep.subr.mxu0 0.0
      %6735 = vmatpush1.msra.mxu0 0.0
      %6736 = vmatprep.subr.mxu0 0.0
      %6737 = vmatpush1.msra.mxu0 0.0
      %6738 = vmatprep.subr.mxu0 0.0
      %6739 = vmatpush1.msra.mxu0 0.0
      %6740 = vmatprep.subr.mxu0 0.0
      %6741 = vmatpush1.msra.mxu0 0.0
      %6742 = vmatprep.subr.mxu0 0.0
      %6743 = vmatpush1.msra.mxu0 0.0
      %6744 = vmatprep.subr.mxu0 0.0
      %6745 = vmatpush1.msra.mxu0 0.0
      %6746 = vmatprep.subr.mxu0 0.0
      %6747 = vmatpush1.msra.mxu0 0.0
      %6748 = vmatprep.subr.mxu0 0.0
      %6749 = vmatpush1.msra.mxu0 0.0
      %6750 = vmatprep.subr.mxu0 0.0
      %6751 = vmatpush1.msra.mxu0 0.0
      %6752 = vmatprep.subr.mxu0 0.0
      %6753 = vmatpush1.msra.mxu0 0.0
      %6754 = vmatprep.mubr.f32.mxu0 0.0
      %v6755 = vand.u32 %v6150, 4294901760
      %6756 = vmatmul.mubr.f32.gmra.mrb[0].mxu0 %v6755
      %v6757 = vpop.f32.mrb[0].mxu0
      %v6758 = vadd.f32 %v6662, %v6757
      %v6759 = vpop.f32.mrb[0].mxu0
      %6760 = vmatprep.mubr.f32.mxu0 0.0
      %v6761 = vand.u32 %v6153, 4294901760
      %6762 = vmatmul.mubr.f32.gmra.mrb[0].mxu0 %v6761
      %v6763 = vpop.f32.mrb[0].mxu0
      %v6764 = vadd.f32 %v6668, %v6763
      %v6765 = vpop.f32.mrb[0].mxu0
      %6766 = vmatprep.mubr.f32.mxu0 0.0
      %v6767 = vand.u32 %v6156, 4294901760
      %6768 = vmatmul.mubr.f32.gmra.mrb[0].mxu0 %v6767
      %v6769 = vpop.f32.mrb[0].mxu0
      %v6770 = vadd.f32 %v6674, %v6769
      %v6771 = vpop.f32.mrb[0].mxu0
      %6772 = vmatprep.mubr.f32.mxu0 0.0
      %v6773 = vand.u32 %v6159, 4294901760
      %6774 = vmatmul.mubr.f32.gmra.mrb[0].mxu0 %v6773
      %v6775 = vpop.f32.mrb[0].mxu0
      %v6776 = vadd.f32 %v6680, %v6775
      %v6777 = vpop.f32.mrb[0].mxu0
      %6778 = vmatprep.mubr.f32.mxu0 0.0
      %v6779 = vand.u32 %v6162, 4294901760
      %6780 = vmatmul.mubr.f32.gmra.mrb[0].mxu0 %v6779
      %v6781 = vpop.f32.mrb[0].mxu0
      %v6782 = vadd.f32 %v6686, %v6781
      %v6783 = vpop.f32.mrb[0].mxu0
      %6784 = vdwg.mxu0
      %v6785 = vmul.f32 %v3553, %v6758
      %v6786 = vmul.f32 %v3560, %v6764
      %v6787 = vmul.f32 %v3567, %v6770
      %v6788 = vmul.f32 %v3574, %v6776
      %v6789 = vmul.f32 %v3581, %v6782
      %v6791 = vsel %vm950, %v6789, 0
      %6793 = vmatprep.subr.mxu0 0.0
      %v6794 = vand.u32 %v6785, 4294901760
      %6795 = vmatpush1.msra.mxu0 %v6794
      %6796 = vmatprep.subr.mxu0 0.0
      %v6797 = vand.u32 %v6786, 4294901760
      %6798 = vmatpush1.msra.mxu0 %v6797
      %6799 = vmatprep.subr.mxu0 0.0
      %v6800 = vand.u32 %v6787, 4294901760
      %6801 = vmatpush1.msra.mxu0 %v6800
      %6802 = vmatprep.subr.mxu0 0.0
      %v6803 = vand.u32 %v6788, 4294901760
      %6804 = vmatpush1.msra.mxu0 %v6803
      %6805 = vmatprep.subr.mxu0 0.0
      %v6806 = vand.u32 %v6791, 4294901760
      %6807 = vmatpush1.msra.mxu0 %v6806
      %6808 = vmatprep.subr.mxu0 0.0
      %6809 = vmatpush1.msra.mxu0 0.0
      %6810 = vmatprep.subr.mxu0 0.0
      %6811 = vmatpush1.msra.mxu0 0.0
      %6812 = vmatprep.subr.mxu0 0.0
      %6813 = vmatpush1.msra.mxu0 0.0
      %6814 = vmatprep.subr.mxu0 0.0
      %6815 = vmatpush1.msra.mxu0 0.0
      %6816 = vmatprep.subr.mxu0 0.0
      %6817 = vmatpush1.msra.mxu0 0.0
      %6818 = vmatprep.subr.mxu0 0.0
      %6819 = vmatpush1.msra.mxu0 0.0
      %6820 = vmatprep.subr.mxu0 0.0
      %6821 = vmatpush1.msra.mxu0 0.0
      %6822 = vmatprep.subr.mxu0 0.0
      %6823 = vmatpush1.msra.mxu0 0.0
      %6824 = vmatprep.subr.mxu0 0.0
      %6825 = vmatpush1.msra.mxu0 0.0
      %6826 = vmatprep.subr.mxu0 0.0
      %6827 = vmatpush1.msra.mxu0 0.0
      %6828 = vmatprep.subr.mxu0 0.0
      %6829 = vmatpush1.msra.mxu0 0.0
      %6830 = vmatprep.subr.mxu0 0.0
      %6831 = vmatpush1.msra.mxu0 0.0
      %6832 = vmatprep.subr.mxu0 0.0
      %6833 = vmatpush1.msra.mxu0 0.0
      %6834 = vmatprep.subr.mxu0 0.0
      %6835 = vmatpush1.msra.mxu0 0.0
      %6836 = vmatprep.subr.mxu0 0.0
      %6837 = vmatpush1.msra.mxu0 0.0
      %6838 = vmatprep.subr.mxu0 0.0
      %6839 = vmatpush1.msra.mxu0 0.0
      %6840 = vmatprep.subr.mxu0 0.0
      %6841 = vmatpush1.msra.mxu0 0.0
      %6842 = vmatprep.subr.mxu0 0.0
      %6843 = vmatpush1.msra.mxu0 0.0
      %6844 = vmatprep.subr.mxu0 0.0
      %6845 = vmatpush1.msra.mxu0 0.0
      %6846 = vmatprep.subr.mxu0 0.0
      %6847 = vmatpush1.msra.mxu0 0.0
      %6848 = vmatprep.subr.mxu0 0.0
      %6849 = vmatpush1.msra.mxu0 0.0
      %6850 = vmatprep.subr.mxu0 0.0
      %6851 = vmatpush1.msra.mxu0 0.0
      %6852 = vmatprep.subr.mxu0 0.0
      %6853 = vmatpush1.msra.mxu0 0.0
      %6854 = vmatprep.subr.mxu0 0.0
      %6855 = vmatpush1.msra.mxu0 0.0
      %6856 = vmatprep.subr.mxu0 0.0
      %6857 = vmatpush1.msra.mxu0 0.0
      %6858 = vmatprep.subr.mxu0 0.0
      %6859 = vmatpush1.msra.mxu0 0.0
      %6860 = vmatprep.subr.mxu0 0.0
      %6861 = vmatpush1.msra.mxu0 0.0
      %6862 = vmatprep.mubr.f32.mxu0 0.0
      %v6863 = vand.u32 %v4949, 4294901760
      %v6864 = vsub.f32 %v4949, %v6863
      %v6865 = vand.u32 %v6864, 4294901760
      %v6866 = vsub.f32 %v6864, %v6865
      %v6867 = vand.u32 %v6866, 4294901760
      %6868 = vmatmul.mubr.f32.gmra.mrb[0].mxu0 %v6867
      %v6869 = vpop.f32.mrb[0].mxu0
      %v6870 = vadd.f32 0.0, %v6869
      %v6871 = vpop.f32.mrb[0].mxu0
      %6872 = vmatprep.mubr.f32.mxu0 0.0
      %v6873 = vand.u32 %v4951, 4294901760
      %v6874 = vsub.f32 %v4951, %v6873
      %v6875 = vand.u32 %v6874, 4294901760
      %v6876 = vsub.f32 %v6874, %v6875
      %v6877 = vand.u32 %v6876, 4294901760
      %6878 = vmatmul.mubr.f32.gmra.mrb[0].mxu0 %v6877
      %v6879 = vpop.f32.mrb[0].mxu0
      %v6880 = vadd.f32 0.0, %v6879
      %v6881 = vpop.f32.mrb[0].mxu0
      %6882 = vdwg.mxu0
      %6883 = vmatprep.subr.mxu0 0.0
      %v6884 = vand.u32 %v6785, 4294901760
      %v6885 = vsub.f32 %v6785, %v6884
      %v6886 = vand.u32 %v6885, 4294901760
      %v6887 = vsub.f32 %v6885, %v6886
      %v6888 = vand.u32 %v6887, 4294901760
      %6889 = vmatpush1.msra.mxu0 %v6888
      %6890 = vmatprep.subr.mxu0 0.0
      %v6891 = vand.u32 %v6786, 4294901760
      %v6892 = vsub.f32 %v6786, %v6891
      %v6893 = vand.u32 %v6892, 4294901760
      %v6894 = vsub.f32 %v6892, %v6893
      %v6895 = vand.u32 %v6894, 4294901760
      %6896 = vmatpush1.msra.mxu0 %v6895
      %6897 = vmatprep.subr.mxu0 0.0
      %v6898 = vand.u32 %v6787, 4294901760
      %v6899 = vsub.f32 %v6787, %v6898
      %v6900 = vand.u32 %v6899, 4294901760
      %v6901 = vsub.f32 %v6899, %v6900
      %v6902 = vand.u32 %v6901, 4294901760
      %6903 = vmatpush1.msra.mxu0 %v6902
      %6904 = vmatprep.subr.mxu0 0.0
      %v6905 = vand.u32 %v6788, 4294901760
      %v6906 = vsub.f32 %v6788, %v6905
      %v6907 = vand.u32 %v6906, 4294901760
      %v6908 = vsub.f32 %v6906, %v6907
      %v6909 = vand.u32 %v6908, 4294901760
      %6910 = vmatpush1.msra.mxu0 %v6909
      %6911 = vmatprep.subr.mxu0 0.0
      %v6912 = vand.u32 %v6791, 4294901760
      %v6913 = vsub.f32 %v6791, %v6912
      %v6914 = vand.u32 %v6913, 4294901760
      %v6915 = vsub.f32 %v6913, %v6914
      %v6916 = vand.u32 %v6915, 4294901760
      %6917 = vmatpush1.msra.mxu0 %v6916
      %6918 = vmatprep.subr.mxu0 0.0
      %6919 = vmatpush1.msra.mxu0 0.0
      %6920 = vmatprep.subr.mxu0 0.0
      %6921 = vmatpush1.msra.mxu0 0.0
      %6922 = vmatprep.subr.mxu0 0.0
      %6923 = vmatpush1.msra.mxu0 0.0
      %6924 = vmatprep.subr.mxu0 0.0
      %6925 = vmatpush1.msra.mxu0 0.0
      %6926 = vmatprep.subr.mxu0 0.0
      %6927 = vmatpush1.msra.mxu0 0.0
      %6928 = vmatprep.subr.mxu0 0.0
      %6929 = vmatpush1.msra.mxu0 0.0
      %6930 = vmatprep.subr.mxu0 0.0
      %6931 = vmatpush1.msra.mxu0 0.0
      %6932 = vmatprep.subr.mxu0 0.0
      %6933 = vmatpush1.msra.mxu0 0.0
      %6934 = vmatprep.subr.mxu0 0.0
      %6935 = vmatpush1.msra.mxu0 0.0
      %6936 = vmatprep.subr.mxu0 0.0
      %6937 = vmatpush1.msra.mxu0 0.0
      %6938 = vmatprep.subr.mxu0 0.0
      %6939 = vmatpush1.msra.mxu0 0.0
      %6940 = vmatprep.subr.mxu0 0.0
      %6941 = vmatpush1.msra.mxu0 0.0
      %6942 = vmatprep.subr.mxu0 0.0
      %6943 = vmatpush1.msra.mxu0 0.0
      %6944 = vmatprep.subr.mxu0 0.0
      %6945 = vmatpush1.msra.mxu0 0.0
      %6946 = vmatprep.subr.mxu0 0.0
      %6947 = vmatpush1.msra.mxu0 0.0
      %6948 = vmatprep.subr.mxu0 0.0
      %6949 = vmatpush1.msra.mxu0 0.0
      %6950 = vmatprep.subr.mxu0 0.0
      %6951 = vmatpush1.msra.mxu0 0.0
      %6952 = vmatprep.subr.mxu0 0.0
      %6953 = vmatpush1.msra.mxu0 0.0
      %6954 = vmatprep.subr.mxu0 0.0
      %6955 = vmatpush1.msra.mxu0 0.0
      %6956 = vmatprep.subr.mxu0 0.0
      %6957 = vmatpush1.msra.mxu0 0.0
      %6958 = vmatprep.subr.mxu0 0.0
      %6959 = vmatpush1.msra.mxu0 0.0
      %6960 = vmatprep.subr.mxu0 0.0
      %6961 = vmatpush1.msra.mxu0 0.0
      %6962 = vmatprep.subr.mxu0 0.0
      %6963 = vmatpush1.msra.mxu0 0.0
      %6964 = vmatprep.subr.mxu0 0.0
      %6965 = vmatpush1.msra.mxu0 0.0
      %6966 = vmatprep.subr.mxu0 0.0
      %6967 = vmatpush1.msra.mxu0 0.0
      %6968 = vmatprep.subr.mxu0 0.0
      %6969 = vmatpush1.msra.mxu0 0.0
      %6970 = vmatprep.subr.mxu0 0.0
      %6971 = vmatpush1.msra.mxu0 0.0
      %6972 = vmatprep.mubr.f32.mxu0 0.0
      %v6973 = vand.u32 %v4949, 4294901760
      %6974 = vmatmul.mubr.f32.gmra.mrb[0].mxu0 %v6973
      %v6975 = vpop.f32.mrb[0].mxu0
      %v6976 = vadd.f32 %v6870, %v6975
      %v6977 = vpop.f32.mrb[0].mxu0
      %6978 = vmatprep.mubr.f32.mxu0 0.0
      %v6979 = vand.u32 %v4951, 4294901760
      %6980 = vmatmul.mubr.f32.gmra.mrb[0].mxu0 %v6979
      %v6981 = vpop.f32.mrb[0].mxu0
      %v6982 = vadd.f32 %v6880, %v6981
      %v6983 = vpop.f32.mrb[0].mxu0
      %6984 = vdwg.mxu0
      %6985 = vmatprep.subr.mxu0 0.0
      %v6986 = vand.u32 %v6785, 4294901760
      %v6987 = vsub.f32 %v6785, %v6986
      %6988 = vmatpush1.msra.mxu0 %v6987
      %6989 = vmatprep.subr.mxu0 0.0
      %v6990 = vand.u32 %v6786, 4294901760
      %v6991 = vsub.f32 %v6786, %v6990
      %6992 = vmatpush1.msra.mxu0 %v6991
      %6993 = vmatprep.subr.mxu0 0.0
      %v6994 = vand.u32 %v6787, 4294901760
      %v6995 = vsub.f32 %v6787, %v6994
      %6996 = vmatpush1.msra.mxu0 %v6995
      %6997 = vmatprep.subr.mxu0 0.0
      %v6998 = vand.u32 %v6788, 4294901760
      %v6999 = vsub.f32 %v6788, %v6998
      %7000 = vmatpush1.msra.mxu0 %v6999
      %7001 = vmatprep.subr.mxu0 0.0
      %v7002 = vand.u32 %v6791, 4294901760
      %v7003 = vsub.f32 %v6791, %v7002
      %7004 = vmatpush1.msra.mxu0 %v7003
      %7005 = vmatprep.subr.mxu0 0.0
      %7006 = vmatpush1.msra.mxu0 0.0
      %7007 = vmatprep.subr.mxu0 0.0
      %7008 = vmatpush1.msra.mxu0 0.0
      %7009 = vmatprep.subr.mxu0 0.0
      %7010 = vmatpush1.msra.mxu0 0.0
      %7011 = vmatprep.subr.mxu0 0.0
      %7012 = vmatpush1.msra.mxu0 0.0
      %7013 = vmatprep.subr.mxu0 0.0
      %7014 = vmatpush1.msra.mxu0 0.0
      %7015 = vmatprep.subr.mxu0 0.0
      %7016 = vmatpush1.msra.mxu0 0.0
      %7017 = vmatprep.subr.mxu0 0.0
      %7018 = vmatpush1.msra.mxu0 0.0
      %7019 = vmatprep.subr.mxu0 0.0
      %7020 = vmatpush1.msra.mxu0 0.0
      %7021 = vmatprep.subr.mxu0 0.0
      %7022 = vmatpush1.msra.mxu0 0.0
      %7023 = vmatprep.subr.mxu0 0.0
      %7024 = vmatpush1.msra.mxu0 0.0
      %7025 = vmatprep.subr.mxu0 0.0
      %7026 = vmatpush1.msra.mxu0 0.0
      %7027 = vmatprep.subr.mxu0 0.0
      %7028 = vmatpush1.msra.mxu0 0.0
      %7029 = vmatprep.subr.mxu0 0.0
      %7030 = vmatpush1.msra.mxu0 0.0
      %7031 = vmatprep.subr.mxu0 0.0
      %7032 = vmatpush1.msra.mxu0 0.0
      %7033 = vmatprep.subr.mxu0 0.0
      %7034 = vmatpush1.msra.mxu0 0.0
      %7035 = vmatprep.subr.mxu0 0.0
      %7036 = vmatpush1.msra.mxu0 0.0
      %7037 = vmatprep.subr.mxu0 0.0
      %7038 = vmatpush1.msra.mxu0 0.0
      %7039 = vmatprep.subr.mxu0 0.0
      %7040 = vmatpush1.msra.mxu0 0.0
      %7041 = vmatprep.subr.mxu0 0.0
      %7042 = vmatpush1.msra.mxu0 0.0
      %7043 = vmatprep.subr.mxu0 0.0
      %7044 = vmatpush1.msra.mxu0 0.0
      %7045 = vmatprep.subr.mxu0 0.0
      %7046 = vmatpush1.msra.mxu0 0.0
      %7047 = vmatprep.subr.mxu0 0.0
      %7048 = vmatpush1.msra.mxu0 0.0
      %7049 = vmatprep.subr.mxu0 0.0
      %7050 = vmatpush1.msra.mxu0 0.0
      %7051 = vmatprep.subr.mxu0 0.0
      %7052 = vmatpush1.msra.mxu0 0.0
      %7053 = vmatprep.subr.mxu0 0.0
      %7054 = vmatpush1.msra.mxu0 0.0
      %7055 = vmatprep.subr.mxu0 0.0
      %7056 = vmatpush1.msra.mxu0 0.0
      %7057 = vmatprep.subr.mxu0 0.0
      %7058 = vmatpush1.msra.mxu0 0.0
      %7059 = vmatprep.mubr.f32.mxu0 0.0
      %v7060 = vand.u32 %v4949, 4294901760
      %v7061 = vsub.f32 %v4949, %v7060
      %7062 = vmatmul.mubr.f32.gmra.mrb[0].mxu0 %v7061
      %v7063 = vpop.f32.mrb[0].mxu0
      %v7064 = vadd.f32 %v6976, %v7063
      %v7065 = vpop.f32.mrb[0].mxu0
      %7066 = vmatprep.mubr.f32.mxu0 0.0
      %v7067 = vand.u32 %v4951, 4294901760
      %v7068 = vsub.f32 %v4951, %v7067
      %7069 = vmatmul.mubr.f32.gmra.mrb[0].mxu0 %v7068
      %v7070 = vpop.f32.mrb[0].mxu0
      %v7071 = vadd.f32 %v6982, %v7070
      %v7072 = vpop.f32.mrb[0].mxu0
      %7073 = vdwg.mxu0
      %7074 = vmatprep.subr.mxu0 0.0
      %v7075 = vand.u32 %v6785, 4294901760
      %7076 = vmatpush1.msra.mxu0 %v7075
      %7077 = vmatprep.subr.mxu0 0.0
      %v7078 = vand.u32 %v6786, 4294901760
      %7079 = vmatpush1.msra.mxu0 %v7078
      %7080 = vmatprep.subr.mxu0 0.0
      %v7081 = vand.u32 %v6787, 4294901760
      %7082 = vmatpush1.msra.mxu0 %v7081
      %7083 = vmatprep.subr.mxu0 0.0
      %v7084 = vand.u32 %v6788, 4294901760
      %7085 = vmatpush1.msra.mxu0 %v7084
      %7086 = vmatprep.subr.mxu0 0.0
      %v7087 = vand.u32 %v6791, 4294901760
      %7088 = vmatpush1.msra.mxu0 %v7087
      %7089 = vmatprep.subr.mxu0 0.0
      %7090 = vmatpush1.msra.mxu0 0.0
      %7091 = vmatprep.subr.mxu0 0.0
      %7092 = vmatpush1.msra.mxu0 0.0
      %7093 = vmatprep.subr.mxu0 0.0
      %7094 = vmatpush1.msra.mxu0 0.0
      %7095 = vmatprep.subr.mxu0 0.0
      %7096 = vmatpush1.msra.mxu0 0.0
      %7097 = vmatprep.subr.mxu0 0.0
      %7098 = vmatpush1.msra.mxu0 0.0
      %7099 = vmatprep.subr.mxu0 0.0
      %7100 = vmatpush1.msra.mxu0 0.0
      %7101 = vmatprep.subr.mxu0 0.0
      %7102 = vmatpush1.msra.mxu0 0.0
      %7103 = vmatprep.subr.mxu0 0.0
      %7104 = vmatpush1.msra.mxu0 0.0
      %7105 = vmatprep.subr.mxu0 0.0
      %7106 = vmatpush1.msra.mxu0 0.0
      %7107 = vmatprep.subr.mxu0 0.0
      %7108 = vmatpush1.msra.mxu0 0.0
      %7109 = vmatprep.subr.mxu0 0.0
      %7110 = vmatpush1.msra.mxu0 0.0
      %7111 = vmatprep.subr.mxu0 0.0
      %7112 = vmatpush1.msra.mxu0 0.0
      %7113 = vmatprep.subr.mxu0 0.0
      %7114 = vmatpush1.msra.mxu0 0.0
      %7115 = vmatprep.subr.mxu0 0.0
      %7116 = vmatpush1.msra.mxu0 0.0
      %7117 = vmatprep.subr.mxu0 0.0
      %7118 = vmatpush1.msra.mxu0 0.0
      %7119 = vmatprep.subr.mxu0 0.0
      %7120 = vmatpush1.msra.mxu0 0.0
      %7121 = vmatprep.subr.mxu0 0.0
      %7122 = vmatpush1.msra.mxu0 0.0
      %7123 = vmatprep.subr.mxu0 0.0
      %7124 = vmatpush1.msra.mxu0 0.0
      %7125 = vmatprep.subr.mxu0 0.0
      %7126 = vmatpush1.msra.mxu0 0.0
      %7127 = vmatprep.subr.mxu0 0.0
      %7128 = vmatpush1.msra.mxu0 0.0
      %7129 = vmatprep.subr.mxu0 0.0
      %7130 = vmatpush1.msra.mxu0 0.0
      %7131 = vmatprep.subr.mxu0 0.0
      %7132 = vmatpush1.msra.mxu0 0.0
      %7133 = vmatprep.subr.mxu0 0.0
      %7134 = vmatpush1.msra.mxu0 0.0
      %7135 = vmatprep.subr.mxu0 0.0
      %7136 = vmatpush1.msra.mxu0 0.0
      %7137 = vmatprep.subr.mxu0 0.0
      %7138 = vmatpush1.msra.mxu0 0.0
      %7139 = vmatprep.subr.mxu0 0.0
      %7140 = vmatpush1.msra.mxu0 0.0
      %7141 = vmatprep.subr.mxu0 0.0
      %7142 = vmatpush1.msra.mxu0 0.0
      %7143 = vmatprep.mubr.f32.mxu0 0.0
      %v7144 = vand.u32 %v4949, 4294901760
      %v7145 = vsub.f32 %v4949, %v7144
      %v7146 = vand.u32 %v7145, 4294901760
      %7147 = vmatmul.mubr.f32.gmra.mrb[0].mxu0 %v7146
      %v7148 = vpop.f32.mrb[0].mxu0
      %v7149 = vadd.f32 %v7064, %v7148
      %v7150 = vpop.f32.mrb[0].mxu0
      %7151 = vmatprep.mubr.f32.mxu0 0.0
      %v7152 = vand.u32 %v4951, 4294901760
      %v7153 = vsub.f32 %v4951, %v7152
      %v7154 = vand.u32 %v7153, 4294901760
      %7155 = vmatmul.mubr.f32.gmra.mrb[0].mxu0 %v7154
      %v7156 = vpop.f32.mrb[0].mxu0
      %v7157 = vadd.f32 %v7071, %v7156
      %v7158 = vpop.f32.mrb[0].mxu0
      %7159 = vdwg.mxu0
      %7160 = vmatprep.subr.mxu0 0.0
      %v7161 = vand.u32 %v6785, 4294901760
      %v7162 = vsub.f32 %v6785, %v7161
      %v7163 = vand.u32 %v7162, 4294901760
      %7164 = vmatpush1.msra.mxu0 %v7163
      %7165 = vmatprep.subr.mxu0 0.0
      %v7166 = vand.u32 %v6786, 4294901760
      %v7167 = vsub.f32 %v6786, %v7166
      %v7168 = vand.u32 %v7167, 4294901760
      %7169 = vmatpush1.msra.mxu0 %v7168
      %7170 = vmatprep.subr.mxu0 0.0
      %v7171 = vand.u32 %v6787, 4294901760
      %v7172 = vsub.f32 %v6787, %v7171
      %v7173 = vand.u32 %v7172, 4294901760
      %7174 = vmatpush1.msra.mxu0 %v7173
      %7175 = vmatprep.subr.mxu0 0.0
      %v7176 = vand.u32 %v6788, 4294901760
      %v7177 = vsub.f32 %v6788, %v7176
      %v7178 = vand.u32 %v7177, 4294901760
      %7179 = vmatpush1.msra.mxu0 %v7178
      %7180 = vmatprep.subr.mxu0 0.0
      %v7181 = vand.u32 %v6791, 4294901760
      %v7182 = vsub.f32 %v6791, %v7181
      %v7183 = vand.u32 %v7182, 4294901760
      %7184 = vmatpush1.msra.mxu0 %v7183
      %7185 = vmatprep.subr.mxu0 0.0
      %7186 = vmatpush1.msra.mxu0 0.0
      %7187 = vmatprep.subr.mxu0 0.0
      %7188 = vmatpush1.msra.mxu0 0.0
      %7189 = vmatprep.subr.mxu0 0.0
      %7190 = vmatpush1.msra.mxu0 0.0
      %7191 = vmatprep.subr.mxu0 0.0
      %7192 = vmatpush1.msra.mxu0 0.0
      %7193 = vmatprep.subr.mxu0 0.0
      %7194 = vmatpush1.msra.mxu0 0.0
      %7195 = vmatprep.subr.mxu0 0.0
      %7196 = vmatpush1.msra.mxu0 0.0
      %7197 = vmatprep.subr.mxu0 0.0
      %7198 = vmatpush1.msra.mxu0 0.0
      %7199 = vmatprep.subr.mxu0 0.0
      %7200 = vmatpush1.msra.mxu0 0.0
      %7201 = vmatprep.subr.mxu0 0.0
      %7202 = vmatpush1.msra.mxu0 0.0
      %7203 = vmatprep.subr.mxu0 0.0
      %7204 = vmatpush1.msra.mxu0 0.0
      %7205 = vmatprep.subr.mxu0 0.0
      %7206 = vmatpush1.msra.mxu0 0.0
      %7207 = vmatprep.subr.mxu0 0.0
      %7208 = vmatpush1.msra.mxu0 0.0
      %7209 = vmatprep.subr.mxu0 0.0
      %7210 = vmatpush1.msra.mxu0 0.0
      %7211 = vmatprep.subr.mxu0 0.0
      %7212 = vmatpush1.msra.mxu0 0.0
      %7213 = vmatprep.subr.mxu0 0.0
      %7214 = vmatpush1.msra.mxu0 0.0
      %7215 = vmatprep.subr.mxu0 0.0
      %7216 = vmatpush1.msra.mxu0 0.0
      %7217 = vmatprep.subr.mxu0 0.0
      %7218 = vmatpush1.msra.mxu0 0.0
      %7219 = vmatprep.subr.mxu0 0.0
      %7220 = vmatpush1.msra.mxu0 0.0
      %7221 = vmatprep.subr.mxu0 0.0
      %7222 = vmatpush1.msra.mxu0 0.0
      %7223 = vmatprep.subr.mxu0 0.0
      %7224 = vmatpush1.msra.mxu0 0.0
      %7225 = vmatprep.subr.mxu0 0.0
      %7226 = vmatpush1.msra.mxu0 0.0
      %7227 = vmatprep.subr.mxu0 0.0
      %7228 = vmatpush1.msra.mxu0 0.0
      %7229 = vmatprep.subr.mxu0 0.0
      %7230 = vmatpush1.msra.mxu0 0.0
      %7231 = vmatprep.subr.mxu0 0.0
      %7232 = vmatpush1.msra.mxu0 0.0
      %7233 = vmatprep.subr.mxu0 0.0
      %7234 = vmatpush1.msra.mxu0 0.0
      %7235 = vmatprep.subr.mxu0 0.0
      %7236 = vmatpush1.msra.mxu0 0.0
      %7237 = vmatprep.subr.mxu0 0.0
      %7238 = vmatpush1.msra.mxu0 0.0
      %7239 = vmatprep.mubr.f32.mxu0 0.0
      %v7240 = vand.u32 %v4949, 4294901760
      %7241 = vmatmul.mubr.f32.gmra.mrb[0].mxu0 %v7240
      %v7242 = vpop.f32.mrb[0].mxu0
      %v7243 = vadd.f32 %v7149, %v7242
      %v7244 = vpop.f32.mrb[0].mxu0
      %7245 = vmatprep.mubr.f32.mxu0 0.0
      %v7246 = vand.u32 %v4951, 4294901760
      %7247 = vmatmul.mubr.f32.gmra.mrb[0].mxu0 %v7246
      %v7248 = vpop.f32.mrb[0].mxu0
      %v7249 = vadd.f32 %v7157, %v7248
      %v7250 = vpop.f32.mrb[0].mxu0
      %7251 = vdwg.mxu0
      %7252 = vmatprep.subr.mxu0 0.0
      %v7253 = vand.u32 %v6785, 4294901760
      %7254 = vmatpush1.msra.mxu0 %v7253
      %7255 = vmatprep.subr.mxu0 0.0
      %v7256 = vand.u32 %v6786, 4294901760
      %7257 = vmatpush1.msra.mxu0 %v7256
      %7258 = vmatprep.subr.mxu0 0.0
      %v7259 = vand.u32 %v6787, 4294901760
      %7260 = vmatpush1.msra.mxu0 %v7259
      %7261 = vmatprep.subr.mxu0 0.0
      %v7262 = vand.u32 %v6788, 4294901760
      %7263 = vmatpush1.msra.mxu0 %v7262
      %7264 = vmatprep.subr.mxu0 0.0
      %v7265 = vand.u32 %v6791, 4294901760
      %7266 = vmatpush1.msra.mxu0 %v7265
      %7267 = vmatprep.subr.mxu0 0.0
      %7268 = vmatpush1.msra.mxu0 0.0
      %7269 = vmatprep.subr.mxu0 0.0
      %7270 = vmatpush1.msra.mxu0 0.0
      %7271 = vmatprep.subr.mxu0 0.0
      %7272 = vmatpush1.msra.mxu0 0.0
      %7273 = vmatprep.subr.mxu0 0.0
      %7274 = vmatpush1.msra.mxu0 0.0
      %7275 = vmatprep.subr.mxu0 0.0
      %7276 = vmatpush1.msra.mxu0 0.0
      %7277 = vmatprep.subr.mxu0 0.0
      %7278 = vmatpush1.msra.mxu0 0.0
      %7279 = vmatprep.subr.mxu0 0.0
      %7280 = vmatpush1.msra.mxu0 0.0
      %7281 = vmatprep.subr.mxu0 0.0
      %7282 = vmatpush1.msra.mxu0 0.0
      %7283 = vmatprep.subr.mxu0 0.0
      %7284 = vmatpush1.msra.mxu0 0.0
      %7285 = vmatprep.subr.mxu0 0.0
      %7286 = vmatpush1.msra.mxu0 0.0
      %7287 = vmatprep.subr.mxu0 0.0
      %7288 = vmatpush1.msra.mxu0 0.0
      %7289 = vmatprep.subr.mxu0 0.0
      %7290 = vmatpush1.msra.mxu0 0.0
      %7291 = vmatprep.subr.mxu0 0.0
      %7292 = vmatpush1.msra.mxu0 0.0
      %7293 = vmatprep.subr.mxu0 0.0
      %7294 = vmatpush1.msra.mxu0 0.0
      %7295 = vmatprep.subr.mxu0 0.0
      %7296 = vmatpush1.msra.mxu0 0.0
      %7297 = vmatprep.subr.mxu0 0.0
      %7298 = vmatpush1.msra.mxu0 0.0
      %7299 = vmatprep.subr.mxu0 0.0
      %7300 = vmatpush1.msra.mxu0 0.0
      %7301 = vmatprep.subr.mxu0 0.0
      %7302 = vmatpush1.msra.mxu0 0.0
      %7303 = vmatprep.subr.mxu0 0.0
      %7304 = vmatpush1.msra.mxu0 0.0
      %7305 = vmatprep.subr.mxu0 0.0
      %7306 = vmatpush1.msra.mxu0 0.0
      %7307 = vmatprep.subr.mxu0 0.0
      %7308 = vmatpush1.msra.mxu0 0.0
      %7309 = vmatprep.subr.mxu0 0.0
      %7310 = vmatpush1.msra.mxu0 0.0
      %7311 = vmatprep.subr.mxu0 0.0
      %7312 = vmatpush1.msra.mxu0 0.0
      %7313 = vmatprep.subr.mxu0 0.0
      %7314 = vmatpush1.msra.mxu0 0.0
      %7315 = vmatprep.subr.mxu0 0.0
      %7316 = vmatpush1.msra.mxu0 0.0
      %7317 = vmatprep.subr.mxu0 0.0
      %7318 = vmatpush1.msra.mxu0 0.0
      %7319 = vmatprep.subr.mxu0 0.0
      %7320 = vmatpush1.msra.mxu0 0.0
      %7321 = vmatprep.mubr.f32.mxu0 0.0
      %v7322 = vand.u32 %v4949, 4294901760
      %7323 = vmatmul.mubr.f32.gmra.mrb[0].mxu0 %v7322
      %v7324 = vpop.f32.mrb[0].mxu0
      %v7325 = vadd.f32 %v7243, %v7324
      %v7326 = vpop.f32.mrb[0].mxu0
      %7327 = vmatprep.mubr.f32.mxu0 0.0
      %v7328 = vand.u32 %v4951, 4294901760
      %7329 = vmatmul.mubr.f32.gmra.mrb[0].mxu0 %v7328
      %v7330 = vpop.f32.mrb[0].mxu0
      %v7331 = vadd.f32 %v7249, %v7330
      %v7332 = vpop.f32.mrb[0].mxu0
      %7333 = vdwg.mxu0
      %v7334 = vld [vmem:[%s6] sm:$0xff]
      %v7335 = vld [vmem:[%s6 + $0x8] sm:$0xff]
      %v7336 = vld [vmem:[%s6 + $0x10] sm:$0xff]
      %v7337 = vld [vmem:[%s6 + $0x18] sm:$0xff]
      %v7338 = vld [vmem:[%s6 + $0x20] sm:$0xff]
      %v7339 = vld [vmem:[%s6 + $0x28] sm:$0xff]
      %v7340 = vld [vmem:[%s6 + $0x30] sm:$0xff]
      %v7341 = vld [vmem:[%s6 + $0x38] sm:$0xff]
      %v7342 = vld [vmem:[%s6 + $0x40] sm:$0xff]
      %v7343 = vld [vmem:[%s6 + $0x48] sm:$0xff]
      %v7344 = vld [vmem:[%s6 + $0x50] sm:$0xff]
      %v7345 = vld [vmem:[%s6 + $0x58] sm:$0xff]
      %v7346 = vld [vmem:[%s6 + $0x60] sm:$0xff]
      %v7347 = vld [vmem:[%s6 + $0x68] sm:$0xff]
      %v7348 = vld [vmem:[%s6 + $0x70] sm:$0xff]
      %v7349 = vld [vmem:[%s6 + $0x78] sm:$0xff]
      %7350 = vrot.lane.b32.xlu0 %v1589, 120
      %v7351 = vpop.permute.xlu0 %7350
      %7353 = vmatprep.subr.mxu0 0.0
      %v7354 = vand.u32 %v7334, 4294901760
      %7355 = vmatpush1.msra.mxu0 %v7354
      %7356 = vmatprep.subr.mxu0 0.0
      %v7357 = vand.u32 %v7335, 4294901760
      %7358 = vmatpush1.msra.mxu0 %v7357
      %7359 = vmatprep.subr.mxu0 0.0
      %v7360 = vand.u32 %v7336, 4294901760
      %7361 = vmatpush1.msra.mxu0 %v7360
      %7362 = vmatprep.subr.mxu0 0.0
      %v7363 = vand.u32 %v7337, 4294901760
      %7364 = vmatpush1.msra.mxu0 %v7363
      %7365 = vmatprep.subr.mxu0 0.0
      %v7366 = vand.u32 %v7338, 4294901760
      %7367 = vmatpush1.msra.mxu0 %v7366
      %7368 = vmatprep.subr.mxu0 0.0
      %v7369 = vand.u32 %v7339, 4294901760
      %7370 = vmatpush1.msra.mxu0 %v7369
      %7371 = vmatprep.subr.mxu0 0.0
      %v7372 = vand.u32 %v7340, 4294901760
      %7373 = vmatpush1.msra.mxu0 %v7372
      %7374 = vmatprep.subr.mxu0 0.0
      %v7375 = vand.u32 %v7341, 4294901760
      %7376 = vmatpush1.msra.mxu0 %v7375
      %7377 = vmatprep.subr.mxu0 0.0
      %v7378 = vand.u32 %v7342, 4294901760
      %7379 = vmatpush1.msra.mxu0 %v7378
      %7380 = vmatprep.subr.mxu0 0.0
      %v7381 = vand.u32 %v7343, 4294901760
      %7382 = vmatpush1.msra.mxu0 %v7381
      %7383 = vmatprep.subr.mxu0 0.0
      %v7384 = vand.u32 %v7344, 4294901760
      %7385 = vmatpush1.msra.mxu0 %v7384
      %7386 = vmatprep.subr.mxu0 0.0
      %v7387 = vand.u32 %v7345, 4294901760
      %7388 = vmatpush1.msra.mxu0 %v7387
      %7389 = vmatprep.subr.mxu0 0.0
      %v7390 = vand.u32 %v7346, 4294901760
      %7391 = vmatpush1.msra.mxu0 %v7390
      %7392 = vmatprep.subr.mxu0 0.0
      %v7393 = vand.u32 %v7347, 4294901760
      %7394 = vmatpush1.msra.mxu0 %v7393
      %7395 = vmatprep.subr.mxu0 0.0
      %v7396 = vand.u32 %v7348, 4294901760
      %7397 = vmatpush1.msra.mxu0 %v7396
      %7398 = vmatprep.subr.mxu0 0.0
      %v7399 = vand.u32 %v7349, 4294901760
      %7400 = vmatpush1.msra.mxu0 %v7399
      %7401 = vmatprep.subr.mxu0 0.0
      %7402 = vmatpush1.msra.mxu0 0.0
      %7403 = vmatprep.subr.mxu0 0.0
      %7404 = vmatpush1.msra.mxu0 0.0
      %7405 = vmatprep.subr.mxu0 0.0
      %7406 = vmatpush1.msra.mxu0 0.0
      %7407 = vmatprep.subr.mxu0 0.0
      %7408 = vmatpush1.msra.mxu0 0.0
      %7409 = vmatprep.subr.mxu0 0.0
      %7410 = vmatpush1.msra.mxu0 0.0
      %7411 = vmatprep.subr.mxu0 0.0
      %7412 = vmatpush1.msra.mxu0 0.0
      %7413 = vmatprep.subr.mxu0 0.0
      %7414 = vmatpush1.msra.mxu0 0.0
      %7415 = vmatprep.subr.mxu0 0.0
      %7416 = vmatpush1.msra.mxu0 0.0
      %7417 = vmatprep.subr.mxu0 0.0
      %7418 = vmatpush1.msra.mxu0 0.0
      %7419 = vmatprep.subr.mxu0 0.0
      %7420 = vmatpush1.msra.mxu0 0.0
      %7421 = vmatprep.subr.mxu0 0.0
      %7422 = vmatpush1.msra.mxu0 0.0
      %7423 = vmatprep.subr.mxu0 0.0
      %7424 = vmatpush1.msra.mxu0 0.0
      %7425 = vmatprep.subr.mxu0 0.0
      %7426 = vmatpush1.msra.mxu0 0.0
      %7427 = vmatprep.subr.mxu0 0.0
      %7428 = vmatpush1.msra.mxu0 0.0
      %7429 = vmatprep.subr.mxu0 0.0
      %7430 = vmatpush1.msra.mxu0 0.0
      %7431 = vmatprep.subr.mxu0 0.0
      %7432 = vmatpush1.msra.mxu0 0.0
      %7433 = vmatprep.mubr.f32.mxu0 0.0
      %v7434 = vand.u32 %v7325, 4294901760
      %v7435 = vsub.f32 %v7325, %v7434
      %v7436 = vand.u32 %v7435, 4294901760
      %v7437 = vsub.f32 %v7435, %v7436
      %v7438 = vand.u32 %v7437, 4294901760
      %7439 = vmatmul.mubr.f32.gmra.mrb[0].mxu0 %v7438
      %v7440 = vpop.f32.mrb[0].mxu0
      %v7441 = vadd.f32 %v7351, %v7440
      %v7442 = vpop.f32.mrb[0].mxu0
      %7443 = vmatprep.mubr.f32.mxu0 0.0
      %v7444 = vand.u32 %v7331, 4294901760
      %v7445 = vsub.f32 %v7331, %v7444
      %v7446 = vand.u32 %v7445, 4294901760
      %v7447 = vsub.f32 %v7445, %v7446
      %v7448 = vand.u32 %v7447, 4294901760
      %7449 = vmatmul.mubr.f32.gmra.mrb[0].mxu0 %v7448
      %v7450 = vpop.f32.mrb[0].mxu0
      %v7451 = vadd.f32 %v7351, %v7450
      %v7452 = vpop.f32.mrb[0].mxu0
      %7453 = vdwg.mxu0
      %7454 = vmatprep.subr.mxu0 0.0
      %v7455 = vand.u32 %v7334, 4294901760
      %v7456 = vsub.f32 %v7334, %v7455
      %v7457 = vand.u32 %v7456, 4294901760
      %v7458 = vsub.f32 %v7456, %v7457
      %v7459 = vand.u32 %v7458, 4294901760
      %7460 = vmatpush1.msra.mxu0 %v7459
      %7461 = vmatprep.subr.mxu0 0.0
      %v7462 = vand.u32 %v7335, 4294901760
      %v7463 = vsub.f32 %v7335, %v7462
      %v7464 = vand.u32 %v7463, 4294901760
      %v7465 = vsub.f32 %v7463, %v7464
      %v7466 = vand.u32 %v7465, 4294901760
      %7467 = vmatpush1.msra.mxu0 %v7466
      %7468 = vmatprep.subr.mxu0 0.0
      %v7469 = vand.u32 %v7336, 4294901760
      %v7470 = vsub.f32 %v7336, %v7469
      %v7471 = vand.u32 %v7470, 4294901760
      %v7472 = vsub.f32 %v7470, %v7471
      %v7473 = vand.u32 %v7472, 4294901760
      %7474 = vmatpush1.msra.mxu0 %v7473
      %7475 = vmatprep.subr.mxu0 0.0
      %v7476 = vand.u32 %v7337, 4294901760
      %v7477 = vsub.f32 %v7337, %v7476
      %v7478 = vand.u32 %v7477, 4294901760
      %v7479 = vsub.f32 %v7477, %v7478
      %v7480 = vand.u32 %v7479, 4294901760
      %7481 = vmatpush1.msra.mxu0 %v7480
      %7482 = vmatprep.subr.mxu0 0.0
      %v7483 = vand.u32 %v7338, 4294901760
      %v7484 = vsub.f32 %v7338, %v7483
      %v7485 = vand.u32 %v7484, 4294901760
      %v7486 = vsub.f32 %v7484, %v7485
      %v7487 = vand.u32 %v7486, 4294901760
      %7488 = vmatpush1.msra.mxu0 %v7487
      %7489 = vmatprep.subr.mxu0 0.0
      %v7490 = vand.u32 %v7339, 4294901760
      %v7491 = vsub.f32 %v7339, %v7490
      %v7492 = vand.u32 %v7491, 4294901760
      %v7493 = vsub.f32 %v7491, %v7492
      %v7494 = vand.u32 %v7493, 4294901760
      %7495 = vmatpush1.msra.mxu0 %v7494
      %7496 = vmatprep.subr.mxu0 0.0
      %v7497 = vand.u32 %v7340, 4294901760
      %v7498 = vsub.f32 %v7340, %v7497
      %v7499 = vand.u32 %v7498, 4294901760
      %v7500 = vsub.f32 %v7498, %v7499
      %v7501 = vand.u32 %v7500, 4294901760
      %7502 = vmatpush1.msra.mxu0 %v7501
      %7503 = vmatprep.subr.mxu0 0.0
      %v7504 = vand.u32 %v7341, 4294901760
      %v7505 = vsub.f32 %v7341, %v7504
      %v7506 = vand.u32 %v7505, 4294901760
      %v7507 = vsub.f32 %v7505, %v7506
      %v7508 = vand.u32 %v7507, 4294901760
      %7509 = vmatpush1.msra.mxu0 %v7508
      %7510 = vmatprep.subr.mxu0 0.0
      %v7511 = vand.u32 %v7342, 4294901760
      %v7512 = vsub.f32 %v7342, %v7511
      %v7513 = vand.u32 %v7512, 4294901760
      %v7514 = vsub.f32 %v7512, %v7513
      %v7515 = vand.u32 %v7514, 4294901760
      %7516 = vmatpush1.msra.mxu0 %v7515
      %7517 = vmatprep.subr.mxu0 0.0
      %v7518 = vand.u32 %v7343, 4294901760
      %v7519 = vsub.f32 %v7343, %v7518
      %v7520 = vand.u32 %v7519, 4294901760
      %v7521 = vsub.f32 %v7519, %v7520
      %v7522 = vand.u32 %v7521, 4294901760
      %7523 = vmatpush1.msra.mxu0 %v7522
      %7524 = vmatprep.subr.mxu0 0.0
      %v7525 = vand.u32 %v7344, 4294901760
      %v7526 = vsub.f32 %v7344, %v7525
      %v7527 = vand.u32 %v7526, 4294901760
      %v7528 = vsub.f32 %v7526, %v7527
      %v7529 = vand.u32 %v7528, 4294901760
      %7530 = vmatpush1.msra.mxu0 %v7529
      %7531 = vmatprep.subr.mxu0 0.0
      %v7532 = vand.u32 %v7345, 4294901760
      %v7533 = vsub.f32 %v7345, %v7532
      %v7534 = vand.u32 %v7533, 4294901760
      %v7535 = vsub.f32 %v7533, %v7534
      %v7536 = vand.u32 %v7535, 4294901760
      %7537 = vmatpush1.msra.mxu0 %v7536
      %7538 = vmatprep.subr.mxu0 0.0
      %v7539 = vand.u32 %v7346, 4294901760
      %v7540 = vsub.f32 %v7346, %v7539
      %v7541 = vand.u32 %v7540, 4294901760
      %v7542 = vsub.f32 %v7540, %v7541
      %v7543 = vand.u32 %v7542, 4294901760
      %7544 = vmatpush1.msra.mxu0 %v7543
      %7545 = vmatprep.subr.mxu0 0.0
      %v7546 = vand.u32 %v7347, 4294901760
      %v7547 = vsub.f32 %v7347, %v7546
      %v7548 = vand.u32 %v7547, 4294901760
      %v7549 = vsub.f32 %v7547, %v7548
      %v7550 = vand.u32 %v7549, 4294901760
      %7551 = vmatpush1.msra.mxu0 %v7550
      %7552 = vmatprep.subr.mxu0 0.0
      %v7553 = vand.u32 %v7348, 4294901760
      %v7554 = vsub.f32 %v7348, %v7553
      %v7555 = vand.u32 %v7554, 4294901760
      %v7556 = vsub.f32 %v7554, %v7555
      %v7557 = vand.u32 %v7556, 4294901760
      %7558 = vmatpush1.msra.mxu0 %v7557
      %7559 = vmatprep.subr.mxu0 0.0
      %v7560 = vand.u32 %v7349, 4294901760
      %v7561 = vsub.f32 %v7349, %v7560
      %v7562 = vand.u32 %v7561, 4294901760
      %v7563 = vsub.f32 %v7561, %v7562
      %v7564 = vand.u32 %v7563, 4294901760
      %7565 = vmatpush1.msra.mxu0 %v7564
      %7566 = vmatprep.subr.mxu0 0.0
      %7567 = vmatpush1.msra.mxu0 0.0
      %7568 = vmatprep.subr.mxu0 0.0
      %7569 = vmatpush1.msra.mxu0 0.0
      %7570 = vmatprep.subr.mxu0 0.0
      %7571 = vmatpush1.msra.mxu0 0.0
      %7572 = vmatprep.subr.mxu0 0.0
      %7573 = vmatpush1.msra.mxu0 0.0
      %7574 = vmatprep.subr.mxu0 0.0
      %7575 = vmatpush1.msra.mxu0 0.0
      %7576 = vmatprep.subr.mxu0 0.0
      %7577 = vmatpush1.msra.mxu0 0.0
      %7578 = vmatprep.subr.mxu0 0.0
      %7579 = vmatpush1.msra.mxu0 0.0
      %7580 = vmatprep.subr.mxu0 0.0
      %7581 = vmatpush1.msra.mxu0 0.0
      %7582 = vmatprep.subr.mxu0 0.0
      %7583 = vmatpush1.msra.mxu0 0.0
      %7584 = vmatprep.subr.mxu0 0.0
      %7585 = vmatpush1.msra.mxu0 0.0
      %7586 = vmatprep.subr.mxu0 0.0
      %7587 = vmatpush1.msra.mxu0 0.0
      %7588 = vmatprep.subr.mxu0 0.0
      %7589 = vmatpush1.msra.mxu0 0.0
      %7590 = vmatprep.subr.mxu0 0.0
      %7591 = vmatpush1.msra.mxu0 0.0
      %7592 = vmatprep.subr.mxu0 0.0
      %7593 = vmatpush1.msra.mxu0 0.0
      %7594 = vmatprep.subr.mxu0 0.0
      %7595 = vmatpush1.msra.mxu0 0.0
      %7596 = vmatprep.subr.mxu0 0.0
      %7597 = vmatpush1.msra.mxu0 0.0
      %7598 = vmatprep.mubr.f32.mxu0 0.0
      %v7599 = vand.u32 %v7325, 4294901760
      %7600 = vmatmul.mubr.f32.gmra.mrb[0].mxu0 %v7599
      %v7601 = vpop.f32.mrb[0].mxu0
      %v7602 = vadd.f32 %v7441, %v7601
      %v7603 = vpop.f32.mrb[0].mxu0
      %7604 = vmatprep.mubr.f32.mxu0 0.0
      %v7605 = vand.u32 %v7331, 4294901760
      %7606 = vmatmul.mubr.f32.gmra.mrb[0].mxu0 %v7605
      %v7607 = vpop.f32.mrb[0].mxu0
      %v7608 = vadd.f32 %v7451, %v7607
      %v7609 = vpop.f32.mrb[0].mxu0
      %7610 = vdwg.mxu0
      %7611 = vmatprep.subr.mxu0 0.0
      %v7612 = vand.u32 %v7334, 4294901760
      %v7613 = vsub.f32 %v7334, %v7612
      %7614 = vmatpush1.msra.mxu0 %v7613
      %7615 = vmatprep.subr.mxu0 0.0
      %v7616 = vand.u32 %v7335, 4294901760
      %v7617 = vsub.f32 %v7335, %v7616
      %7618 = vmatpush1.msra.mxu0 %v7617
      %7619 = vmatprep.subr.mxu0 0.0
      %v7620 = vand.u32 %v7336, 4294901760
      %v7621 = vsub.f32 %v7336, %v7620
      %7622 = vmatpush1.msra.mxu0 %v7621
      %7623 = vmatprep.subr.mxu0 0.0
      %v7624 = vand.u32 %v7337, 4294901760
      %v7625 = vsub.f32 %v7337, %v7624
      %7626 = vmatpush1.msra.mxu0 %v7625
      %7627 = vmatprep.subr.mxu0 0.0
      %v7628 = vand.u32 %v7338, 4294901760
      %v7629 = vsub.f32 %v7338, %v7628
      %7630 = vmatpush1.msra.mxu0 %v7629
      %7631 = vmatprep.subr.mxu0 0.0
      %v7632 = vand.u32 %v7339, 4294901760
      %v7633 = vsub.f32 %v7339, %v7632
      %7634 = vmatpush1.msra.mxu0 %v7633
      %7635 = vmatprep.subr.mxu0 0.0
      %v7636 = vand.u32 %v7340, 4294901760
      %v7637 = vsub.f32 %v7340, %v7636
      %7638 = vmatpush1.msra.mxu0 %v7637
      %7639 = vmatprep.subr.mxu0 0.0
      %v7640 = vand.u32 %v7341, 4294901760
      %v7641 = vsub.f32 %v7341, %v7640
      %7642 = vmatpush1.msra.mxu0 %v7641
      %7643 = vmatprep.subr.mxu0 0.0
      %v7644 = vand.u32 %v7342, 4294901760
      %v7645 = vsub.f32 %v7342, %v7644
      %7646 = vmatpush1.msra.mxu0 %v7645
      %7647 = vmatprep.subr.mxu0 0.0
      %v7648 = vand.u32 %v7343, 4294901760
      %v7649 = vsub.f32 %v7343, %v7648
      %7650 = vmatpush1.msra.mxu0 %v7649
      %7651 = vmatprep.subr.mxu0 0.0
      %v7652 = vand.u32 %v7344, 4294901760
      %v7653 = vsub.f32 %v7344, %v7652
      %7654 = vmatpush1.msra.mxu0 %v7653
      %7655 = vmatprep.subr.mxu0 0.0
      %v7656 = vand.u32 %v7345, 4294901760
      %v7657 = vsub.f32 %v7345, %v7656
      %7658 = vmatpush1.msra.mxu0 %v7657
      %7659 = vmatprep.subr.mxu0 0.0
      %v7660 = vand.u32 %v7346, 4294901760
      %v7661 = vsub.f32 %v7346, %v7660
      %7662 = vmatpush1.msra.mxu0 %v7661
      %7663 = vmatprep.subr.mxu0 0.0
      %v7664 = vand.u32 %v7347, 4294901760
      %v7665 = vsub.f32 %v7347, %v7664
      %7666 = vmatpush1.msra.mxu0 %v7665
      %7667 = vmatprep.subr.mxu0 0.0
      %v7668 = vand.u32 %v7348, 4294901760
      %v7669 = vsub.f32 %v7348, %v7668
      %7670 = vmatpush1.msra.mxu0 %v7669
      %7671 = vmatprep.subr.mxu0 0.0
      %v7672 = vand.u32 %v7349, 4294901760
      %v7673 = vsub.f32 %v7349, %v7672
      %7674 = vmatpush1.msra.mxu0 %v7673
      %7675 = vmatprep.subr.mxu0 0.0
      %7676 = vmatpush1.msra.mxu0 0.0
      %7677 = vmatprep.subr.mxu0 0.0
      %7678 = vmatpush1.msra.mxu0 0.0
      %7679 = vmatprep.subr.mxu0 0.0
      %7680 = vmatpush1.msra.mxu0 0.0
      %7681 = vmatprep.subr.mxu0 0.0
      %7682 = vmatpush1.msra.mxu0 0.0
      %7683 = vmatprep.subr.mxu0 0.0
      %7684 = vmatpush1.msra.mxu0 0.0
      %7685 = vmatprep.subr.mxu0 0.0
      %7686 = vmatpush1.msra.mxu0 0.0
      %7687 = vmatprep.subr.mxu0 0.0
      %7688 = vmatpush1.msra.mxu0 0.0
      %7689 = vmatprep.subr.mxu0 0.0
      %7690 = vmatpush1.msra.mxu0 0.0
      %7691 = vmatprep.subr.mxu0 0.0
      %7692 = vmatpush1.msra.mxu0 0.0
      %7693 = vmatprep.subr.mxu0 0.0
      %7694 = vmatpush1.msra.mxu0 0.0
      %7695 = vmatprep.subr.mxu0 0.0
      %7696 = vmatpush1.msra.mxu0 0.0
      %7697 = vmatprep.subr.mxu0 0.0
      %7698 = vmatpush1.msra.mxu0 0.0
      %7699 = vmatprep.subr.mxu0 0.0
      %7700 = vmatpush1.msra.mxu0 0.0
      %7701 = vmatprep.subr.mxu0 0.0
      %7702 = vmatpush1.msra.mxu0 0.0
      %7703 = vmatprep.subr.mxu0 0.0
      %7704 = vmatpush1.msra.mxu0 0.0
      %7705 = vmatprep.subr.mxu0 0.0
      %7706 = vmatpush1.msra.mxu0 0.0
      %7707 = vmatprep.mubr.f32.mxu0 0.0
      %v7708 = vand.u32 %v7325, 4294901760
      %v7709 = vsub.f32 %v7325, %v7708
      %7710 = vmatmul.mubr.f32.gmra.mrb[0].mxu0 %v7709
      %v7711 = vpop.f32.mrb[0].mxu0
      %v7712 = vadd.f32 %v7602, %v7711
      %v7713 = vpop.f32.mrb[0].mxu0
      %7714 = vmatprep.mubr.f32.mxu0 0.0
      %v7715 = vand.u32 %v7331, 4294901760
      %v7716 = vsub.f32 %v7331, %v7715
      %7717 = vmatmul.mubr.f32.gmra.mrb[0].mxu0 %v7716
      %v7718 = vpop.f32.mrb[0].mxu0
      %v7719 = vadd.f32 %v7608, %v7718
      %v7720 = vpop.f32.mrb[0].mxu0
      %7721 = vdwg.mxu0
      %7722 = vmatprep.subr.mxu0 0.0
      %v7723 = vand.u32 %v7334, 4294901760
      %7724 = vmatpush1.msra.mxu0 %v7723
      %7725 = vmatprep.subr.mxu0 0.0
      %v7726 = vand.u32 %v7335, 4294901760
      %7727 = vmatpush1.msra.mxu0 %v7726
      %7728 = vmatprep.subr.mxu0 0.0
      %v7729 = vand.u32 %v7336, 4294901760
      %7730 = vmatpush1.msra.mxu0 %v7729
      %7731 = vmatprep.subr.mxu0 0.0
      %v7732 = vand.u32 %v7337, 4294901760
      %7733 = vmatpush1.msra.mxu0 %v7732
      %7734 = vmatprep.subr.mxu0 0.0
      %v7735 = vand.u32 %v7338, 4294901760
      %7736 = vmatpush1.msra.mxu0 %v7735
      %7737 = vmatprep.subr.mxu0 0.0
      %v7738 = vand.u32 %v7339, 4294901760
      %7739 = vmatpush1.msra.mxu0 %v7738
      %7740 = vmatprep.subr.mxu0 0.0
      %v7741 = vand.u32 %v7340, 4294901760
      %7742 = vmatpush1.msra.mxu0 %v7741
      %7743 = vmatprep.subr.mxu0 0.0
      %v7744 = vand.u32 %v7341, 4294901760
      %7745 = vmatpush1.msra.mxu0 %v7744
      %7746 = vmatprep.subr.mxu0 0.0
      %v7747 = vand.u32 %v7342, 4294901760
      %7748 = vmatpush1.msra.mxu0 %v7747
      %7749 = vmatprep.subr.mxu0 0.0
      %v7750 = vand.u32 %v7343, 4294901760
      %7751 = vmatpush1.msra.mxu0 %v7750
      %7752 = vmatprep.subr.mxu0 0.0
      %v7753 = vand.u32 %v7344, 4294901760
      %7754 = vmatpush1.msra.mxu0 %v7753
      %7755 = vmatprep.subr.mxu0 0.0
      %v7756 = vand.u32 %v7345, 4294901760
      %7757 = vmatpush1.msra.mxu0 %v7756
      %7758 = vmatprep.subr.mxu0 0.0
      %v7759 = vand.u32 %v7346, 4294901760
      %7760 = vmatpush1.msra.mxu0 %v7759
      %7761 = vmatprep.subr.mxu0 0.0
      %v7762 = vand.u32 %v7347, 4294901760
      %7763 = vmatpush1.msra.mxu0 %v7762
      %7764 = vmatprep.subr.mxu0 0.0
      %v7765 = vand.u32 %v7348, 4294901760
      %7766 = vmatpush1.msra.mxu0 %v7765
      %7767 = vmatprep.subr.mxu0 0.0
      %v7768 = vand.u32 %v7349, 4294901760
      %7769 = vmatpush1.msra.mxu0 %v7768
      %7770 = vmatprep.subr.mxu0 0.0
      %7771 = vmatpush1.msra.mxu0 0.0
      %7772 = vmatprep.subr.mxu0 0.0
      %7773 = vmatpush1.msra.mxu0 0.0
      %7774 = vmatprep.subr.mxu0 0.0
      %7775 = vmatpush1.msra.mxu0 0.0
      %7776 = vmatprep.subr.mxu0 0.0
      %7777 = vmatpush1.msra.mxu0 0.0
      %7778 = vmatprep.subr.mxu0 0.0
      %7779 = vmatpush1.msra.mxu0 0.0
      %7780 = vmatprep.subr.mxu0 0.0
      %7781 = vmatpush1.msra.mxu0 0.0
      %7782 = vmatprep.subr.mxu0 0.0
      %7783 = vmatpush1.msra.mxu0 0.0
      %7784 = vmatprep.subr.mxu0 0.0
      %7785 = vmatpush1.msra.mxu0 0.0
      %7786 = vmatprep.subr.mxu0 0.0
      %7787 = vmatpush1.msra.mxu0 0.0
      %7788 = vmatprep.subr.mxu0 0.0
      %7789 = vmatpush1.msra.mxu0 0.0
      %7790 = vmatprep.subr.mxu0 0.0
      %7791 = vmatpush1.msra.mxu0 0.0
      %7792 = vmatprep.subr.mxu0 0.0
      %7793 = vmatpush1.msra.mxu0 0.0
      %7794 = vmatprep.subr.mxu0 0.0
      %7795 = vmatpush1.msra.mxu0 0.0
      %7796 = vmatprep.subr.mxu0 0.0
      %7797 = vmatpush1.msra.mxu0 0.0
      %7798 = vmatprep.subr.mxu0 0.0
      %7799 = vmatpush1.msra.mxu0 0.0
      %7800 = vmatprep.subr.mxu0 0.0
      %7801 = vmatpush1.msra.mxu0 0.0
      %7802 = vmatprep.mubr.f32.mxu0 0.0
      %v7803 = vand.u32 %v7325, 4294901760
      %v7804 = vsub.f32 %v7325, %v7803
      %v7805 = vand.u32 %v7804, 4294901760
      %7806 = vmatmul.mubr.f32.gmra.mrb[0].mxu0 %v7805
      %v7807 = vpop.f32.mrb[0].mxu0
      %v7808 = vadd.f32 %v7712, %v7807
      %v7809 = vpop.f32.mrb[0].mxu0
      %7810 = vmatprep.mubr.f32.mxu0 0.0
      %v7811 = vand.u32 %v7331, 4294901760
      %v7812 = vsub.f32 %v7331, %v7811
      %v7813 = vand.u32 %v7812, 4294901760
      %7814 = vmatmul.mubr.f32.gmra.mrb[0].mxu0 %v7813
      %v7815 = vpop.f32.mrb[0].mxu0
      %v7816 = vadd.f32 %v7719, %v7815
      %v7817 = vpop.f32.mrb[0].mxu0
      %7818 = vdwg.mxu0
      %7819 = vmatprep.subr.mxu0 0.0
      %v7820 = vand.u32 %v7334, 4294901760
      %v7821 = vsub.f32 %v7334, %v7820
      %v7822 = vand.u32 %v7821, 4294901760
      %7823 = vmatpush1.msra.mxu0 %v7822
      %7824 = vmatprep.subr.mxu0 0.0
      %v7825 = vand.u32 %v7335, 4294901760
      %v7826 = vsub.f32 %v7335, %v7825
      %v7827 = vand.u32 %v7826, 4294901760
      %7828 = vmatpush1.msra.mxu0 %v7827
      %7829 = vmatprep.subr.mxu0 0.0
      %v7830 = vand.u32 %v7336, 4294901760
      %v7831 = vsub.f32 %v7336, %v7830
      %v7832 = vand.u32 %v7831, 4294901760
      %7833 = vmatpush1.msra.mxu0 %v7832
      %7834 = vmatprep.subr.mxu0 0.0
      %v7835 = vand.u32 %v7337, 4294901760
      %v7836 = vsub.f32 %v7337, %v7835
      %v7837 = vand.u32 %v7836, 4294901760
      %7838 = vmatpush1.msra.mxu0 %v7837
      %7839 = vmatprep.subr.mxu0 0.0
      %v7840 = vand.u32 %v7338, 4294901760
      %v7841 = vsub.f32 %v7338, %v7840
      %v7842 = vand.u32 %v7841, 4294901760
      %7843 = vmatpush1.msra.mxu0 %v7842
      %7844 = vmatprep.subr.mxu0 0.0
      %v7845 = vand.u32 %v7339, 4294901760
      %v7846 = vsub.f32 %v7339, %v7845
      %v7847 = vand.u32 %v7846, 4294901760
      %7848 = vmatpush1.msra.mxu0 %v7847
      %7849 = vmatprep.subr.mxu0 0.0
      %v7850 = vand.u32 %v7340, 4294901760
      %v7851 = vsub.f32 %v7340, %v7850
      %v7852 = vand.u32 %v7851, 4294901760
      %7853 = vmatpush1.msra.mxu0 %v7852
      %7854 = vmatprep.subr.mxu0 0.0
      %v7855 = vand.u32 %v7341, 4294901760
      %v7856 = vsub.f32 %v7341, %v7855
      %v7857 = vand.u32 %v7856, 4294901760
      %7858 = vmatpush1.msra.mxu0 %v7857
      %7859 = vmatprep.subr.mxu0 0.0
      %v7860 = vand.u32 %v7342, 4294901760
      %v7861 = vsub.f32 %v7342, %v7860
      %v7862 = vand.u32 %v7861, 4294901760
      %7863 = vmatpush1.msra.mxu0 %v7862
      %7864 = vmatprep.subr.mxu0 0.0
      %v7865 = vand.u32 %v7343, 4294901760
      %v7866 = vsub.f32 %v7343, %v7865
      %v7867 = vand.u32 %v7866, 4294901760
      %7868 = vmatpush1.msra.mxu0 %v7867
      %7869 = vmatprep.subr.mxu0 0.0
      %v7870 = vand.u32 %v7344, 4294901760
      %v7871 = vsub.f32 %v7344, %v7870
      %v7872 = vand.u32 %v7871, 4294901760
      %7873 = vmatpush1.msra.mxu0 %v7872
      %7874 = vmatprep.subr.mxu0 0.0
      %v7875 = vand.u32 %v7345, 4294901760
      %v7876 = vsub.f32 %v7345, %v7875
      %v7877 = vand.u32 %v7876, 4294901760
      %7878 = vmatpush1.msra.mxu0 %v7877
      %7879 = vmatprep.subr.mxu0 0.0
      %v7880 = vand.u32 %v7346, 4294901760
      %v7881 = vsub.f32 %v7346, %v7880
      %v7882 = vand.u32 %v7881, 4294901760
      %7883 = vmatpush1.msra.mxu0 %v7882
      %7884 = vmatprep.subr.mxu0 0.0
      %v7885 = vand.u32 %v7347, 4294901760
      %v7886 = vsub.f32 %v7347, %v7885
      %v7887 = vand.u32 %v7886, 4294901760
      %7888 = vmatpush1.msra.mxu0 %v7887
      %7889 = vmatprep.subr.mxu0 0.0
      %v7890 = vand.u32 %v7348, 4294901760
      %v7891 = vsub.f32 %v7348, %v7890
      %v7892 = vand.u32 %v7891, 4294901760
      %7893 = vmatpush1.msra.mxu0 %v7892
      %7894 = vmatprep.subr.mxu0 0.0
      %v7895 = vand.u32 %v7349, 4294901760
      %v7896 = vsub.f32 %v7349, %v7895
      %v7897 = vand.u32 %v7896, 4294901760
      %7898 = vmatpush1.msra.mxu0 %v7897
      %7899 = vmatprep.subr.mxu0 0.0
      %7900 = vmatpush1.msra.mxu0 0.0
      %7901 = vmatprep.subr.mxu0 0.0
      %7902 = vmatpush1.msra.mxu0 0.0
      %7903 = vmatprep.subr.mxu0 0.0
      %7904 = vmatpush1.msra.mxu0 0.0
      %7905 = vmatprep.subr.mxu0 0.0
      %7906 = vmatpush1.msra.mxu0 0.0
      %7907 = vmatprep.subr.mxu0 0.0
      %7908 = vmatpush1.msra.mxu0 0.0
      %7909 = vmatprep.subr.mxu0 0.0
      %7910 = vmatpush1.msra.mxu0 0.0
      %7911 = vmatprep.subr.mxu0 0.0
      %7912 = vmatpush1.msra.mxu0 0.0
      %7913 = vmatprep.subr.mxu0 0.0
      %7914 = vmatpush1.msra.mxu0 0.0
      %7915 = vmatprep.subr.mxu0 0.0
      %7916 = vmatpush1.msra.mxu0 0.0
      %7917 = vmatprep.subr.mxu0 0.0
      %7918 = vmatpush1.msra.mxu0 0.0
      %7919 = vmatprep.subr.mxu0 0.0
      %7920 = vmatpush1.msra.mxu0 0.0
      %7921 = vmatprep.subr.mxu0 0.0
      %7922 = vmatpush1.msra.mxu0 0.0
      %7923 = vmatprep.subr.mxu0 0.0
      %7924 = vmatpush1.msra.mxu0 0.0
      %7925 = vmatprep.subr.mxu0 0.0
      %7926 = vmatpush1.msra.mxu0 0.0
      %7927 = vmatprep.subr.mxu0 0.0
      %7928 = vmatpush1.msra.mxu0 0.0
      %7929 = vmatprep.subr.mxu0 0.0
      %7930 = vmatpush1.msra.mxu0 0.0
      %7931 = vmatprep.mubr.f32.mxu0 0.0
      %v7932 = vand.u32 %v7325, 4294901760
      %7933 = vmatmul.mubr.f32.gmra.mrb[0].mxu0 %v7932
      %v7934 = vpop.f32.mrb[0].mxu0
      %v7935 = vadd.f32 %v7808, %v7934
      %v7936 = vpop.f32.mrb[0].mxu0
      %7937 = vmatprep.mubr.f32.mxu0 0.0
      %v7938 = vand.u32 %v7331, 4294901760
      %7939 = vmatmul.mubr.f32.gmra.mrb[0].mxu0 %v7938
      %v7940 = vpop.f32.mrb[0].mxu0
      %v7941 = vadd.f32 %v7816, %v7940
      %v7942 = vpop.f32.mrb[0].mxu0
      %7943 = vdwg.mxu0
      %7944 = vmatprep.subr.mxu0 0.0
      %v7945 = vand.u32 %v7334, 4294901760
      %7946 = vmatpush1.msra.mxu0 %v7945
      %7947 = vmatprep.subr.mxu0 0.0
      %v7948 = vand.u32 %v7335, 4294901760
      %7949 = vmatpush1.msra.mxu0 %v7948
      %7950 = vmatprep.subr.mxu0 0.0
      %v7951 = vand.u32 %v7336, 4294901760
      %7952 = vmatpush1.msra.mxu0 %v7951
      %7953 = vmatprep.subr.mxu0 0.0
      %v7954 = vand.u32 %v7337, 4294901760
      %7955 = vmatpush1.msra.mxu0 %v7954
      %7956 = vmatprep.subr.mxu0 0.0
      %v7957 = vand.u32 %v7338, 4294901760
      %7958 = vmatpush1.msra.mxu0 %v7957
      %7959 = vmatprep.subr.mxu0 0.0
      %v7960 = vand.u32 %v7339, 4294901760
      %7961 = vmatpush1.msra.mxu0 %v7960
      %7962 = vmatprep.subr.mxu0 0.0
      %v7963 = vand.u32 %v7340, 4294901760
      %7964 = vmatpush1.msra.mxu0 %v7963
      %7965 = vmatprep.subr.mxu0 0.0
      %v7966 = vand.u32 %v7341, 4294901760
      %7967 = vmatpush1.msra.mxu0 %v7966
      %7968 = vmatprep.subr.mxu0 0.0
      %v7969 = vand.u32 %v7342, 4294901760
      %7970 = vmatpush1.msra.mxu0 %v7969
      %7971 = vmatprep.subr.mxu0 0.0
      %v7972 = vand.u32 %v7343, 4294901760
      %7973 = vmatpush1.msra.mxu0 %v7972
      %7974 = vmatprep.subr.mxu0 0.0
      %v7975 = vand.u32 %v7344, 4294901760
      %7976 = vmatpush1.msra.mxu0 %v7975
      %7977 = vmatprep.subr.mxu0 0.0
      %v7978 = vand.u32 %v7345, 4294901760
      %7979 = vmatpush1.msra.mxu0 %v7978
      %7980 = vmatprep.subr.mxu0 0.0
      %v7981 = vand.u32 %v7346, 4294901760
      %7982 = vmatpush1.msra.mxu0 %v7981
      %7983 = vmatprep.subr.mxu0 0.0
      %v7984 = vand.u32 %v7347, 4294901760
      %7985 = vmatpush1.msra.mxu0 %v7984
      %7986 = vmatprep.subr.mxu0 0.0
      %v7987 = vand.u32 %v7348, 4294901760
      %7988 = vmatpush1.msra.mxu0 %v7987
      %7989 = vmatprep.subr.mxu0 0.0
      %v7990 = vand.u32 %v7349, 4294901760
      %7991 = vmatpush1.msra.mxu0 %v7990
      %7992 = vmatprep.subr.mxu0 0.0
      %7993 = vmatpush1.msra.mxu0 0.0
      %7994 = vmatprep.subr.mxu0 0.0
      %7995 = vmatpush1.msra.mxu0 0.0
      %7996 = vmatprep.subr.mxu0 0.0
      %7997 = vmatpush1.msra.mxu0 0.0
      %7998 = vmatprep.subr.mxu0 0.0
      %7999 = vmatpush1.msra.mxu0 0.0
      %8000 = vmatprep.subr.mxu0 0.0
      %8001 = vmatpush1.msra.mxu0 0.0
      %8002 = vmatprep.subr.mxu0 0.0
      %8003 = vmatpush1.msra.mxu0 0.0
      %8004 = vmatprep.subr.mxu0 0.0
      %8005 = vmatpush1.msra.mxu0 0.0
      %8006 = vmatprep.subr.mxu0 0.0
      %8007 = vmatpush1.msra.mxu0 0.0
      %8008 = vmatprep.subr.mxu0 0.0
      %8009 = vmatpush1.msra.mxu0 0.0
      %8010 = vmatprep.subr.mxu0 0.0
      %8011 = vmatpush1.msra.mxu0 0.0
      %8012 = vmatprep.subr.mxu0 0.0
      %8013 = vmatpush1.msra.mxu0 0.0
      %8014 = vmatprep.subr.mxu0 0.0
      %8015 = vmatpush1.msra.mxu0 0.0
      %8016 = vmatprep.subr.mxu0 0.0
      %8017 = vmatpush1.msra.mxu0 0.0
      %8018 = vmatprep.subr.mxu0 0.0
      %8019 = vmatpush1.msra.mxu0 0.0
      %8020 = vmatprep.subr.mxu0 0.0
      %8021 = vmatpush1.msra.mxu0 0.0
      %8022 = vmatprep.subr.mxu0 0.0
      %8023 = vmatpush1.msra.mxu0 0.0
      %8024 = vmatprep.mubr.f32.mxu0 0.0
      %v8025 = vand.u32 %v7325, 4294901760
      %8026 = vmatmul.mubr.f32.gmra.mrb[0].mxu0 %v8025
      %v8027 = vpop.f32.mrb[0].mxu0
      %v8028 = vadd.f32 %v7935, %v8027
      %v8029 = vpop.f32.mrb[0].mxu0
      %8030 = vmatprep.mubr.f32.mxu0 0.0
      %v8031 = vand.u32 %v7331, 4294901760
      %8032 = vmatmul.mubr.f32.gmra.mrb[0].mxu0 %v8031
      %v8033 = vpop.f32.mrb[0].mxu0
      %v8034 = vadd.f32 %v7941, %v8033
      %v8035 = vpop.f32.mrb[0].mxu0
      %8036 = vdwg.mxu0
      %v8037 = vmax.f32 %v8028, 0.0
      %v8038 = vmax.f32 %v8034, 0.0
      %vm8039 = vcmask 261120
      %8040 = vst.msk [vmem:[%s365] sm:$0xff] %vm8039, %v8037
      %vm8041 = vcmask 257024
      %8042 = vst.msk [vmem:[%s365 + $0x8] sm:$0xf] %vm8041, %v8038
      %p8043 = scmp.lt.s32.totalorder %s19, 1
      %s8044 = scalar_select %p8043, %s19, 1
      %s8045 = smul.addr %s8044, 2
      %s8046 = smul.addr %s8045, 8
      %s8047 = scalar_lea.vmem %s8, %s8046
      // Predicated region
      $region53: #{path_quality_aware_conv.1} parent=51 // pred_check
        %p8048 = pneg %p225
      $region54: #{path_quality_aware_conv.1} parent=51 // pred_check_branch
        %8050 = sbr.rel (%p8048) target = $region56
      $region55: #{path_quality_aware_conv.1} parent=51 // pred_region
        _
      $region56: #{path_quality_aware_conv.1} parent=51 // pred_fallthru
        _
    $region52: #{path_quality_aware_conv.1} parent=5 // pred_fallthru
      _
    %p8051 = scmp.le.s32.totalorder 2, %s14
    // Predicated region
    $region57: #{path_quality_aware_conv.1} parent=5 // pred_check
      %p8052 = pneg %p8051
    $region58: #{path_quality_aware_conv.1} parent=5 // pred_check_branch
      %8054 = sbr.rel (%p8052) target = $region60
    $region59: #{path_quality_aware_conv.1} parent=5 // pred_region
      %s8055 = ssub.s32 %s14, 2
      // Predicated region
      $region61: #{path_quality_aware_conv.1} parent=59 // pred_check
        %p8056 = pneg %p231
      $region62: #{path_quality_aware_conv.1} parent=59 // pred_check_branch
        %8058 = sbr.rel (%p8056) target = $region64
      $region63: #{path_quality_aware_conv.1} parent=59 // pred_region
        %p8059 = scmp.lt.s32.totalorder %s20, 1
        %s8060 = scalar_select %p8059, %s20, 1
        %s8061 = smul.addr %s8060, 2
        %s8062 = smul.addr %s8061, 8
        %s8063 = scalar_lea.vmem %s8, %s8062
      $region64: #{path_quality_aware_conv.1} parent=59 // pred_fallthru
        _
    $region60: #{path_quality_aware_conv.1} parent=5 // pred_fallthru
      _
  $region6: #{path_quality_aware_conv.1} parent=0 // loop_footer
    %s18 = sadd.s32 1, %s14
  $region7: #{path_quality_aware_conv.1} parent=0 // loop_footer_branch
    %13 = sbr.rel target = $region3
  $region8: #{path_quality_aware_conv.1} parent=0 // loop_exit
    _

</llo_original>
